<compile_context>
chip_gen: v5e
topology: v5e:2x2
jax: 0.10.0
libtpu: 0.0.40
codegen_flags: <defaults>
</compile_context>

<pallas_src>
import functools

import numpy as np
import jax
import jax.numpy as jnp
from jax import lax
from jax.experimental import pallas as pl
from jax.experimental.pallas import tpu as pltpu

embeddingDim = 128
fBase = 32
vocabSize = 1868
BN_EPS = 1e-5

SEQ_LEN = 32                                     # only length compatible with the 4x4 c1/c2 head
H1, W1 = SEQ_LEN // 2, embeddingDim // 2         # conv1 output geometry (16, 64)
K1 = 16                                          # conv1 im2col depth (4*4*1)

# Input geometry (H, W, Cin, Cout, kh, kw, sh, ph) of conv layers 2..5 (sw=2, pw=1 everywhere).
LAYER_GEO = (
    (16, 64, fBase,     fBase * 2, 4, 4, 2, 1),
    (8,  32, fBase * 2, fBase * 4, 4, 4, 2, 1),
    (4,  16, fBase * 4, fBase * 4, 1, 4, 1, 0),
    (4,  8,  fBase * 4, fBase * 4, 1, 4, 1, 0),
)
HF, WF, CF = 4, 4, fBase * 4                     # activation entering the c1/c2 head


def _out_hw(H, W, kh, kw, sh, ph):
    return (H + 2 * ph - kh) // sh + 1, (W + 2 - kw) // 2 + 1


# --------------------------------------------------------------------------
# Fused kernel: conv1..conv5 (+BN+ReLU) and the fused c1|c2 head, all in VMEM
# --------------------------------------------------------------------------

def _fill_padded(pad_ref, act, H, W, ph, C):
    """Write `act` ((H*W, C) value, row = h*W + w) into the zero-padded plane
    `pad_ref` ((Hp*Wp, C) scratch, row = h_pad*(W+2) + w_pad), borders included."""
    Wp = W + 2
    zrow = jnp.zeros((1, C), jnp.float32)
    if ph:
        zfull = jnp.zeros((Wp, C), jnp.float32)
        pad_ref[pl.ds(0, Wp), :] = zfull                        # top padding row
        pad_ref[pl.ds((H + 1) * Wp, Wp), :] = zfull             # bottom padding row
    for h in range(H):
        base = (h + ph) * Wp
        pad_ref[pl.ds(base, 1), :] = zrow                       # left padding column
        pad_ref[pl.ds(base + 1, W), :] = act[h * W:(h + 1) * W, :]
        pad_ref[pl.ds(base + 1 + W, 1), :] = zrow               # right padding column


def _conv_relu(pad_ref, w_ref, shift, H, W, kh, kw, sh, ph):
    """Conv with stride (sh, 2) + BN shift + ReLU.  One MXU matmul per kernel tap;
    the LHS of each tap is gathered with strided-sublane loads straight from the
    padded plane, so no im2col patch matrix is ever materialised."""
    Wp = W + 2
    Ho, Wo = _out_hw(H, W, kh, kw, sh, ph)
    acc = None
    for dh in range(kh):
        for dw in range(kw):
            blocks = [pad_ref[pl.ds((sh * ho + dh) * Wp + dw, Wo, stride=2), :]
                      for ho in range(Ho)]
            x_tap = blocks[0] if len(blocks) == 1 else jnp.concatenate(blocks, axis=0)
            part = jnp.dot(x_tap.astype(jnp.bfloat16), w_ref[dh * kw + dw],
                           preferred_element_type=jnp.float32)
            acc = part if acc is None else acc + part
    return jnp.maximum(acc + shift, 0.0)


def _encoder_kernel(x1_ref, w1_ref, s1_ref, w2_ref, s2_ref, w3_ref, s3_ref,
                    w4_ref, s4_ref, w5_ref, s5_ref, wh_ref, out_ref,
                    pad2, pad3, pad4, pad5):
    # conv1 + BN + ReLU: a single (H1*W1, 16) x (16, fBase) matmul (im2col is host-side).
    a = jnp.dot(x1_ref[0].astype(jnp.bfloat16), w1_ref[...],
                preferred_element_type=jnp.float32)
    a = jnp.maximum(a + s1_ref[...], 0.0)                       # (1024, 32) f32

    layer_refs = ((w2_ref, s2_ref, pad2), (w3_ref, s3_ref, pad3),
                  (w4_ref, s4_ref, pad4), (w5_ref, s5_ref, pad5))
    for (H, W, Cin, _, kh, kw, sh, ph), (w_ref, s_ref, pad_ref) in zip(LAYER_GEO, layer_refs):
        _fill_padded(pad_ref, a, H, W, ph, Cin)
        a = _conv_relu(pad_ref, w_ref, s_ref[...], H, W, kh, kw, sh, ph)

    # fused c1|c2 head: the 4x4 valid conv is a full contraction over the final
    # (HF*WF, CF) activation == one lane-dense (1, 2048) x (2048, n_pad) matmul.
    flat = jnp.concatenate([a[p:p + 1, :] for p in range(HF * WF)], axis=1)
    out_ref[0] = jnp.dot(flat.astype(jnp.bfloat16), wh_ref[...],
                         preferred_element_type=jnp.float32)


def _pallas_encoder(prep, x1, B):
    n_pad = prep["wh"].shape[1]
    w_args = [prep[k] for k in ("w1", "s1", "w2", "s2", "w3", "s3",
                                "w4", "s4", "w5", "s5", "wh")]

    in_specs = [pl.BlockSpec((1, H1 * W1, K1), lambda b: (b, 0, 0))]
    for arr in w_args:                                          # weights: resident, constant index
        in_specs.append(pl.BlockSpec(arr.shape, lambda b, _n=arr.ndim: (0,) * _n))

    def pad_scratch(H, W, Cin, ph):
        rows = (H + 2 * ph) * (W + 2)
        rows = ((rows + 7) // 8) * 8
        return pltpu.VMEM((rows, Cin), jnp.float32)

    scratch = [pad_scratch(H, W, Cin, ph)
               for (H, W, Cin, _, _, _, _, ph) in LAYER_GEO]

    macs = H1 * W1 * K1 * fBase
    for (H, W, Cin, Cout, kh, kw, sh, ph) in LAYER_GEO:
        Ho, Wo = _out_hw(H, W, kh, kw, sh, ph)
        macs += Ho * Wo * kh * kw * Cin * Cout
    macs += HF * WF * CF * n_pad
    bytes_accessed = int(x1.size * x1.dtype.itemsize
                         + sum(int(a.size) * a.dtype.itemsize for a in w_args)
                         + B * n_pad * 4)
    cost = pl.CostEstimate(flops=int(2 * macs * B), transcendentals=0,
                           bytes_accessed=bytes_accessed)

    return pl.pallas_call(
        _encoder_kernel,
        out_shape=jax.ShapeDtypeStruct((B, 1, n_pad), jnp.float32),
        grid=(B,),
        in_specs=in_specs,
        out_specs=pl.BlockSpec((1, 1, n_pad), lambda b: (b, 0, 0)),
        scratch_shapes=scratch,
        compiler_params=pltpu.CompilerParams(dimension_semantics=("parallel",)),
        cost_estimate=cost,
    )(x1, *w_args)


# --------------------------------------------------------------------------
# Parameter preparation: fold BN into weights, arrange MXU-friendly matrices
# --------------------------------------------------------------------------

def prepare_params(params, latent_dim):
    def fold(w, bn):
        g, bt, m, v = bn
        scale = g / jnp.sqrt(v + BN_EPS)
        return w * scale[:, None, None, None], bt - m * scale

    enc = params["enc"]

    # conv1: (fBase, 1, 4, 4) -> (16, fBase) with row = dh*4 + dw (matches host im2col).
    w1_s, sh1 = fold(enc[0][0], enc[0][1])
    w1 = jnp.transpose(w1_s[:, 0], (1, 2, 0)).reshape(K1, fBase).astype(jnp.bfloat16)

    def tap_matrices(w_s):
        co, ci, kh, kw = w_s.shape
        return jnp.transpose(w_s, (2, 3, 1, 0)).reshape(kh * kw, ci, co).astype(jnp.bfloat16)

    mats, shifts = [], []
    for (w, bn, _, _) in enc[1:]:
        w_s, sh = fold(w, bn)
        mats.append(tap_matrices(w_s))
        shifts.append(sh.reshape(1, -1).astype(jnp.float32))

    # fused c1|c2 head, output padded to a lane-dense (multiple of 128) width.
    n_out = 2 * latent_dim
    n_pad = ((n_out + 127) // 128) * 128
    whc = jnp.concatenate([params["c1"], params["c2"]], axis=0)          # (n_out, 128, 4, 4)
    wh = jnp.transpose(whc, (2, 3, 1, 0)).reshape(HF * WF * CF, n_out)
    wh = jnp.pad(wh, ((0, 0), (0, n_pad - n_out))).astype(jnp.bfloat16)

    return dict(table=params["embedding"].astype(jnp.float32),
                w1=w1, s1=sh1.reshape(1, -1).astype(jnp.float32),
                w2=mats[0], s2=shifts[0], w3=mats[1], s3=shifts[1],
                w4=mats[2], s4=shifts[2], w5=mats[3], s5=shifts[3],
                wh=wh)


def encoder_forward(prep, x_idx, latent_dim):
    B, L = x_idx.shape
    if L != SEQ_LEN:
        raise ValueError("the 4x4 c1/c2 head requires sequence length 32")
    # Embedding gather + conv1 im2col are pure layout plumbing done on the XLA side
    # (per review), so the kernel never touches the ~956 KB embedding table.
    emb = jnp.take(prep["table"], x_idx.astype(jnp.int32), axis=0)       # (B, 32, 128)
    embp = jnp.pad(emb, ((0, 0), (1, 1), (1, 1)))
    cols = [embp[:, dh:dh + SEQ_LEN:2, dw:dw + embeddingDim:2]
            for dh in range(4) for dw in range(4)]
    x1 = jnp.stack(cols, axis=-1).reshape(B, H1 * W1, K1)                # (B, 1024, 16) f32

    out = _pallas_encoder(prep, x1, B).reshape(B, -1)                    # (B, n_pad)
    return out[:, :latent_dim], out[:, latent_dim:2 * latent_dim]        # mu, logvar (.squeeze())


# --------------------------------------------------------------------------
# Pure-JAX reference mirroring the kernel numerics (bf16 operands, f32 accumulation)
# --------------------------------------------------------------------------

def _conv_ref(x, w_hwio_bf16, stride, pad):
    return lax.conv_general_dilated(
        x.astype(jnp.bfloat16), w_hwio_bf16,
        window_strides=stride,
        padding=[(pad[0], pad[0]), (pad[1], pad[1])],
        dimension_numbers=("NHWC", "HWIO", "NHWC"),
        preferred_element_type=jnp.float32)


def encoder_forward_ref(params, x_idx):
    b, l = x_idx.shape
    e = params["embedding"][x_idx].reshape(b, l, embeddingDim, 1)        # NHWC
    for (w, (g, bt, m, v), stride, pad) in params["enc"]:
        scale = g / jnp.sqrt(v + BN_EPS)
        shift = bt - m * scale
        w_hwio = jnp.transpose(w * scale[:, None, None, None], (2, 3, 1, 0)).astype(jnp.bfloat16)
        y = _conv_ref(e, w_hwio, stride, pad)
        e = jnp.maximum(y + shift, 0.0)
    c1h = jnp.transpose(params["c1"], (2, 3, 1, 0)).astype(jnp.bfloat16)
    c2h = jnp.transpose(params["c2"], (2, 3, 1, 0)).astype(jnp.bfloat16)
    mu = _conv_ref(e, c1h, (1, 1), (0, 0)).reshape(b, -1)
    logvar = _conv_ref(e, c2h, (1, 1), (0, 0)).reshape(b, -1)
    return mu, logvar


# --------------------------------------------------------------------------
# Parameters
# --------------------------------------------------------------------------

def init_params(key, latent_dim):
    ks = list(jax.random.split(key, 40))

    def nk():
        return ks.pop()

    emb = jax.random.normal(nk(), (vocabSize, embeddingDim), jnp.float32)
    emb = emb.at[0].set(0.0)                                   # padding_idx = 0

    conv_cfg = [
        (1,          fBase,     (4, 4), (2, 2), (1, 1)),
        (fBase,      fBase * 2, (4, 4), (2, 2), (1, 1)),
        (fBase * 2,  fBase * 4, (4, 4), (2, 2), (1, 1)),
        (fBase * 4,  fBase * 4, (1, 4), (1, 2), (0, 1)),
        (fBase * 4,  fBase * 4, (1, 4), (1, 2), (0, 1)),
    ]
    enc = []
    for (cin, cout, k, s, p) in conv_cfg:
        fan_in = cin * k[0] * k[1]
        w = jax.random.normal(nk(), (cout, cin, k[0], k[1]), jnp.float32) / np.sqrt(fan_in)
        gamma = 1.0 + 0.1 * jax.random.normal(nk(), (cout,), jnp.float32)
        beta = 0.1 * jax.random.normal(nk(), (cout,), jnp.float32)
        mean = 0.1 * jax.random.normal(nk(), (cout,), jnp.float32)
        var = 1.0 + 0.5 * jax.random.uniform(nk(), (cout,), jnp.float32)
        enc.append((w, (gamma, beta, mean, var), s, p))

    fan_c = fBase * 4 * 16
    c1 = jax.random.normal(nk(), (latent_dim, fBase * 4, 4, 4), jnp.float32) / np.sqrt(fan_c)
    c2 = jax.random.normal(nk(), (latent_dim, fBase * 4, 4, 4), jnp.float32) / np.sqrt(fan_c)
    return {"embedding": emb, "enc": enc, "c1": c1, "c2": c2}


# --------------------------------------------------------------------------
# main
# --------------------------------------------------------------------------

if __name__ == "__main__":
    latent_dim = 32
    B, L = 2, SEQ_LEN

    key = jax.random.PRNGKey(0)
    pkey, xkey = jax.random.split(key)
    params = init_params(pkey, latent_dim)
    x = jax.random.randint(xkey, (B, L), 0, vocabSize, dtype=jnp.int32)

    prep = prepare_params(params, latent_dim)
    fwd = jax.jit(functools.partial(encoder_forward, latent_dim=latent_dim))
    mu, logvar = fwd(prep, x)
    mu, logvar = jax.block_until_ready((mu, logvar))

    assert mu.shape == (B, latent_dim) and logvar.shape == (B, latent_dim)

    mu_ref, logvar_ref = encoder_forward_ref(params, x)
    np.testing.assert_allclose(np.asarray(mu), np.asarray(mu_ref), rtol=2e-3, atol=2e-3)
    np.testing.assert_allclose(np.asarray(logvar), np.asarray(logvar_ref), rtol=2e-3, atol=2e-3)

    print("KERNEL_OK")
</pallas_src>

<mosaic_0001>
module attributes {stable_mosaic.version = 11 : i64} {
  func.func @_encoder_kernel(%arg0: i32, %arg1: memref<1x1024x16xf32, #tpu.memory_space<vmem>>, %arg2: memref<16x32xbf16, #tpu.memory_space<vmem>>, %arg3: memref<1x32xf32, #tpu.memory_space<vmem>>, %arg4: memref<16x32x64xbf16, #tpu.memory_space<vmem>>, %arg5: memref<1x64xf32, #tpu.memory_space<vmem>>, %arg6: memref<16x64x128xbf16, #tpu.memory_space<vmem>>, %arg7: memref<1x128xf32, #tpu.memory_space<vmem>>, %arg8: memref<4x128x128xbf16, #tpu.memory_space<vmem>>, %arg9: memref<1x128xf32, #tpu.memory_space<vmem>>, %arg10: memref<4x128x128xbf16, #tpu.memory_space<vmem>>, %arg11: memref<1x128xf32, #tpu.memory_space<vmem>>, %arg12: memref<2048x128xbf16, #tpu.memory_space<vmem>>, %arg13: memref<1x1x128xf32, #tpu.memory_space<vmem>>, %arg14: memref<1192x32xf32, #tpu.memory_space<vmem>>, %arg15: memref<344x64xf32, #tpu.memory_space<vmem>>, %arg16: memref<72x128xf32, #tpu.memory_space<vmem>>, %arg17: memref<40x128xf32, #tpu.memory_space<vmem>>) attributes {dimension_semantics = [#tpu.dimension_semantics<parallel>], iteration_bounds = array<i64: 2>, scalar_prefetch = 0 : i64, scratch_operands = 4 : i64, tpu.core_type = #tpu.core_type<tc>, window_params = [{transform_indices = @transform_0, window_bounds = array<i64: 1, 1024, 16>}, {pipeline_mode = #tpu.pipeline_mode<synchronous>, transform_indices = @transform_1, window_bounds = array<i64: 16, 32>}, {pipeline_mode = #tpu.pipeline_mode<synchronous>, transform_indices = @transform_2, window_bounds = array<i64: 1, 32>}, {pipeline_mode = #tpu.pipeline_mode<synchronous>, transform_indices = @transform_3, window_bounds = array<i64: 16, 32, 64>}, {pipeline_mode = #tpu.pipeline_mode<synchronous>, transform_indices = @transform_4, window_bounds = array<i64: 1, 64>}, {pipeline_mode = #tpu.pipeline_mode<synchronous>, transform_indices = @transform_5, window_bounds = array<i64: 16, 64, 128>}, {pipeline_mode = #tpu.pipeline_mode<synchronous>, transform_indices = @transform_6, window_bounds = array<i64: 1, 128>}, {pipeline_mode = #tpu.pipeline_mode<synchronous>, transform_indices = @transform_7, window_bounds = array<i64: 4, 128, 128>}, {pipeline_mode = #tpu.pipeline_mode<synchronous>, transform_indices = @transform_8, window_bounds = array<i64: 1, 128>}, {pipeline_mode = #tpu.pipeline_mode<synchronous>, transform_indices = @transform_9, window_bounds = array<i64: 4, 128, 128>}, {pipeline_mode = #tpu.pipeline_mode<synchronous>, transform_indices = @transform_10, window_bounds = array<i64: 1, 128>}, {pipeline_mode = #tpu.pipeline_mode<synchronous>, transform_indices = @transform_11, window_bounds = array<i64: 2048, 128>}, {transform_indices = @transform_12, window_bounds = array<i64: 1, 1, 128>}]} {
    %c0 = arith.constant 0 : index
    %c0_0 = arith.constant 0 : index
    %c0_1 = arith.constant 0 : index
    %0 = vector.load %arg1[%c0, %c0_0, %c0_1] : memref<1x1024x16xf32, #tpu.memory_space<vmem>>, vector<1x1024x16xf32>
    %1 = vector.shape_cast %0 : vector<1x1024x16xf32> to vector<1024x16xf32>
    %2 = arith.truncf %1 : vector<1024x16xf32> to vector<1024x16xbf16>
    %c0_2 = arith.constant 0 : index
    %c0_3 = arith.constant 0 : index
    %3 = vector.load %arg2[%c0_2, %c0_3] : memref<16x32xbf16, #tpu.memory_space<vmem>>, vector<16x32xbf16>
    %cst = arith.constant dense<0.000000e+00> : vector<1024x32xf32>
    %4 = tpu.matmul %2, %3, %cst {dimension_numbers = #tpu.dot_dimension_numbers<[1], [0], [0], [1], [0, 0, 1, 1], [], []>} : vector<1024x16xbf16>, vector<16x32xbf16>, vector<1024x32xf32> -> vector<1024x32xf32>
    %c0_4 = arith.constant 0 : index
    %c0_5 = arith.constant 0 : index
    %5 = vector.load %arg3[%c0_4, %c0_5] : memref<1x32xf32, #tpu.memory_space<vmem>>, vector<1x32xf32>
    %6 = vector.broadcast %5 : vector<1x32xf32> to vector<1024x32xf32>
    %7 = arith.addf %4, %6 : vector<1024x32xf32>
    %cst_6 = arith.constant 0.000000e+00 : f32
    %8 = vector.broadcast %cst_6 : f32 to vector<1024x32xf32>
    %9 = arith.maximumf %7, %8 : vector<1024x32xf32>
    %cst_7 = arith.constant 0.000000e+00 : f32
    %10 = vector.broadcast %cst_7 : f32 to vector<1x32xf32>
    %cst_8 = arith.constant 0.000000e+00 : f32
    %11 = vector.broadcast %cst_8 : f32 to vector<66x32xf32>
    %c0_9 = arith.constant 0 : index
    %c0_10 = arith.constant 0 : index
    %12 = vector.load %arg14[%c0_9, %c0_10] : memref<1192x32xf32, #tpu.memory_space<vmem>>, vector<66x32xf32>
    tpu.vector_store %arg14[%c0_9, %c0_10], %11 {strides = array<i32>} : memref<1192x32xf32, #tpu.memory_space<vmem>>, vector<66x32xf32>,
    %c1122 = arith.constant 1122 : index
    %c0_11 = arith.constant 0 : index
    %13 = vector.load %arg14[%c1122, %c0_11] : memref<1192x32xf32, #tpu.memory_space<vmem>>, vector<66x32xf32>
    tpu.vector_store %arg14[%c1122, %c0_11], %11 {strides = array<i32>} : memref<1192x32xf32, #tpu.memory_space<vmem>>, vector<66x32xf32>,
    %c66 = arith.constant 66 : index
    %c0_12 = arith.constant 0 : index
    %14 = vector.load %arg14[%c66, %c0_12] : memref<1192x32xf32, #tpu.memory_space<vmem>>, vector<1x32xf32>
    tpu.vector_store %arg14[%c66, %c0_12], %10 {strides = array<i32>} : memref<1192x32xf32, #tpu.memory_space<vmem>>, vector<1x32xf32>,
    %15 = vector.extract_strided_slice %9 {offsets = [0, 0], sizes = [64, 32], strides = [1, 1]} : vector<1024x32xf32> to vector<64x32xf32>
    %c67 = arith.constant 67 : index
    %c0_13 = arith.constant 0 : index
    %16 = vector.load %arg14[%c67, %c0_13] : memref<1192x32xf32, #tpu.memory_space<vmem>>, vector<64x32xf32>
    tpu.vector_store %arg14[%c67, %c0_13], %15 {strides = array<i32>} : memref<1192x32xf32, #tpu.memory_space<vmem>>, vector<64x32xf32>,
    %c131 = arith.constant 131 : index
    %c0_14 = arith.constant 0 : index
    %17 = vector.load %arg14[%c131, %c0_14] : memref<1192x32xf32, #tpu.memory_space<vmem>>, vector<1x32xf32>
    tpu.vector_store %arg14[%c131, %c0_14], %10 {strides = array<i32>} : memref<1192x32xf32, #tpu.memory_space<vmem>>, vector<1x32xf32>,
    %c132 = arith.constant 132 : index
    %c0_15 = arith.constant 0 : index
    %18 = vector.load %arg14[%c132, %c0_15] : memref<1192x32xf32, #tpu.memory_space<vmem>>, vector<1x32xf32>
    tpu.vector_store %arg14[%c132, %c0_15], %10 {strides = array<i32>} : memref<1192x32xf32, #tpu.memory_space<vmem>>, vector<1x32xf32>,
    %19 = vector.extract_strided_slice %9 {offsets = [64, 0], sizes = [64, 32], strides = [1, 1]} : vector<1024x32xf32> to vector<64x32xf32>
    %c133 = arith.constant 133 : index
    %c0_16 = arith.constant 0 : index
    %20 = vector.load %arg14[%c133, %c0_16] : memref<1192x32xf32, #tpu.memory_space<vmem>>, vector<64x32xf32>
    tpu.vector_store %arg14[%c133, %c0_16], %19 {strides = array<i32>} : memref<1192x32xf32, #tpu.memory_space<vmem>>, vector<64x32xf32>,
    %c197 = arith.constant 197 : index
    %c0_17 = arith.constant 0 : index
    %21 = vector.load %arg14[%c197, %c0_17] : memref<1192x32xf32, #tpu.memory_space<vmem>>, vector<1x32xf32>
    tpu.vector_store %arg14[%c197, %c0_17], %10 {strides = array<i32>} : memref<1192x32xf32, #tpu.memory_space<vmem>>, vector<1x32xf32>,
    %c198 = arith.constant 198 : index
    %c0_18 = arith.constant 0 : index
    %22 = vector.load %arg14[%c198, %c0_18] : memref<1192x32xf32, #tpu.memory_space<vmem>>, vector<1x32xf32>
    tpu.vector_store %arg14[%c198, %c0_18], %10 {strides = array<i32>} : memref<1192x32xf32, #tpu.memory_space<vmem>>, vector<1x32xf32>,
    %23 = vector.extract_strided_slice %9 {offsets = [128, 0], sizes = [64, 32], strides = [1, 1]} : vector<1024x32xf32> to vector<64x32xf32>
    %c199 = arith.constant 199 : index
    %c0_19 = arith.constant 0 : index
    %24 = vector.load %arg14[%c199, %c0_19] : memref<1192x32xf32, #tpu.memory_space<vmem>>, vector<64x32xf32>
    tpu.vector_store %arg14[%c199, %c0_19], %23 {strides = array<i32>} : memref<1192x32xf32, #tpu.memory_space<vmem>>, vector<64x32xf32>,
    %c263 = arith.constant 263 : index
    %c0_20 = arith.constant 0 : index
    %25 = vector.load %arg14[%c263, %c0_20] : memref<1192x32xf32, #tpu.memory_space<vmem>>, vector<1x32xf32>
    tpu.vector_store %arg14[%c263, %c0_20], %10 {strides = array<i32>} : memref<1192x32xf32, #tpu.memory_space<vmem>>, vector<1x32xf32>,
    %c264 = arith.constant 264 : index
    %c0_21 = arith.constant 0 : index
    %26 = vector.load %arg14[%c264, %c0_21] : memref<1192x32xf32, #tpu.memory_space<vmem>>, vector<1x32xf32>
    tpu.vector_store %arg14[%c264, %c0_21], %10 {strides = array<i32>} : memref<1192x32xf32, #tpu.memory_space<vmem>>, vector<1x32xf32>,
    %27 = vector.extract_strided_slice %9 {offsets = [192, 0], sizes = [64, 32], strides = [1, 1]} : vector<1024x32xf32> to vector<64x32xf32>
    %c265 = arith.constant 265 : index
    %c0_22 = arith.constant 0 : index
    %28 = vector.load %arg14[%c265, %c0_22] : memref<1192x32xf32, #tpu.memory_space<vmem>>, vector<64x32xf32>
    tpu.vector_store %arg14[%c265, %c0_22], %27 {strides = array<i32>} : memref<1192x32xf32, #tpu.memory_space<vmem>>, vector<64x32xf32>,
    %c329 = arith.constant 329 : index
    %c0_23 = arith.constant 0 : index
    %29 = vector.load %arg14[%c329, %c0_23] : memref<1192x32xf32, #tpu.memory_space<vmem>>, vector<1x32xf32>
    tpu.vector_store %arg14[%c329, %c0_23], %10 {strides = array<i32>} : memref<1192x32xf32, #tpu.memory_space<vmem>>, vector<1x32xf32>,
    %c330 = arith.constant 330 : index
    %c0_24 = arith.constant 0 : index
    %30 = vector.load %arg14[%c330, %c0_24] : memref<1192x32xf32, #tpu.memory_space<vmem>>, vector<1x32xf32>
    tpu.vector_store %arg14[%c330, %c0_24], %10 {strides = array<i32>} : memref<1192x32xf32, #tpu.memory_space<vmem>>, vector<1x32xf32>,
    %31 = vector.extract_strided_slice %9 {offsets = [256, 0], sizes = [64, 32], strides = [1, 1]} : vector<1024x32xf32> to vector<64x32xf32>
    %c331 = arith.constant 331 : index
    %c0_25 = arith.constant 0 : index
    %32 = vector.load %arg14[%c331, %c0_25] : memref<1192x32xf32, #tpu.memory_space<vmem>>, vector<64x32xf32>
    tpu.vector_store %arg14[%c331, %c0_25], %31 {strides = array<i32>} : memref<1192x32xf32, #tpu.memory_space<vmem>>, vector<64x32xf32>,
    %c395 = arith.constant 395 : index
    %c0_26 = arith.constant 0 : index
    %33 = vector.load %arg14[%c395, %c0_26] : memref<1192x32xf32, #tpu.memory_space<vmem>>, vector<1x32xf32>
    tpu.vector_store %arg14[%c395, %c0_26], %10 {strides = array<i32>} : memref<1192x32xf32, #tpu.memory_space<vmem>>, vector<1x32xf32>,
    %c396 = arith.constant 396 : index
    %c0_27 = arith.constant 0 : index
    %34 = vector.load %arg14[%c396, %c0_27] : memref<1192x32xf32, #tpu.memory_space<vmem>>, vector<1x32xf32>
    tpu.vector_store %arg14[%c396, %c0_27], %10 {strides = array<i32>} : memref<1192x32xf32, #tpu.memory_space<vmem>>, vector<1x32xf32>,
    %35 = vector.extract_strided_slice %9 {offsets = [320, 0], sizes = [64, 32], strides = [1, 1]} : vector<1024x32xf32> to vector<64x32xf32>
    %c397 = arith.constant 397 : index
    %c0_28 = arith.constant 0 : index
    %36 = vector.load %arg14[%c397, %c0_28] : memref<1192x32xf32, #tpu.memory_space<vmem>>, vector<64x32xf32>
    tpu.vector_store %arg14[%c397, %c0_28], %35 {strides = array<i32>} : memref<1192x32xf32, #tpu.memory_space<vmem>>, vector<64x32xf32>,
    %c461 = arith.constant 461 : index
    %c0_29 = arith.constant 0 : index
    %37 = vector.load %arg14[%c461, %c0_29] : memref<1192x32xf32, #tpu.memory_space<vmem>>, vector<1x32xf32>
    tpu.vector_store %arg14[%c461, %c0_29], %10 {strides = array<i32>} : memref<1192x32xf32, #tpu.memory_space<vmem>>, vector<1x32xf32>,
    %c462 = arith.constant 462 : index
    %c0_30 = arith.constant 0 : index
    %38 = vector.load %arg14[%c462, %c0_30] : memref<1192x32xf32, #tpu.memory_space<vmem>>, vector<1x32xf32>
    tpu.vector_store %arg14[%c462, %c0_30], %10 {strides = array<i32>} : memref<1192x32xf32, #tpu.memory_space<vmem>>, vector<1x32xf32>,
    %39 = vector.extract_strided_slice %9 {offsets = [384, 0], sizes = [64, 32], strides = [1, 1]} : vector<1024x32xf32> to vector<64x32xf32>
    %c463 = arith.constant 463 : index
    %c0_31 = arith.constant 0 : index
    %40 = vector.load %arg14[%c463, %c0_31] : memref<1192x32xf32, #tpu.memory_space<vmem>>, vector<64x32xf32>
    tpu.vector_store %arg14[%c463, %c0_31], %39 {strides = array<i32>} : memref<1192x32xf32, #tpu.memory_space<vmem>>, vector<64x32xf32>,
    %c527 = arith.constant 527 : index
    %c0_32 = arith.constant 0 : index
    %41 = vector.load %arg14[%c527, %c0_32] : memref<1192x32xf32, #tpu.memory_space<vmem>>, vector<1x32xf32>
    tpu.vector_store %arg14[%c527, %c0_32], %10 {strides = array<i32>} : memref<1192x32xf32, #tpu.memory_space<vmem>>, vector<1x32xf32>,
    %c528 = arith.constant 528 : index
    %c0_33 = arith.constant 0 : index
    %42 = vector.load %arg14[%c528, %c0_33] : memref<1192x32xf32, #tpu.memory_space<vmem>>, vector<1x32xf32>
    tpu.vector_store %arg14[%c528, %c0_33], %10 {strides = array<i32>} : memref<1192x32xf32, #tpu.memory_space<vmem>>, vector<1x32xf32>,
    %43 = vector.extract_strided_slice %9 {offsets = [448, 0], sizes = [64, 32], strides = [1, 1]} : vector<1024x32xf32> to vector<64x32xf32>
    %c529 = arith.constant 529 : index
    %c0_34 = arith.constant 0 : index
    %44 = vector.load %arg14[%c529, %c0_34] : memref<1192x32xf32, #tpu.memory_space<vmem>>, vector<64x32xf32>
    tpu.vector_store %arg14[%c529, %c0_34], %43 {strides = array<i32>} : memref<1192x32xf32, #tpu.memory_space<vmem>>, vector<64x32xf32>,
    %c593 = arith.constant 593 : index
    %c0_35 = arith.constant 0 : index
    %45 = vector.load %arg14[%c593, %c0_35] : memref<1192x32xf32, #tpu.memory_space<vmem>>, vector<1x32xf32>
    tpu.vector_store %arg14[%c593, %c0_35], %10 {strides = array<i32>} : memref<1192x32xf32, #tpu.memory_space<vmem>>, vector<1x32xf32>,
    %c594 = arith.constant 594 : index
    %c0_36 = arith.constant 0 : index
    %46 = vector.load %arg14[%c594, %c0_36] : memref<1192x32xf32, #tpu.memory_space<vmem>>, vector<1x32xf32>
    tpu.vector_store %arg14[%c594, %c0_36], %10 {strides = array<i32>} : memref<1192x32xf32, #tpu.memory_space<vmem>>, vector<1x32xf32>,
    %47 = vector.extract_strided_slice %9 {offsets = [512, 0], sizes = [64, 32], strides = [1, 1]} : vector<1024x32xf32> to vector<64x32xf32>
    %c595 = arith.constant 595 : index
    %c0_37 = arith.constant 0 : index
    %48 = vector.load %arg14[%c595, %c0_37] : memref<1192x32xf32, #tpu.memory_space<vmem>>, vector<64x32xf32>
    tpu.vector_store %arg14[%c595, %c0_37], %47 {strides = array<i32>} : memref<1192x32xf32, #tpu.memory_space<vmem>>, vector<64x32xf32>,
    %c659 = arith.constant 659 : index
    %c0_38 = arith.constant 0 : index
    %49 = vector.load %arg14[%c659, %c0_38] : memref<1192x32xf32, #tpu.memory_space<vmem>>, vector<1x32xf32>
    tpu.vector_store %arg14[%c659, %c0_38], %10 {strides = array<i32>} : memref<1192x32xf32, #tpu.memory_space<vmem>>, vector<1x32xf32>,
    %c660 = arith.constant 660 : index
    %c0_39 = arith.constant 0 : index
    %50 = vector.load %arg14[%c660, %c0_39] : memref<1192x32xf32, #tpu.memory_space<vmem>>, vector<1x32xf32>
    tpu.vector_store %arg14[%c660, %c0_39], %10 {strides = array<i32>} : memref<1192x32xf32, #tpu.memory_space<vmem>>, vector<1x32xf32>,
    %51 = vector.extract_strided_slice %9 {offsets = [576, 0], sizes = [64, 32], strides = [1, 1]} : vector<1024x32xf32> to vector<64x32xf32>
    %c661 = arith.constant 661 : index
    %c0_40 = arith.constant 0 : index
    %52 = vector.load %arg14[%c661, %c0_40] : memref<1192x32xf32, #tpu.memory_space<vmem>>, vector<64x32xf32>
    tpu.vector_store %arg14[%c661, %c0_40], %51 {strides = array<i32>} : memref<1192x32xf32, #tpu.memory_space<vmem>>, vector<64x32xf32>,
    %c725 = arith.constant 725 : index
    %c0_41 = arith.constant 0 : index
    %53 = vector.load %arg14[%c725, %c0_41] : memref<1192x32xf32, #tpu.memory_space<vmem>>, vector<1x32xf32>
    tpu.vector_store %arg14[%c725, %c0_41], %10 {strides = array<i32>} : memref<1192x32xf32, #tpu.memory_space<vmem>>, vector<1x32xf32>,
    %c726 = arith.constant 726 : index
    %c0_42 = arith.constant 0 : index
    %54 = vector.load %arg14[%c726, %c0_42] : memref<1192x32xf32, #tpu.memory_space<vmem>>, vector<1x32xf32>
    tpu.vector_store %arg14[%c726, %c0_42], %10 {strides = array<i32>} : memref<1192x32xf32, #tpu.memory_space<vmem>>, vector<1x32xf32>,
    %55 = vector.extract_strided_slice %9 {offsets = [640, 0], sizes = [64, 32], strides = [1, 1]} : vector<1024x32xf32> to vector<64x32xf32>
    %c727 = arith.constant 727 : index
    %c0_43 = arith.constant 0 : index
    %56 = vector.load %arg14[%c727, %c0_43] : memref<1192x32xf32, #tpu.memory_space<vmem>>, vector<64x32xf32>
    tpu.vector_store %arg14[%c727, %c0_43], %55 {strides = array<i32>} : memref<1192x32xf32, #tpu.memory_space<vmem>>, vector<64x32xf32>,
    %c791 = arith.constant 791 : index
    %c0_44 = arith.constant 0 : index
    %57 = vector.load %arg14[%c791, %c0_44] : memref<1192x32xf32, #tpu.memory_space<vmem>>, vector<1x32xf32>
    tpu.vector_store %arg14[%c791, %c0_44], %10 {strides = array<i32>} : memref<1192x32xf32, #tpu.memory_space<vmem>>, vector<1x32xf32>,
    %c792 = arith.constant 792 : index
    %c0_45 = arith.constant 0 : index
    %58 = vector.load %arg14[%c792, %c0_45] : memref<1192x32xf32, #tpu.memory_space<vmem>>, vector<1x32xf32>
    tpu.vector_store %arg14[%c792, %c0_45], %10 {strides = array<i32>} : memref<1192x32xf32, #tpu.memory_space<vmem>>, vector<1x32xf32>,
    %59 = vector.extract_strided_slice %9 {offsets = [704, 0], sizes = [64, 32], strides = [1, 1]} : vector<1024x32xf32> to vector<64x32xf32>
    %c793 = arith.constant 793 : index
    %c0_46 = arith.constant 0 : index
    %60 = vector.load %arg14[%c793, %c0_46] : memref<1192x32xf32, #tpu.memory_space<vmem>>, vector<64x32xf32>
    tpu.vector_store %arg14[%c793, %c0_46], %59 {strides = array<i32>} : memref<1192x32xf32, #tpu.memory_space<vmem>>, vector<64x32xf32>,
    %c857 = arith.constant 857 : index
    %c0_47 = arith.constant 0 : index
    %61 = vector.load %arg14[%c857, %c0_47] : memref<1192x32xf32, #tpu.memory_space<vmem>>, vector<1x32xf32>
    tpu.vector_store %arg14[%c857, %c0_47], %10 {strides = array<i32>} : memref<1192x32xf32, #tpu.memory_space<vmem>>, vector<1x32xf32>,
    %c858 = arith.constant 858 : index
    %c0_48 = arith.constant 0 : index
    %62 = vector.load %arg14[%c858, %c0_48] : memref<1192x32xf32, #tpu.memory_space<vmem>>, vector<1x32xf32>
    tpu.vector_store %arg14[%c858, %c0_48], %10 {strides = array<i32>} : memref<1192x32xf32, #tpu.memory_space<vmem>>, vector<1x32xf32>,
    %63 = vector.extract_strided_slice %9 {offsets = [768, 0], sizes = [64, 32], strides = [1, 1]} : vector<1024x32xf32> to vector<64x32xf32>
    %c859 = arith.constant 859 : index
    %c0_49 = arith.constant 0 : index
    %64 = vector.load %arg14[%c859, %c0_49] : memref<1192x32xf32, #tpu.memory_space<vmem>>, vector<64x32xf32>
    tpu.vector_store %arg14[%c859, %c0_49], %63 {strides = array<i32>} : memref<1192x32xf32, #tpu.memory_space<vmem>>, vector<64x32xf32>,
    %c923 = arith.constant 923 : index
    %c0_50 = arith.constant 0 : index
    %65 = vector.load %arg14[%c923, %c0_50] : memref<1192x32xf32, #tpu.memory_space<vmem>>, vector<1x32xf32>
    tpu.vector_store %arg14[%c923, %c0_50], %10 {strides = array<i32>} : memref<1192x32xf32, #tpu.memory_space<vmem>>, vector<1x32xf32>,
    %c924 = arith.constant 924 : index
    %c0_51 = arith.constant 0 : index
    %66 = vector.load %arg14[%c924, %c0_51] : memref<1192x32xf32, #tpu.memory_space<vmem>>, vector<1x32xf32>
    tpu.vector_store %arg14[%c924, %c0_51], %10 {strides = array<i32>} : memref<1192x32xf32, #tpu.memory_space<vmem>>, vector<1x32xf32>,
    %67 = vector.extract_strided_slice %9 {offsets = [832, 0], sizes = [64, 32], strides = [1, 1]} : vector<1024x32xf32> to vector<64x32xf32>
    %c925 = arith.constant 925 : index
    %c0_52 = arith.constant 0 : index
    %68 = vector.load %arg14[%c925, %c0_52] : memref<1192x32xf32, #tpu.memory_space<vmem>>, vector<64x32xf32>
    tpu.vector_store %arg14[%c925, %c0_52], %67 {strides = array<i32>} : memref<1192x32xf32, #tpu.memory_space<vmem>>, vector<64x32xf32>,
    %c989 = arith.constant 989 : index
    %c0_53 = arith.constant 0 : index
    %69 = vector.load %arg14[%c989, %c0_53] : memref<1192x32xf32, #tpu.memory_space<vmem>>, vector<1x32xf32>
    tpu.vector_store %arg14[%c989, %c0_53], %10 {strides = array<i32>} : memref<1192x32xf32, #tpu.memory_space<vmem>>, vector<1x32xf32>,
    %c990 = arith.constant 990 : index
    %c0_54 = arith.constant 0 : index
    %70 = vector.load %arg14[%c990, %c0_54] : memref<1192x32xf32, #tpu.memory_space<vmem>>, vector<1x32xf32>
    tpu.vector_store %arg14[%c990, %c0_54], %10 {strides = array<i32>} : memref<1192x32xf32, #tpu.memory_space<vmem>>, vector<1x32xf32>,
    %71 = vector.extract_strided_slice %9 {offsets = [896, 0], sizes = [64, 32], strides = [1, 1]} : vector<1024x32xf32> to vector<64x32xf32>
    %c991 = arith.constant 991 : index
    %c0_55 = arith.constant 0 : index
    %72 = vector.load %arg14[%c991, %c0_55] : memref<1192x32xf32, #tpu.memory_space<vmem>>, vector<64x32xf32>
    tpu.vector_store %arg14[%c991, %c0_55], %71 {strides = array<i32>} : memref<1192x32xf32, #tpu.memory_space<vmem>>, vector<64x32xf32>,
    %c1055 = arith.constant 1055 : index
    %c0_56 = arith.constant 0 : index
    %73 = vector.load %arg14[%c1055, %c0_56] : memref<1192x32xf32, #tpu.memory_space<vmem>>, vector<1x32xf32>
    tpu.vector_store %arg14[%c1055, %c0_56], %10 {strides = array<i32>} : memref<1192x32xf32, #tpu.memory_space<vmem>>, vector<1x32xf32>,
    %c1056 = arith.constant 1056 : index
    %c0_57 = arith.constant 0 : index
    %74 = vector.load %arg14[%c1056, %c0_57] : memref<1192x32xf32, #tpu.memory_space<vmem>>, vector<1x32xf32>
    tpu.vector_store %arg14[%c1056, %c0_57], %10 {strides = array<i32>} : memref<1192x32xf32, #tpu.memory_space<vmem>>, vector<1x32xf32>,
    %75 = vector.extract_strided_slice %9 {offsets = [960, 0], sizes = [64, 32], strides = [1, 1]} : vector<1024x32xf32> to vector<64x32xf32>
    %c1057 = arith.constant 1057 : index
    %c0_58 = arith.constant 0 : index
    %76 = vector.load %arg14[%c1057, %c0_58] : memref<1192x32xf32, #tpu.memory_space<vmem>>, vector<64x32xf32>
    tpu.vector_store %arg14[%c1057, %c0_58], %75 {strides = array<i32>} : memref<1192x32xf32, #tpu.memory_space<vmem>>, vector<64x32xf32>,
    %c1121 = arith.constant 1121 : index
    %c0_59 = arith.constant 0 : index
    %77 = vector.load %arg14[%c1121, %c0_59] : memref<1192x32xf32, #tpu.memory_space<vmem>>, vector<1x32xf32>
    tpu.vector_store %arg14[%c1121, %c0_59], %10 {strides = array<i32>} : memref<1192x32xf32, #tpu.memory_space<vmem>>, vector<1x32xf32>,
    %c0_60 = arith.constant 0 : index
    %c0_61 = arith.constant 0 : index
    %78 = vector.load %arg5[%c0_60, %c0_61] : memref<1x64xf32, #tpu.memory_space<vmem>>, vector<1x64xf32>
    %c0_62 = arith.constant 0 : index
    %c0_63 = arith.constant 0 : index
    %79 = tpu.strided_load %arg14[%c0_62, %c0_63] {strides = array<i32: 2, 1>} : memref<1192x32xf32, #tpu.memory_space<vmem>>, vector<32x32xf32>
    %c132_64 = arith.constant 132 : index
    %c0_65 = arith.constant 0 : index
    %80 = tpu.strided_load %arg14[%c132_64, %c0_65] {strides = array<i32: 2, 1>} : memref<1192x32xf32, #tpu.memory_space<vmem>>, vector<32x32xf32>
    %c264_66 = arith.constant 264 : index
    %c0_67 = arith.constant 0 : index
    %81 = tpu.strided_load %arg14[%c264_66, %c0_67] {strides = array<i32: 2, 1>} : memref<1192x32xf32, #tpu.memory_space<vmem>>, vector<32x32xf32>
    %c396_68 = arith.constant 396 : index
    %c0_69 = arith.constant 0 : index
    %82 = tpu.strided_load %arg14[%c396_68, %c0_69] {strides = array<i32: 2, 1>} : memref<1192x32xf32, #tpu.memory_space<vmem>>, vector<32x32xf32>
    %c528_70 = arith.constant 528 : index
    %c0_71 = arith.constant 0 : index
    %83 = tpu.strided_load %arg14[%c528_70, %c0_71] {strides = array<i32: 2, 1>} : memref<1192x32xf32, #tpu.memory_space<vmem>>, vector<32x32xf32>
    %c660_72 = arith.constant 660 : index
    %c0_73 = arith.constant 0 : index
    %84 = tpu.strided_load %arg14[%c660_72, %c0_73] {strides = array<i32: 2, 1>} : memref<1192x32xf32, #tpu.memory_space<vmem>>, vector<32x32xf32>
    %c792_74 = arith.constant 792 : index
    %c0_75 = arith.constant 0 : index
    %85 = tpu.strided_load %arg14[%c792_74, %c0_75] {strides = array<i32: 2, 1>} : memref<1192x32xf32, #tpu.memory_space<vmem>>, vector<32x32xf32>
    %c924_76 = arith.constant 924 : index
    %c0_77 = arith.constant 0 : index
    %86 = tpu.strided_load %arg14[%c924_76, %c0_77] {strides = array<i32: 2, 1>} : memref<1192x32xf32, #tpu.memory_space<vmem>>, vector<32x32xf32>
    %87 = tpu.concatenate %79, %80, %81, %82, %83, %84, %85, %86 in 0 : vector<32x32xf32>, vector<32x32xf32>, vector<32x32xf32>, vector<32x32xf32>, vector<32x32xf32>, vector<32x32xf32>, vector<32x32xf32>, vector<32x32xf32> -> vector<256x32xf32>
    %88 = arith.truncf %87 : vector<256x32xf32> to vector<256x32xbf16>
    %c0_78 = arith.constant 0 : index
    %c0_79 = arith.constant 0 : index
    %c0_80 = arith.constant 0 : index
    %89 = vector.load %arg4[%c0_78, %c0_79, %c0_80] : memref<16x32x64xbf16, #tpu.memory_space<vmem>>, vector<1x32x64xbf16>
    %90 = vector.shape_cast %89 : vector<1x32x64xbf16> to vector<32x64xbf16>
    %cst_81 = arith.constant dense<0.000000e+00> : vector<256x64xf32>
    %91 = tpu.matmul %88, %90, %cst_81 {dimension_numbers = #tpu.dot_dimension_numbers<[1], [0], [0], [1], [0, 0, 1, 1], [], []>} : vector<256x32xbf16>, vector<32x64xbf16>, vector<256x64xf32> -> vector<256x64xf32>
    %c1 = arith.constant 1 : index
    %c0_82 = arith.constant 0 : index
    %92 = tpu.strided_load %arg14[%c1, %c0_82] {strides = array<i32: 2, 1>} : memref<1192x32xf32, #tpu.memory_space<vmem>>, vector<32x32xf32>
    %c133_83 = arith.constant 133 : index
    %c0_84 = arith.constant 0 : index
    %93 = tpu.strided_load %arg14[%c133_83, %c0_84] {strides = array<i32: 2, 1>} : memref<1192x32xf32, #tpu.memory_space<vmem>>, vector<32x32xf32>
    %c265_85 = arith.constant 265 : index
    %c0_86 = arith.constant 0 : index
    %94 = tpu.strided_load %arg14[%c265_85, %c0_86] {strides = array<i32: 2, 1>} : memref<1192x32xf32, #tpu.memory_space<vmem>>, vector<32x32xf32>
    %c397_87 = arith.constant 397 : index
    %c0_88 = arith.constant 0 : index
    %95 = tpu.strided_load %arg14[%c397_87, %c0_88] {strides = array<i32: 2, 1>} : memref<1192x32xf32, #tpu.memory_space<vmem>>, vector<32x32xf32>
    %c529_89 = arith.constant 529 : index
    %c0_90 = arith.constant 0 : index
    %96 = tpu.strided_load %arg14[%c529_89, %c0_90] {strides = array<i32: 2, 1>} : memref<1192x32xf32, #tpu.memory_space<vmem>>, vector<32x32xf32>
    %c661_91 = arith.constant 661 : index
    %c0_92 = arith.constant 0 : index
    %97 = tpu.strided_load %arg14[%c661_91, %c0_92] {strides = array<i32: 2, 1>} : memref<1192x32xf32, #tpu.memory_space<vmem>>, vector<32x32xf32>
    %c793_93 = arith.constant 793 : index
    %c0_94 = arith.constant 0 : index
    %98 = tpu.strided_load %arg14[%c793_93, %c0_94] {strides = array<i32: 2, 1>} : memref<1192x32xf32, #tpu.memory_space<vmem>>, vector<32x32xf32>
    %c925_95 = arith.constant 925 : index
    %c0_96 = arith.constant 0 : index
    %99 = tpu.strided_load %arg14[%c925_95, %c0_96] {strides = array<i32: 2, 1>} : memref<1192x32xf32, #tpu.memory_space<vmem>>, vector<32x32xf32>
    %100 = tpu.concatenate %92, %93, %94, %95, %96, %97, %98, %99 in 0 : vector<32x32xf32>, vector<32x32xf32>, vector<32x32xf32>, vector<32x32xf32>, vector<32x32xf32>, vector<32x32xf32>, vector<32x32xf32>, vector<32x32xf32> -> vector<256x32xf32>
    %101 = arith.truncf %100 : vector<256x32xf32> to vector<256x32xbf16>
    %c1_97 = arith.constant 1 : index
    %c0_98 = arith.constant 0 : index
    %c0_99 = arith.constant 0 : index
    %102 = vector.load %arg4[%c1_97, %c0_98, %c0_99] : memref<16x32x64xbf16, #tpu.memory_space<vmem>>, vector<1x32x64xbf16>
    %103 = vector.shape_cast %102 : vector<1x32x64xbf16> to vector<32x64xbf16>
    %cst_100 = arith.constant dense<0.000000e+00> : vector<256x64xf32>
    %104 = tpu.matmul %101, %103, %cst_100 {dimension_numbers = #tpu.dot_dimension_numbers<[1], [0], [0], [1], [0, 0, 1, 1], [], []>} : vector<256x32xbf16>, vector<32x64xbf16>, vector<256x64xf32> -> vector<256x64xf32>
    %105 = arith.addf %91, %104 : vector<256x64xf32>
    %c2 = arith.constant 2 : index
    %c0_101 = arith.constant 0 : index
    %106 = tpu.strided_load %arg14[%c2, %c0_101] {strides = array<i32: 2, 1>} : memref<1192x32xf32, #tpu.memory_space<vmem>>, vector<32x32xf32>
    %c134 = arith.constant 134 : index
    %c0_102 = arith.constant 0 : index
    %107 = tpu.strided_load %arg14[%c134, %c0_102] {strides = array<i32: 2, 1>} : memref<1192x32xf32, #tpu.memory_space<vmem>>, vector<32x32xf32>
    %c266 = arith.constant 266 : index
    %c0_103 = arith.constant 0 : index
    %108 = tpu.strided_load %arg14[%c266, %c0_103] {strides = array<i32: 2, 1>} : memref<1192x32xf32, #tpu.memory_space<vmem>>, vector<32x32xf32>
    %c398 = arith.constant 398 : index
    %c0_104 = arith.constant 0 : index
    %109 = tpu.strided_load %arg14[%c398, %c0_104] {strides = array<i32: 2, 1>} : memref<1192x32xf32, #tpu.memory_space<vmem>>, vector<32x32xf32>
    %c530 = arith.constant 530 : index
    %c0_105 = arith.constant 0 : index
    %110 = tpu.strided_load %arg14[%c530, %c0_105] {strides = array<i32: 2, 1>} : memref<1192x32xf32, #tpu.memory_space<vmem>>, vector<32x32xf32>
    %c662 = arith.constant 662 : index
    %c0_106 = arith.constant 0 : index
    %111 = tpu.strided_load %arg14[%c662, %c0_106] {strides = array<i32: 2, 1>} : memref<1192x32xf32, #tpu.memory_space<vmem>>, vector<32x32xf32>
    %c794 = arith.constant 794 : index
    %c0_107 = arith.constant 0 : index
    %112 = tpu.strided_load %arg14[%c794, %c0_107] {strides = array<i32: 2, 1>} : memref<1192x32xf32, #tpu.memory_space<vmem>>, vector<32x32xf32>
    %c926 = arith.constant 926 : index
    %c0_108 = arith.constant 0 : index
    %113 = tpu.strided_load %arg14[%c926, %c0_108] {strides = array<i32: 2, 1>} : memref<1192x32xf32, #tpu.memory_space<vmem>>, vector<32x32xf32>
    %114 = tpu.concatenate %106, %107, %108, %109, %110, %111, %112, %113 in 0 : vector<32x32xf32>, vector<32x32xf32>, vector<32x32xf32>, vector<32x32xf32>, vector<32x32xf32>, vector<32x32xf32>, vector<32x32xf32>, vector<32x32xf32> -> vector<256x32xf32>
    %115 = arith.truncf %114 : vector<256x32xf32> to vector<256x32xbf16>
    %c2_109 = arith.constant 2 : index
    %c0_110 = arith.constant 0 : index
    %c0_111 = arith.constant 0 : index
    %116 = vector.load %arg4[%c2_109, %c0_110, %c0_111] : memref<16x32x64xbf16, #tpu.memory_space<vmem>>, vector<1x32x64xbf16>
    %117 = vector.shape_cast %116 : vector<1x32x64xbf16> to vector<32x64xbf16>
    %cst_112 = arith.constant dense<0.000000e+00> : vector<256x64xf32>
    %118 = tpu.matmul %115, %117, %cst_112 {dimension_numbers = #tpu.dot_dimension_numbers<[1], [0], [0], [1], [0, 0, 1, 1], [], []>} : vector<256x32xbf16>, vector<32x64xbf16>, vector<256x64xf32> -> vector<256x64xf32>
    %119 = arith.addf %105, %118 : vector<256x64xf32>
    %c3 = arith.constant 3 : index
    %c0_113 = arith.constant 0 : index
    %120 = tpu.strided_load %arg14[%c3, %c0_113] {strides = array<i32: 2, 1>} : memref<1192x32xf32, #tpu.memory_space<vmem>>, vector<32x32xf32>
    %c135 = arith.constant 135 : index
    %c0_114 = arith.constant 0 : index
    %121 = tpu.strided_load %arg14[%c135, %c0_114] {strides = array<i32: 2, 1>} : memref<1192x32xf32, #tpu.memory_space<vmem>>, vector<32x32xf32>
    %c267 = arith.constant 267 : index
    %c0_115 = arith.constant 0 : index
    %122 = tpu.strided_load %arg14[%c267, %c0_115] {strides = array<i32: 2, 1>} : memref<1192x32xf32, #tpu.memory_space<vmem>>, vector<32x32xf32>
    %c399 = arith.constant 399 : index
    %c0_116 = arith.constant 0 : index
    %123 = tpu.strided_load %arg14[%c399, %c0_116] {strides = array<i32: 2, 1>} : memref<1192x32xf32, #tpu.memory_space<vmem>>, vector<32x32xf32>
    %c531 = arith.constant 531 : index
    %c0_117 = arith.constant 0 : index
    %124 = tpu.strided_load %arg14[%c531, %c0_117] {strides = array<i32: 2, 1>} : memref<1192x32xf32, #tpu.memory_space<vmem>>, vector<32x32xf32>
    %c663 = arith.constant 663 : index
    %c0_118 = arith.constant 0 : index
    %125 = tpu.strided_load %arg14[%c663, %c0_118] {strides = array<i32: 2, 1>} : memref<1192x32xf32, #tpu.memory_space<vmem>>, vector<32x32xf32>
    %c795 = arith.constant 795 : index
    %c0_119 = arith.constant 0 : index
    %126 = tpu.strided_load %arg14[%c795, %c0_119] {strides = array<i32: 2, 1>} : memref<1192x32xf32, #tpu.memory_space<vmem>>, vector<32x32xf32>
    %c927 = arith.constant 927 : index
    %c0_120 = arith.constant 0 : index
    %127 = tpu.strided_load %arg14[%c927, %c0_120] {strides = array<i32: 2, 1>} : memref<1192x32xf32, #tpu.memory_space<vmem>>, vector<32x32xf32>
    %128 = tpu.concatenate %120, %121, %122, %123, %124, %125, %126, %127 in 0 : vector<32x32xf32>, vector<32x32xf32>, vector<32x32xf32>, vector<32x32xf32>, vector<32x32xf32>, vector<32x32xf32>, vector<32x32xf32>, vector<32x32xf32> -> vector<256x32xf32>
    %129 = arith.truncf %128 : vector<256x32xf32> to vector<256x32xbf16>
    %c3_121 = arith.constant 3 : index
    %c0_122 = arith.constant 0 : index
    %c0_123 = arith.constant 0 : index
    %130 = vector.load %arg4[%c3_121, %c0_122, %c0_123] : memref<16x32x64xbf16, #tpu.memory_space<vmem>>, vector<1x32x64xbf16>
    %131 = vector.shape_cast %130 : vector<1x32x64xbf16> to vector<32x64xbf16>
    %cst_124 = arith.constant dense<0.000000e+00> : vector<256x64xf32>
    %132 = tpu.matmul %129, %131, %cst_124 {dimension_numbers = #tpu.dot_dimension_numbers<[1], [0], [0], [1], [0, 0, 1, 1], [], []>} : vector<256x32xbf16>, vector<32x64xbf16>, vector<256x64xf32> -> vector<256x64xf32>
    %133 = arith.addf %119, %132 : vector<256x64xf32>
    %c66_125 = arith.constant 66 : index
    %c0_126 = arith.constant 0 : index
    %134 = tpu.strided_load %arg14[%c66_125, %c0_126] {strides = array<i32: 2, 1>} : memref<1192x32xf32, #tpu.memory_space<vmem>>, vector<32x32xf32>
    %c198_127 = arith.constant 198 : index
    %c0_128 = arith.constant 0 : index
    %135 = tpu.strided_load %arg14[%c198_127, %c0_128] {strides = array<i32: 2, 1>} : memref<1192x32xf32, #tpu.memory_space<vmem>>, vector<32x32xf32>
    %c330_129 = arith.constant 330 : index
    %c0_130 = arith.constant 0 : index
    %136 = tpu.strided_load %arg14[%c330_129, %c0_130] {strides = array<i32: 2, 1>} : memref<1192x32xf32, #tpu.memory_space<vmem>>, vector<32x32xf32>
    %c462_131 = arith.constant 462 : index
    %c0_132 = arith.constant 0 : index
    %137 = tpu.strided_load %arg14[%c462_131, %c0_132] {strides = array<i32: 2, 1>} : memref<1192x32xf32, #tpu.memory_space<vmem>>, vector<32x32xf32>
    %c594_133 = arith.constant 594 : index
    %c0_134 = arith.constant 0 : index
    %138 = tpu.strided_load %arg14[%c594_133, %c0_134] {strides = array<i32: 2, 1>} : memref<1192x32xf32, #tpu.memory_space<vmem>>, vector<32x32xf32>
    %c726_135 = arith.constant 726 : index
    %c0_136 = arith.constant 0 : index
    %139 = tpu.strided_load %arg14[%c726_135, %c0_136] {strides = array<i32: 2, 1>} : memref<1192x32xf32, #tpu.memory_space<vmem>>, vector<32x32xf32>
    %c858_137 = arith.constant 858 : index
    %c0_138 = arith.constant 0 : index
    %140 = tpu.strided_load %arg14[%c858_137, %c0_138] {strides = array<i32: 2, 1>} : memref<1192x32xf32, #tpu.memory_space<vmem>>, vector<32x32xf32>
    %c990_139 = arith.constant 990 : index
    %c0_140 = arith.constant 0 : index
    %141 = tpu.strided_load %arg14[%c990_139, %c0_140] {strides = array<i32: 2, 1>} : memref<1192x32xf32, #tpu.memory_space<vmem>>, vector<32x32xf32>
    %142 = tpu.concatenate %134, %135, %136, %137, %138, %139, %140, %141 in 0 : vector<32x32xf32>, vector<32x32xf32>, vector<32x32xf32>, vector<32x32xf32>, vector<32x32xf32>, vector<32x32xf32>, vector<32x32xf32>, vector<32x32xf32> -> vector<256x32xf32>
    %143 = arith.truncf %142 : vector<256x32xf32> to vector<256x32xbf16>
    %c4 = arith.constant 4 : index
    %c0_141 = arith.constant 0 : index
    %c0_142 = arith.constant 0 : index
    %144 = vector.load %arg4[%c4, %c0_141, %c0_142] : memref<16x32x64xbf16, #tpu.memory_space<vmem>>, vector<1x32x64xbf16>
    %145 = vector.shape_cast %144 : vector<1x32x64xbf16> to vector<32x64xbf16>
    %cst_143 = arith.constant dense<0.000000e+00> : vector<256x64xf32>
    %146 = tpu.matmul %143, %145, %cst_143 {dimension_numbers = #tpu.dot_dimension_numbers<[1], [0], [0], [1], [0, 0, 1, 1], [], []>} : vector<256x32xbf16>, vector<32x64xbf16>, vector<256x64xf32> -> vector<256x64xf32>
    %147 = arith.addf %133, %146 : vector<256x64xf32>
    %c67_144 = arith.constant 67 : index
    %c0_145 = arith.constant 0 : index
    %148 = tpu.strided_load %arg14[%c67_144, %c0_145] {strides = array<i32: 2, 1>} : memref<1192x32xf32, #tpu.memory_space<vmem>>, vector<32x32xf32>
    %c199_146 = arith.constant 199 : index
    %c0_147 = arith.constant 0 : index
    %149 = tpu.strided_load %arg14[%c199_146, %c0_147] {strides = array<i32: 2, 1>} : memref<1192x32xf32, #tpu.memory_space<vmem>>, vector<32x32xf32>
    %c331_148 = arith.constant 331 : index
    %c0_149 = arith.constant 0 : index
    %150 = tpu.strided_load %arg14[%c331_148, %c0_149] {strides = array<i32: 2, 1>} : memref<1192x32xf32, #tpu.memory_space<vmem>>, vector<32x32xf32>
    %c463_150 = arith.constant 463 : index
    %c0_151 = arith.constant 0 : index
    %151 = tpu.strided_load %arg14[%c463_150, %c0_151] {strides = array<i32: 2, 1>} : memref<1192x32xf32, #tpu.memory_space<vmem>>, vector<32x32xf32>
    %c595_152 = arith.constant 595 : index
    %c0_153 = arith.constant 0 : index
    %152 = tpu.strided_load %arg14[%c595_152, %c0_153] {strides = array<i32: 2, 1>} : memref<1192x32xf32, #tpu.memory_space<vmem>>, vector<32x32xf32>
    %c727_154 = arith.constant 727 : index
    %c0_155 = arith.constant 0 : index
    %153 = tpu.strided_load %arg14[%c727_154, %c0_155] {strides = array<i32: 2, 1>} : memref<1192x32xf32, #tpu.memory_space<vmem>>, vector<32x32xf32>
    %c859_156 = arith.constant 859 : index
    %c0_157 = arith.constant 0 : index
    %154 = tpu.strided_load %arg14[%c859_156, %c0_157] {strides = array<i32: 2, 1>} : memref<1192x32xf32, #tpu.memory_space<vmem>>, vector<32x32xf32>
    %c991_158 = arith.constant 991 : index
    %c0_159 = arith.constant 0 : index
    %155 = tpu.strided_load %arg14[%c991_158, %c0_159] {strides = array<i32: 2, 1>} : memref<1192x32xf32, #tpu.memory_space<vmem>>, vector<32x32xf32>
    %156 = tpu.concatenate %148, %149, %150, %151, %152, %153, %154, %155 in 0 : vector<32x32xf32>, vector<32x32xf32>, vector<32x32xf32>, vector<32x32xf32>, vector<32x32xf32>, vector<32x32xf32>, vector<32x32xf32>, vector<32x32xf32> -> vector<256x32xf32>
    %157 = arith.truncf %156 : vector<256x32xf32> to vector<256x32xbf16>
    %c5 = arith.constant 5 : index
    %c0_160 = arith.constant 0 : index
    %c0_161 = arith.constant 0 : index
    %158 = vector.load %arg4[%c5, %c0_160, %c0_161] : memref<16x32x64xbf16, #tpu.memory_space<vmem>>, vector<1x32x64xbf16>
    %159 = vector.shape_cast %158 : vector<1x32x64xbf16> to vector<32x64xbf16>
    %cst_162 = arith.constant dense<0.000000e+00> : vector<256x64xf32>
    %160 = tpu.matmul %157, %159, %cst_162 {dimension_numbers = #tpu.dot_dimension_numbers<[1], [0], [0], [1], [0, 0, 1, 1], [], []>} : vector<256x32xbf16>, vector<32x64xbf16>, vector<256x64xf32> -> vector<256x64xf32>
    %161 = arith.addf %147, %160 : vector<256x64xf32>
    %c68 = arith.constant 68 : index
    %c0_163 = arith.constant 0 : index
    %162 = tpu.strided_load %arg14[%c68, %c0_163] {strides = array<i32: 2, 1>} : memref<1192x32xf32, #tpu.memory_space<vmem>>, vector<32x32xf32>
    %c200 = arith.constant 200 : index
    %c0_164 = arith.constant 0 : index
    %163 = tpu.strided_load %arg14[%c200, %c0_164] {strides = array<i32: 2, 1>} : memref<1192x32xf32, #tpu.memory_space<vmem>>, vector<32x32xf32>
    %c332 = arith.constant 332 : index
    %c0_165 = arith.constant 0 : index
    %164 = tpu.strided_load %arg14[%c332, %c0_165] {strides = array<i32: 2, 1>} : memref<1192x32xf32, #tpu.memory_space<vmem>>, vector<32x32xf32>
    %c464 = arith.constant 464 : index
    %c0_166 = arith.constant 0 : index
    %165 = tpu.strided_load %arg14[%c464, %c0_166] {strides = array<i32: 2, 1>} : memref<1192x32xf32, #tpu.memory_space<vmem>>, vector<32x32xf32>
    %c596 = arith.constant 596 : index
    %c0_167 = arith.constant 0 : index
    %166 = tpu.strided_load %arg14[%c596, %c0_167] {strides = array<i32: 2, 1>} : memref<1192x32xf32, #tpu.memory_space<vmem>>, vector<32x32xf32>
    %c728 = arith.constant 728 : index
    %c0_168 = arith.constant 0 : index
    %167 = tpu.strided_load %arg14[%c728, %c0_168] {strides = array<i32: 2, 1>} : memref<1192x32xf32, #tpu.memory_space<vmem>>, vector<32x32xf32>
    %c860 = arith.constant 860 : index
    %c0_169 = arith.constant 0 : index
    %168 = tpu.strided_load %arg14[%c860, %c0_169] {strides = array<i32: 2, 1>} : memref<1192x32xf32, #tpu.memory_space<vmem>>, vector<32x32xf32>
    %c992 = arith.constant 992 : index
    %c0_170 = arith.constant 0 : index
    %169 = tpu.strided_load %arg14[%c992, %c0_170] {strides = array<i32: 2, 1>} : memref<1192x32xf32, #tpu.memory_space<vmem>>, vector<32x32xf32>
    %170 = tpu.concatenate %162, %163, %164, %165, %166, %167, %168, %169 in 0 : vector<32x32xf32>, vector<32x32xf32>, vector<32x32xf32>, vector<32x32xf32>, vector<32x32xf32>, vector<32x32xf32>, vector<32x32xf32>, vector<32x32xf32> -> vector<256x32xf32>
    %171 = arith.truncf %170 : vector<256x32xf32> to vector<256x32xbf16>
    %c6 = arith.constant 6 : index
    %c0_171 = arith.constant 0 : index
    %c0_172 = arith.constant 0 : index
    %172 = vector.load %arg4[%c6, %c0_171, %c0_172] : memref<16x32x64xbf16, #tpu.memory_space<vmem>>, vector<1x32x64xbf16>
    %173 = vector.shape_cast %172 : vector<1x32x64xbf16> to vector<32x64xbf16>
    %cst_173 = arith.constant dense<0.000000e+00> : vector<256x64xf32>
    %174 = tpu.matmul %171, %173, %cst_173 {dimension_numbers = #tpu.dot_dimension_numbers<[1], [0], [0], [1], [0, 0, 1, 1], [], []>} : vector<256x32xbf16>, vector<32x64xbf16>, vector<256x64xf32> -> vector<256x64xf32>
    %175 = arith.addf %161, %174 : vector<256x64xf32>
    %c69 = arith.constant 69 : index
    %c0_174 = arith.constant 0 : index
    %176 = tpu.strided_load %arg14[%c69, %c0_174] {strides = array<i32: 2, 1>} : memref<1192x32xf32, #tpu.memory_space<vmem>>, vector<32x32xf32>
    %c201 = arith.constant 201 : index
    %c0_175 = arith.constant 0 : index
    %177 = tpu.strided_load %arg14[%c201, %c0_175] {strides = array<i32: 2, 1>} : memref<1192x32xf32, #tpu.memory_space<vmem>>, vector<32x32xf32>
    %c333 = arith.constant 333 : index
    %c0_176 = arith.constant 0 : index
    %178 = tpu.strided_load %arg14[%c333, %c0_176] {strides = array<i32: 2, 1>} : memref<1192x32xf32, #tpu.memory_space<vmem>>, vector<32x32xf32>
    %c465 = arith.constant 465 : index
    %c0_177 = arith.constant 0 : index
    %179 = tpu.strided_load %arg14[%c465, %c0_177] {strides = array<i32: 2, 1>} : memref<1192x32xf32, #tpu.memory_space<vmem>>, vector<32x32xf32>
    %c597 = arith.constant 597 : index
    %c0_178 = arith.constant 0 : index
    %180 = tpu.strided_load %arg14[%c597, %c0_178] {strides = array<i32: 2, 1>} : memref<1192x32xf32, #tpu.memory_space<vmem>>, vector<32x32xf32>
    %c729 = arith.constant 729 : index
    %c0_179 = arith.constant 0 : index
    %181 = tpu.strided_load %arg14[%c729, %c0_179] {strides = array<i32: 2, 1>} : memref<1192x32xf32, #tpu.memory_space<vmem>>, vector<32x32xf32>
    %c861 = arith.constant 861 : index
    %c0_180 = arith.constant 0 : index
    %182 = tpu.strided_load %arg14[%c861, %c0_180] {strides = array<i32: 2, 1>} : memref<1192x32xf32, #tpu.memory_space<vmem>>, vector<32x32xf32>
    %c993 = arith.constant 993 : index
    %c0_181 = arith.constant 0 : index
    %183 = tpu.strided_load %arg14[%c993, %c0_181] {strides = array<i32: 2, 1>} : memref<1192x32xf32, #tpu.memory_space<vmem>>, vector<32x32xf32>
    %184 = tpu.concatenate %176, %177, %178, %179, %180, %181, %182, %183 in 0 : vector<32x32xf32>, vector<32x32xf32>, vector<32x32xf32>, vector<32x32xf32>, vector<32x32xf32>, vector<32x32xf32>, vector<32x32xf32>, vector<32x32xf32> -> vector<256x32xf32>
    %185 = arith.truncf %184 : vector<256x32xf32> to vector<256x32xbf16>
    %c7 = arith.constant 7 : index
    %c0_182 = arith.constant 0 : index
    %c0_183 = arith.constant 0 : index
    %186 = vector.load %arg4[%c7, %c0_182, %c0_183] : memref<16x32x64xbf16, #tpu.memory_space<vmem>>, vector<1x32x64xbf16>
    %187 = vector.shape_cast %186 : vector<1x32x64xbf16> to vector<32x64xbf16>
    %cst_184 = arith.constant dense<0.000000e+00> : vector<256x64xf32>
    %188 = tpu.matmul %185, %187, %cst_184 {dimension_numbers = #tpu.dot_dimension_numbers<[1], [0], [0], [1], [0, 0, 1, 1], [], []>} : vector<256x32xbf16>, vector<32x64xbf16>, vector<256x64xf32> -> vector<256x64xf32>
    %189 = arith.addf %175, %188 : vector<256x64xf32>
    %c132_185 = arith.constant 132 : index
    %c0_186 = arith.constant 0 : index
    %190 = tpu.strided_load %arg14[%c132_185, %c0_186] {strides = array<i32: 2, 1>} : memref<1192x32xf32, #tpu.memory_space<vmem>>, vector<32x32xf32>
    %c264_187 = arith.constant 264 : index
    %c0_188 = arith.constant 0 : index
    %191 = tpu.strided_load %arg14[%c264_187, %c0_188] {strides = array<i32: 2, 1>} : memref<1192x32xf32, #tpu.memory_space<vmem>>, vector<32x32xf32>
    %c396_189 = arith.constant 396 : index
    %c0_190 = arith.constant 0 : index
    %192 = tpu.strided_load %arg14[%c396_189, %c0_190] {strides = array<i32: 2, 1>} : memref<1192x32xf32, #tpu.memory_space<vmem>>, vector<32x32xf32>
    %c528_191 = arith.constant 528 : index
    %c0_192 = arith.constant 0 : index
    %193 = tpu.strided_load %arg14[%c528_191, %c0_192] {strides = array<i32: 2, 1>} : memref<1192x32xf32, #tpu.memory_space<vmem>>, vector<32x32xf32>
    %c660_193 = arith.constant 660 : index
    %c0_194 = arith.constant 0 : index
    %194 = tpu.strided_load %arg14[%c660_193, %c0_194] {strides = array<i32: 2, 1>} : memref<1192x32xf32, #tpu.memory_space<vmem>>, vector<32x32xf32>
    %c792_195 = arith.constant 792 : index
    %c0_196 = arith.constant 0 : index
    %195 = tpu.strided_load %arg14[%c792_195, %c0_196] {strides = array<i32: 2, 1>} : memref<1192x32xf32, #tpu.memory_space<vmem>>, vector<32x32xf32>
    %c924_197 = arith.constant 924 : index
    %c0_198 = arith.constant 0 : index
    %196 = tpu.strided_load %arg14[%c924_197, %c0_198] {strides = array<i32: 2, 1>} : memref<1192x32xf32, #tpu.memory_space<vmem>>, vector<32x32xf32>
    %c1056_199 = arith.constant 1056 : index
    %c0_200 = arith.constant 0 : index
    %197 = tpu.strided_load %arg14[%c1056_199, %c0_200] {strides = array<i32: 2, 1>} : memref<1192x32xf32, #tpu.memory_space<vmem>>, vector<32x32xf32>
    %198 = tpu.concatenate %190, %191, %192, %193, %194, %195, %196, %197 in 0 : vector<32x32xf32>, vector<32x32xf32>, vector<32x32xf32>, vector<32x32xf32>, vector<32x32xf32>, vector<32x32xf32>, vector<32x32xf32>, vector<32x32xf32> -> vector<256x32xf32>
    %199 = arith.truncf %198 : vector<256x32xf32> to vector<256x32xbf16>
    %c8 = arith.constant 8 : index
    %c0_201 = arith.constant 0 : index
    %c0_202 = arith.constant 0 : index
    %200 = vector.load %arg4[%c8, %c0_201, %c0_202] : memref<16x32x64xbf16, #tpu.memory_space<vmem>>, vector<1x32x64xbf16>
    %201 = vector.shape_cast %200 : vector<1x32x64xbf16> to vector<32x64xbf16>
    %cst_203 = arith.constant dense<0.000000e+00> : vector<256x64xf32>
    %202 = tpu.matmul %199, %201, %cst_203 {dimension_numbers = #tpu.dot_dimension_numbers<[1], [0], [0], [1], [0, 0, 1, 1], [], []>} : vector<256x32xbf16>, vector<32x64xbf16>, vector<256x64xf32> -> vector<256x64xf32>
    %203 = arith.addf %189, %202 : vector<256x64xf32>
    %c133_204 = arith.constant 133 : index
    %c0_205 = arith.constant 0 : index
    %204 = tpu.strided_load %arg14[%c133_204, %c0_205] {strides = array<i32: 2, 1>} : memref<1192x32xf32, #tpu.memory_space<vmem>>, vector<32x32xf32>
    %c265_206 = arith.constant 265 : index
    %c0_207 = arith.constant 0 : index
    %205 = tpu.strided_load %arg14[%c265_206, %c0_207] {strides = array<i32: 2, 1>} : memref<1192x32xf32, #tpu.memory_space<vmem>>, vector<32x32xf32>
    %c397_208 = arith.constant 397 : index
    %c0_209 = arith.constant 0 : index
    %206 = tpu.strided_load %arg14[%c397_208, %c0_209] {strides = array<i32: 2, 1>} : memref<1192x32xf32, #tpu.memory_space<vmem>>, vector<32x32xf32>
    %c529_210 = arith.constant 529 : index
    %c0_211 = arith.constant 0 : index
    %207 = tpu.strided_load %arg14[%c529_210, %c0_211] {strides = array<i32: 2, 1>} : memref<1192x32xf32, #tpu.memory_space<vmem>>, vector<32x32xf32>
    %c661_212 = arith.constant 661 : index
    %c0_213 = arith.constant 0 : index
    %208 = tpu.strided_load %arg14[%c661_212, %c0_213] {strides = array<i32: 2, 1>} : memref<1192x32xf32, #tpu.memory_space<vmem>>, vector<32x32xf32>
    %c793_214 = arith.constant 793 : index
    %c0_215 = arith.constant 0 : index
    %209 = tpu.strided_load %arg14[%c793_214, %c0_215] {strides = array<i32: 2, 1>} : memref<1192x32xf32, #tpu.memory_space<vmem>>, vector<32x32xf32>
    %c925_216 = arith.constant 925 : index
    %c0_217 = arith.constant 0 : index
    %210 = tpu.strided_load %arg14[%c925_216, %c0_217] {strides = array<i32: 2, 1>} : memref<1192x32xf32, #tpu.memory_space<vmem>>, vector<32x32xf32>
    %c1057_218 = arith.constant 1057 : index
    %c0_219 = arith.constant 0 : index
    %211 = tpu.strided_load %arg14[%c1057_218, %c0_219] {strides = array<i32: 2, 1>} : memref<1192x32xf32, #tpu.memory_space<vmem>>, vector<32x32xf32>
    %212 = tpu.concatenate %204, %205, %206, %207, %208, %209, %210, %211 in 0 : vector<32x32xf32>, vector<32x32xf32>, vector<32x32xf32>, vector<32x32xf32>, vector<32x32xf32>, vector<32x32xf32>, vector<32x32xf32>, vector<32x32xf32> -> vector<256x32xf32>
    %213 = arith.truncf %212 : vector<256x32xf32> to vector<256x32xbf16>
    %c9 = arith.constant 9 : index
    %c0_220 = arith.constant 0 : index
    %c0_221 = arith.constant 0 : index
    %214 = vector.load %arg4[%c9, %c0_220, %c0_221] : memref<16x32x64xbf16, #tpu.memory_space<vmem>>, vector<1x32x64xbf16>
    %215 = vector.shape_cast %214 : vector<1x32x64xbf16> to vector<32x64xbf16>
    %cst_222 = arith.constant dense<0.000000e+00> : vector<256x64xf32>
    %216 = tpu.matmul %213, %215, %cst_222 {dimension_numbers = #tpu.dot_dimension_numbers<[1], [0], [0], [1], [0, 0, 1, 1], [], []>} : vector<256x32xbf16>, vector<32x64xbf16>, vector<256x64xf32> -> vector<256x64xf32>
    %217 = arith.addf %203, %216 : vector<256x64xf32>
    %c134_223 = arith.constant 134 : index
    %c0_224 = arith.constant 0 : index
    %218 = tpu.strided_load %arg14[%c134_223, %c0_224] {strides = array<i32: 2, 1>} : memref<1192x32xf32, #tpu.memory_space<vmem>>, vector<32x32xf32>
    %c266_225 = arith.constant 266 : index
    %c0_226 = arith.constant 0 : index
    %219 = tpu.strided_load %arg14[%c266_225, %c0_226] {strides = array<i32: 2, 1>} : memref<1192x32xf32, #tpu.memory_space<vmem>>, vector<32x32xf32>
    %c398_227 = arith.constant 398 : index
    %c0_228 = arith.constant 0 : index
    %220 = tpu.strided_load %arg14[%c398_227, %c0_228] {strides = array<i32: 2, 1>} : memref<1192x32xf32, #tpu.memory_space<vmem>>, vector<32x32xf32>
    %c530_229 = arith.constant 530 : index
    %c0_230 = arith.constant 0 : index
    %221 = tpu.strided_load %arg14[%c530_229, %c0_230] {strides = array<i32: 2, 1>} : memref<1192x32xf32, #tpu.memory_space<vmem>>, vector<32x32xf32>
    %c662_231 = arith.constant 662 : index
    %c0_232 = arith.constant 0 : index
    %222 = tpu.strided_load %arg14[%c662_231, %c0_232] {strides = array<i32: 2, 1>} : memref<1192x32xf32, #tpu.memory_space<vmem>>, vector<32x32xf32>
    %c794_233 = arith.constant 794 : index
    %c0_234 = arith.constant 0 : index
    %223 = tpu.strided_load %arg14[%c794_233, %c0_234] {strides = array<i32: 2, 1>} : memref<1192x32xf32, #tpu.memory_space<vmem>>, vector<32x32xf32>
    %c926_235 = arith.constant 926 : index
    %c0_236 = arith.constant 0 : index
    %224 = tpu.strided_load %arg14[%c926_235, %c0_236] {strides = array<i32: 2, 1>} : memref<1192x32xf32, #tpu.memory_space<vmem>>, vector<32x32xf32>
    %c1058 = arith.constant 1058 : index
    %c0_237 = arith.constant 0 : index
    %225 = tpu.strided_load %arg14[%c1058, %c0_237] {strides = array<i32: 2, 1>} : memref<1192x32xf32, #tpu.memory_space<vmem>>, vector<32x32xf32>
    %226 = tpu.concatenate %218, %219, %220, %221, %222, %223, %224, %225 in 0 : vector<32x32xf32>, vector<32x32xf32>, vector<32x32xf32>, vector<32x32xf32>, vector<32x32xf32>, vector<32x32xf32>, vector<32x32xf32>, vector<32x32xf32> -> vector<256x32xf32>
    %227 = arith.truncf %226 : vector<256x32xf32> to vector<256x32xbf16>
    %c10 = arith.constant 10 : index
    %c0_238 = arith.constant 0 : index
    %c0_239 = arith.constant 0 : index
    %228 = vector.load %arg4[%c10, %c0_238, %c0_239] : memref<16x32x64xbf16, #tpu.memory_space<vmem>>, vector<1x32x64xbf16>
    %229 = vector.shape_cast %228 : vector<1x32x64xbf16> to vector<32x64xbf16>
    %cst_240 = arith.constant dense<0.000000e+00> : vector<256x64xf32>
    %230 = tpu.matmul %227, %229, %cst_240 {dimension_numbers = #tpu.dot_dimension_numbers<[1], [0], [0], [1], [0, 0, 1, 1], [], []>} : vector<256x32xbf16>, vector<32x64xbf16>, vector<256x64xf32> -> vector<256x64xf32>
    %231 = arith.addf %217, %230 : vector<256x64xf32>
    %c135_241 = arith.constant 135 : index
    %c0_242 = arith.constant 0 : index
    %232 = tpu.strided_load %arg14[%c135_241, %c0_242] {strides = array<i32: 2, 1>} : memref<1192x32xf32, #tpu.memory_space<vmem>>, vector<32x32xf32>
    %c267_243 = arith.constant 267 : index
    %c0_244 = arith.constant 0 : index
    %233 = tpu.strided_load %arg14[%c267_243, %c0_244] {strides = array<i32: 2, 1>} : memref<1192x32xf32, #tpu.memory_space<vmem>>, vector<32x32xf32>
    %c399_245 = arith.constant 399 : index
    %c0_246 = arith.constant 0 : index
    %234 = tpu.strided_load %arg14[%c399_245, %c0_246] {strides = array<i32: 2, 1>} : memref<1192x32xf32, #tpu.memory_space<vmem>>, vector<32x32xf32>
    %c531_247 = arith.constant 531 : index
    %c0_248 = arith.constant 0 : index
    %235 = tpu.strided_load %arg14[%c531_247, %c0_248] {strides = array<i32: 2, 1>} : memref<1192x32xf32, #tpu.memory_space<vmem>>, vector<32x32xf32>
    %c663_249 = arith.constant 663 : index
    %c0_250 = arith.constant 0 : index
    %236 = tpu.strided_load %arg14[%c663_249, %c0_250] {strides = array<i32: 2, 1>} : memref<1192x32xf32, #tpu.memory_space<vmem>>, vector<32x32xf32>
    %c795_251 = arith.constant 795 : index
    %c0_252 = arith.constant 0 : index
    %237 = tpu.strided_load %arg14[%c795_251, %c0_252] {strides = array<i32: 2, 1>} : memref<1192x32xf32, #tpu.memory_space<vmem>>, vector<32x32xf32>
    %c927_253 = arith.constant 927 : index
    %c0_254 = arith.constant 0 : index
    %238 = tpu.strided_load %arg14[%c927_253, %c0_254] {strides = array<i32: 2, 1>} : memref<1192x32xf32, #tpu.memory_space<vmem>>, vector<32x32xf32>
    %c1059 = arith.constant 1059 : index
    %c0_255 = arith.constant 0 : index
    %239 = tpu.strided_load %arg14[%c1059, %c0_255] {strides = array<i32: 2, 1>} : memref<1192x32xf32, #tpu.memory_space<vmem>>, vector<32x32xf32>
    %240 = tpu.concatenate %232, %233, %234, %235, %236, %237, %238, %239 in 0 : vector<32x32xf32>, vector<32x32xf32>, vector<32x32xf32>, vector<32x32xf32>, vector<32x32xf32>, vector<32x32xf32>, vector<32x32xf32>, vector<32x32xf32> -> vector<256x32xf32>
    %241 = arith.truncf %240 : vector<256x32xf32> to vector<256x32xbf16>
    %c11 = arith.constant 11 : index
    %c0_256 = arith.constant 0 : index
    %c0_257 = arith.constant 0 : index
    %242 = vector.load %arg4[%c11, %c0_256, %c0_257] : memref<16x32x64xbf16, #tpu.memory_space<vmem>>, vector<1x32x64xbf16>
    %243 = vector.shape_cast %242 : vector<1x32x64xbf16> to vector<32x64xbf16>
    %cst_258 = arith.constant dense<0.000000e+00> : vector<256x64xf32>
    %244 = tpu.matmul %241, %243, %cst_258 {dimension_numbers = #tpu.dot_dimension_numbers<[1], [0], [0], [1], [0, 0, 1, 1], [], []>} : vector<256x32xbf16>, vector<32x64xbf16>, vector<256x64xf32> -> vector<256x64xf32>
    %245 = arith.addf %231, %244 : vector<256x64xf32>
    %c198_259 = arith.constant 198 : index
    %c0_260 = arith.constant 0 : index
    %246 = tpu.strided_load %arg14[%c198_259, %c0_260] {strides = array<i32: 2, 1>} : memref<1192x32xf32, #tpu.memory_space<vmem>>, vector<32x32xf32>
    %c330_261 = arith.constant 330 : index
    %c0_262 = arith.constant 0 : index
    %247 = tpu.strided_load %arg14[%c330_261, %c0_262] {strides = array<i32: 2, 1>} : memref<1192x32xf32, #tpu.memory_space<vmem>>, vector<32x32xf32>
    %c462_263 = arith.constant 462 : index
    %c0_264 = arith.constant 0 : index
    %248 = tpu.strided_load %arg14[%c462_263, %c0_264] {strides = array<i32: 2, 1>} : memref<1192x32xf32, #tpu.memory_space<vmem>>, vector<32x32xf32>
    %c594_265 = arith.constant 594 : index
    %c0_266 = arith.constant 0 : index
    %249 = tpu.strided_load %arg14[%c594_265, %c0_266] {strides = array<i32: 2, 1>} : memref<1192x32xf32, #tpu.memory_space<vmem>>, vector<32x32xf32>
    %c726_267 = arith.constant 726 : index
    %c0_268 = arith.constant 0 : index
    %250 = tpu.strided_load %arg14[%c726_267, %c0_268] {strides = array<i32: 2, 1>} : memref<1192x32xf32, #tpu.memory_space<vmem>>, vector<32x32xf32>
    %c858_269 = arith.constant 858 : index
    %c0_270 = arith.constant 0 : index
    %251 = tpu.strided_load %arg14[%c858_269, %c0_270] {strides = array<i32: 2, 1>} : memref<1192x32xf32, #tpu.memory_space<vmem>>, vector<32x32xf32>
    %c990_271 = arith.constant 990 : index
    %c0_272 = arith.constant 0 : index
    %252 = tpu.strided_load %arg14[%c990_271, %c0_272] {strides = array<i32: 2, 1>} : memref<1192x32xf32, #tpu.memory_space<vmem>>, vector<32x32xf32>
    %c1122_273 = arith.constant 1122 : index
    %c0_274 = arith.constant 0 : index
    %253 = tpu.strided_load %arg14[%c1122_273, %c0_274] {strides = array<i32: 2, 1>} : memref<1192x32xf32, #tpu.memory_space<vmem>>, vector<32x32xf32>
    %254 = tpu.concatenate %246, %247, %248, %249, %250, %251, %252, %253 in 0 : vector<32x32xf32>, vector<32x32xf32>, vector<32x32xf32>, vector<32x32xf32>, vector<32x32xf32>, vector<32x32xf32>, vector<32x32xf32>, vector<32x32xf32> -> vector<256x32xf32>
    %255 = arith.truncf %254 : vector<256x32xf32> to vector<256x32xbf16>
    %c12 = arith.constant 12 : index
    %c0_275 = arith.constant 0 : index
    %c0_276 = arith.constant 0 : index
    %256 = vector.load %arg4[%c12, %c0_275, %c0_276] : memref<16x32x64xbf16, #tpu.memory_space<vmem>>, vector<1x32x64xbf16>
    %257 = vector.shape_cast %256 : vector<1x32x64xbf16> to vector<32x64xbf16>
    %cst_277 = arith.constant dense<0.000000e+00> : vector<256x64xf32>
    %258 = tpu.matmul %255, %257, %cst_277 {dimension_numbers = #tpu.dot_dimension_numbers<[1], [0], [0], [1], [0, 0, 1, 1], [], []>} : vector<256x32xbf16>, vector<32x64xbf16>, vector<256x64xf32> -> vector<256x64xf32>
    %259 = arith.addf %245, %258 : vector<256x64xf32>
    %c199_278 = arith.constant 199 : index
    %c0_279 = arith.constant 0 : index
    %260 = tpu.strided_load %arg14[%c199_278, %c0_279] {strides = array<i32: 2, 1>} : memref<1192x32xf32, #tpu.memory_space<vmem>>, vector<32x32xf32>
    %c331_280 = arith.constant 331 : index
    %c0_281 = arith.constant 0 : index
    %261 = tpu.strided_load %arg14[%c331_280, %c0_281] {strides = array<i32: 2, 1>} : memref<1192x32xf32, #tpu.memory_space<vmem>>, vector<32x32xf32>
    %c463_282 = arith.constant 463 : index
    %c0_283 = arith.constant 0 : index
    %262 = tpu.strided_load %arg14[%c463_282, %c0_283] {strides = array<i32: 2, 1>} : memref<1192x32xf32, #tpu.memory_space<vmem>>, vector<32x32xf32>
    %c595_284 = arith.constant 595 : index
    %c0_285 = arith.constant 0 : index
    %263 = tpu.strided_load %arg14[%c595_284, %c0_285] {strides = array<i32: 2, 1>} : memref<1192x32xf32, #tpu.memory_space<vmem>>, vector<32x32xf32>
    %c727_286 = arith.constant 727 : index
    %c0_287 = arith.constant 0 : index
    %264 = tpu.strided_load %arg14[%c727_286, %c0_287] {strides = array<i32: 2, 1>} : memref<1192x32xf32, #tpu.memory_space<vmem>>, vector<32x32xf32>
    %c859_288 = arith.constant 859 : index
    %c0_289 = arith.constant 0 : index
    %265 = tpu.strided_load %arg14[%c859_288, %c0_289] {strides = array<i32: 2, 1>} : memref<1192x32xf32, #tpu.memory_space<vmem>>, vector<32x32xf32>
    %c991_290 = arith.constant 991 : index
    %c0_291 = arith.constant 0 : index
    %266 = tpu.strided_load %arg14[%c991_290, %c0_291] {strides = array<i32: 2, 1>} : memref<1192x32xf32, #tpu.memory_space<vmem>>, vector<32x32xf32>
    %c1123 = arith.constant 1123 : index
    %c0_292 = arith.constant 0 : index
    %267 = tpu.strided_load %arg14[%c1123, %c0_292] {strides = array<i32: 2, 1>} : memref<1192x32xf32, #tpu.memory_space<vmem>>, vector<32x32xf32>
    %268 = tpu.concatenate %260, %261, %262, %263, %264, %265, %266, %267 in 0 : vector<32x32xf32>, vector<32x32xf32>, vector<32x32xf32>, vector<32x32xf32>, vector<32x32xf32>, vector<32x32xf32>, vector<32x32xf32>, vector<32x32xf32> -> vector<256x32xf32>
    %269 = arith.truncf %268 : vector<256x32xf32> to vector<256x32xbf16>
    %c13 = arith.constant 13 : index
    %c0_293 = arith.constant 0 : index
    %c0_294 = arith.constant 0 : index
    %270 = vector.load %arg4[%c13, %c0_293, %c0_294] : memref<16x32x64xbf16, #tpu.memory_space<vmem>>, vector<1x32x64xbf16>
    %271 = vector.shape_cast %270 : vector<1x32x64xbf16> to vector<32x64xbf16>
    %cst_295 = arith.constant dense<0.000000e+00> : vector<256x64xf32>
    %272 = tpu.matmul %269, %271, %cst_295 {dimension_numbers = #tpu.dot_dimension_numbers<[1], [0], [0], [1], [0, 0, 1, 1], [], []>} : vector<256x32xbf16>, vector<32x64xbf16>, vector<256x64xf32> -> vector<256x64xf32>
    %273 = arith.addf %259, %272 : vector<256x64xf32>
    %c200_296 = arith.constant 200 : index
    %c0_297 = arith.constant 0 : index
    %274 = tpu.strided_load %arg14[%c200_296, %c0_297] {strides = array<i32: 2, 1>} : memref<1192x32xf32, #tpu.memory_space<vmem>>, vector<32x32xf32>
    %c332_298 = arith.constant 332 : index
    %c0_299 = arith.constant 0 : index
    %275 = tpu.strided_load %arg14[%c332_298, %c0_299] {strides = array<i32: 2, 1>} : memref<1192x32xf32, #tpu.memory_space<vmem>>, vector<32x32xf32>
    %c464_300 = arith.constant 464 : index
    %c0_301 = arith.constant 0 : index
    %276 = tpu.strided_load %arg14[%c464_300, %c0_301] {strides = array<i32: 2, 1>} : memref<1192x32xf32, #tpu.memory_space<vmem>>, vector<32x32xf32>
    %c596_302 = arith.constant 596 : index
    %c0_303 = arith.constant 0 : index
    %277 = tpu.strided_load %arg14[%c596_302, %c0_303] {strides = array<i32: 2, 1>} : memref<1192x32xf32, #tpu.memory_space<vmem>>, vector<32x32xf32>
    %c728_304 = arith.constant 728 : index
    %c0_305 = arith.constant 0 : index
    %278 = tpu.strided_load %arg14[%c728_304, %c0_305] {strides = array<i32: 2, 1>} : memref<1192x32xf32, #tpu.memory_space<vmem>>, vector<32x32xf32>
    %c860_306 = arith.constant 860 : index
    %c0_307 = arith.constant 0 : index
    %279 = tpu.strided_load %arg14[%c860_306, %c0_307] {strides = array<i32: 2, 1>} : memref<1192x32xf32, #tpu.memory_space<vmem>>, vector<32x32xf32>
    %c992_308 = arith.constant 992 : index
    %c0_309 = arith.constant 0 : index
    %280 = tpu.strided_load %arg14[%c992_308, %c0_309] {strides = array<i32: 2, 1>} : memref<1192x32xf32, #tpu.memory_space<vmem>>, vector<32x32xf32>
    %c1124 = arith.constant 1124 : index
    %c0_310 = arith.constant 0 : index
    %281 = tpu.strided_load %arg14[%c1124, %c0_310] {strides = array<i32: 2, 1>} : memref<1192x32xf32, #tpu.memory_space<vmem>>, vector<32x32xf32>
    %282 = tpu.concatenate %274, %275, %276, %277, %278, %279, %280, %281 in 0 : vector<32x32xf32>, vector<32x32xf32>, vector<32x32xf32>, vector<32x32xf32>, vector<32x32xf32>, vector<32x32xf32>, vector<32x32xf32>, vector<32x32xf32> -> vector<256x32xf32>
    %283 = arith.truncf %282 : vector<256x32xf32> to vector<256x32xbf16>
    %c14 = arith.constant 14 : index
    %c0_311 = arith.constant 0 : index
    %c0_312 = arith.constant 0 : index
    %284 = vector.load %arg4[%c14, %c0_311, %c0_312] : memref<16x32x64xbf16, #tpu.memory_space<vmem>>, vector<1x32x64xbf16>
    %285 = vector.shape_cast %284 : vector<1x32x64xbf16> to vector<32x64xbf16>
    %cst_313 = arith.constant dense<0.000000e+00> : vector<256x64xf32>
    %286 = tpu.matmul %283, %285, %cst_313 {dimension_numbers = #tpu.dot_dimension_numbers<[1], [0], [0], [1], [0, 0, 1, 1], [], []>} : vector<256x32xbf16>, vector<32x64xbf16>, vector<256x64xf32> -> vector<256x64xf32>
    %287 = arith.addf %273, %286 : vector<256x64xf32>
    %c201_314 = arith.constant 201 : index
    %c0_315 = arith.constant 0 : index
    %288 = tpu.strided_load %arg14[%c201_314, %c0_315] {strides = array<i32: 2, 1>} : memref<1192x32xf32, #tpu.memory_space<vmem>>, vector<32x32xf32>
    %c333_316 = arith.constant 333 : index
    %c0_317 = arith.constant 0 : index
    %289 = tpu.strided_load %arg14[%c333_316, %c0_317] {strides = array<i32: 2, 1>} : memref<1192x32xf32, #tpu.memory_space<vmem>>, vector<32x32xf32>
    %c465_318 = arith.constant 465 : index
    %c0_319 = arith.constant 0 : index
    %290 = tpu.strided_load %arg14[%c465_318, %c0_319] {strides = array<i32: 2, 1>} : memref<1192x32xf32, #tpu.memory_space<vmem>>, vector<32x32xf32>
    %c597_320 = arith.constant 597 : index
    %c0_321 = arith.constant 0 : index
    %291 = tpu.strided_load %arg14[%c597_320, %c0_321] {strides = array<i32: 2, 1>} : memref<1192x32xf32, #tpu.memory_space<vmem>>, vector<32x32xf32>
    %c729_322 = arith.constant 729 : index
    %c0_323 = arith.constant 0 : index
    %292 = tpu.strided_load %arg14[%c729_322, %c0_323] {strides = array<i32: 2, 1>} : memref<1192x32xf32, #tpu.memory_space<vmem>>, vector<32x32xf32>
    %c861_324 = arith.constant 861 : index
    %c0_325 = arith.constant 0 : index
    %293 = tpu.strided_load %arg14[%c861_324, %c0_325] {strides = array<i32: 2, 1>} : memref<1192x32xf32, #tpu.memory_space<vmem>>, vector<32x32xf32>
    %c993_326 = arith.constant 993 : index
    %c0_327 = arith.constant 0 : index
    %294 = tpu.strided_load %arg14[%c993_326, %c0_327] {strides = array<i32: 2, 1>} : memref<1192x32xf32, #tpu.memory_space<vmem>>, vector<32x32xf32>
    %c1125 = arith.constant 1125 : index
    %c0_328 = arith.constant 0 : index
    %295 = tpu.strided_load %arg14[%c1125, %c0_328] {strides = array<i32: 2, 1>} : memref<1192x32xf32, #tpu.memory_space<vmem>>, vector<32x32xf32>
    %296 = tpu.concatenate %288, %289, %290, %291, %292, %293, %294, %295 in 0 : vector<32x32xf32>, vector<32x32xf32>, vector<32x32xf32>, vector<32x32xf32>, vector<32x32xf32>, vector<32x32xf32>, vector<32x32xf32>, vector<32x32xf32> -> vector<256x32xf32>
    %297 = arith.truncf %296 : vector<256x32xf32> to vector<256x32xbf16>
    %c15 = arith.constant 15 : index
    %c0_329 = arith.constant 0 : index
    %c0_330 = arith.constant 0 : index
    %298 = vector.load %arg4[%c15, %c0_329, %c0_330] : memref<16x32x64xbf16, #tpu.memory_space<vmem>>, vector<1x32x64xbf16>
    %299 = vector.shape_cast %298 : vector<1x32x64xbf16> to vector<32x64xbf16>
    %cst_331 = arith.constant dense<0.000000e+00> : vector<256x64xf32>
    %300 = tpu.matmul %297, %299, %cst_331 {dimension_numbers = #tpu.dot_dimension_numbers<[1], [0], [0], [1], [0, 0, 1, 1], [], []>} : vector<256x32xbf16>, vector<32x64xbf16>, vector<256x64xf32> -> vector<256x64xf32>
    %301 = arith.addf %287, %300 : vector<256x64xf32>
    %302 = vector.broadcast %78 : vector<1x64xf32> to vector<256x64xf32>
    %303 = arith.addf %301, %302 : vector<256x64xf32>
    %cst_332 = arith.constant 0.000000e+00 : f32
    %304 = vector.broadcast %cst_332 : f32 to vector<256x64xf32>
    %305 = arith.maximumf %303, %304 : vector<256x64xf32>
    %cst_333 = arith.constant 0.000000e+00 : f32
    %306 = vector.broadcast %cst_333 : f32 to vector<1x64xf32>
    %cst_334 = arith.constant 0.000000e+00 : f32
    %307 = vector.broadcast %cst_334 : f32 to vector<34x64xf32>
    %c0_335 = arith.constant 0 : index
    %c0_336 = arith.constant 0 : index
    %308 = vector.load %arg15[%c0_335, %c0_336] : memref<344x64xf32, #tpu.memory_space<vmem>>, vector<34x64xf32>
    tpu.vector_store %arg15[%c0_335, %c0_336], %307 {strides = array<i32>} : memref<344x64xf32, #tpu.memory_space<vmem>>, vector<34x64xf32>,
    %c306 = arith.constant 306 : index
    %c0_337 = arith.constant 0 : index
    %309 = vector.load %arg15[%c306, %c0_337] : memref<344x64xf32, #tpu.memory_space<vmem>>, vector<34x64xf32>
    tpu.vector_store %arg15[%c306, %c0_337], %307 {strides = array<i32>} : memref<344x64xf32, #tpu.memory_space<vmem>>, vector<34x64xf32>,
    %c34 = arith.constant 34 : index
    %c0_338 = arith.constant 0 : index
    %310 = vector.load %arg15[%c34, %c0_338] : memref<344x64xf32, #tpu.memory_space<vmem>>, vector<1x64xf32>
    tpu.vector_store %arg15[%c34, %c0_338], %306 {strides = array<i32>} : memref<344x64xf32, #tpu.memory_space<vmem>>, vector<1x64xf32>,
    %311 = vector.extract_strided_slice %305 {offsets = [0, 0], sizes = [32, 64], strides = [1, 1]} : vector<256x64xf32> to vector<32x64xf32>
    %c35 = arith.constant 35 : index
    %c0_339 = arith.constant 0 : index
    %312 = vector.load %arg15[%c35, %c0_339] : memref<344x64xf32, #tpu.memory_space<vmem>>, vector<32x64xf32>
    tpu.vector_store %arg15[%c35, %c0_339], %311 {strides = array<i32>} : memref<344x64xf32, #tpu.memory_space<vmem>>, vector<32x64xf32>,
    %c67_340 = arith.constant 67 : index
    %c0_341 = arith.constant 0 : index
    %313 = vector.load %arg15[%c67_340, %c0_341] : memref<344x64xf32, #tpu.memory_space<vmem>>, vector<1x64xf32>
    tpu.vector_store %arg15[%c67_340, %c0_341], %306 {strides = array<i32>} : memref<344x64xf32, #tpu.memory_space<vmem>>, vector<1x64xf32>,
    %c68_342 = arith.constant 68 : index
    %c0_343 = arith.constant 0 : index
    %314 = vector.load %arg15[%c68_342, %c0_343] : memref<344x64xf32, #tpu.memory_space<vmem>>, vector<1x64xf32>
    tpu.vector_store %arg15[%c68_342, %c0_343], %306 {strides = array<i32>} : memref<344x64xf32, #tpu.memory_space<vmem>>, vector<1x64xf32>,
    %315 = vector.extract_strided_slice %305 {offsets = [32, 0], sizes = [32, 64], strides = [1, 1]} : vector<256x64xf32> to vector<32x64xf32>
    %c69_344 = arith.constant 69 : index
    %c0_345 = arith.constant 0 : index
    %316 = vector.load %arg15[%c69_344, %c0_345] : memref<344x64xf32, #tpu.memory_space<vmem>>, vector<32x64xf32>
    tpu.vector_store %arg15[%c69_344, %c0_345], %315 {strides = array<i32>} : memref<344x64xf32, #tpu.memory_space<vmem>>, vector<32x64xf32>,
    %c101 = arith.constant 101 : index
    %c0_346 = arith.constant 0 : index
    %317 = vector.load %arg15[%c101, %c0_346] : memref<344x64xf32, #tpu.memory_space<vmem>>, vector<1x64xf32>
    tpu.vector_store %arg15[%c101, %c0_346], %306 {strides = array<i32>} : memref<344x64xf32, #tpu.memory_space<vmem>>, vector<1x64xf32>,
    %c102 = arith.constant 102 : index
    %c0_347 = arith.constant 0 : index
    %318 = vector.load %arg15[%c102, %c0_347] : memref<344x64xf32, #tpu.memory_space<vmem>>, vector<1x64xf32>
    tpu.vector_store %arg15[%c102, %c0_347], %306 {strides = array<i32>} : memref<344x64xf32, #tpu.memory_space<vmem>>, vector<1x64xf32>,
    %319 = vector.extract_strided_slice %305 {offsets = [64, 0], sizes = [32, 64], strides = [1, 1]} : vector<256x64xf32> to vector<32x64xf32>
    %c103 = arith.constant 103 : index
    %c0_348 = arith.constant 0 : index
    %320 = vector.load %arg15[%c103, %c0_348] : memref<344x64xf32, #tpu.memory_space<vmem>>, vector<32x64xf32>
    tpu.vector_store %arg15[%c103, %c0_348], %319 {strides = array<i32>} : memref<344x64xf32, #tpu.memory_space<vmem>>, vector<32x64xf32>,
    %c135_349 = arith.constant 135 : index
    %c0_350 = arith.constant 0 : index
    %321 = vector.load %arg15[%c135_349, %c0_350] : memref<344x64xf32, #tpu.memory_space<vmem>>, vector<1x64xf32>
    tpu.vector_store %arg15[%c135_349, %c0_350], %306 {strides = array<i32>} : memref<344x64xf32, #tpu.memory_space<vmem>>, vector<1x64xf32>,
    %c136 = arith.constant 136 : index
    %c0_351 = arith.constant 0 : index
    %322 = vector.load %arg15[%c136, %c0_351] : memref<344x64xf32, #tpu.memory_space<vmem>>, vector<1x64xf32>
    tpu.vector_store %arg15[%c136, %c0_351], %306 {strides = array<i32>} : memref<344x64xf32, #tpu.memory_space<vmem>>, vector<1x64xf32>,
    %323 = vector.extract_strided_slice %305 {offsets = [96, 0], sizes = [32, 64], strides = [1, 1]} : vector<256x64xf32> to vector<32x64xf32>
    %c137 = arith.constant 137 : index
    %c0_352 = arith.constant 0 : index
    %324 = vector.load %arg15[%c137, %c0_352] : memref<344x64xf32, #tpu.memory_space<vmem>>, vector<32x64xf32>
    tpu.vector_store %arg15[%c137, %c0_352], %323 {strides = array<i32>} : memref<344x64xf32, #tpu.memory_space<vmem>>, vector<32x64xf32>,
    %c169 = arith.constant 169 : index
    %c0_353 = arith.constant 0 : index
    %325 = vector.load %arg15[%c169, %c0_353] : memref<344x64xf32, #tpu.memory_space<vmem>>, vector<1x64xf32>
    tpu.vector_store %arg15[%c169, %c0_353], %306 {strides = array<i32>} : memref<344x64xf32, #tpu.memory_space<vmem>>, vector<1x64xf32>,
    %c170 = arith.constant 170 : index
    %c0_354 = arith.constant 0 : index
    %326 = vector.load %arg15[%c170, %c0_354] : memref<344x64xf32, #tpu.memory_space<vmem>>, vector<1x64xf32>
    tpu.vector_store %arg15[%c170, %c0_354], %306 {strides = array<i32>} : memref<344x64xf32, #tpu.memory_space<vmem>>, vector<1x64xf32>,
    %327 = vector.extract_strided_slice %305 {offsets = [128, 0], sizes = [32, 64], strides = [1, 1]} : vector<256x64xf32> to vector<32x64xf32>
    %c171 = arith.constant 171 : index
    %c0_355 = arith.constant 0 : index
    %328 = vector.load %arg15[%c171, %c0_355] : memref<344x64xf32, #tpu.memory_space<vmem>>, vector<32x64xf32>
    tpu.vector_store %arg15[%c171, %c0_355], %327 {strides = array<i32>} : memref<344x64xf32, #tpu.memory_space<vmem>>, vector<32x64xf32>,
    %c203 = arith.constant 203 : index
    %c0_356 = arith.constant 0 : index
    %329 = vector.load %arg15[%c203, %c0_356] : memref<344x64xf32, #tpu.memory_space<vmem>>, vector<1x64xf32>
    tpu.vector_store %arg15[%c203, %c0_356], %306 {strides = array<i32>} : memref<344x64xf32, #tpu.memory_space<vmem>>, vector<1x64xf32>,
    %c204 = arith.constant 204 : index
    %c0_357 = arith.constant 0 : index
    %330 = vector.load %arg15[%c204, %c0_357] : memref<344x64xf32, #tpu.memory_space<vmem>>, vector<1x64xf32>
    tpu.vector_store %arg15[%c204, %c0_357], %306 {strides = array<i32>} : memref<344x64xf32, #tpu.memory_space<vmem>>, vector<1x64xf32>,
    %331 = vector.extract_strided_slice %305 {offsets = [160, 0], sizes = [32, 64], strides = [1, 1]} : vector<256x64xf32> to vector<32x64xf32>
    %c205 = arith.constant 205 : index
    %c0_358 = arith.constant 0 : index
    %332 = vector.load %arg15[%c205, %c0_358] : memref<344x64xf32, #tpu.memory_space<vmem>>, vector<32x64xf32>
    tpu.vector_store %arg15[%c205, %c0_358], %331 {strides = array<i32>} : memref<344x64xf32, #tpu.memory_space<vmem>>, vector<32x64xf32>,
    %c237 = arith.constant 237 : index
    %c0_359 = arith.constant 0 : index
    %333 = vector.load %arg15[%c237, %c0_359] : memref<344x64xf32, #tpu.memory_space<vmem>>, vector<1x64xf32>
    tpu.vector_store %arg15[%c237, %c0_359], %306 {strides = array<i32>} : memref<344x64xf32, #tpu.memory_space<vmem>>, vector<1x64xf32>,
    %c238 = arith.constant 238 : index
    %c0_360 = arith.constant 0 : index
    %334 = vector.load %arg15[%c238, %c0_360] : memref<344x64xf32, #tpu.memory_space<vmem>>, vector<1x64xf32>
    tpu.vector_store %arg15[%c238, %c0_360], %306 {strides = array<i32>} : memref<344x64xf32, #tpu.memory_space<vmem>>, vector<1x64xf32>,
    %335 = vector.extract_strided_slice %305 {offsets = [192, 0], sizes = [32, 64], strides = [1, 1]} : vector<256x64xf32> to vector<32x64xf32>
    %c239 = arith.constant 239 : index
    %c0_361 = arith.constant 0 : index
    %336 = vector.load %arg15[%c239, %c0_361] : memref<344x64xf32, #tpu.memory_space<vmem>>, vector<32x64xf32>
    tpu.vector_store %arg15[%c239, %c0_361], %335 {strides = array<i32>} : memref<344x64xf32, #tpu.memory_space<vmem>>, vector<32x64xf32>,
    %c271 = arith.constant 271 : index
    %c0_362 = arith.constant 0 : index
    %337 = vector.load %arg15[%c271, %c0_362] : memref<344x64xf32, #tpu.memory_space<vmem>>, vector<1x64xf32>
    tpu.vector_store %arg15[%c271, %c0_362], %306 {strides = array<i32>} : memref<344x64xf32, #tpu.memory_space<vmem>>, vector<1x64xf32>,
    %c272 = arith.constant 272 : index
    %c0_363 = arith.constant 0 : index
    %338 = vector.load %arg15[%c272, %c0_363] : memref<344x64xf32, #tpu.memory_space<vmem>>, vector<1x64xf32>
    tpu.vector_store %arg15[%c272, %c0_363], %306 {strides = array<i32>} : memref<344x64xf32, #tpu.memory_space<vmem>>, vector<1x64xf32>,
    %339 = vector.extract_strided_slice %305 {offsets = [224, 0], sizes = [32, 64], strides = [1, 1]} : vector<256x64xf32> to vector<32x64xf32>
    %c273 = arith.constant 273 : index
    %c0_364 = arith.constant 0 : index
    %340 = vector.load %arg15[%c273, %c0_364] : memref<344x64xf32, #tpu.memory_space<vmem>>, vector<32x64xf32>
    tpu.vector_store %arg15[%c273, %c0_364], %339 {strides = array<i32>} : memref<344x64xf32, #tpu.memory_space<vmem>>, vector<32x64xf32>,
    %c305 = arith.constant 305 : index
    %c0_365 = arith.constant 0 : index
    %341 = vector.load %arg15[%c305, %c0_365] : memref<344x64xf32, #tpu.memory_space<vmem>>, vector<1x64xf32>
    tpu.vector_store %arg15[%c305, %c0_365], %306 {strides = array<i32>} : memref<344x64xf32, #tpu.memory_space<vmem>>, vector<1x64xf32>,
    %c0_366 = arith.constant 0 : index
    %c0_367 = arith.constant 0 : index
    %342 = vector.load %arg7[%c0_366, %c0_367] : memref<1x128xf32, #tpu.memory_space<vmem>>, vector<1x128xf32>
    %c0_368 = arith.constant 0 : index
    %c0_369 = arith.constant 0 : index
    %343 = tpu.strided_load %arg15[%c0_368, %c0_369] {strides = array<i32: 2, 1>} : memref<344x64xf32, #tpu.memory_space<vmem>>, vector<16x64xf32>
    %c68_370 = arith.constant 68 : index
    %c0_371 = arith.constant 0 : index
    %344 = tpu.strided_load %arg15[%c68_370, %c0_371] {strides = array<i32: 2, 1>} : memref<344x64xf32, #tpu.memory_space<vmem>>, vector<16x64xf32>
    %c136_372 = arith.constant 136 : index
    %c0_373 = arith.constant 0 : index
    %345 = tpu.strided_load %arg15[%c136_372, %c0_373] {strides = array<i32: 2, 1>} : memref<344x64xf32, #tpu.memory_space<vmem>>, vector<16x64xf32>
    %c204_374 = arith.constant 204 : index
    %c0_375 = arith.constant 0 : index
    %346 = tpu.strided_load %arg15[%c204_374, %c0_375] {strides = array<i32: 2, 1>} : memref<344x64xf32, #tpu.memory_space<vmem>>, vector<16x64xf32>
    %347 = tpu.concatenate %343, %344, %345, %346 in 0 : vector<16x64xf32>, vector<16x64xf32>, vector<16x64xf32>, vector<16x64xf32> -> vector<64x64xf32>
    %348 = arith.truncf %347 : vector<64x64xf32> to vector<64x64xbf16>
    %c0_376 = arith.constant 0 : index
    %c0_377 = arith.constant 0 : index
    %c0_378 = arith.constant 0 : index
    %349 = vector.load %arg6[%c0_376, %c0_377, %c0_378] : memref<16x64x128xbf16, #tpu.memory_space<vmem>>, vector<1x64x128xbf16>
    %350 = vector.shape_cast %349 : vector<1x64x128xbf16> to vector<64x128xbf16>
    %cst_379 = arith.constant dense<0.000000e+00> : vector<64x128xf32>
    %351 = tpu.matmul %348, %350, %cst_379 {dimension_numbers = #tpu.dot_dimension_numbers<[1], [0], [0], [1], [0, 0, 1, 1], [], []>} : vector<64x64xbf16>, vector<64x128xbf16>, vector<64x128xf32> -> vector<64x128xf32>
    %c1_380 = arith.constant 1 : index
    %c0_381 = arith.constant 0 : index
    %352 = tpu.strided_load %arg15[%c1_380, %c0_381] {strides = array<i32: 2, 1>} : memref<344x64xf32, #tpu.memory_space<vmem>>, vector<16x64xf32>
    %c69_382 = arith.constant 69 : index
    %c0_383 = arith.constant 0 : index
    %353 = tpu.strided_load %arg15[%c69_382, %c0_383] {strides = array<i32: 2, 1>} : memref<344x64xf32, #tpu.memory_space<vmem>>, vector<16x64xf32>
    %c137_384 = arith.constant 137 : index
    %c0_385 = arith.constant 0 : index
    %354 = tpu.strided_load %arg15[%c137_384, %c0_385] {strides = array<i32: 2, 1>} : memref<344x64xf32, #tpu.memory_space<vmem>>, vector<16x64xf32>
    %c205_386 = arith.constant 205 : index
    %c0_387 = arith.constant 0 : index
    %355 = tpu.strided_load %arg15[%c205_386, %c0_387] {strides = array<i32: 2, 1>} : memref<344x64xf32, #tpu.memory_space<vmem>>, vector<16x64xf32>
    %356 = tpu.concatenate %352, %353, %354, %355 in 0 : vector<16x64xf32>, vector<16x64xf32>, vector<16x64xf32>, vector<16x64xf32> -> vector<64x64xf32>
    %357 = arith.truncf %356 : vector<64x64xf32> to vector<64x64xbf16>
    %c1_388 = arith.constant 1 : index
    %c0_389 = arith.constant 0 : index
    %c0_390 = arith.constant 0 : index
    %358 = vector.load %arg6[%c1_388, %c0_389, %c0_390] : memref<16x64x128xbf16, #tpu.memory_space<vmem>>, vector<1x64x128xbf16>
    %359 = vector.shape_cast %358 : vector<1x64x128xbf16> to vector<64x128xbf16>
    %cst_391 = arith.constant dense<0.000000e+00> : vector<64x128xf32>
    %360 = tpu.matmul %357, %359, %cst_391 {dimension_numbers = #tpu.dot_dimension_numbers<[1], [0], [0], [1], [0, 0, 1, 1], [], []>} : vector<64x64xbf16>, vector<64x128xbf16>, vector<64x128xf32> -> vector<64x128xf32>
    %361 = arith.addf %351, %360 : vector<64x128xf32>
    %c2_392 = arith.constant 2 : index
    %c0_393 = arith.constant 0 : index
    %362 = tpu.strided_load %arg15[%c2_392, %c0_393] {strides = array<i32: 2, 1>} : memref<344x64xf32, #tpu.memory_space<vmem>>, vector<16x64xf32>
    %c70 = arith.constant 70 : index
    %c0_394 = arith.constant 0 : index
    %363 = tpu.strided_load %arg15[%c70, %c0_394] {strides = array<i32: 2, 1>} : memref<344x64xf32, #tpu.memory_space<vmem>>, vector<16x64xf32>
    %c138 = arith.constant 138 : index
    %c0_395 = arith.constant 0 : index
    %364 = tpu.strided_load %arg15[%c138, %c0_395] {strides = array<i32: 2, 1>} : memref<344x64xf32, #tpu.memory_space<vmem>>, vector<16x64xf32>
    %c206 = arith.constant 206 : index
    %c0_396 = arith.constant 0 : index
    %365 = tpu.strided_load %arg15[%c206, %c0_396] {strides = array<i32: 2, 1>} : memref<344x64xf32, #tpu.memory_space<vmem>>, vector<16x64xf32>
    %366 = tpu.concatenate %362, %363, %364, %365 in 0 : vector<16x64xf32>, vector<16x64xf32>, vector<16x64xf32>, vector<16x64xf32> -> vector<64x64xf32>
    %367 = arith.truncf %366 : vector<64x64xf32> to vector<64x64xbf16>
    %c2_397 = arith.constant 2 : index
    %c0_398 = arith.constant 0 : index
    %c0_399 = arith.constant 0 : index
    %368 = vector.load %arg6[%c2_397, %c0_398, %c0_399] : memref<16x64x128xbf16, #tpu.memory_space<vmem>>, vector<1x64x128xbf16>
    %369 = vector.shape_cast %368 : vector<1x64x128xbf16> to vector<64x128xbf16>
    %cst_400 = arith.constant dense<0.000000e+00> : vector<64x128xf32>
    %370 = tpu.matmul %367, %369, %cst_400 {dimension_numbers = #tpu.dot_dimension_numbers<[1], [0], [0], [1], [0, 0, 1, 1], [], []>} : vector<64x64xbf16>, vector<64x128xbf16>, vector<64x128xf32> -> vector<64x128xf32>
    %371 = arith.addf %361, %370 : vector<64x128xf32>
    %c3_401 = arith.constant 3 : index
    %c0_402 = arith.constant 0 : index
    %372 = tpu.strided_load %arg15[%c3_401, %c0_402] {strides = array<i32: 2, 1>} : memref<344x64xf32, #tpu.memory_space<vmem>>, vector<16x64xf32>
    %c71 = arith.constant 71 : index
    %c0_403 = arith.constant 0 : index
    %373 = tpu.strided_load %arg15[%c71, %c0_403] {strides = array<i32: 2, 1>} : memref<344x64xf32, #tpu.memory_space<vmem>>, vector<16x64xf32>
    %c139 = arith.constant 139 : index
    %c0_404 = arith.constant 0 : index
    %374 = tpu.strided_load %arg15[%c139, %c0_404] {strides = array<i32: 2, 1>} : memref<344x64xf32, #tpu.memory_space<vmem>>, vector<16x64xf32>
    %c207 = arith.constant 207 : index
    %c0_405 = arith.constant 0 : index
    %375 = tpu.strided_load %arg15[%c207, %c0_405] {strides = array<i32: 2, 1>} : memref<344x64xf32, #tpu.memory_space<vmem>>, vector<16x64xf32>
    %376 = tpu.concatenate %372, %373, %374, %375 in 0 : vector<16x64xf32>, vector<16x64xf32>, vector<16x64xf32>, vector<16x64xf32> -> vector<64x64xf32>
    %377 = arith.truncf %376 : vector<64x64xf32> to vector<64x64xbf16>
    %c3_406 = arith.constant 3 : index
    %c0_407 = arith.constant 0 : index
    %c0_408 = arith.constant 0 : index
    %378 = vector.load %arg6[%c3_406, %c0_407, %c0_408] : memref<16x64x128xbf16, #tpu.memory_space<vmem>>, vector<1x64x128xbf16>
    %379 = vector.shape_cast %378 : vector<1x64x128xbf16> to vector<64x128xbf16>
    %cst_409 = arith.constant dense<0.000000e+00> : vector<64x128xf32>
    %380 = tpu.matmul %377, %379, %cst_409 {dimension_numbers = #tpu.dot_dimension_numbers<[1], [0], [0], [1], [0, 0, 1, 1], [], []>} : vector<64x64xbf16>, vector<64x128xbf16>, vector<64x128xf32> -> vector<64x128xf32>
    %381 = arith.addf %371, %380 : vector<64x128xf32>
    %c34_410 = arith.constant 34 : index
    %c0_411 = arith.constant 0 : index
    %382 = tpu.strided_load %arg15[%c34_410, %c0_411] {strides = array<i32: 2, 1>} : memref<344x64xf32, #tpu.memory_space<vmem>>, vector<16x64xf32>
    %c102_412 = arith.constant 102 : index
    %c0_413 = arith.constant 0 : index
    %383 = tpu.strided_load %arg15[%c102_412, %c0_413] {strides = array<i32: 2, 1>} : memref<344x64xf32, #tpu.memory_space<vmem>>, vector<16x64xf32>
    %c170_414 = arith.constant 170 : index
    %c0_415 = arith.constant 0 : index
    %384 = tpu.strided_load %arg15[%c170_414, %c0_415] {strides = array<i32: 2, 1>} : memref<344x64xf32, #tpu.memory_space<vmem>>, vector<16x64xf32>
    %c238_416 = arith.constant 238 : index
    %c0_417 = arith.constant 0 : index
    %385 = tpu.strided_load %arg15[%c238_416, %c0_417] {strides = array<i32: 2, 1>} : memref<344x64xf32, #tpu.memory_space<vmem>>, vector<16x64xf32>
    %386 = tpu.concatenate %382, %383, %384, %385 in 0 : vector<16x64xf32>, vector<16x64xf32>, vector<16x64xf32>, vector<16x64xf32> -> vector<64x64xf32>
    %387 = arith.truncf %386 : vector<64x64xf32> to vector<64x64xbf16>
    %c4_418 = arith.constant 4 : index
    %c0_419 = arith.constant 0 : index
    %c0_420 = arith.constant 0 : index
    %388 = vector.load %arg6[%c4_418, %c0_419, %c0_420] : memref<16x64x128xbf16, #tpu.memory_space<vmem>>, vector<1x64x128xbf16>
    %389 = vector.shape_cast %388 : vector<1x64x128xbf16> to vector<64x128xbf16>
    %cst_421 = arith.constant dense<0.000000e+00> : vector<64x128xf32>
    %390 = tpu.matmul %387, %389, %cst_421 {dimension_numbers = #tpu.dot_dimension_numbers<[1], [0], [0], [1], [0, 0, 1, 1], [], []>} : vector<64x64xbf16>, vector<64x128xbf16>, vector<64x128xf32> -> vector<64x128xf32>
    %391 = arith.addf %381, %390 : vector<64x128xf32>
    %c35_422 = arith.constant 35 : index
    %c0_423 = arith.constant 0 : index
    %392 = tpu.strided_load %arg15[%c35_422, %c0_423] {strides = array<i32: 2, 1>} : memref<344x64xf32, #tpu.memory_space<vmem>>, vector<16x64xf32>
    %c103_424 = arith.constant 103 : index
    %c0_425 = arith.constant 0 : index
    %393 = tpu.strided_load %arg15[%c103_424, %c0_425] {strides = array<i32: 2, 1>} : memref<344x64xf32, #tpu.memory_space<vmem>>, vector<16x64xf32>
    %c171_426 = arith.constant 171 : index
    %c0_427 = arith.constant 0 : index
    %394 = tpu.strided_load %arg15[%c171_426, %c0_427] {strides = array<i32: 2, 1>} : memref<344x64xf32, #tpu.memory_space<vmem>>, vector<16x64xf32>
    %c239_428 = arith.constant 239 : index
    %c0_429 = arith.constant 0 : index
    %395 = tpu.strided_load %arg15[%c239_428, %c0_429] {strides = array<i32: 2, 1>} : memref<344x64xf32, #tpu.memory_space<vmem>>, vector<16x64xf32>
    %396 = tpu.concatenate %392, %393, %394, %395 in 0 : vector<16x64xf32>, vector<16x64xf32>, vector<16x64xf32>, vector<16x64xf32> -> vector<64x64xf32>
    %397 = arith.truncf %396 : vector<64x64xf32> to vector<64x64xbf16>
    %c5_430 = arith.constant 5 : index
    %c0_431 = arith.constant 0 : index
    %c0_432 = arith.constant 0 : index
    %398 = vector.load %arg6[%c5_430, %c0_431, %c0_432] : memref<16x64x128xbf16, #tpu.memory_space<vmem>>, vector<1x64x128xbf16>
    %399 = vector.shape_cast %398 : vector<1x64x128xbf16> to vector<64x128xbf16>
    %cst_433 = arith.constant dense<0.000000e+00> : vector<64x128xf32>
    %400 = tpu.matmul %397, %399, %cst_433 {dimension_numbers = #tpu.dot_dimension_numbers<[1], [0], [0], [1], [0, 0, 1, 1], [], []>} : vector<64x64xbf16>, vector<64x128xbf16>, vector<64x128xf32> -> vector<64x128xf32>
    %401 = arith.addf %391, %400 : vector<64x128xf32>
    %c36 = arith.constant 36 : index
    %c0_434 = arith.constant 0 : index
    %402 = tpu.strided_load %arg15[%c36, %c0_434] {strides = array<i32: 2, 1>} : memref<344x64xf32, #tpu.memory_space<vmem>>, vector<16x64xf32>
    %c104 = arith.constant 104 : index
    %c0_435 = arith.constant 0 : index
    %403 = tpu.strided_load %arg15[%c104, %c0_435] {strides = array<i32: 2, 1>} : memref<344x64xf32, #tpu.memory_space<vmem>>, vector<16x64xf32>
    %c172 = arith.constant 172 : index
    %c0_436 = arith.constant 0 : index
    %404 = tpu.strided_load %arg15[%c172, %c0_436] {strides = array<i32: 2, 1>} : memref<344x64xf32, #tpu.memory_space<vmem>>, vector<16x64xf32>
    %c240 = arith.constant 240 : index
    %c0_437 = arith.constant 0 : index
    %405 = tpu.strided_load %arg15[%c240, %c0_437] {strides = array<i32: 2, 1>} : memref<344x64xf32, #tpu.memory_space<vmem>>, vector<16x64xf32>
    %406 = tpu.concatenate %402, %403, %404, %405 in 0 : vector<16x64xf32>, vector<16x64xf32>, vector<16x64xf32>, vector<16x64xf32> -> vector<64x64xf32>
    %407 = arith.truncf %406 : vector<64x64xf32> to vector<64x64xbf16>
    %c6_438 = arith.constant 6 : index
    %c0_439 = arith.constant 0 : index
    %c0_440 = arith.constant 0 : index
    %408 = vector.load %arg6[%c6_438, %c0_439, %c0_440] : memref<16x64x128xbf16, #tpu.memory_space<vmem>>, vector<1x64x128xbf16>
    %409 = vector.shape_cast %408 : vector<1x64x128xbf16> to vector<64x128xbf16>
    %cst_441 = arith.constant dense<0.000000e+00> : vector<64x128xf32>
    %410 = tpu.matmul %407, %409, %cst_441 {dimension_numbers = #tpu.dot_dimension_numbers<[1], [0], [0], [1], [0, 0, 1, 1], [], []>} : vector<64x64xbf16>, vector<64x128xbf16>, vector<64x128xf32> -> vector<64x128xf32>
    %411 = arith.addf %401, %410 : vector<64x128xf32>
    %c37 = arith.constant 37 : index
    %c0_442 = arith.constant 0 : index
    %412 = tpu.strided_load %arg15[%c37, %c0_442] {strides = array<i32: 2, 1>} : memref<344x64xf32, #tpu.memory_space<vmem>>, vector<16x64xf32>
    %c105 = arith.constant 105 : index
    %c0_443 = arith.constant 0 : index
    %413 = tpu.strided_load %arg15[%c105, %c0_443] {strides = array<i32: 2, 1>} : memref<344x64xf32, #tpu.memory_space<vmem>>, vector<16x64xf32>
    %c173 = arith.constant 173 : index
    %c0_444 = arith.constant 0 : index
    %414 = tpu.strided_load %arg15[%c173, %c0_444] {strides = array<i32: 2, 1>} : memref<344x64xf32, #tpu.memory_space<vmem>>, vector<16x64xf32>
    %c241 = arith.constant 241 : index
    %c0_445 = arith.constant 0 : index
    %415 = tpu.strided_load %arg15[%c241, %c0_445] {strides = array<i32: 2, 1>} : memref<344x64xf32, #tpu.memory_space<vmem>>, vector<16x64xf32>
    %416 = tpu.concatenate %412, %413, %414, %415 in 0 : vector<16x64xf32>, vector<16x64xf32>, vector<16x64xf32>, vector<16x64xf32> -> vector<64x64xf32>
    %417 = arith.truncf %416 : vector<64x64xf32> to vector<64x64xbf16>
    %c7_446 = arith.constant 7 : index
    %c0_447 = arith.constant 0 : index
    %c0_448 = arith.constant 0 : index
    %418 = vector.load %arg6[%c7_446, %c0_447, %c0_448] : memref<16x64x128xbf16, #tpu.memory_space<vmem>>, vector<1x64x128xbf16>
    %419 = vector.shape_cast %418 : vector<1x64x128xbf16> to vector<64x128xbf16>
    %cst_449 = arith.constant dense<0.000000e+00> : vector<64x128xf32>
    %420 = tpu.matmul %417, %419, %cst_449 {dimension_numbers = #tpu.dot_dimension_numbers<[1], [0], [0], [1], [0, 0, 1, 1], [], []>} : vector<64x64xbf16>, vector<64x128xbf16>, vector<64x128xf32> -> vector<64x128xf32>
    %421 = arith.addf %411, %420 : vector<64x128xf32>
    %c68_450 = arith.constant 68 : index
    %c0_451 = arith.constant 0 : index
    %422 = tpu.strided_load %arg15[%c68_450, %c0_451] {strides = array<i32: 2, 1>} : memref<344x64xf32, #tpu.memory_space<vmem>>, vector<16x64xf32>
    %c136_452 = arith.constant 136 : index
    %c0_453 = arith.constant 0 : index
    %423 = tpu.strided_load %arg15[%c136_452, %c0_453] {strides = array<i32: 2, 1>} : memref<344x64xf32, #tpu.memory_space<vmem>>, vector<16x64xf32>
    %c204_454 = arith.constant 204 : index
    %c0_455 = arith.constant 0 : index
    %424 = tpu.strided_load %arg15[%c204_454, %c0_455] {strides = array<i32: 2, 1>} : memref<344x64xf32, #tpu.memory_space<vmem>>, vector<16x64xf32>
    %c272_456 = arith.constant 272 : index
    %c0_457 = arith.constant 0 : index
    %425 = tpu.strided_load %arg15[%c272_456, %c0_457] {strides = array<i32: 2, 1>} : memref<344x64xf32, #tpu.memory_space<vmem>>, vector<16x64xf32>
    %426 = tpu.concatenate %422, %423, %424, %425 in 0 : vector<16x64xf32>, vector<16x64xf32>, vector<16x64xf32>, vector<16x64xf32> -> vector<64x64xf32>
    %427 = arith.truncf %426 : vector<64x64xf32> to vector<64x64xbf16>
    %c8_458 = arith.constant 8 : index
    %c0_459 = arith.constant 0 : index
    %c0_460 = arith.constant 0 : index
    %428 = vector.load %arg6[%c8_458, %c0_459, %c0_460] : memref<16x64x128xbf16, #tpu.memory_space<vmem>>, vector<1x64x128xbf16>
    %429 = vector.shape_cast %428 : vector<1x64x128xbf16> to vector<64x128xbf16>
    %cst_461 = arith.constant dense<0.000000e+00> : vector<64x128xf32>
    %430 = tpu.matmul %427, %429, %cst_461 {dimension_numbers = #tpu.dot_dimension_numbers<[1], [0], [0], [1], [0, 0, 1, 1], [], []>} : vector<64x64xbf16>, vector<64x128xbf16>, vector<64x128xf32> -> vector<64x128xf32>
    %431 = arith.addf %421, %430 : vector<64x128xf32>
    %c69_462 = arith.constant 69 : index
    %c0_463 = arith.constant 0 : index
    %432 = tpu.strided_load %arg15[%c69_462, %c0_463] {strides = array<i32: 2, 1>} : memref<344x64xf32, #tpu.memory_space<vmem>>, vector<16x64xf32>
    %c137_464 = arith.constant 137 : index
    %c0_465 = arith.constant 0 : index
    %433 = tpu.strided_load %arg15[%c137_464, %c0_465] {strides = array<i32: 2, 1>} : memref<344x64xf32, #tpu.memory_space<vmem>>, vector<16x64xf32>
    %c205_466 = arith.constant 205 : index
    %c0_467 = arith.constant 0 : index
    %434 = tpu.strided_load %arg15[%c205_466, %c0_467] {strides = array<i32: 2, 1>} : memref<344x64xf32, #tpu.memory_space<vmem>>, vector<16x64xf32>
    %c273_468 = arith.constant 273 : index
    %c0_469 = arith.constant 0 : index
    %435 = tpu.strided_load %arg15[%c273_468, %c0_469] {strides = array<i32: 2, 1>} : memref<344x64xf32, #tpu.memory_space<vmem>>, vector<16x64xf32>
    %436 = tpu.concatenate %432, %433, %434, %435 in 0 : vector<16x64xf32>, vector<16x64xf32>, vector<16x64xf32>, vector<16x64xf32> -> vector<64x64xf32>
    %437 = arith.truncf %436 : vector<64x64xf32> to vector<64x64xbf16>
    %c9_470 = arith.constant 9 : index
    %c0_471 = arith.constant 0 : index
    %c0_472 = arith.constant 0 : index
    %438 = vector.load %arg6[%c9_470, %c0_471, %c0_472] : memref<16x64x128xbf16, #tpu.memory_space<vmem>>, vector<1x64x128xbf16>
    %439 = vector.shape_cast %438 : vector<1x64x128xbf16> to vector<64x128xbf16>
    %cst_473 = arith.constant dense<0.000000e+00> : vector<64x128xf32>
    %440 = tpu.matmul %437, %439, %cst_473 {dimension_numbers = #tpu.dot_dimension_numbers<[1], [0], [0], [1], [0, 0, 1, 1], [], []>} : vector<64x64xbf16>, vector<64x128xbf16>, vector<64x128xf32> -> vector<64x128xf32>
    %441 = arith.addf %431, %440 : vector<64x128xf32>
    %c70_474 = arith.constant 70 : index
    %c0_475 = arith.constant 0 : index
    %442 = tpu.strided_load %arg15[%c70_474, %c0_475] {strides = array<i32: 2, 1>} : memref<344x64xf32, #tpu.memory_space<vmem>>, vector<16x64xf32>
    %c138_476 = arith.constant 138 : index
    %c0_477 = arith.constant 0 : index
    %443 = tpu.strided_load %arg15[%c138_476, %c0_477] {strides = array<i32: 2, 1>} : memref<344x64xf32, #tpu.memory_space<vmem>>, vector<16x64xf32>
    %c206_478 = arith.constant 206 : index
    %c0_479 = arith.constant 0 : index
    %444 = tpu.strided_load %arg15[%c206_478, %c0_479] {strides = array<i32: 2, 1>} : memref<344x64xf32, #tpu.memory_space<vmem>>, vector<16x64xf32>
    %c274 = arith.constant 274 : index
    %c0_480 = arith.constant 0 : index
    %445 = tpu.strided_load %arg15[%c274, %c0_480] {strides = array<i32: 2, 1>} : memref<344x64xf32, #tpu.memory_space<vmem>>, vector<16x64xf32>
    %446 = tpu.concatenate %442, %443, %444, %445 in 0 : vector<16x64xf32>, vector<16x64xf32>, vector<16x64xf32>, vector<16x64xf32> -> vector<64x64xf32>
    %447 = arith.truncf %446 : vector<64x64xf32> to vector<64x64xbf16>
    %c10_481 = arith.constant 10 : index
    %c0_482 = arith.constant 0 : index
    %c0_483 = arith.constant 0 : index
    %448 = vector.load %arg6[%c10_481, %c0_482, %c0_483] : memref<16x64x128xbf16, #tpu.memory_space<vmem>>, vector<1x64x128xbf16>
    %449 = vector.shape_cast %448 : vector<1x64x128xbf16> to vector<64x128xbf16>
    %cst_484 = arith.constant dense<0.000000e+00> : vector<64x128xf32>
    %450 = tpu.matmul %447, %449, %cst_484 {dimension_numbers = #tpu.dot_dimension_numbers<[1], [0], [0], [1], [0, 0, 1, 1], [], []>} : vector<64x64xbf16>, vector<64x128xbf16>, vector<64x128xf32> -> vector<64x128xf32>
    %451 = arith.addf %441, %450 : vector<64x128xf32>
    %c71_485 = arith.constant 71 : index
    %c0_486 = arith.constant 0 : index
    %452 = tpu.strided_load %arg15[%c71_485, %c0_486] {strides = array<i32: 2, 1>} : memref<344x64xf32, #tpu.memory_space<vmem>>, vector<16x64xf32>
    %c139_487 = arith.constant 139 : index
    %c0_488 = arith.constant 0 : index
    %453 = tpu.strided_load %arg15[%c139_487, %c0_488] {strides = array<i32: 2, 1>} : memref<344x64xf32, #tpu.memory_space<vmem>>, vector<16x64xf32>
    %c207_489 = arith.constant 207 : index
    %c0_490 = arith.constant 0 : index
    %454 = tpu.strided_load %arg15[%c207_489, %c0_490] {strides = array<i32: 2, 1>} : memref<344x64xf32, #tpu.memory_space<vmem>>, vector<16x64xf32>
    %c275 = arith.constant 275 : index
    %c0_491 = arith.constant 0 : index
    %455 = tpu.strided_load %arg15[%c275, %c0_491] {strides = array<i32: 2, 1>} : memref<344x64xf32, #tpu.memory_space<vmem>>, vector<16x64xf32>
    %456 = tpu.concatenate %452, %453, %454, %455 in 0 : vector<16x64xf32>, vector<16x64xf32>, vector<16x64xf32>, vector<16x64xf32> -> vector<64x64xf32>
    %457 = arith.truncf %456 : vector<64x64xf32> to vector<64x64xbf16>
    %c11_492 = arith.constant 11 : index
    %c0_493 = arith.constant 0 : index
    %c0_494 = arith.constant 0 : index
    %458 = vector.load %arg6[%c11_492, %c0_493, %c0_494] : memref<16x64x128xbf16, #tpu.memory_space<vmem>>, vector<1x64x128xbf16>
    %459 = vector.shape_cast %458 : vector<1x64x128xbf16> to vector<64x128xbf16>
    %cst_495 = arith.constant dense<0.000000e+00> : vector<64x128xf32>
    %460 = tpu.matmul %457, %459, %cst_495 {dimension_numbers = #tpu.dot_dimension_numbers<[1], [0], [0], [1], [0, 0, 1, 1], [], []>} : vector<64x64xbf16>, vector<64x128xbf16>, vector<64x128xf32> -> vector<64x128xf32>
    %461 = arith.addf %451, %460 : vector<64x128xf32>
    %c102_496 = arith.constant 102 : index
    %c0_497 = arith.constant 0 : index
    %462 = tpu.strided_load %arg15[%c102_496, %c0_497] {strides = array<i32: 2, 1>} : memref<344x64xf32, #tpu.memory_space<vmem>>, vector<16x64xf32>
    %c170_498 = arith.constant 170 : index
    %c0_499 = arith.constant 0 : index
    %463 = tpu.strided_load %arg15[%c170_498, %c0_499] {strides = array<i32: 2, 1>} : memref<344x64xf32, #tpu.memory_space<vmem>>, vector<16x64xf32>
    %c238_500 = arith.constant 238 : index
    %c0_501 = arith.constant 0 : index
    %464 = tpu.strided_load %arg15[%c238_500, %c0_501] {strides = array<i32: 2, 1>} : memref<344x64xf32, #tpu.memory_space<vmem>>, vector<16x64xf32>
    %c306_502 = arith.constant 306 : index
    %c0_503 = arith.constant 0 : index
    %465 = tpu.strided_load %arg15[%c306_502, %c0_503] {strides = array<i32: 2, 1>} : memref<344x64xf32, #tpu.memory_space<vmem>>, vector<16x64xf32>
    %466 = tpu.concatenate %462, %463, %464, %465 in 0 : vector<16x64xf32>, vector<16x64xf32>, vector<16x64xf32>, vector<16x64xf32> -> vector<64x64xf32>
    %467 = arith.truncf %466 : vector<64x64xf32> to vector<64x64xbf16>
    %c12_504 = arith.constant 12 : index
    %c0_505 = arith.constant 0 : index
    %c0_506 = arith.constant 0 : index
    %468 = vector.load %arg6[%c12_504, %c0_505, %c0_506] : memref<16x64x128xbf16, #tpu.memory_space<vmem>>, vector<1x64x128xbf16>
    %469 = vector.shape_cast %468 : vector<1x64x128xbf16> to vector<64x128xbf16>
    %cst_507 = arith.constant dense<0.000000e+00> : vector<64x128xf32>
    %470 = tpu.matmul %467, %469, %cst_507 {dimension_numbers = #tpu.dot_dimension_numbers<[1], [0], [0], [1], [0, 0, 1, 1], [], []>} : vector<64x64xbf16>, vector<64x128xbf16>, vector<64x128xf32> -> vector<64x128xf32>
    %471 = arith.addf %461, %470 : vector<64x128xf32>
    %c103_508 = arith.constant 103 : index
    %c0_509 = arith.constant 0 : index
    %472 = tpu.strided_load %arg15[%c103_508, %c0_509] {strides = array<i32: 2, 1>} : memref<344x64xf32, #tpu.memory_space<vmem>>, vector<16x64xf32>
    %c171_510 = arith.constant 171 : index
    %c0_511 = arith.constant 0 : index
    %473 = tpu.strided_load %arg15[%c171_510, %c0_511] {strides = array<i32: 2, 1>} : memref<344x64xf32, #tpu.memory_space<vmem>>, vector<16x64xf32>
    %c239_512 = arith.constant 239 : index
    %c0_513 = arith.constant 0 : index
    %474 = tpu.strided_load %arg15[%c239_512, %c0_513] {strides = array<i32: 2, 1>} : memref<344x64xf32, #tpu.memory_space<vmem>>, vector<16x64xf32>
    %c307 = arith.constant 307 : index
    %c0_514 = arith.constant 0 : index
    %475 = tpu.strided_load %arg15[%c307, %c0_514] {strides = array<i32: 2, 1>} : memref<344x64xf32, #tpu.memory_space<vmem>>, vector<16x64xf32>
    %476 = tpu.concatenate %472, %473, %474, %475 in 0 : vector<16x64xf32>, vector<16x64xf32>, vector<16x64xf32>, vector<16x64xf32> -> vector<64x64xf32>
    %477 = arith.truncf %476 : vector<64x64xf32> to vector<64x64xbf16>
    %c13_515 = arith.constant 13 : index
    %c0_516 = arith.constant 0 : index
    %c0_517 = arith.constant 0 : index
    %478 = vector.load %arg6[%c13_515, %c0_516, %c0_517] : memref<16x64x128xbf16, #tpu.memory_space<vmem>>, vector<1x64x128xbf16>
    %479 = vector.shape_cast %478 : vector<1x64x128xbf16> to vector<64x128xbf16>
    %cst_518 = arith.constant dense<0.000000e+00> : vector<64x128xf32>
    %480 = tpu.matmul %477, %479, %cst_518 {dimension_numbers = #tpu.dot_dimension_numbers<[1], [0], [0], [1], [0, 0, 1, 1], [], []>} : vector<64x64xbf16>, vector<64x128xbf16>, vector<64x128xf32> -> vector<64x128xf32>
    %481 = arith.addf %471, %480 : vector<64x128xf32>
    %c104_519 = arith.constant 104 : index
    %c0_520 = arith.constant 0 : index
    %482 = tpu.strided_load %arg15[%c104_519, %c0_520] {strides = array<i32: 2, 1>} : memref<344x64xf32, #tpu.memory_space<vmem>>, vector<16x64xf32>
    %c172_521 = arith.constant 172 : index
    %c0_522 = arith.constant 0 : index
    %483 = tpu.strided_load %arg15[%c172_521, %c0_522] {strides = array<i32: 2, 1>} : memref<344x64xf32, #tpu.memory_space<vmem>>, vector<16x64xf32>
    %c240_523 = arith.constant 240 : index
    %c0_524 = arith.constant 0 : index
    %484 = tpu.strided_load %arg15[%c240_523, %c0_524] {strides = array<i32: 2, 1>} : memref<344x64xf32, #tpu.memory_space<vmem>>, vector<16x64xf32>
    %c308 = arith.constant 308 : index
    %c0_525 = arith.constant 0 : index
    %485 = tpu.strided_load %arg15[%c308, %c0_525] {strides = array<i32: 2, 1>} : memref<344x64xf32, #tpu.memory_space<vmem>>, vector<16x64xf32>
    %486 = tpu.concatenate %482, %483, %484, %485 in 0 : vector<16x64xf32>, vector<16x64xf32>, vector<16x64xf32>, vector<16x64xf32> -> vector<64x64xf32>
    %487 = arith.truncf %486 : vector<64x64xf32> to vector<64x64xbf16>
    %c14_526 = arith.constant 14 : index
    %c0_527 = arith.constant 0 : index
    %c0_528 = arith.constant 0 : index
    %488 = vector.load %arg6[%c14_526, %c0_527, %c0_528] : memref<16x64x128xbf16, #tpu.memory_space<vmem>>, vector<1x64x128xbf16>
    %489 = vector.shape_cast %488 : vector<1x64x128xbf16> to vector<64x128xbf16>
    %cst_529 = arith.constant dense<0.000000e+00> : vector<64x128xf32>
    %490 = tpu.matmul %487, %489, %cst_529 {dimension_numbers = #tpu.dot_dimension_numbers<[1], [0], [0], [1], [0, 0, 1, 1], [], []>} : vector<64x64xbf16>, vector<64x128xbf16>, vector<64x128xf32> -> vector<64x128xf32>
    %491 = arith.addf %481, %490 : vector<64x128xf32>
    %c105_530 = arith.constant 105 : index
    %c0_531 = arith.constant 0 : index
    %492 = tpu.strided_load %arg15[%c105_530, %c0_531] {strides = array<i32: 2, 1>} : memref<344x64xf32, #tpu.memory_space<vmem>>, vector<16x64xf32>
    %c173_532 = arith.constant 173 : index
    %c0_533 = arith.constant 0 : index
    %493 = tpu.strided_load %arg15[%c173_532, %c0_533] {strides = array<i32: 2, 1>} : memref<344x64xf32, #tpu.memory_space<vmem>>, vector<16x64xf32>
    %c241_534 = arith.constant 241 : index
    %c0_535 = arith.constant 0 : index
    %494 = tpu.strided_load %arg15[%c241_534, %c0_535] {strides = array<i32: 2, 1>} : memref<344x64xf32, #tpu.memory_space<vmem>>, vector<16x64xf32>
    %c309 = arith.constant 309 : index
    %c0_536 = arith.constant 0 : index
    %495 = tpu.strided_load %arg15[%c309, %c0_536] {strides = array<i32: 2, 1>} : memref<344x64xf32, #tpu.memory_space<vmem>>, vector<16x64xf32>
    %496 = tpu.concatenate %492, %493, %494, %495 in 0 : vector<16x64xf32>, vector<16x64xf32>, vector<16x64xf32>, vector<16x64xf32> -> vector<64x64xf32>
    %497 = arith.truncf %496 : vector<64x64xf32> to vector<64x64xbf16>
    %c15_537 = arith.constant 15 : index
    %c0_538 = arith.constant 0 : index
    %c0_539 = arith.constant 0 : index
    %498 = vector.load %arg6[%c15_537, %c0_538, %c0_539] : memref<16x64x128xbf16, #tpu.memory_space<vmem>>, vector<1x64x128xbf16>
    %499 = vector.shape_cast %498 : vector<1x64x128xbf16> to vector<64x128xbf16>
    %cst_540 = arith.constant dense<0.000000e+00> : vector<64x128xf32>
    %500 = tpu.matmul %497, %499, %cst_540 {dimension_numbers = #tpu.dot_dimension_numbers<[1], [0], [0], [1], [0, 0, 1, 1], [], []>} : vector<64x64xbf16>, vector<64x128xbf16>, vector<64x128xf32> -> vector<64x128xf32>
    %501 = arith.addf %491, %500 : vector<64x128xf32>
    %502 = vector.broadcast %342 : vector<1x128xf32> to vector<64x128xf32>
    %503 = arith.addf %501, %502 : vector<64x128xf32>
    %cst_541 = arith.constant 0.000000e+00 : f32
    %504 = vector.broadcast %cst_541 : f32 to vector<64x128xf32>
    %505 = arith.maximumf %503, %504 : vector<64x128xf32>
    %cst_542 = arith.constant 0.000000e+00 : f32
    %506 = vector.broadcast %cst_542 : f32 to vector<1x128xf32>
    %c0_543 = arith.constant 0 : index
    %c0_544 = arith.constant 0 : index
    %507 = vector.load %arg16[%c0_543, %c0_544] : memref<72x128xf32, #tpu.memory_space<vmem>>, vector<1x128xf32>
    tpu.vector_store %arg16[%c0_543, %c0_544], %506 {strides = array<i32>} : memref<72x128xf32, #tpu.memory_space<vmem>>, vector<1x128xf32>,
    %508 = vector.extract_strided_slice %505 {offsets = [0, 0], sizes = [16, 128], strides = [1, 1]} : vector<64x128xf32> to vector<16x128xf32>
    %c1_545 = arith.constant 1 : index
    %c0_546 = arith.constant 0 : index
    %509 = vector.load %arg16[%c1_545, %c0_546] : memref<72x128xf32, #tpu.memory_space<vmem>>, vector<16x128xf32>
    tpu.vector_store %arg16[%c1_545, %c0_546], %508 {strides = array<i32>} : memref<72x128xf32, #tpu.memory_space<vmem>>, vector<16x128xf32>,
    %c17 = arith.constant 17 : index
    %c0_547 = arith.constant 0 : index
    %510 = vector.load %arg16[%c17, %c0_547] : memref<72x128xf32, #tpu.memory_space<vmem>>, vector<1x128xf32>
    tpu.vector_store %arg16[%c17, %c0_547], %506 {strides = array<i32>} : memref<72x128xf32, #tpu.memory_space<vmem>>, vector<1x128xf32>,
    %c18 = arith.constant 18 : index
    %c0_548 = arith.constant 0 : index
    %511 = vector.load %arg16[%c18, %c0_548] : memref<72x128xf32, #tpu.memory_space<vmem>>, vector<1x128xf32>
    tpu.vector_store %arg16[%c18, %c0_548], %506 {strides = array<i32>} : memref<72x128xf32, #tpu.memory_space<vmem>>, vector<1x128xf32>,
    %512 = vector.extract_strided_slice %505 {offsets = [16, 0], sizes = [16, 128], strides = [1, 1]} : vector<64x128xf32> to vector<16x128xf32>
    %c19 = arith.constant 19 : index
    %c0_549 = arith.constant 0 : index
    %513 = vector.load %arg16[%c19, %c0_549] : memref<72x128xf32, #tpu.memory_space<vmem>>, vector<16x128xf32>
    tpu.vector_store %arg16[%c19, %c0_549], %512 {strides = array<i32>} : memref<72x128xf32, #tpu.memory_space<vmem>>, vector<16x128xf32>,
    %c35_550 = arith.constant 35 : index
    %c0_551 = arith.constant 0 : index
    %514 = vector.load %arg16[%c35_550, %c0_551] : memref<72x128xf32, #tpu.memory_space<vmem>>, vector<1x128xf32>
    tpu.vector_store %arg16[%c35_550, %c0_551], %506 {strides = array<i32>} : memref<72x128xf32, #tpu.memory_space<vmem>>, vector<1x128xf32>,
    %c36_552 = arith.constant 36 : index
    %c0_553 = arith.constant 0 : index
    %515 = vector.load %arg16[%c36_552, %c0_553] : memref<72x128xf32, #tpu.memory_space<vmem>>, vector<1x128xf32>
    tpu.vector_store %arg16[%c36_552, %c0_553], %506 {strides = array<i32>} : memref<72x128xf32, #tpu.memory_space<vmem>>, vector<1x128xf32>,
    %516 = vector.extract_strided_slice %505 {offsets = [32, 0], sizes = [16, 128], strides = [1, 1]} : vector<64x128xf32> to vector<16x128xf32>
    %c37_554 = arith.constant 37 : index
    %c0_555 = arith.constant 0 : index
    %517 = vector.load %arg16[%c37_554, %c0_555] : memref<72x128xf32, #tpu.memory_space<vmem>>, vector<16x128xf32>
    tpu.vector_store %arg16[%c37_554, %c0_555], %516 {strides = array<i32>} : memref<72x128xf32, #tpu.memory_space<vmem>>, vector<16x128xf32>,
    %c53 = arith.constant 53 : index
    %c0_556 = arith.constant 0 : index
    %518 = vector.load %arg16[%c53, %c0_556] : memref<72x128xf32, #tpu.memory_space<vmem>>, vector<1x128xf32>
    tpu.vector_store %arg16[%c53, %c0_556], %506 {strides = array<i32>} : memref<72x128xf32, #tpu.memory_space<vmem>>, vector<1x128xf32>,
    %c54 = arith.constant 54 : index
    %c0_557 = arith.constant 0 : index
    %519 = vector.load %arg16[%c54, %c0_557] : memref<72x128xf32, #tpu.memory_space<vmem>>, vector<1x128xf32>
    tpu.vector_store %arg16[%c54, %c0_557], %506 {strides = array<i32>} : memref<72x128xf32, #tpu.memory_space<vmem>>, vector<1x128xf32>,
    %520 = vector.extract_strided_slice %505 {offsets = [48, 0], sizes = [16, 128], strides = [1, 1]} : vector<64x128xf32> to vector<16x128xf32>
    %c55 = arith.constant 55 : index
    %c0_558 = arith.constant 0 : index
    %521 = vector.load %arg16[%c55, %c0_558] : memref<72x128xf32, #tpu.memory_space<vmem>>, vector<16x128xf32>
    tpu.vector_store %arg16[%c55, %c0_558], %520 {strides = array<i32>} : memref<72x128xf32, #tpu.memory_space<vmem>>, vector<16x128xf32>,
    %c71_559 = arith.constant 71 : index
    %c0_560 = arith.constant 0 : index
    %522 = vector.load %arg16[%c71_559, %c0_560] : memref<72x128xf32, #tpu.memory_space<vmem>>, vector<1x128xf32>
    tpu.vector_store %arg16[%c71_559, %c0_560], %506 {strides = array<i32>} : memref<72x128xf32, #tpu.memory_space<vmem>>, vector<1x128xf32>,
    %c0_561 = arith.constant 0 : index
    %c0_562 = arith.constant 0 : index
    %523 = vector.load %arg9[%c0_561, %c0_562] : memref<1x128xf32, #tpu.memory_space<vmem>>, vector<1x128xf32>
    %c0_563 = arith.constant 0 : index
    %c0_564 = arith.constant 0 : index
    %524 = tpu.strided_load %arg16[%c0_563, %c0_564] {strides = array<i32: 2, 1>} : memref<72x128xf32, #tpu.memory_space<vmem>>, vector<8x128xf32>
    %c18_565 = arith.constant 18 : index
    %c0_566 = arith.constant 0 : index
    %525 = tpu.strided_load %arg16[%c18_565, %c0_566] {strides = array<i32: 2, 1>} : memref<72x128xf32, #tpu.memory_space<vmem>>, vector<8x128xf32>
    %c36_567 = arith.constant 36 : index
    %c0_568 = arith.constant 0 : index
    %526 = tpu.strided_load %arg16[%c36_567, %c0_568] {strides = array<i32: 2, 1>} : memref<72x128xf32, #tpu.memory_space<vmem>>, vector<8x128xf32>
    %c54_569 = arith.constant 54 : index
    %c0_570 = arith.constant 0 : index
    %527 = tpu.strided_load %arg16[%c54_569, %c0_570] {strides = array<i32: 2, 1>} : memref<72x128xf32, #tpu.memory_space<vmem>>, vector<8x128xf32>
    %528 = tpu.concatenate %524, %525, %526, %527 in 0 : vector<8x128xf32>, vector<8x128xf32>, vector<8x128xf32>, vector<8x128xf32> -> vector<32x128xf32>
    %529 = arith.truncf %528 : vector<32x128xf32> to vector<32x128xbf16>
    %c0_571 = arith.constant 0 : index
    %c0_572 = arith.constant 0 : index
    %c0_573 = arith.constant 0 : index
    %530 = vector.load %arg8[%c0_571, %c0_572, %c0_573] : memref<4x128x128xbf16, #tpu.memory_space<vmem>>, vector<1x128x128xbf16>
    %531 = vector.shape_cast %530 : vector<1x128x128xbf16> to vector<128x128xbf16>
    %cst_574 = arith.constant dense<0.000000e+00> : vector<32x128xf32>
    %532 = tpu.matmul %529, %531, %cst_574 {dimension_numbers = #tpu.dot_dimension_numbers<[1], [0], [0], [1], [0, 0, 1, 1], [], []>} : vector<32x128xbf16>, vector<128x128xbf16>, vector<32x128xf32> -> vector<32x128xf32>
    %c1_575 = arith.constant 1 : index
    %c0_576 = arith.constant 0 : index
    %533 = tpu.strided_load %arg16[%c1_575, %c0_576] {strides = array<i32: 2, 1>} : memref<72x128xf32, #tpu.memory_space<vmem>>, vector<8x128xf32>
    %c19_577 = arith.constant 19 : index
    %c0_578 = arith.constant 0 : index
    %534 = tpu.strided_load %arg16[%c19_577, %c0_578] {strides = array<i32: 2, 1>} : memref<72x128xf32, #tpu.memory_space<vmem>>, vector<8x128xf32>
    %c37_579 = arith.constant 37 : index
    %c0_580 = arith.constant 0 : index
    %535 = tpu.strided_load %arg16[%c37_579, %c0_580] {strides = array<i32: 2, 1>} : memref<72x128xf32, #tpu.memory_space<vmem>>, vector<8x128xf32>
    %c55_581 = arith.constant 55 : index
    %c0_582 = arith.constant 0 : index
    %536 = tpu.strided_load %arg16[%c55_581, %c0_582] {strides = array<i32: 2, 1>} : memref<72x128xf32, #tpu.memory_space<vmem>>, vector<8x128xf32>
    %537 = tpu.concatenate %533, %534, %535, %536 in 0 : vector<8x128xf32>, vector<8x128xf32>, vector<8x128xf32>, vector<8x128xf32> -> vector<32x128xf32>
    %538 = arith.truncf %537 : vector<32x128xf32> to vector<32x128xbf16>
    %c1_583 = arith.constant 1 : index
    %c0_584 = arith.constant 0 : index
    %c0_585 = arith.constant 0 : index
    %539 = vector.load %arg8[%c1_583, %c0_584, %c0_585] : memref<4x128x128xbf16, #tpu.memory_space<vmem>>, vector<1x128x128xbf16>
    %540 = vector.shape_cast %539 : vector<1x128x128xbf16> to vector<128x128xbf16>
    %cst_586 = arith.constant dense<0.000000e+00> : vector<32x128xf32>
    %541 = tpu.matmul %538, %540, %cst_586 {dimension_numbers = #tpu.dot_dimension_numbers<[1], [0], [0], [1], [0, 0, 1, 1], [], []>} : vector<32x128xbf16>, vector<128x128xbf16>, vector<32x128xf32> -> vector<32x128xf32>
    %542 = arith.addf %532, %541 : vector<32x128xf32>
    %c2_587 = arith.constant 2 : index
    %c0_588 = arith.constant 0 : index
    %543 = tpu.strided_load %arg16[%c2_587, %c0_588] {strides = array<i32: 2, 1>} : memref<72x128xf32, #tpu.memory_space<vmem>>, vector<8x128xf32>
    %c20 = arith.constant 20 : index
    %c0_589 = arith.constant 0 : index
    %544 = tpu.strided_load %arg16[%c20, %c0_589] {strides = array<i32: 2, 1>} : memref<72x128xf32, #tpu.memory_space<vmem>>, vector<8x128xf32>
    %c38 = arith.constant 38 : index
    %c0_590 = arith.constant 0 : index
    %545 = tpu.strided_load %arg16[%c38, %c0_590] {strides = array<i32: 2, 1>} : memref<72x128xf32, #tpu.memory_space<vmem>>, vector<8x128xf32>
    %c56 = arith.constant 56 : index
    %c0_591 = arith.constant 0 : index
    %546 = tpu.strided_load %arg16[%c56, %c0_591] {strides = array<i32: 2, 1>} : memref<72x128xf32, #tpu.memory_space<vmem>>, vector<8x128xf32>
    %547 = tpu.concatenate %543, %544, %545, %546 in 0 : vector<8x128xf32>, vector<8x128xf32>, vector<8x128xf32>, vector<8x128xf32> -> vector<32x128xf32>
    %548 = arith.truncf %547 : vector<32x128xf32> to vector<32x128xbf16>
    %c2_592 = arith.constant 2 : index
    %c0_593 = arith.constant 0 : index
    %c0_594 = arith.constant 0 : index
    %549 = vector.load %arg8[%c2_592, %c0_593, %c0_594] : memref<4x128x128xbf16, #tpu.memory_space<vmem>>, vector<1x128x128xbf16>
    %550 = vector.shape_cast %549 : vector<1x128x128xbf16> to vector<128x128xbf16>
    %cst_595 = arith.constant dense<0.000000e+00> : vector<32x128xf32>
    %551 = tpu.matmul %548, %550, %cst_595 {dimension_numbers = #tpu.dot_dimension_numbers<[1], [0], [0], [1], [0, 0, 1, 1], [], []>} : vector<32x128xbf16>, vector<128x128xbf16>, vector<32x128xf32> -> vector<32x128xf32>
    %552 = arith.addf %542, %551 : vector<32x128xf32>
    %c3_596 = arith.constant 3 : index
    %c0_597 = arith.constant 0 : index
    %553 = tpu.strided_load %arg16[%c3_596, %c0_597] {strides = array<i32: 2, 1>} : memref<72x128xf32, #tpu.memory_space<vmem>>, vector<8x128xf32>
    %c21 = arith.constant 21 : index
    %c0_598 = arith.constant 0 : index
    %554 = tpu.strided_load %arg16[%c21, %c0_598] {strides = array<i32: 2, 1>} : memref<72x128xf32, #tpu.memory_space<vmem>>, vector<8x128xf32>
    %c39 = arith.constant 39 : index
    %c0_599 = arith.constant 0 : index
    %555 = tpu.strided_load %arg16[%c39, %c0_599] {strides = array<i32: 2, 1>} : memref<72x128xf32, #tpu.memory_space<vmem>>, vector<8x128xf32>
    %c57 = arith.constant 57 : index
    %c0_600 = arith.constant 0 : index
    %556 = tpu.strided_load %arg16[%c57, %c0_600] {strides = array<i32: 2, 1>} : memref<72x128xf32, #tpu.memory_space<vmem>>, vector<8x128xf32>
    %557 = tpu.concatenate %553, %554, %555, %556 in 0 : vector<8x128xf32>, vector<8x128xf32>, vector<8x128xf32>, vector<8x128xf32> -> vector<32x128xf32>
    %558 = arith.truncf %557 : vector<32x128xf32> to vector<32x128xbf16>
    %c3_601 = arith.constant 3 : index
    %c0_602 = arith.constant 0 : index
    %c0_603 = arith.constant 0 : index
    %559 = vector.load %arg8[%c3_601, %c0_602, %c0_603] : memref<4x128x128xbf16, #tpu.memory_space<vmem>>, vector<1x128x128xbf16>
    %560 = vector.shape_cast %559 : vector<1x128x128xbf16> to vector<128x128xbf16>
    %cst_604 = arith.constant dense<0.000000e+00> : vector<32x128xf32>
    %561 = tpu.matmul %558, %560, %cst_604 {dimension_numbers = #tpu.dot_dimension_numbers<[1], [0], [0], [1], [0, 0, 1, 1], [], []>} : vector<32x128xbf16>, vector<128x128xbf16>, vector<32x128xf32> -> vector<32x128xf32>
    %562 = arith.addf %552, %561 : vector<32x128xf32>
    %563 = vector.broadcast %523 : vector<1x128xf32> to vector<32x128xf32>
    %564 = arith.addf %562, %563 : vector<32x128xf32>
    %cst_605 = arith.constant 0.000000e+00 : f32
    %565 = vector.broadcast %cst_605 : f32 to vector<32x128xf32>
    %566 = arith.maximumf %564, %565 : vector<32x128xf32>
    %cst_606 = arith.constant 0.000000e+00 : f32
    %567 = vector.broadcast %cst_606 : f32 to vector<1x128xf32>
    %c0_607 = arith.constant 0 : index
    %c0_608 = arith.constant 0 : index
    %568 = vector.load %arg17[%c0_607, %c0_608] : memref<40x128xf32, #tpu.memory_space<vmem>>, vector<1x128xf32>
    tpu.vector_store %arg17[%c0_607, %c0_608], %567 {strides = array<i32>} : memref<40x128xf32, #tpu.memory_space<vmem>>, vector<1x128xf32>,
    %569 = vector.extract_strided_slice %566 {offsets = [0, 0], sizes = [8, 128], strides = [1, 1]} : vector<32x128xf32> to vector<8x128xf32>
    %c1_609 = arith.constant 1 : index
    %c0_610 = arith.constant 0 : index
    %570 = vector.load %arg17[%c1_609, %c0_610] : memref<40x128xf32, #tpu.memory_space<vmem>>, vector<8x128xf32>
    tpu.vector_store %arg17[%c1_609, %c0_610], %569 {strides = array<i32>} : memref<40x128xf32, #tpu.memory_space<vmem>>, vector<8x128xf32>,
    %c9_611 = arith.constant 9 : index
    %c0_612 = arith.constant 0 : index
    %571 = vector.load %arg17[%c9_611, %c0_612] : memref<40x128xf32, #tpu.memory_space<vmem>>, vector<1x128xf32>
    tpu.vector_store %arg17[%c9_611, %c0_612], %567 {strides = array<i32>} : memref<40x128xf32, #tpu.memory_space<vmem>>, vector<1x128xf32>,
    %c10_613 = arith.constant 10 : index
    %c0_614 = arith.constant 0 : index
    %572 = vector.load %arg17[%c10_613, %c0_614] : memref<40x128xf32, #tpu.memory_space<vmem>>, vector<1x128xf32>
    tpu.vector_store %arg17[%c10_613, %c0_614], %567 {strides = array<i32>} : memref<40x128xf32, #tpu.memory_space<vmem>>, vector<1x128xf32>,
    %573 = vector.extract_strided_slice %566 {offsets = [8, 0], sizes = [8, 128], strides = [1, 1]} : vector<32x128xf32> to vector<8x128xf32>
    %c11_615 = arith.constant 11 : index
    %c0_616 = arith.constant 0 : index
    %574 = vector.load %arg17[%c11_615, %c0_616] : memref<40x128xf32, #tpu.memory_space<vmem>>, vector<8x128xf32>
    tpu.vector_store %arg17[%c11_615, %c0_616], %573 {strides = array<i32>} : memref<40x128xf32, #tpu.memory_space<vmem>>, vector<8x128xf32>,
    %c19_617 = arith.constant 19 : index
    %c0_618 = arith.constant 0 : index
    %575 = vector.load %arg17[%c19_617, %c0_618] : memref<40x128xf32, #tpu.memory_space<vmem>>, vector<1x128xf32>
    tpu.vector_store %arg17[%c19_617, %c0_618], %567 {strides = array<i32>} : memref<40x128xf32, #tpu.memory_space<vmem>>, vector<1x128xf32>,
    %c20_619 = arith.constant 20 : index
    %c0_620 = arith.constant 0 : index
    %576 = vector.load %arg17[%c20_619, %c0_620] : memref<40x128xf32, #tpu.memory_space<vmem>>, vector<1x128xf32>
    tpu.vector_store %arg17[%c20_619, %c0_620], %567 {strides = array<i32>} : memref<40x128xf32, #tpu.memory_space<vmem>>, vector<1x128xf32>,
    %577 = vector.extract_strided_slice %566 {offsets = [16, 0], sizes = [8, 128], strides = [1, 1]} : vector<32x128xf32> to vector<8x128xf32>
    %c21_621 = arith.constant 21 : index
    %c0_622 = arith.constant 0 : index
    %578 = vector.load %arg17[%c21_621, %c0_622] : memref<40x128xf32, #tpu.memory_space<vmem>>, vector<8x128xf32>
    tpu.vector_store %arg17[%c21_621, %c0_622], %577 {strides = array<i32>} : memref<40x128xf32, #tpu.memory_space<vmem>>, vector<8x128xf32>,
    %c29 = arith.constant 29 : index
    %c0_623 = arith.constant 0 : index
    %579 = vector.load %arg17[%c29, %c0_623] : memref<40x128xf32, #tpu.memory_space<vmem>>, vector<1x128xf32>
    tpu.vector_store %arg17[%c29, %c0_623], %567 {strides = array<i32>} : memref<40x128xf32, #tpu.memory_space<vmem>>, vector<1x128xf32>,
    %c30 = arith.constant 30 : index
    %c0_624 = arith.constant 0 : index
    %580 = vector.load %arg17[%c30, %c0_624] : memref<40x128xf32, #tpu.memory_space<vmem>>, vector<1x128xf32>
    tpu.vector_store %arg17[%c30, %c0_624], %567 {strides = array<i32>} : memref<40x128xf32, #tpu.memory_space<vmem>>, vector<1x128xf32>,
    %581 = vector.extract_strided_slice %566 {offsets = [24, 0], sizes = [8, 128], strides = [1, 1]} : vector<32x128xf32> to vector<8x128xf32>
    %c31 = arith.constant 31 : index
    %c0_625 = arith.constant 0 : index
    %582 = vector.load %arg17[%c31, %c0_625] : memref<40x128xf32, #tpu.memory_space<vmem>>, vector<8x128xf32>
    tpu.vector_store %arg17[%c31, %c0_625], %581 {strides = array<i32>} : memref<40x128xf32, #tpu.memory_space<vmem>>, vector<8x128xf32>,
    %c39_626 = arith.constant 39 : index
    %c0_627 = arith.constant 0 : index
    %583 = vector.load %arg17[%c39_626, %c0_627] : memref<40x128xf32, #tpu.memory_space<vmem>>, vector<1x128xf32>
    tpu.vector_store %arg17[%c39_626, %c0_627], %567 {strides = array<i32>} : memref<40x128xf32, #tpu.memory_space<vmem>>, vector<1x128xf32>,
    %c0_628 = arith.constant 0 : index
    %c0_629 = arith.constant 0 : index
    %584 = vector.load %arg11[%c0_628, %c0_629] : memref<1x128xf32, #tpu.memory_space<vmem>>, vector<1x128xf32>
    %c0_630 = arith.constant 0 : index
    %c0_631 = arith.constant 0 : index
    %585 = tpu.strided_load %arg17[%c0_630, %c0_631] {strides = array<i32: 2, 1>} : memref<40x128xf32, #tpu.memory_space<vmem>>, vector<4x128xf32>
    %c10_632 = arith.constant 10 : index
    %c0_633 = arith.constant 0 : index
    %586 = tpu.strided_load %arg17[%c10_632, %c0_633] {strides = array<i32: 2, 1>} : memref<40x128xf32, #tpu.memory_space<vmem>>, vector<4x128xf32>
    %c20_634 = arith.constant 20 : index
    %c0_635 = arith.constant 0 : index
    %587 = tpu.strided_load %arg17[%c20_634, %c0_635] {strides = array<i32: 2, 1>} : memref<40x128xf32, #tpu.memory_space<vmem>>, vector<4x128xf32>
    %c30_636 = arith.constant 30 : index
    %c0_637 = arith.constant 0 : index
    %588 = tpu.strided_load %arg17[%c30_636, %c0_637] {strides = array<i32: 2, 1>} : memref<40x128xf32, #tpu.memory_space<vmem>>, vector<4x128xf32>
    %589 = tpu.concatenate %585, %586, %587, %588 in 0 : vector<4x128xf32>, vector<4x128xf32>, vector<4x128xf32>, vector<4x128xf32> -> vector<16x128xf32>
    %590 = arith.truncf %589 : vector<16x128xf32> to vector<16x128xbf16>
    %c0_638 = arith.constant 0 : index
    %c0_639 = arith.constant 0 : index
    %c0_640 = arith.constant 0 : index
    %591 = vector.load %arg10[%c0_638, %c0_639, %c0_640] : memref<4x128x128xbf16, #tpu.memory_space<vmem>>, vector<1x128x128xbf16>
    %592 = vector.shape_cast %591 : vector<1x128x128xbf16> to vector<128x128xbf16>
    %cst_641 = arith.constant dense<0.000000e+00> : vector<16x128xf32>
    %593 = tpu.matmul %590, %592, %cst_641 {dimension_numbers = #tpu.dot_dimension_numbers<[1], [0], [0], [1], [0, 0, 1, 1], [], []>} : vector<16x128xbf16>, vector<128x128xbf16>, vector<16x128xf32> -> vector<16x128xf32>
    %c1_642 = arith.constant 1 : index
    %c0_643 = arith.constant 0 : index
    %594 = tpu.strided_load %arg17[%c1_642, %c0_643] {strides = array<i32: 2, 1>} : memref<40x128xf32, #tpu.memory_space<vmem>>, vector<4x128xf32>
    %c11_644 = arith.constant 11 : index
    %c0_645 = arith.constant 0 : index
    %595 = tpu.strided_load %arg17[%c11_644, %c0_645] {strides = array<i32: 2, 1>} : memref<40x128xf32, #tpu.memory_space<vmem>>, vector<4x128xf32>
    %c21_646 = arith.constant 21 : index
    %c0_647 = arith.constant 0 : index
    %596 = tpu.strided_load %arg17[%c21_646, %c0_647] {strides = array<i32: 2, 1>} : memref<40x128xf32, #tpu.memory_space<vmem>>, vector<4x128xf32>
    %c31_648 = arith.constant 31 : index
    %c0_649 = arith.constant 0 : index
    %597 = tpu.strided_load %arg17[%c31_648, %c0_649] {strides = array<i32: 2, 1>} : memref<40x128xf32, #tpu.memory_space<vmem>>, vector<4x128xf32>
    %598 = tpu.concatenate %594, %595, %596, %597 in 0 : vector<4x128xf32>, vector<4x128xf32>, vector<4x128xf32>, vector<4x128xf32> -> vector<16x128xf32>
    %599 = arith.truncf %598 : vector<16x128xf32> to vector<16x128xbf16>
    %c1_650 = arith.constant 1 : index
    %c0_651 = arith.constant 0 : index
    %c0_652 = arith.constant 0 : index
    %600 = vector.load %arg10[%c1_650, %c0_651, %c0_652] : memref<4x128x128xbf16, #tpu.memory_space<vmem>>, vector<1x128x128xbf16>
    %601 = vector.shape_cast %600 : vector<1x128x128xbf16> to vector<128x128xbf16>
    %cst_653 = arith.constant dense<0.000000e+00> : vector<16x128xf32>
    %602 = tpu.matmul %599, %601, %cst_653 {dimension_numbers = #tpu.dot_dimension_numbers<[1], [0], [0], [1], [0, 0, 1, 1], [], []>} : vector<16x128xbf16>, vector<128x128xbf16>, vector<16x128xf32> -> vector<16x128xf32>
    %603 = arith.addf %593, %602 : vector<16x128xf32>
    %c2_654 = arith.constant 2 : index
    %c0_655 = arith.constant 0 : index
    %604 = tpu.strided_load %arg17[%c2_654, %c0_655] {strides = array<i32: 2, 1>} : memref<40x128xf32, #tpu.memory_space<vmem>>, vector<4x128xf32>
    %c12_656 = arith.constant 12 : index
    %c0_657 = arith.constant 0 : index
    %605 = tpu.strided_load %arg17[%c12_656, %c0_657] {strides = array<i32: 2, 1>} : memref<40x128xf32, #tpu.memory_space<vmem>>, vector<4x128xf32>
    %c22 = arith.constant 22 : index
    %c0_658 = arith.constant 0 : index
    %606 = tpu.strided_load %arg17[%c22, %c0_658] {strides = array<i32: 2, 1>} : memref<40x128xf32, #tpu.memory_space<vmem>>, vector<4x128xf32>
    %c32 = arith.constant 32 : index
    %c0_659 = arith.constant 0 : index
    %607 = tpu.strided_load %arg17[%c32, %c0_659] {strides = array<i32: 2, 1>} : memref<40x128xf32, #tpu.memory_space<vmem>>, vector<4x128xf32>
    %608 = tpu.concatenate %604, %605, %606, %607 in 0 : vector<4x128xf32>, vector<4x128xf32>, vector<4x128xf32>, vector<4x128xf32> -> vector<16x128xf32>
    %609 = arith.truncf %608 : vector<16x128xf32> to vector<16x128xbf16>
    %c2_660 = arith.constant 2 : index
    %c0_661 = arith.constant 0 : index
    %c0_662 = arith.constant 0 : index
    %610 = vector.load %arg10[%c2_660, %c0_661, %c0_662] : memref<4x128x128xbf16, #tpu.memory_space<vmem>>, vector<1x128x128xbf16>
    %611 = vector.shape_cast %610 : vector<1x128x128xbf16> to vector<128x128xbf16>
    %cst_663 = arith.constant dense<0.000000e+00> : vector<16x128xf32>
    %612 = tpu.matmul %609, %611, %cst_663 {dimension_numbers = #tpu.dot_dimension_numbers<[1], [0], [0], [1], [0, 0, 1, 1], [], []>} : vector<16x128xbf16>, vector<128x128xbf16>, vector<16x128xf32> -> vector<16x128xf32>
    %613 = arith.addf %603, %612 : vector<16x128xf32>
    %c3_664 = arith.constant 3 : index
    %c0_665 = arith.constant 0 : index
    %614 = tpu.strided_load %arg17[%c3_664, %c0_665] {strides = array<i32: 2, 1>} : memref<40x128xf32, #tpu.memory_space<vmem>>, vector<4x128xf32>
    %c13_666 = arith.constant 13 : index
    %c0_667 = arith.constant 0 : index
    %615 = tpu.strided_load %arg17[%c13_666, %c0_667] {strides = array<i32: 2, 1>} : memref<40x128xf32, #tpu.memory_space<vmem>>, vector<4x128xf32>
    %c23 = arith.constant 23 : index
    %c0_668 = arith.constant 0 : index
    %616 = tpu.strided_load %arg17[%c23, %c0_668] {strides = array<i32: 2, 1>} : memref<40x128xf32, #tpu.memory_space<vmem>>, vector<4x128xf32>
    %c33 = arith.constant 33 : index
    %c0_669 = arith.constant 0 : index
    %617 = tpu.strided_load %arg17[%c33, %c0_669] {strides = array<i32: 2, 1>} : memref<40x128xf32, #tpu.memory_space<vmem>>, vector<4x128xf32>
    %618 = tpu.concatenate %614, %615, %616, %617 in 0 : vector<4x128xf32>, vector<4x128xf32>, vector<4x128xf32>, vector<4x128xf32> -> vector<16x128xf32>
    %619 = arith.truncf %618 : vector<16x128xf32> to vector<16x128xbf16>
    %c3_670 = arith.constant 3 : index
    %c0_671 = arith.constant 0 : index
    %c0_672 = arith.constant 0 : index
    %620 = vector.load %arg10[%c3_670, %c0_671, %c0_672] : memref<4x128x128xbf16, #tpu.memory_space<vmem>>, vector<1x128x128xbf16>
    %621 = vector.shape_cast %620 : vector<1x128x128xbf16> to vector<128x128xbf16>
    %cst_673 = arith.constant dense<0.000000e+00> : vector<16x128xf32>
    %622 = tpu.matmul %619, %621, %cst_673 {dimension_numbers = #tpu.dot_dimension_numbers<[1], [0], [0], [1], [0, 0, 1, 1], [], []>} : vector<16x128xbf16>, vector<128x128xbf16>, vector<16x128xf32> -> vector<16x128xf32>
    %623 = arith.addf %613, %622 : vector<16x128xf32>
    %624 = vector.broadcast %584 : vector<1x128xf32> to vector<16x128xf32>
    %625 = arith.addf %623, %624 : vector<16x128xf32>
    %cst_674 = arith.constant 0.000000e+00 : f32
    %626 = vector.broadcast %cst_674 : f32 to vector<16x128xf32>
    %627 = arith.maximumf %625, %626 : vector<16x128xf32>
    %628 = vector.extract_strided_slice %627 {offsets = [0, 0], sizes = [1, 128], strides = [1, 1]} : vector<16x128xf32> to vector<1x128xf32>
    %629 = vector.extract_strided_slice %627 {offsets = [1, 0], sizes = [1, 128], strides = [1, 1]} : vector<16x128xf32> to vector<1x128xf32>
    %630 = vector.extract_strided_slice %627 {offsets = [2, 0], sizes = [1, 128], strides = [1, 1]} : vector<16x128xf32> to vector<1x128xf32>
    %631 = vector.extract_strided_slice %627 {offsets = [3, 0], sizes = [1, 128], strides = [1, 1]} : vector<16x128xf32> to vector<1x128xf32>
    %632 = vector.extract_strided_slice %627 {offsets = [4, 0], sizes = [1, 128], strides = [1, 1]} : vector<16x128xf32> to vector<1x128xf32>
    %633 = vector.extract_strided_slice %627 {offsets = [5, 0], sizes = [1, 128], strides = [1, 1]} : vector<16x128xf32> to vector<1x128xf32>
    %634 = vector.extract_strided_slice %627 {offsets = [6, 0], sizes = [1, 128], strides = [1, 1]} : vector<16x128xf32> to vector<1x128xf32>
    %635 = vector.extract_strided_slice %627 {offsets = [7, 0], sizes = [1, 128], strides = [1, 1]} : vector<16x128xf32> to vector<1x128xf32>
    %636 = vector.extract_strided_slice %627 {offsets = [8, 0], sizes = [1, 128], strides = [1, 1]} : vector<16x128xf32> to vector<1x128xf32>
    %637 = vector.extract_strided_slice %627 {offsets = [9, 0], sizes = [1, 128], strides = [1, 1]} : vector<16x128xf32> to vector<1x128xf32>
    %638 = vector.extract_strided_slice %627 {offsets = [10, 0], sizes = [1, 128], strides = [1, 1]} : vector<16x128xf32> to vector<1x128xf32>
    %639 = vector.extract_strided_slice %627 {offsets = [11, 0], sizes = [1, 128], strides = [1, 1]} : vector<16x128xf32> to vector<1x128xf32>
    %640 = vector.extract_strided_slice %627 {offsets = [12, 0], sizes = [1, 128], strides = [1, 1]} : vector<16x128xf32> to vector<1x128xf32>
    %641 = vector.extract_strided_slice %627 {offsets = [13, 0], sizes = [1, 128], strides = [1, 1]} : vector<16x128xf32> to vector<1x128xf32>
    %642 = vector.extract_strided_slice %627 {offsets = [14, 0], sizes = [1, 128], strides = [1, 1]} : vector<16x128xf32> to vector<1x128xf32>
    %643 = vector.extract_strided_slice %627 {offsets = [15, 0], sizes = [1, 128], strides = [1, 1]} : vector<16x128xf32> to vector<1x128xf32>
    %644 = tpu.concatenate %628, %629, %630, %631, %632, %633, %634, %635, %636, %637, %638, %639, %640, %641, %642, %643 in 1 : vector<1x128xf32>, vector<1x128xf32>, vector<1x128xf32>, vector<1x128xf32>, vector<1x128xf32>, vector<1x128xf32>, vector<1x128xf32>, vector<1x128xf32>, vector<1x128xf32>, vector<1x128xf32>, vector<1x128xf32>, vector<1x128xf32>, vector<1x128xf32>, vector<1x128xf32>, vector<1x128xf32>, vector<1x128xf32> -> vector<1x2048xf32>
    %645 = arith.truncf %644 : vector<1x2048xf32> to vector<1x2048xbf16>
    %c0_675 = arith.constant 0 : index
    %c0_676 = arith.constant 0 : index
    %646 = vector.load %arg12[%c0_675, %c0_676] : memref<2048x128xbf16, #tpu.memory_space<vmem>>, vector<2048x128xbf16>
    %cst_677 = arith.constant dense<0.000000e+00> : vector<1x128xf32>
    %647 = tpu.matmul %645, %646, %cst_677 {dimension_numbers = #tpu.dot_dimension_numbers<[1], [0], [0], [1], [0, 0, 1, 1], [], []>} : vector<1x2048xbf16>, vector<2048x128xbf16>, vector<1x128xf32> -> vector<1x128xf32>
    %c0_678 = arith.constant 0 : index
    %c0_679 = arith.constant 0 : index
    %c0_680 = arith.constant 0 : index
    %648 = vector.load %arg13[%c0_678, %c0_679, %c0_680] : memref<1x1x128xf32, #tpu.memory_space<vmem>>, vector<1x1x128xf32>
    %649 = vector.shape_cast %648 : vector<1x1x128xf32> to vector<1x128xf32>
    %650 = vector.shape_cast %647 : vector<1x128xf32> to vector<1x1x128xf32>
    tpu.vector_store %arg13[%c0_678, %c0_679, %c0_680], %650 {strides = array<i32>} : memref<1x1x128xf32, #tpu.memory_space<vmem>>, vector<1x1x128xf32>,
    return
  }
  func.func @transform_0(%arg0: i32) -> (i32, i32, i32) {
    %c0_i32 = arith.constant 0 : i32
    %c0_i32_0 = arith.constant 0 : i32
    %c0_i32_1 = arith.constant 0 : i32
    return %arg0, %c0_i32, %c0_i32_0 : i32, i32, i32
  }
  func.func @transform_1(%arg0: i32) -> (i32, i32) {
    %c0_i32 = arith.constant 0 : i32
    %c0_i32_0 = arith.constant 0 : i32
    %c0_i32_1 = arith.constant 0 : i32
    return %c0_i32, %c0_i32_0 : i32, i32
  }
  func.func @transform_2(%arg0: i32) -> (i32, i32) {
    %c0_i32 = arith.constant 0 : i32
    %c0_i32_0 = arith.constant 0 : i32
    %c0_i32_1 = arith.constant 0 : i32
    return %c0_i32, %c0_i32_0 : i32, i32
  }
  func.func @transform_3(%arg0: i32) -> (i32, i32, i32) {
    %c0_i32 = arith.constant 0 : i32
    %c0_i32_0 = arith.constant 0 : i32
    %c0_i32_1 = arith.constant 0 : i32
    %c0_i32_2 = arith.constant 0 : i32
    return %c0_i32, %c0_i32_0, %c0_i32_1 : i32, i32, i32
  }
  func.func @transform_4(%arg0: i32) -> (i32, i32) {
    %c0_i32 = arith.constant 0 : i32
    %c0_i32_0 = arith.constant 0 : i32
    %c0_i32_1 = arith.constant 0 : i32
    return %c0_i32, %c0_i32_0 : i32, i32
  }
  func.func @transform_5(%arg0: i32) -> (i32, i32, i32) {
    %c0_i32 = arith.constant 0 : i32
    %c0_i32_0 = arith.constant 0 : i32
    %c0_i32_1 = arith.constant 0 : i32
    %c0_i32_2 = arith.constant 0 : i32
    return %c0_i32, %c0_i32_0, %c0_i32_1 : i32, i32, i32
  }
  func.func @transform_6(%arg0: i32) -> (i32, i32) {
    %c0_i32 = arith.constant 0 : i32
    %c0_i32_0 = arith.constant 0 : i32
    %c0_i32_1 = arith.constant 0 : i32
    return %c0_i32, %c0_i32_0 : i32, i32
  }
  func.func @transform_7(%arg0: i32) -> (i32, i32, i32) {
    %c0_i32 = arith.constant 0 : i32
    %c0_i32_0 = arith.constant 0 : i32
    %c0_i32_1 = arith.constant 0 : i32
    %c0_i32_2 = arith.constant 0 : i32
    return %c0_i32, %c0_i32_0, %c0_i32_1 : i32, i32, i32
  }
  func.func @transform_8(%arg0: i32) -> (i32, i32) {
    %c0_i32 = arith.constant 0 : i32
    %c0_i32_0 = arith.constant 0 : i32
    %c0_i32_1 = arith.constant 0 : i32
    return %c0_i32, %c0_i32_0 : i32, i32
  }
  func.func @transform_9(%arg0: i32) -> (i32, i32, i32) {
    %c0_i32 = arith.constant 0 : i32
    %c0_i32_0 = arith.constant 0 : i32
    %c0_i32_1 = arith.constant 0 : i32
    %c0_i32_2 = arith.constant 0 : i32
    return %c0_i32, %c0_i32_0, %c0_i32_1 : i32, i32, i32
  }
  func.func @transform_10(%arg0: i32) -> (i32, i32) {
    %c0_i32 = arith.constant 0 : i32
    %c0_i32_0 = arith.constant 0 : i32
    %c0_i32_1 = arith.constant 0 : i32
    return %c0_i32, %c0_i32_0 : i32, i32
  }
  func.func @transform_11(%arg0: i32) -> (i32, i32) {
    %c0_i32 = arith.constant 0 : i32
    %c0_i32_0 = arith.constant 0 : i32
    %c0_i32_1 = arith.constant 0 : i32
    return %c0_i32, %c0_i32_0 : i32, i32
  }
  func.func @transform_12(%arg0: i32) -> (i32, i32, i32) {
    %c0_i32 = arith.constant 0 : i32
    %c0_i32_0 = arith.constant 0 : i32
    %c0_i32_1 = arith.constant 0 : i32
    return %arg0, %c0_i32, %c0_i32_0 : i32, i32, i32
  }
}

</mosaic_0001>

<llo_original>
// kernel: encoder_forward.1
$region0: #{encoder_forward.1}
  #allocation0 [shape = 'u32[]', space=smem, size = 0x4, offset = 0x4, fixed_abs, tag = 'smem constant byte address 0x4 - core index']
  #allocation1 [shape = 'u32[72,128]{1,0:T(1,128)}', space=vmem, size = 0x9000, scoped, tag = 'internal scratch']
  #allocation2 [shape = 'f32[1192,32]{1,0:T(8,128)}', space=vmem, size = 0x95000, scoped, tag = 'scratch operand']
  #allocation3 [shape = 'f32[344,64]{1,0:T(8,128)}', space=vmem, size = 0x2b000, scoped, tag = 'scratch operand']
  #allocation4 [shape = 'f32[72,128]{1,0:T(8,128)}', space=vmem, size = 0x9000, scoped, tag = 'scratch operand']
  #allocation5 [shape = 'f32[40,128]{1,0:T(8,128)}', space=vmem, size = 0x5000, scoped, tag = 'scratch operand']
  %s0 = inlined_call_operand.vmem [shape: f32[2,1024,16], index: 0, kind: input, shape index: {}]
  %s1 = inlined_call_operand.vmem [shape: bf16[16,32], index: 1, kind: input, shape index: {}]
  %s2 = inlined_call_operand.vmem [shape: f32[1,32], index: 2, kind: input, shape index: {}]
  %s3 = inlined_call_operand.vmem [shape: bf16[16,32,64], index: 3, kind: input, shape index: {}]
  %s4 = inlined_call_operand.vmem [shape: f32[1,64], index: 4, kind: input, shape index: {}]
  %s5 = inlined_call_operand.vmem [shape: bf16[16,64,128], index: 5, kind: input, shape index: {}]
  %s6 = inlined_call_operand.vmem [shape: f32[1,128], index: 6, kind: input, shape index: {}]
  %s7 = inlined_call_operand.vmem [shape: bf16[4,128,128], index: 7, kind: input, shape index: {}]
  %s8 = inlined_call_operand.vmem [shape: f32[1,128], index: 8, kind: input, shape index: {}]
  %s9 = inlined_call_operand.vmem [shape: bf16[4,128,128], index: 9, kind: input, shape index: {}]
  %s10 = inlined_call_operand.vmem [shape: f32[1,128], index: 10, kind: input, shape index: {}]
  %s11 = inlined_call_operand.vmem [shape: bf16[2048,128], index: 11, kind: input, shape index: {}]
  %s12 = inlined_call_operand.vmem [shape: f32[2,1,128], index: 12, kind: output, shape index: {}]
  %s13 = sld [smem:[#allocation0]]
  $region81: #{encoder_forward.1} parent=0
    _
  %s15 = ssub.s32 1, %s13
  %s16 = scalar_select 0, %s15, %s13
  loop: start=0, step=1, limit=4
  $region2: #{encoder_forward.1} parent=0 // loop_pre_header
    _
  $region3: #{encoder_forward.1} parent=0 // loop_header
    %s18 = sphi 0, %s22
    %p19 = scmp.ge.s32.totalorder %s18, 4
    %s28 = sphi 0, %s30
    %s31 = sphi 0, %s28
    %s32 = sphi 0, %s31
    %s48 = sphi 0, %s32
    %s52 = sphi 0, %s52
    %s54 = sphi 0, %s52
    %s55 = sphi 0, %s54
    %s69 = sphi 0, %s55
    %s73 = sphi 0, %s73
    %s75 = sphi 0, %s73
    %s76 = sphi 0, %s75
    %s90 = sphi 0, %s76
    %s94 = sphi 0, %s94
    %s96 = sphi 0, %s94
    %s97 = sphi 0, %s96
    %s111 = sphi 0, %s97
    %s115 = sphi 0, %s115
    %s117 = sphi 0, %s115
    %s118 = sphi 0, %s117
    %s132 = sphi 0, %s118
    %s136 = sphi 0, %s136
    %s138 = sphi 0, %s136
    %s139 = sphi 0, %s138
    %s153 = sphi 0, %s139
    %s157 = sphi 0, %s157
    %s159 = sphi 0, %s157
    %s160 = sphi 0, %s159
    %s174 = sphi 0, %s160
    %s178 = sphi 0, %s178
    %s180 = sphi 0, %s178
    %s181 = sphi 0, %s180
    %s195 = sphi 0, %s181
    %s199 = sphi 0, %s199
    %s201 = sphi 0, %s199
    %s202 = sphi 0, %s201
    %s216 = sphi 0, %s202
    %s220 = sphi 0, %s220
    %s222 = sphi 0, %s220
    %s223 = sphi 0, %s222
    %s237 = sphi 0, %s223
    %s241 = sphi 0, %s241
    %s243 = sphi 0, %s241
    %s244 = sphi 0, %s243
    %s258 = sphi 0, %s244
    %s262 = sphi 0, %s262
    %s264 = sphi 0, %s262
    %s265 = sphi 0, %s264
    %s279 = sphi 0, %s265
    %s285 = sphi 0, %s287
    %s288 = sphi 0, %s285
    %s289 = sphi 0, %s288
    %s305 = sphi 0, %s289
  $region4: #{encoder_forward.1} parent=0 // loop_header_branch
    %21 = sbr.rel (%p19) target = $region8
  $region5: #{encoder_forward.1} parent=0 // loop_body
    %s23 = ssub.s32 %s18, 1
    %s24 = ssub.s32 %s18, 2
    %s25 = sadd.s32 %s18, 1
    %s26 = ssub.s32 %s18, %s25
    %p27 = scmp.eq.s32.totalorder %s26, 0
    %s29 = sadd.s32 %s28, 1
    %s30 = scalar_select %p27, %s28, %s29
    %p33 = pneg %p27
    %p34 = scmp.eq.s32.totalorder %s18, 1
    %p35 = por %p33, %p34
    %p36 = scmp.ne.s32.totalorder %s28, %s31
    %p37 = scmp.eq.s32.totalorder %s18, 0
    %p38 = por %p36, %p37
    %p39 = scmp.ne.s32.totalorder %s28, %s31
    %p40 = scmp.eq.s32.totalorder %s23, 1
    %p41 = por %p39, %p40
    %p42 = scmp.ne.s32.totalorder %s31, %s32
    %p43 = scmp.eq.s32.totalorder %s23, 0
    %p44 = por %p42, %p43
    %p45 = scmp.ne.s32.totalorder %s31, %s32
    %p46 = scmp.eq.s32.totalorder %s24, 1
    %p47 = por %p45, %p46
    %p49 = scmp.ne.s32.totalorder %s32, %s48
    %p50 = scmp.eq.s32.totalorder %s24, 0
    %p51 = por %p49, %p50
    %s53 = sadd.s32 %s52, 1
    %p56 = scmp.eq.s32.totalorder %s18, 1
    %p57 = scmp.ne.s32.totalorder %s52, %s54
    %p58 = scmp.eq.s32.totalorder %s18, 0
    %p59 = por %p57, %p58
    %p60 = scmp.ne.s32.totalorder %s52, %s54
    %p61 = scmp.eq.s32.totalorder %s23, 1
    %p62 = por %p60, %p61
    %p63 = scmp.ne.s32.totalorder %s54, %s55
    %p64 = scmp.eq.s32.totalorder %s23, 0
    %p65 = por %p63, %p64
    %p66 = scmp.ne.s32.totalorder %s54, %s55
    %p67 = scmp.eq.s32.totalorder %s24, 1
    %p68 = por %p66, %p67
    %p70 = scmp.ne.s32.totalorder %s55, %s69
    %p71 = scmp.eq.s32.totalorder %s24, 0
    %p72 = por %p70, %p71
    %s74 = sadd.s32 %s73, 1
    %p77 = scmp.eq.s32.totalorder %s18, 1
    %p78 = scmp.ne.s32.totalorder %s73, %s75
    %p79 = scmp.eq.s32.totalorder %s18, 0
    %p80 = por %p78, %p79
    %p81 = scmp.ne.s32.totalorder %s73, %s75
    %p82 = scmp.eq.s32.totalorder %s23, 1
    %p83 = por %p81, %p82
    %p84 = scmp.ne.s32.totalorder %s75, %s76
    %p85 = scmp.eq.s32.totalorder %s23, 0
    %p86 = por %p84, %p85
    %p87 = scmp.ne.s32.totalorder %s75, %s76
    %p88 = scmp.eq.s32.totalorder %s24, 1
    %p89 = por %p87, %p88
    %p91 = scmp.ne.s32.totalorder %s76, %s90
    %p92 = scmp.eq.s32.totalorder %s24, 0
    %p93 = por %p91, %p92
    %s95 = sadd.s32 %s94, 1
    %p98 = scmp.eq.s32.totalorder %s18, 1
    %p99 = scmp.ne.s32.totalorder %s94, %s96
    %p100 = scmp.eq.s32.totalorder %s18, 0
    %p101 = por %p99, %p100
    %p102 = scmp.ne.s32.totalorder %s94, %s96
    %p103 = scmp.eq.s32.totalorder %s23, 1
    %p104 = por %p102, %p103
    %p105 = scmp.ne.s32.totalorder %s96, %s97
    %p106 = scmp.eq.s32.totalorder %s23, 0
    %p107 = por %p105, %p106
    %p108 = scmp.ne.s32.totalorder %s96, %s97
    %p109 = scmp.eq.s32.totalorder %s24, 1
    %p110 = por %p108, %p109
    %p112 = scmp.ne.s32.totalorder %s97, %s111
    %p113 = scmp.eq.s32.totalorder %s24, 0
    %p114 = por %p112, %p113
    %s116 = sadd.s32 %s115, 1
    %p119 = scmp.eq.s32.totalorder %s18, 1
    %p120 = scmp.ne.s32.totalorder %s115, %s117
    %p121 = scmp.eq.s32.totalorder %s18, 0
    %p122 = por %p120, %p121
    %p123 = scmp.ne.s32.totalorder %s115, %s117
    %p124 = scmp.eq.s32.totalorder %s23, 1
    %p125 = por %p123, %p124
    %p126 = scmp.ne.s32.totalorder %s117, %s118
    %p127 = scmp.eq.s32.totalorder %s23, 0
    %p128 = por %p126, %p127
    %p129 = scmp.ne.s32.totalorder %s117, %s118
    %p130 = scmp.eq.s32.totalorder %s24, 1
    %p131 = por %p129, %p130
    %p133 = scmp.ne.s32.totalorder %s118, %s132
    %p134 = scmp.eq.s32.totalorder %s24, 0
    %p135 = por %p133, %p134
    %s137 = sadd.s32 %s136, 1
    %p140 = scmp.eq.s32.totalorder %s18, 1
    %p141 = scmp.ne.s32.totalorder %s136, %s138
    %p142 = scmp.eq.s32.totalorder %s18, 0
    %p143 = por %p141, %p142
    %p144 = scmp.ne.s32.totalorder %s136, %s138
    %p145 = scmp.eq.s32.totalorder %s23, 1
    %p146 = por %p144, %p145
    %p147 = scmp.ne.s32.totalorder %s138, %s139
    %p148 = scmp.eq.s32.totalorder %s23, 0
    %p149 = por %p147, %p148
    %p150 = scmp.ne.s32.totalorder %s138, %s139
    %p151 = scmp.eq.s32.totalorder %s24, 1
    %p152 = por %p150, %p151
    %p154 = scmp.ne.s32.totalorder %s139, %s153
    %p155 = scmp.eq.s32.totalorder %s24, 0
    %p156 = por %p154, %p155
    %s158 = sadd.s32 %s157, 1
    %p161 = scmp.eq.s32.totalorder %s18, 1
    %p162 = scmp.ne.s32.totalorder %s157, %s159
    %p163 = scmp.eq.s32.totalorder %s18, 0
    %p164 = por %p162, %p163
    %p165 = scmp.ne.s32.totalorder %s157, %s159
    %p166 = scmp.eq.s32.totalorder %s23, 1
    %p167 = por %p165, %p166
    %p168 = scmp.ne.s32.totalorder %s159, %s160
    %p169 = scmp.eq.s32.totalorder %s23, 0
    %p170 = por %p168, %p169
    %p171 = scmp.ne.s32.totalorder %s159, %s160
    %p172 = scmp.eq.s32.totalorder %s24, 1
    %p173 = por %p171, %p172
    %p175 = scmp.ne.s32.totalorder %s160, %s174
    %p176 = scmp.eq.s32.totalorder %s24, 0
    %p177 = por %p175, %p176
    %s179 = sadd.s32 %s178, 1
    %p182 = scmp.eq.s32.totalorder %s18, 1
    %p183 = scmp.ne.s32.totalorder %s178, %s180
    %p184 = scmp.eq.s32.totalorder %s18, 0
    %p185 = por %p183, %p184
    %p186 = scmp.ne.s32.totalorder %s178, %s180
    %p187 = scmp.eq.s32.totalorder %s23, 1
    %p188 = por %p186, %p187
    %p189 = scmp.ne.s32.totalorder %s180, %s181
    %p190 = scmp.eq.s32.totalorder %s23, 0
    %p191 = por %p189, %p190
    %p192 = scmp.ne.s32.totalorder %s180, %s181
    %p193 = scmp.eq.s32.totalorder %s24, 1
    %p194 = por %p192, %p193
    %p196 = scmp.ne.s32.totalorder %s181, %s195
    %p197 = scmp.eq.s32.totalorder %s24, 0
    %p198 = por %p196, %p197
    %s200 = sadd.s32 %s199, 1
    %p203 = scmp.eq.s32.totalorder %s18, 1
    %p204 = scmp.ne.s32.totalorder %s199, %s201
    %p205 = scmp.eq.s32.totalorder %s18, 0
    %p206 = por %p204, %p205
    %p207 = scmp.ne.s32.totalorder %s199, %s201
    %p208 = scmp.eq.s32.totalorder %s23, 1
    %p209 = por %p207, %p208
    %p210 = scmp.ne.s32.totalorder %s201, %s202
    %p211 = scmp.eq.s32.totalorder %s23, 0
    %p212 = por %p210, %p211
    %p213 = scmp.ne.s32.totalorder %s201, %s202
    %p214 = scmp.eq.s32.totalorder %s24, 1
    %p215 = por %p213, %p214
    %p217 = scmp.ne.s32.totalorder %s202, %s216
    %p218 = scmp.eq.s32.totalorder %s24, 0
    %p219 = por %p217, %p218
    %s221 = sadd.s32 %s220, 1
    %p224 = scmp.eq.s32.totalorder %s18, 1
    %p225 = scmp.ne.s32.totalorder %s220, %s222
    %p226 = scmp.eq.s32.totalorder %s18, 0
    %p227 = por %p225, %p226
    %p228 = scmp.ne.s32.totalorder %s220, %s222
    %p229 = scmp.eq.s32.totalorder %s23, 1
    %p230 = por %p228, %p229
    %p231 = scmp.ne.s32.totalorder %s222, %s223
    %p232 = scmp.eq.s32.totalorder %s23, 0
    %p233 = por %p231, %p232
    %p234 = scmp.ne.s32.totalorder %s222, %s223
    %p235 = scmp.eq.s32.totalorder %s24, 1
    %p236 = por %p234, %p235
    %p238 = scmp.ne.s32.totalorder %s223, %s237
    %p239 = scmp.eq.s32.totalorder %s24, 0
    %p240 = por %p238, %p239
    %s242 = sadd.s32 %s241, 1
    %p245 = scmp.eq.s32.totalorder %s18, 1
    %p246 = scmp.ne.s32.totalorder %s241, %s243
    %p247 = scmp.eq.s32.totalorder %s18, 0
    %p248 = por %p246, %p247
    %p249 = scmp.ne.s32.totalorder %s241, %s243
    %p250 = scmp.eq.s32.totalorder %s23, 1
    %p251 = por %p249, %p250
    %p252 = scmp.ne.s32.totalorder %s243, %s244
    %p253 = scmp.eq.s32.totalorder %s23, 0
    %p254 = por %p252, %p253
    %p255 = scmp.ne.s32.totalorder %s243, %s244
    %p256 = scmp.eq.s32.totalorder %s24, 1
    %p257 = por %p255, %p256
    %p259 = scmp.ne.s32.totalorder %s244, %s258
    %p260 = scmp.eq.s32.totalorder %s24, 0
    %p261 = por %p259, %p260
    %s263 = sadd.s32 %s262, 1
    %p266 = scmp.eq.s32.totalorder %s18, 1
    %p267 = scmp.ne.s32.totalorder %s262, %s264
    %p268 = scmp.eq.s32.totalorder %s18, 0
    %p269 = por %p267, %p268
    %p270 = scmp.ne.s32.totalorder %s262, %s264
    %p271 = scmp.eq.s32.totalorder %s23, 1
    %p272 = por %p270, %p271
    %p273 = scmp.ne.s32.totalorder %s264, %s265
    %p274 = scmp.eq.s32.totalorder %s23, 0
    %p275 = por %p273, %p274
    %p276 = scmp.ne.s32.totalorder %s264, %s265
    %p277 = scmp.eq.s32.totalorder %s24, 1
    %p278 = por %p276, %p277
    %p280 = scmp.ne.s32.totalorder %s265, %s279
    %p281 = scmp.eq.s32.totalorder %s24, 0
    %p282 = por %p280, %p281
    %s283 = ssub.s32 %s18, %s25
    %p284 = scmp.eq.s32.totalorder %s283, 0
    %s286 = sadd.s32 %s285, 1
    %s287 = scalar_select %p284, %s285, %s286
    %p290 = pneg %p284
    %p291 = scmp.eq.s32.totalorder %s18, 1
    %p292 = por %p290, %p291
    %p293 = scmp.ne.s32.totalorder %s285, %s288
    %p294 = scmp.eq.s32.totalorder %s18, 0
    %p295 = por %p293, %p294
    %p296 = scmp.ne.s32.totalorder %s285, %s288
    %p297 = scmp.eq.s32.totalorder %s23, 1
    %p298 = por %p296, %p297
    %p299 = scmp.ne.s32.totalorder %s288, %s289
    %p300 = scmp.eq.s32.totalorder %s23, 0
    %p301 = por %p299, %p300
    %p302 = scmp.ne.s32.totalorder %s288, %s289
    %p303 = scmp.eq.s32.totalorder %s24, 1
    %p304 = por %p302, %p303
    %p306 = scmp.ne.s32.totalorder %s289, %s305
    %p307 = scmp.eq.s32.totalorder %s24, 0
    %p308 = por %p306, %p307
    %p309 = scmp.le.s32.totalorder 1, %s18
    %p310 = scmp.lt.s32.totalorder %s18, 3
    %p311 = pnand %p309, %p310
    %p312 = pneg %p311
    // Predicated region
    $region9: #{encoder_forward.1} parent=5 // pred_check
      _
    $region10: #{encoder_forward.1} parent=5 // pred_check_branch
      %314 = sbr.rel (%p311) target = $region12
    $region11: #{encoder_forward.1} parent=5 // pred_region
      %s315 = ssub.s32 %s18, 1
      // Predicated region
      $region13: #{encoder_forward.1} parent=11 // pred_check
        %p316 = pneg %p65
      $region14: #{encoder_forward.1} parent=11 // pred_check_branch
        %318 = sbr.rel (%p316) target = $region16
      $region15: #{encoder_forward.1} parent=11 // pred_region
        _
      $region16: #{encoder_forward.1} parent=11 // pred_fallthru
        _
      // Predicated region
      $region17: #{encoder_forward.1} parent=11 // pred_check
        %p319 = pneg %p86
      $region18: #{encoder_forward.1} parent=11 // pred_check_branch
        %321 = sbr.rel (%p319) target = $region20
      $region19: #{encoder_forward.1} parent=11 // pred_region
        _
      $region20: #{encoder_forward.1} parent=11 // pred_fallthru
        _
      // Predicated region
      $region21: #{encoder_forward.1} parent=11 // pred_check
        %p322 = pneg %p107
      $region22: #{encoder_forward.1} parent=11 // pred_check_branch
        %324 = sbr.rel (%p322) target = $region24
      $region23: #{encoder_forward.1} parent=11 // pred_region
        _
      $region24: #{encoder_forward.1} parent=11 // pred_fallthru
        _
      // Predicated region
      $region25: #{encoder_forward.1} parent=11 // pred_check
        %p325 = pneg %p128
      $region26: #{encoder_forward.1} parent=11 // pred_check_branch
        %327 = sbr.rel (%p325) target = $region28
      $region27: #{encoder_forward.1} parent=11 // pred_region
        _
      $region28: #{encoder_forward.1} parent=11 // pred_fallthru
        _
      // Predicated region
      $region29: #{encoder_forward.1} parent=11 // pred_check
        %p328 = pneg %p149
      $region30: #{encoder_forward.1} parent=11 // pred_check_branch
        %330 = sbr.rel (%p328) target = $region32
      $region31: #{encoder_forward.1} parent=11 // pred_region
        _
      $region32: #{encoder_forward.1} parent=11 // pred_fallthru
        _
      // Predicated region
      $region33: #{encoder_forward.1} parent=11 // pred_check
        %p331 = pneg %p170
      $region34: #{encoder_forward.1} parent=11 // pred_check_branch
        %333 = sbr.rel (%p331) target = $region36
      $region35: #{encoder_forward.1} parent=11 // pred_region
        _
      $region36: #{encoder_forward.1} parent=11 // pred_fallthru
        _
      // Predicated region
      $region37: #{encoder_forward.1} parent=11 // pred_check
        %p334 = pneg %p191
      $region38: #{encoder_forward.1} parent=11 // pred_check_branch
        %336 = sbr.rel (%p334) target = $region40
      $region39: #{encoder_forward.1} parent=11 // pred_region
        _
      $region40: #{encoder_forward.1} parent=11 // pred_fallthru
        _
      // Predicated region
      $region41: #{encoder_forward.1} parent=11 // pred_check
        %p337 = pneg %p212
      $region42: #{encoder_forward.1} parent=11 // pred_check_branch
        %339 = sbr.rel (%p337) target = $region44
      $region43: #{encoder_forward.1} parent=11 // pred_region
        _
      $region44: #{encoder_forward.1} parent=11 // pred_fallthru
        _
      // Predicated region
      $region45: #{encoder_forward.1} parent=11 // pred_check
        %p340 = pneg %p233
      $region46: #{encoder_forward.1} parent=11 // pred_check_branch
        %342 = sbr.rel (%p340) target = $region48
      $region47: #{encoder_forward.1} parent=11 // pred_region
        _
      $region48: #{encoder_forward.1} parent=11 // pred_fallthru
        _
      // Predicated region
      $region49: #{encoder_forward.1} parent=11 // pred_check
        %p343 = pneg %p254
      $region50: #{encoder_forward.1} parent=11 // pred_check_branch
        %345 = sbr.rel (%p343) target = $region52
      $region51: #{encoder_forward.1} parent=11 // pred_region
        _
      $region52: #{encoder_forward.1} parent=11 // pred_fallthru
        _
      // Predicated region
      $region53: #{encoder_forward.1} parent=11 // pred_check
        %p346 = pneg %p275
      $region54: #{encoder_forward.1} parent=11 // pred_check_branch
        %348 = sbr.rel (%p346) target = $region56
      $region55: #{encoder_forward.1} parent=11 // pred_region
        _
      $region56: #{encoder_forward.1} parent=11 // pred_fallthru
        _
    $region12: #{encoder_forward.1} parent=5 // pred_fallthru
      _
    %p349 = scmp.lt.s32.totalorder %s18, 2
    // Predicated region
    $region57: #{encoder_forward.1} parent=5 // pred_check
      %p350 = pneg %p349
    $region58: #{encoder_forward.1} parent=5 // pred_check_branch
      %352 = sbr.rel (%p350) target = $region60
    $region59: #{encoder_forward.1} parent=5 // pred_region
      // Predicated region
      $region61: #{encoder_forward.1} parent=59 // pred_check
        %p353 = pneg %p38
      $region62: #{encoder_forward.1} parent=59 // pred_check_branch
        %355 = sbr.rel (%p353) target = $region64
      $region63: #{encoder_forward.1} parent=59 // pred_region
        %p356 = scmp.lt.s32.totalorder %s18, 1
        %s357 = scalar_select %p356, %s18, 1
        %s358 = smul.addr %s357, 128
        %s359 = smul.addr %s358, 8
        %s360 = scalar_lea.vmem %s0, %s359
      $region64: #{encoder_forward.1} parent=59 // pred_fallthru
        _
    $region60: #{encoder_forward.1} parent=5 // pred_fallthru
      _
    %p361 = scmp.le.s32.totalorder 1, %s18
    %p362 = scmp.lt.s32.totalorder %s18, 3
    %p363 = pnand %p361, %p362
    %p364 = pneg %p363
    // Predicated region
    $region65: #{encoder_forward.1} parent=5 // pred_check
      _
    $region66: #{encoder_forward.1} parent=5 // pred_check_branch
      %366 = sbr.rel (%p363) target = $region68
    $region67: #{encoder_forward.1} parent=5 // pred_region
      %s367 = ssub.s32 %s18, 1
      %p368 = scmp.lt.s32.totalorder %s23, 1
      %s369 = scalar_select %p368, %s23, 1
      %s370 = smul.addr %s369, 128
      %s371 = smul.addr %s370, 8
      %s372 = scalar_lea.vmem %s0, %s371
      %p373 = pneg %p44
      %p374 = pneg %p41
      %p375 = pneg %p65
      %p376 = pneg %p62
      %p377 = pneg %p86
      %p378 = pneg %p83
      %p379 = pneg %p107
      %p380 = pneg %p104
      %p381 = pneg %p128
      %p382 = pneg %p125
      %p383 = pneg %p149
      %p384 = pneg %p146
      %p385 = pneg %p170
      %p386 = pneg %p167
      %p387 = pneg %p191
      %p388 = pneg %p188
      %p389 = pneg %p212
      %p390 = pneg %p209
      %p391 = pneg %p233
      %p392 = pneg %p230
      %p393 = pneg %p254
      %p394 = pneg %p251
      %p395 = pneg %p275
      %p396 = pneg %p272
      %p397 = pneg %p301
      %p398 = pneg %p298
      %p399 = scmp.lt.s32.totalorder %s23, 1
      %s400 = scalar_select %p399, %s23, 1
      %s401 = scalar_lea.vmem %s12, %s400
      %p402 = scmp.lt.s32.totalorder %s23, 1
      %s403 = scalar_select %p402, %s23, 1
      %s404 = smul.addr %s403, 128
      %s405 = smul.addr %s404, 8
      %s406 = scalar_lea.vmem %s0, %s405
      %p407 = scmp.lt.s32.totalorder %s23, 1
      %s408 = scalar_select %p407, %s23, 1
      %s409 = scalar_lea.vmem %s12, %s408
      %v411 = vld [vmem:[%s406] sm:$0xff]
      %v412 = vld [vmem:[%s406 + $0x8] sm:$0xff]
      %v413 = vld [vmem:[%s406 + $0x10] sm:$0xff]
      %v414 = vld [vmem:[%s406 + $0x18] sm:$0xff]
      %v415 = vld [vmem:[%s406 + $0x20] sm:$0xff]
      %v416 = vld [vmem:[%s406 + $0x28] sm:$0xff]
      %v417 = vld [vmem:[%s406 + $0x30] sm:$0xff]
      %v418 = vld [vmem:[%s406 + $0x38] sm:$0xff]
      %v419 = vld [vmem:[%s406 + $0x40] sm:$0xff]
      %v420 = vld [vmem:[%s406 + $0x48] sm:$0xff]
      %v421 = vld [vmem:[%s406 + $0x50] sm:$0xff]
      %v422 = vld [vmem:[%s406 + $0x58] sm:$0xff]
      %v423 = vld [vmem:[%s406 + $0x60] sm:$0xff]
      %v424 = vld [vmem:[%s406 + $0x68] sm:$0xff]
      %v425 = vld [vmem:[%s406 + $0x70] sm:$0xff]
      %v426 = vld [vmem:[%s406 + $0x78] sm:$0xff]
      %v427 = vld [vmem:[%s406 + $0x80] sm:$0xff]
      %v428 = vld [vmem:[%s406 + $0x88] sm:$0xff]
      %v429 = vld [vmem:[%s406 + $0x90] sm:$0xff]
      %v430 = vld [vmem:[%s406 + $0x98] sm:$0xff]
      %v431 = vld [vmem:[%s406 + $0xa0] sm:$0xff]
      %v432 = vld [vmem:[%s406 + $0xa8] sm:$0xff]
      %v433 = vld [vmem:[%s406 + $0xb0] sm:$0xff]
      %v434 = vld [vmem:[%s406 + $0xb8] sm:$0xff]
      %v435 = vld [vmem:[%s406 + $0xc0] sm:$0xff]
      %v436 = vld [vmem:[%s406 + $0xc8] sm:$0xff]
      %v437 = vld [vmem:[%s406 + $0xd0] sm:$0xff]
      %v438 = vld [vmem:[%s406 + $0xd8] sm:$0xff]
      %v439 = vld [vmem:[%s406 + $0xe0] sm:$0xff]
      %v440 = vld [vmem:[%s406 + $0xe8] sm:$0xff]
      %v441 = vld [vmem:[%s406 + $0xf0] sm:$0xff]
      %v442 = vld [vmem:[%s406 + $0xf8] sm:$0xff]
      %v443 = vld [vmem:[%s406 + $0x100] sm:$0xff]
      %v444 = vld [vmem:[%s406 + $0x108] sm:$0xff]
      %v445 = vld [vmem:[%s406 + $0x110] sm:$0xff]
      %v446 = vld [vmem:[%s406 + $0x118] sm:$0xff]
      %v447 = vld [vmem:[%s406 + $0x120] sm:$0xff]
      %v448 = vld [vmem:[%s406 + $0x128] sm:$0xff]
      %v449 = vld [vmem:[%s406 + $0x130] sm:$0xff]
      %v450 = vld [vmem:[%s406 + $0x138] sm:$0xff]
      %v451 = vld [vmem:[%s406 + $0x140] sm:$0xff]
      %v452 = vld [vmem:[%s406 + $0x148] sm:$0xff]
      %v453 = vld [vmem:[%s406 + $0x150] sm:$0xff]
      %v454 = vld [vmem:[%s406 + $0x158] sm:$0xff]
      %v455 = vld [vmem:[%s406 + $0x160] sm:$0xff]
      %v456 = vld [vmem:[%s406 + $0x168] sm:$0xff]
      %v457 = vld [vmem:[%s406 + $0x170] sm:$0xff]
      %v458 = vld [vmem:[%s406 + $0x178] sm:$0xff]
      %v459 = vld [vmem:[%s406 + $0x180] sm:$0xff]
      %v460 = vld [vmem:[%s406 + $0x188] sm:$0xff]
      %v461 = vld [vmem:[%s406 + $0x190] sm:$0xff]
      %v462 = vld [vmem:[%s406 + $0x198] sm:$0xff]
      %v463 = vld [vmem:[%s406 + $0x1a0] sm:$0xff]
      %v464 = vld [vmem:[%s406 + $0x1a8] sm:$0xff]
      %v465 = vld [vmem:[%s406 + $0x1b0] sm:$0xff]
      %v466 = vld [vmem:[%s406 + $0x1b8] sm:$0xff]
      %v467 = vld [vmem:[%s406 + $0x1c0] sm:$0xff]
      %v468 = vld [vmem:[%s406 + $0x1c8] sm:$0xff]
      %v469 = vld [vmem:[%s406 + $0x1d0] sm:$0xff]
      %v470 = vld [vmem:[%s406 + $0x1d8] sm:$0xff]
      %v471 = vld [vmem:[%s406 + $0x1e0] sm:$0xff]
      %v472 = vld [vmem:[%s406 + $0x1e8] sm:$0xff]
      %v473 = vld [vmem:[%s406 + $0x1f0] sm:$0xff]
      %v474 = vld [vmem:[%s406 + $0x1f8] sm:$0xff]
      %v475 = vld [vmem:[%s406 + $0x200] sm:$0xff]
      %v476 = vld [vmem:[%s406 + $0x208] sm:$0xff]
      %v477 = vld [vmem:[%s406 + $0x210] sm:$0xff]
      %v478 = vld [vmem:[%s406 + $0x218] sm:$0xff]
      %v479 = vld [vmem:[%s406 + $0x220] sm:$0xff]
      %v480 = vld [vmem:[%s406 + $0x228] sm:$0xff]
      %v481 = vld [vmem:[%s406 + $0x230] sm:$0xff]
      %v482 = vld [vmem:[%s406 + $0x238] sm:$0xff]
      %v483 = vld [vmem:[%s406 + $0x240] sm:$0xff]
      %v484 = vld [vmem:[%s406 + $0x248] sm:$0xff]
      %v485 = vld [vmem:[%s406 + $0x250] sm:$0xff]
      %v486 = vld [vmem:[%s406 + $0x258] sm:$0xff]
      %v487 = vld [vmem:[%s406 + $0x260] sm:$0xff]
      %v488 = vld [vmem:[%s406 + $0x268] sm:$0xff]
      %v489 = vld [vmem:[%s406 + $0x270] sm:$0xff]
      %v490 = vld [vmem:[%s406 + $0x278] sm:$0xff]
      %v491 = vld [vmem:[%s406 + $0x280] sm:$0xff]
      %v492 = vld [vmem:[%s406 + $0x288] sm:$0xff]
      %v493 = vld [vmem:[%s406 + $0x290] sm:$0xff]
      %v494 = vld [vmem:[%s406 + $0x298] sm:$0xff]
      %v495 = vld [vmem:[%s406 + $0x2a0] sm:$0xff]
      %v496 = vld [vmem:[%s406 + $0x2a8] sm:$0xff]
      %v497 = vld [vmem:[%s406 + $0x2b0] sm:$0xff]
      %v498 = vld [vmem:[%s406 + $0x2b8] sm:$0xff]
      %v499 = vld [vmem:[%s406 + $0x2c0] sm:$0xff]
      %v500 = vld [vmem:[%s406 + $0x2c8] sm:$0xff]
      %v501 = vld [vmem:[%s406 + $0x2d0] sm:$0xff]
      %v502 = vld [vmem:[%s406 + $0x2d8] sm:$0xff]
      %v503 = vld [vmem:[%s406 + $0x2e0] sm:$0xff]
      %v504 = vld [vmem:[%s406 + $0x2e8] sm:$0xff]
      %v505 = vld [vmem:[%s406 + $0x2f0] sm:$0xff]
      %v506 = vld [vmem:[%s406 + $0x2f8] sm:$0xff]
      %v507 = vld [vmem:[%s406 + $0x300] sm:$0xff]
      %v508 = vld [vmem:[%s406 + $0x308] sm:$0xff]
      %v509 = vld [vmem:[%s406 + $0x310] sm:$0xff]
      %v510 = vld [vmem:[%s406 + $0x318] sm:$0xff]
      %v511 = vld [vmem:[%s406 + $0x320] sm:$0xff]
      %v512 = vld [vmem:[%s406 + $0x328] sm:$0xff]
      %v513 = vld [vmem:[%s406 + $0x330] sm:$0xff]
      %v514 = vld [vmem:[%s406 + $0x338] sm:$0xff]
      %v515 = vld [vmem:[%s406 + $0x340] sm:$0xff]
      %v516 = vld [vmem:[%s406 + $0x348] sm:$0xff]
      %v517 = vld [vmem:[%s406 + $0x350] sm:$0xff]
      %v518 = vld [vmem:[%s406 + $0x358] sm:$0xff]
      %v519 = vld [vmem:[%s406 + $0x360] sm:$0xff]
      %v520 = vld [vmem:[%s406 + $0x368] sm:$0xff]
      %v521 = vld [vmem:[%s406 + $0x370] sm:$0xff]
      %v522 = vld [vmem:[%s406 + $0x378] sm:$0xff]
      %v523 = vld [vmem:[%s406 + $0x380] sm:$0xff]
      %v524 = vld [vmem:[%s406 + $0x388] sm:$0xff]
      %v525 = vld [vmem:[%s406 + $0x390] sm:$0xff]
      %v526 = vld [vmem:[%s406 + $0x398] sm:$0xff]
      %v527 = vld [vmem:[%s406 + $0x3a0] sm:$0xff]
      %v528 = vld [vmem:[%s406 + $0x3a8] sm:$0xff]
      %v529 = vld [vmem:[%s406 + $0x3b0] sm:$0xff]
      %v530 = vld [vmem:[%s406 + $0x3b8] sm:$0xff]
      %v531 = vld [vmem:[%s406 + $0x3c0] sm:$0xff]
      %v532 = vld [vmem:[%s406 + $0x3c8] sm:$0xff]
      %v533 = vld [vmem:[%s406 + $0x3d0] sm:$0xff]
      %v534 = vld [vmem:[%s406 + $0x3d8] sm:$0xff]
      %v535 = vld [vmem:[%s406 + $0x3e0] sm:$0xff]
      %v536 = vld [vmem:[%s406 + $0x3e8] sm:$0xff]
      %v537 = vld [vmem:[%s406 + $0x3f0] sm:$0xff]
      %v538 = vld [vmem:[%s406 + $0x3f8] sm:$0xff]
      %v539 = vpack.c.bf16 %v412, %v411
      %v540 = vpack.c.bf16 %v414, %v413
      %v541 = vpack.c.bf16 %v416, %v415
      %v542 = vpack.c.bf16 %v418, %v417
      %v543 = vpack.c.bf16 %v420, %v419
      %v544 = vpack.c.bf16 %v422, %v421
      %v545 = vpack.c.bf16 %v424, %v423
      %v546 = vpack.c.bf16 %v426, %v425
      %v547 = vpack.c.bf16 %v428, %v427
      %v548 = vpack.c.bf16 %v430, %v429
      %v549 = vpack.c.bf16 %v432, %v431
      %v550 = vpack.c.bf16 %v434, %v433
      %v551 = vpack.c.bf16 %v436, %v435
      %v552 = vpack.c.bf16 %v438, %v437
      %v553 = vpack.c.bf16 %v440, %v439
      %v554 = vpack.c.bf16 %v442, %v441
      %v555 = vpack.c.bf16 %v444, %v443
      %v556 = vpack.c.bf16 %v446, %v445
      %v557 = vpack.c.bf16 %v448, %v447
      %v558 = vpack.c.bf16 %v450, %v449
      %v559 = vpack.c.bf16 %v452, %v451
      %v560 = vpack.c.bf16 %v454, %v453
      %v561 = vpack.c.bf16 %v456, %v455
      %v562 = vpack.c.bf16 %v458, %v457
      %v563 = vpack.c.bf16 %v460, %v459
      %v564 = vpack.c.bf16 %v462, %v461
      %v565 = vpack.c.bf16 %v464, %v463
      %v566 = vpack.c.bf16 %v466, %v465
      %v567 = vpack.c.bf16 %v468, %v467
      %v568 = vpack.c.bf16 %v470, %v469
      %v569 = vpack.c.bf16 %v472, %v471
      %v570 = vpack.c.bf16 %v474, %v473
      %v571 = vpack.c.bf16 %v476, %v475
      %v572 = vpack.c.bf16 %v478, %v477
      %v573 = vpack.c.bf16 %v480, %v479
      %v574 = vpack.c.bf16 %v482, %v481
      %v575 = vpack.c.bf16 %v484, %v483
      %v576 = vpack.c.bf16 %v486, %v485
      %v577 = vpack.c.bf16 %v488, %v487
      %v578 = vpack.c.bf16 %v490, %v489
      %v579 = vpack.c.bf16 %v492, %v491
      %v580 = vpack.c.bf16 %v494, %v493
      %v581 = vpack.c.bf16 %v496, %v495
      %v582 = vpack.c.bf16 %v498, %v497
      %v583 = vpack.c.bf16 %v500, %v499
      %v584 = vpack.c.bf16 %v502, %v501
      %v585 = vpack.c.bf16 %v504, %v503
      %v586 = vpack.c.bf16 %v506, %v505
      %v587 = vpack.c.bf16 %v508, %v507
      %v588 = vpack.c.bf16 %v510, %v509
      %v589 = vpack.c.bf16 %v512, %v511
      %v590 = vpack.c.bf16 %v514, %v513
      %v591 = vpack.c.bf16 %v516, %v515
      %v592 = vpack.c.bf16 %v518, %v517
      %v593 = vpack.c.bf16 %v520, %v519
      %v594 = vpack.c.bf16 %v522, %v521
      %v595 = vpack.c.bf16 %v524, %v523
      %v596 = vpack.c.bf16 %v526, %v525
      %v597 = vpack.c.bf16 %v528, %v527
      %v598 = vpack.c.bf16 %v530, %v529
      %v599 = vpack.c.bf16 %v532, %v531
      %v600 = vpack.c.bf16 %v534, %v533
      %v601 = vpack.c.bf16 %v536, %v535
      %v602 = vpack.c.bf16 %v538, %v537
      %v603 = vld [vmem:[%s1] sm:$0xf]
      %v604 = vld [vmem:[%s1 + $0x4] sm:$0xf]
      %v605 = vld [vmem:[%s2] sm:$0x1]
      %v607 = vperm.slane %v605, 0
      %v611 = vunpack.c.l.b16 %v603
      %v612 = vunpack.c.l.b16 %v604
      %v613 = vpack.c.b16 %v612, %v611
      %vm615 = vcmask 130048
      %v617 = vsel %vm615, %v539, 0
      %v620 = vsel %vm615, %v540, 0
      %v623 = vsel %vm615, %v541, 0
      %v626 = vsel %vm615, %v542, 0
      %v629 = vsel %vm615, %v543, 0
      %v632 = vsel %vm615, %v544, 0
      %v635 = vsel %vm615, %v545, 0
      %v638 = vsel %vm615, %v546, 0
      %v641 = vsel %vm615, %v547, 0
      %v644 = vsel %vm615, %v548, 0
      %v647 = vsel %vm615, %v549, 0
      %v650 = vsel %vm615, %v550, 0
      %v653 = vsel %vm615, %v551, 0
      %v656 = vsel %vm615, %v552, 0
      %v659 = vsel %vm615, %v553, 0
      %v662 = vsel %vm615, %v554, 0
      %v665 = vsel %vm615, %v555, 0
      %v668 = vsel %vm615, %v556, 0
      %v671 = vsel %vm615, %v557, 0
      %v674 = vsel %vm615, %v558, 0
      %v677 = vsel %vm615, %v559, 0
      %v680 = vsel %vm615, %v560, 0
      %v683 = vsel %vm615, %v561, 0
      %v686 = vsel %vm615, %v562, 0
      %v689 = vsel %vm615, %v563, 0
      %v692 = vsel %vm615, %v564, 0
      %v695 = vsel %vm615, %v565, 0
      %v698 = vsel %vm615, %v566, 0
      %v701 = vsel %vm615, %v567, 0
      %v704 = vsel %vm615, %v568, 0
      %v707 = vsel %vm615, %v569, 0
      %v710 = vsel %vm615, %v570, 0
      %v713 = vsel %vm615, %v571, 0
      %v716 = vsel %vm615, %v572, 0
      %v719 = vsel %vm615, %v573, 0
      %v722 = vsel %vm615, %v574, 0
      %v725 = vsel %vm615, %v575, 0
      %v728 = vsel %vm615, %v576, 0
      %v731 = vsel %vm615, %v577, 0
      %v734 = vsel %vm615, %v578, 0
      %v737 = vsel %vm615, %v579, 0
      %v740 = vsel %vm615, %v580, 0
      %v743 = vsel %vm615, %v581, 0
      %v746 = vsel %vm615, %v582, 0
      %v749 = vsel %vm615, %v583, 0
      %v752 = vsel %vm615, %v584, 0
      %v755 = vsel %vm615, %v585, 0
      %v758 = vsel %vm615, %v586, 0
      %v761 = vsel %vm615, %v587, 0
      %v764 = vsel %vm615, %v588, 0
      %v767 = vsel %vm615, %v589, 0
      %v770 = vsel %vm615, %v590, 0
      %v773 = vsel %vm615, %v591, 0
      %v776 = vsel %vm615, %v592, 0
      %v779 = vsel %vm615, %v593, 0
      %v782 = vsel %vm615, %v594, 0
      %v785 = vsel %vm615, %v595, 0
      %v788 = vsel %vm615, %v596, 0
      %v791 = vsel %vm615, %v597, 0
      %v794 = vsel %vm615, %v598, 0
      %v797 = vsel %vm615, %v599, 0
      %v800 = vsel %vm615, %v600, 0
      %v803 = vsel %vm615, %v601, 0
      %v806 = vsel %vm615, %v602, 0
      %808 = vmatpush.bf16.msra.mxu0 0
      %809 = vmatpush.bf16.msra.mxu0 0
      %810 = vmatpush.bf16.msra.mxu0 0
      %811 = vmatpush.bf16.msra.mxu0 0
      %812 = vmatpush.bf16.msra.mxu0 0
      %813 = vmatpush.bf16.msra.mxu0 0
      %814 = vmatpush.bf16.msra.mxu0 0
      %815 = vmatpush.bf16.msra.mxu0 %v613
      %816 = vmatmul.bf16.gmra.mxu0 %v617
      %v817 = vpop.f32.mrf.mxu0
      %v818 = vadd.f32 %v607, %v817
      %v819 = vpop.f32.mrf.mxu0
      %v820 = vadd.f32 %v607, %v819
      %821 = vmatmul.bf16.gmra.mxu0 %v620
      %v822 = vpop.f32.mrf.mxu0
      %v823 = vadd.f32 %v607, %v822
      %v824 = vpop.f32.mrf.mxu0
      %v825 = vadd.f32 %v607, %v824
      %826 = vmatmul.bf16.gmra.mxu0 %v623
      %v827 = vpop.f32.mrf.mxu0
      %v828 = vadd.f32 %v607, %v827
      %v829 = vpop.f32.mrf.mxu0
      %v830 = vadd.f32 %v607, %v829
      %831 = vmatmul.bf16.gmra.mxu0 %v626
      %v832 = vpop.f32.mrf.mxu0
      %v833 = vadd.f32 %v607, %v832
      %v834 = vpop.f32.mrf.mxu0
      %v835 = vadd.f32 %v607, %v834
      %836 = vmatmul.bf16.gmra.mxu0 %v629
      %v837 = vpop.f32.mrf.mxu0
      %v838 = vadd.f32 %v607, %v837
      %v839 = vpop.f32.mrf.mxu0
      %v840 = vadd.f32 %v607, %v839
      %841 = vmatmul.bf16.gmra.mxu0 %v632
      %v842 = vpop.f32.mrf.mxu0
      %v843 = vadd.f32 %v607, %v842
      %v844 = vpop.f32.mrf.mxu0
      %v845 = vadd.f32 %v607, %v844
      %846 = vmatmul.bf16.gmra.mxu0 %v635
      %v847 = vpop.f32.mrf.mxu0
      %v848 = vadd.f32 %v607, %v847
      %v849 = vpop.f32.mrf.mxu0
      %v850 = vadd.f32 %v607, %v849
      %851 = vmatmul.bf16.gmra.mxu0 %v638
      %v852 = vpop.f32.mrf.mxu0
      %v853 = vadd.f32 %v607, %v852
      %v854 = vpop.f32.mrf.mxu0
      %v855 = vadd.f32 %v607, %v854
      %856 = vmatmul.bf16.gmra.mxu0 %v641
      %v857 = vpop.f32.mrf.mxu0
      %v858 = vadd.f32 %v607, %v857
      %v859 = vpop.f32.mrf.mxu0
      %v860 = vadd.f32 %v607, %v859
      %861 = vmatmul.bf16.gmra.mxu0 %v644
      %v862 = vpop.f32.mrf.mxu0
      %v863 = vadd.f32 %v607, %v862
      %v864 = vpop.f32.mrf.mxu0
      %v865 = vadd.f32 %v607, %v864
      %866 = vmatmul.bf16.gmra.mxu0 %v647
      %v867 = vpop.f32.mrf.mxu0
      %v868 = vadd.f32 %v607, %v867
      %v869 = vpop.f32.mrf.mxu0
      %v870 = vadd.f32 %v607, %v869
      %871 = vmatmul.bf16.gmra.mxu0 %v650
      %v872 = vpop.f32.mrf.mxu0
      %v873 = vadd.f32 %v607, %v872
      %v874 = vpop.f32.mrf.mxu0
      %v875 = vadd.f32 %v607, %v874
      %876 = vmatmul.bf16.gmra.mxu0 %v653
      %v877 = vpop.f32.mrf.mxu0
      %v878 = vadd.f32 %v607, %v877
      %v879 = vpop.f32.mrf.mxu0
      %v880 = vadd.f32 %v607, %v879
      %881 = vmatmul.bf16.gmra.mxu0 %v656
      %v882 = vpop.f32.mrf.mxu0
      %v883 = vadd.f32 %v607, %v882
      %v884 = vpop.f32.mrf.mxu0
      %v885 = vadd.f32 %v607, %v884
      %886 = vmatmul.bf16.gmra.mxu0 %v659
      %v887 = vpop.f32.mrf.mxu0
      %v888 = vadd.f32 %v607, %v887
      %v889 = vpop.f32.mrf.mxu0
      %v890 = vadd.f32 %v607, %v889
      %891 = vmatmul.bf16.gmra.mxu0 %v662
      %v892 = vpop.f32.mrf.mxu0
      %v893 = vadd.f32 %v607, %v892
      %v894 = vpop.f32.mrf.mxu0
      %v895 = vadd.f32 %v607, %v894
      %896 = vmatmul.bf16.gmra.mxu0 %v665
      %v897 = vpop.f32.mrf.mxu0
      %v898 = vadd.f32 %v607, %v897
      %v899 = vpop.f32.mrf.mxu0
      %v900 = vadd.f32 %v607, %v899
      %901 = vmatmul.bf16.gmra.mxu0 %v668
      %v902 = vpop.f32.mrf.mxu0
      %v903 = vadd.f32 %v607, %v902
      %v904 = vpop.f32.mrf.mxu0
      %v905 = vadd.f32 %v607, %v904
      %906 = vmatmul.bf16.gmra.mxu0 %v671
      %v907 = vpop.f32.mrf.mxu0
      %v908 = vadd.f32 %v607, %v907
      %v909 = vpop.f32.mrf.mxu0
      %v910 = vadd.f32 %v607, %v909
      %911 = vmatmul.bf16.gmra.mxu0 %v674
      %v912 = vpop.f32.mrf.mxu0
      %v913 = vadd.f32 %v607, %v912
      %v914 = vpop.f32.mrf.mxu0
      %v915 = vadd.f32 %v607, %v914
      %916 = vmatmul.bf16.gmra.mxu0 %v677
      %v917 = vpop.f32.mrf.mxu0
      %v918 = vadd.f32 %v607, %v917
      %v919 = vpop.f32.mrf.mxu0
      %v920 = vadd.f32 %v607, %v919
      %921 = vmatmul.bf16.gmra.mxu0 %v680
      %v922 = vpop.f32.mrf.mxu0
      %v923 = vadd.f32 %v607, %v922
      %v924 = vpop.f32.mrf.mxu0
      %v925 = vadd.f32 %v607, %v924
      %926 = vmatmul.bf16.gmra.mxu0 %v683
      %v927 = vpop.f32.mrf.mxu0
      %v928 = vadd.f32 %v607, %v927
      %v929 = vpop.f32.mrf.mxu0
      %v930 = vadd.f32 %v607, %v929
      %931 = vmatmul.bf16.gmra.mxu0 %v686
      %v932 = vpop.f32.mrf.mxu0
      %v933 = vadd.f32 %v607, %v932
      %v934 = vpop.f32.mrf.mxu0
      %v935 = vadd.f32 %v607, %v934
      %936 = vmatmul.bf16.gmra.mxu0 %v689
      %v937 = vpop.f32.mrf.mxu0
      %v938 = vadd.f32 %v607, %v937
      %v939 = vpop.f32.mrf.mxu0
      %v940 = vadd.f32 %v607, %v939
      %941 = vmatmul.bf16.gmra.mxu0 %v692
      %v942 = vpop.f32.mrf.mxu0
      %v943 = vadd.f32 %v607, %v942
      %v944 = vpop.f32.mrf.mxu0
      %v945 = vadd.f32 %v607, %v944
      %946 = vmatmul.bf16.gmra.mxu0 %v695
      %v947 = vpop.f32.mrf.mxu0
      %v948 = vadd.f32 %v607, %v947
      %v949 = vpop.f32.mrf.mxu0
      %v950 = vadd.f32 %v607, %v949
      %951 = vmatmul.bf16.gmra.mxu0 %v698
      %v952 = vpop.f32.mrf.mxu0
      %v953 = vadd.f32 %v607, %v952
      %v954 = vpop.f32.mrf.mxu0
      %v955 = vadd.f32 %v607, %v954
      %956 = vmatmul.bf16.gmra.mxu0 %v701
      %v957 = vpop.f32.mrf.mxu0
      %v958 = vadd.f32 %v607, %v957
      %v959 = vpop.f32.mrf.mxu0
      %v960 = vadd.f32 %v607, %v959
      %961 = vmatmul.bf16.gmra.mxu0 %v704
      %v962 = vpop.f32.mrf.mxu0
      %v963 = vadd.f32 %v607, %v962
      %v964 = vpop.f32.mrf.mxu0
      %v965 = vadd.f32 %v607, %v964
      %966 = vmatmul.bf16.gmra.mxu0 %v707
      %v967 = vpop.f32.mrf.mxu0
      %v968 = vadd.f32 %v607, %v967
      %v969 = vpop.f32.mrf.mxu0
      %v970 = vadd.f32 %v607, %v969
      %971 = vmatmul.bf16.gmra.mxu0 %v710
      %v972 = vpop.f32.mrf.mxu0
      %v973 = vadd.f32 %v607, %v972
      %v974 = vpop.f32.mrf.mxu0
      %v975 = vadd.f32 %v607, %v974
      %976 = vmatmul.bf16.gmra.mxu0 %v713
      %v977 = vpop.f32.mrf.mxu0
      %v978 = vadd.f32 %v607, %v977
      %v979 = vpop.f32.mrf.mxu0
      %v980 = vadd.f32 %v607, %v979
      %981 = vmatmul.bf16.gmra.mxu0 %v716
      %v982 = vpop.f32.mrf.mxu0
      %v983 = vadd.f32 %v607, %v982
      %v984 = vpop.f32.mrf.mxu0
      %v985 = vadd.f32 %v607, %v984
      %986 = vmatmul.bf16.gmra.mxu0 %v719
      %v987 = vpop.f32.mrf.mxu0
      %v988 = vadd.f32 %v607, %v987
      %v989 = vpop.f32.mrf.mxu0
      %v990 = vadd.f32 %v607, %v989
      %991 = vmatmul.bf16.gmra.mxu0 %v722
      %v992 = vpop.f32.mrf.mxu0
      %v993 = vadd.f32 %v607, %v992
      %v994 = vpop.f32.mrf.mxu0
      %v995 = vadd.f32 %v607, %v994
      %996 = vmatmul.bf16.gmra.mxu0 %v725
      %v997 = vpop.f32.mrf.mxu0
      %v998 = vadd.f32 %v607, %v997
      %v999 = vpop.f32.mrf.mxu0
      %v1000 = vadd.f32 %v607, %v999
      %1001 = vmatmul.bf16.gmra.mxu0 %v728
      %v1002 = vpop.f32.mrf.mxu0
      %v1003 = vadd.f32 %v607, %v1002
      %v1004 = vpop.f32.mrf.mxu0
      %v1005 = vadd.f32 %v607, %v1004
      %1006 = vmatmul.bf16.gmra.mxu0 %v731
      %v1007 = vpop.f32.mrf.mxu0
      %v1008 = vadd.f32 %v607, %v1007
      %v1009 = vpop.f32.mrf.mxu0
      %v1010 = vadd.f32 %v607, %v1009
      %1011 = vmatmul.bf16.gmra.mxu0 %v734
      %v1012 = vpop.f32.mrf.mxu0
      %v1013 = vadd.f32 %v607, %v1012
      %v1014 = vpop.f32.mrf.mxu0
      %v1015 = vadd.f32 %v607, %v1014
      %1016 = vmatmul.bf16.gmra.mxu0 %v737
      %v1017 = vpop.f32.mrf.mxu0
      %v1018 = vadd.f32 %v607, %v1017
      %v1019 = vpop.f32.mrf.mxu0
      %v1020 = vadd.f32 %v607, %v1019
      %1021 = vmatmul.bf16.gmra.mxu0 %v740
      %v1022 = vpop.f32.mrf.mxu0
      %v1023 = vadd.f32 %v607, %v1022
      %v1024 = vpop.f32.mrf.mxu0
      %v1025 = vadd.f32 %v607, %v1024
      %1026 = vmatmul.bf16.gmra.mxu0 %v743
      %v1027 = vpop.f32.mrf.mxu0
      %v1028 = vadd.f32 %v607, %v1027
      %v1029 = vpop.f32.mrf.mxu0
      %v1030 = vadd.f32 %v607, %v1029
      %1031 = vmatmul.bf16.gmra.mxu0 %v746
      %v1032 = vpop.f32.mrf.mxu0
      %v1033 = vadd.f32 %v607, %v1032
      %v1034 = vpop.f32.mrf.mxu0
      %v1035 = vadd.f32 %v607, %v1034
      %1036 = vmatmul.bf16.gmra.mxu0 %v749
      %v1037 = vpop.f32.mrf.mxu0
      %v1038 = vadd.f32 %v607, %v1037
      %v1039 = vpop.f32.mrf.mxu0
      %v1040 = vadd.f32 %v607, %v1039
      %1041 = vmatmul.bf16.gmra.mxu0 %v752
      %v1042 = vpop.f32.mrf.mxu0
      %v1043 = vadd.f32 %v607, %v1042
      %v1044 = vpop.f32.mrf.mxu0
      %v1045 = vadd.f32 %v607, %v1044
      %1046 = vmatmul.bf16.gmra.mxu0 %v755
      %v1047 = vpop.f32.mrf.mxu0
      %v1048 = vadd.f32 %v607, %v1047
      %v1049 = vpop.f32.mrf.mxu0
      %v1050 = vadd.f32 %v607, %v1049
      %1051 = vmatmul.bf16.gmra.mxu0 %v758
      %v1052 = vpop.f32.mrf.mxu0
      %v1053 = vadd.f32 %v607, %v1052
      %v1054 = vpop.f32.mrf.mxu0
      %v1055 = vadd.f32 %v607, %v1054
      %1056 = vmatmul.bf16.gmra.mxu0 %v761
      %v1057 = vpop.f32.mrf.mxu0
      %v1058 = vadd.f32 %v607, %v1057
      %v1059 = vpop.f32.mrf.mxu0
      %v1060 = vadd.f32 %v607, %v1059
      %1061 = vmatmul.bf16.gmra.mxu0 %v764
      %v1062 = vpop.f32.mrf.mxu0
      %v1063 = vadd.f32 %v607, %v1062
      %v1064 = vpop.f32.mrf.mxu0
      %v1065 = vadd.f32 %v607, %v1064
      %1066 = vmatmul.bf16.gmra.mxu0 %v767
      %v1067 = vpop.f32.mrf.mxu0
      %v1068 = vadd.f32 %v607, %v1067
      %v1069 = vpop.f32.mrf.mxu0
      %v1070 = vadd.f32 %v607, %v1069
      %1071 = vmatmul.bf16.gmra.mxu0 %v770
      %v1072 = vpop.f32.mrf.mxu0
      %v1073 = vadd.f32 %v607, %v1072
      %v1074 = vpop.f32.mrf.mxu0
      %v1075 = vadd.f32 %v607, %v1074
      %1076 = vmatmul.bf16.gmra.mxu0 %v773
      %v1077 = vpop.f32.mrf.mxu0
      %v1078 = vadd.f32 %v607, %v1077
      %v1079 = vpop.f32.mrf.mxu0
      %v1080 = vadd.f32 %v607, %v1079
      %1081 = vmatmul.bf16.gmra.mxu0 %v776
      %v1082 = vpop.f32.mrf.mxu0
      %v1083 = vadd.f32 %v607, %v1082
      %v1084 = vpop.f32.mrf.mxu0
      %v1085 = vadd.f32 %v607, %v1084
      %1086 = vmatmul.bf16.gmra.mxu0 %v779
      %v1087 = vpop.f32.mrf.mxu0
      %v1088 = vadd.f32 %v607, %v1087
      %v1089 = vpop.f32.mrf.mxu0
      %v1090 = vadd.f32 %v607, %v1089
      %1091 = vmatmul.bf16.gmra.mxu0 %v782
      %v1092 = vpop.f32.mrf.mxu0
      %v1093 = vadd.f32 %v607, %v1092
      %v1094 = vpop.f32.mrf.mxu0
      %v1095 = vadd.f32 %v607, %v1094
      %1096 = vmatmul.bf16.gmra.mxu0 %v785
      %v1097 = vpop.f32.mrf.mxu0
      %v1098 = vadd.f32 %v607, %v1097
      %v1099 = vpop.f32.mrf.mxu0
      %v1100 = vadd.f32 %v607, %v1099
      %1101 = vmatmul.bf16.gmra.mxu0 %v788
      %v1102 = vpop.f32.mrf.mxu0
      %v1103 = vadd.f32 %v607, %v1102
      %v1104 = vpop.f32.mrf.mxu0
      %v1105 = vadd.f32 %v607, %v1104
      %1106 = vmatmul.bf16.gmra.mxu0 %v791
      %v1107 = vpop.f32.mrf.mxu0
      %v1108 = vadd.f32 %v607, %v1107
      %v1109 = vpop.f32.mrf.mxu0
      %v1110 = vadd.f32 %v607, %v1109
      %1111 = vmatmul.bf16.gmra.mxu0 %v794
      %v1112 = vpop.f32.mrf.mxu0
      %v1113 = vadd.f32 %v607, %v1112
      %v1114 = vpop.f32.mrf.mxu0
      %v1115 = vadd.f32 %v607, %v1114
      %1116 = vmatmul.bf16.gmra.mxu0 %v797
      %v1117 = vpop.f32.mrf.mxu0
      %v1118 = vadd.f32 %v607, %v1117
      %v1119 = vpop.f32.mrf.mxu0
      %v1120 = vadd.f32 %v607, %v1119
      %1121 = vmatmul.bf16.gmra.mxu0 %v800
      %v1122 = vpop.f32.mrf.mxu0
      %v1123 = vadd.f32 %v607, %v1122
      %v1124 = vpop.f32.mrf.mxu0
      %v1125 = vadd.f32 %v607, %v1124
      %1126 = vmatmul.bf16.gmra.mxu0 %v803
      %v1127 = vpop.f32.mrf.mxu0
      %v1128 = vadd.f32 %v607, %v1127
      %v1129 = vpop.f32.mrf.mxu0
      %v1130 = vadd.f32 %v607, %v1129
      %1131 = vmatmul.bf16.gmra.mxu0 %v806
      %v1132 = vpop.f32.mrf.mxu0
      %v1133 = vadd.f32 %v607, %v1132
      %v1134 = vpop.f32.mrf.mxu0
      %v1135 = vadd.f32 %v607, %v1134
      %1136 = vdwg.mxu0
      %v1137 = vmax.f32 %v818, 0.0
      %v1138 = vmax.f32 %v820, 0.0
      %v1139 = vmax.f32 %v823, 0.0
      %v1140 = vmax.f32 %v825, 0.0
      %v1141 = vmax.f32 %v828, 0.0
      %v1142 = vmax.f32 %v830, 0.0
      %v1143 = vmax.f32 %v833, 0.0
      %v1144 = vmax.f32 %v835, 0.0
      %v1145 = vmax.f32 %v838, 0.0
      %v1146 = vmax.f32 %v840, 0.0
      %v1147 = vmax.f32 %v843, 0.0
      %v1148 = vmax.f32 %v845, 0.0
      %v1149 = vmax.f32 %v848, 0.0
      %v1150 = vmax.f32 %v850, 0.0
      %v1151 = vmax.f32 %v853, 0.0
      %v1152 = vmax.f32 %v855, 0.0
      %v1153 = vmax.f32 %v858, 0.0
      %v1154 = vmax.f32 %v860, 0.0
      %v1155 = vmax.f32 %v863, 0.0
      %v1156 = vmax.f32 %v865, 0.0
      %v1157 = vmax.f32 %v868, 0.0
      %v1158 = vmax.f32 %v870, 0.0
      %v1159 = vmax.f32 %v873, 0.0
      %v1160 = vmax.f32 %v875, 0.0
      %v1161 = vmax.f32 %v878, 0.0
      %v1162 = vmax.f32 %v880, 0.0
      %v1163 = vmax.f32 %v883, 0.0
      %v1164 = vmax.f32 %v885, 0.0
      %v1165 = vmax.f32 %v888, 0.0
      %v1166 = vmax.f32 %v890, 0.0
      %v1167 = vmax.f32 %v893, 0.0
      %v1168 = vmax.f32 %v895, 0.0
      %v1169 = vmax.f32 %v898, 0.0
      %v1170 = vmax.f32 %v900, 0.0
      %v1171 = vmax.f32 %v903, 0.0
      %v1172 = vmax.f32 %v905, 0.0
      %v1173 = vmax.f32 %v908, 0.0
      %v1174 = vmax.f32 %v910, 0.0
      %v1175 = vmax.f32 %v913, 0.0
      %v1176 = vmax.f32 %v915, 0.0
      %v1177 = vmax.f32 %v918, 0.0
      %v1178 = vmax.f32 %v920, 0.0
      %v1179 = vmax.f32 %v923, 0.0
      %v1180 = vmax.f32 %v925, 0.0
      %v1181 = vmax.f32 %v928, 0.0
      %v1182 = vmax.f32 %v930, 0.0
      %v1183 = vmax.f32 %v933, 0.0
      %v1184 = vmax.f32 %v935, 0.0
      %v1185 = vmax.f32 %v938, 0.0
      %v1186 = vmax.f32 %v940, 0.0
      %v1187 = vmax.f32 %v943, 0.0
      %v1188 = vmax.f32 %v945, 0.0
      %v1189 = vmax.f32 %v948, 0.0
      %v1190 = vmax.f32 %v950, 0.0
      %v1191 = vmax.f32 %v953, 0.0
      %v1192 = vmax.f32 %v955, 0.0
      %v1193 = vmax.f32 %v958, 0.0
      %v1194 = vmax.f32 %v960, 0.0
      %v1195 = vmax.f32 %v963, 0.0
      %v1196 = vmax.f32 %v965, 0.0
      %v1197 = vmax.f32 %v968, 0.0
      %v1198 = vmax.f32 %v970, 0.0
      %v1199 = vmax.f32 %v973, 0.0
      %v1200 = vmax.f32 %v975, 0.0
      %v1201 = vmax.f32 %v978, 0.0
      %v1202 = vmax.f32 %v980, 0.0
      %v1203 = vmax.f32 %v983, 0.0
      %v1204 = vmax.f32 %v985, 0.0
      %v1205 = vmax.f32 %v988, 0.0
      %v1206 = vmax.f32 %v990, 0.0
      %v1207 = vmax.f32 %v993, 0.0
      %v1208 = vmax.f32 %v995, 0.0
      %v1209 = vmax.f32 %v998, 0.0
      %v1210 = vmax.f32 %v1000, 0.0
      %v1211 = vmax.f32 %v1003, 0.0
      %v1212 = vmax.f32 %v1005, 0.0
      %v1213 = vmax.f32 %v1008, 0.0
      %v1214 = vmax.f32 %v1010, 0.0
      %v1215 = vmax.f32 %v1013, 0.0
      %v1216 = vmax.f32 %v1015, 0.0
      %v1217 = vmax.f32 %v1018, 0.0
      %v1218 = vmax.f32 %v1020, 0.0
      %v1219 = vmax.f32 %v1023, 0.0
      %v1220 = vmax.f32 %v1025, 0.0
      %v1221 = vmax.f32 %v1028, 0.0
      %v1222 = vmax.f32 %v1030, 0.0
      %v1223 = vmax.f32 %v1033, 0.0
      %v1224 = vmax.f32 %v1035, 0.0
      %v1225 = vmax.f32 %v1038, 0.0
      %v1226 = vmax.f32 %v1040, 0.0
      %v1227 = vmax.f32 %v1043, 0.0
      %v1228 = vmax.f32 %v1045, 0.0
      %v1229 = vmax.f32 %v1048, 0.0
      %v1230 = vmax.f32 %v1050, 0.0
      %v1231 = vmax.f32 %v1053, 0.0
      %v1232 = vmax.f32 %v1055, 0.0
      %v1233 = vmax.f32 %v1058, 0.0
      %v1234 = vmax.f32 %v1060, 0.0
      %v1235 = vmax.f32 %v1063, 0.0
      %v1236 = vmax.f32 %v1065, 0.0
      %v1237 = vmax.f32 %v1068, 0.0
      %v1238 = vmax.f32 %v1070, 0.0
      %v1239 = vmax.f32 %v1073, 0.0
      %v1240 = vmax.f32 %v1075, 0.0
      %v1241 = vmax.f32 %v1078, 0.0
      %v1242 = vmax.f32 %v1080, 0.0
      %v1243 = vmax.f32 %v1083, 0.0
      %v1244 = vmax.f32 %v1085, 0.0
      %v1245 = vmax.f32 %v1088, 0.0
      %v1246 = vmax.f32 %v1090, 0.0
      %v1247 = vmax.f32 %v1093, 0.0
      %v1248 = vmax.f32 %v1095, 0.0
      %v1249 = vmax.f32 %v1098, 0.0
      %v1250 = vmax.f32 %v1100, 0.0
      %v1251 = vmax.f32 %v1103, 0.0
      %v1252 = vmax.f32 %v1105, 0.0
      %v1253 = vmax.f32 %v1108, 0.0
      %v1254 = vmax.f32 %v1110, 0.0
      %v1255 = vmax.f32 %v1113, 0.0
      %v1256 = vmax.f32 %v1115, 0.0
      %v1257 = vmax.f32 %v1118, 0.0
      %v1258 = vmax.f32 %v1120, 0.0
      %v1259 = vmax.f32 %v1123, 0.0
      %v1260 = vmax.f32 %v1125, 0.0
      %v1261 = vmax.f32 %v1128, 0.0
      %v1262 = vmax.f32 %v1130, 0.0
      %v1263 = vmax.f32 %v1133, 0.0
      %v1264 = vmax.f32 %v1135, 0.0
      %vm1265 = vcmask 261120
      %1266 = vst.msk [vmem:[#allocation2] sm:$0xff] %vm1265, 0.0
      %1267 = vst.msk [vmem:[#allocation2 + $0x8] sm:$0xff] %vm1265, 0.0
      %1268 = vst.msk [vmem:[#allocation2 + $0x10] sm:$0xff] %vm1265, 0.0
      %1269 = vst.msk [vmem:[#allocation2 + $0x18] sm:$0xff] %vm1265, 0.0
      %1270 = vst.msk [vmem:[#allocation2 + $0x20] sm:$0xff] %vm1265, 0.0
      %1271 = vst.msk [vmem:[#allocation2 + $0x28] sm:$0xff] %vm1265, 0.0
      %1272 = vst.msk [vmem:[#allocation2 + $0x30] sm:$0xff] %vm1265, 0.0
      %1273 = vst.msk [vmem:[#allocation2 + $0x38] sm:$0xff] %vm1265, 0.0
      %vm1274 = vcmask 254976
      %1275 = vst.msk [vmem:[#allocation2 + $0x40] sm:$0x3] %vm1274, 0.0
      %1276 = vst.msk [vmem:[#allocation2 + $0x462] sm:$0xff] %vm1265, 0.0
      %1277 = vst.msk [vmem:[#allocation2 + $0x46a] sm:$0xff] %vm1265, 0.0
      %1278 = vst.msk [vmem:[#allocation2 + $0x472] sm:$0xff] %vm1265, 0.0
      %1279 = vst.msk [vmem:[#allocation2 + $0x47a] sm:$0xff] %vm1265, 0.0
      %1280 = vst.msk [vmem:[#allocation2 + $0x482] sm:$0xff] %vm1265, 0.0
      %1281 = vst.msk [vmem:[#allocation2 + $0x48a] sm:$0xff] %vm1265, 0.0
      %1282 = vst.msk [vmem:[#allocation2 + $0x492] sm:$0xff] %vm1265, 0.0
      %1283 = vst.msk [vmem:[#allocation2 + $0x49a] sm:$0xff] %vm1265, 0.0
      %1284 = vst.msk [vmem:[#allocation2 + $0x4a2] sm:$0x3] %vm1274, 0.0
      %vm1285 = vcmask 253952
      %1286 = vst.msk [vmem:[#allocation2 + $0x42] sm:$0x1] %vm1285, 0.0
      %1287 = vst.msk [vmem:[#allocation2 + $0x43] sm:$0xff] %vm1265, %v1137
      %1288 = vst.msk [vmem:[#allocation2 + $0x4b] sm:$0xff] %vm1265, %v1138
      %1289 = vst.msk [vmem:[#allocation2 + $0x53] sm:$0xff] %vm1265, %v1139
      %1290 = vst.msk [vmem:[#allocation2 + $0x5b] sm:$0xff] %vm1265, %v1140
      %1291 = vst.msk [vmem:[#allocation2 + $0x63] sm:$0xff] %vm1265, %v1141
      %1292 = vst.msk [vmem:[#allocation2 + $0x6b] sm:$0xff] %vm1265, %v1142
      %1293 = vst.msk [vmem:[#allocation2 + $0x73] sm:$0xff] %vm1265, %v1143
      %1294 = vst.msk [vmem:[#allocation2 + $0x7b] sm:$0xff] %vm1265, %v1144
      %1295 = vst.msk [vmem:[#allocation2 + $0x83] sm:$0x1] %vm1285, 0.0
      %1296 = vst.msk [vmem:[#allocation2 + $0x84] sm:$0x1] %vm1285, 0.0
      %1297 = vst.msk [vmem:[#allocation2 + $0x85] sm:$0xff] %vm1265, %v1145
      %1298 = vst.msk [vmem:[#allocation2 + $0x8d] sm:$0xff] %vm1265, %v1146
      %1299 = vst.msk [vmem:[#allocation2 + $0x95] sm:$0xff] %vm1265, %v1147
      %1300 = vst.msk [vmem:[#allocation2 + $0x9d] sm:$0xff] %vm1265, %v1148
      %1301 = vst.msk [vmem:[#allocation2 + $0xa5] sm:$0xff] %vm1265, %v1149
      %1302 = vst.msk [vmem:[#allocation2 + $0xad] sm:$0xff] %vm1265, %v1150
      %1303 = vst.msk [vmem:[#allocation2 + $0xb5] sm:$0xff] %vm1265, %v1151
      %1304 = vst.msk [vmem:[#allocation2 + $0xbd] sm:$0xff] %vm1265, %v1152
      %1305 = vst.msk [vmem:[#allocation2 + $0xc5] sm:$0x1] %vm1285, 0.0
      %1306 = vst.msk [vmem:[#allocation2 + $0xc6] sm:$0x1] %vm1285, 0.0
      %1307 = vst.msk [vmem:[#allocation2 + $0xc7] sm:$0xff] %vm1265, %v1153
      %1308 = vst.msk [vmem:[#allocation2 + $0xcf] sm:$0xff] %vm1265, %v1154
      %1309 = vst.msk [vmem:[#allocation2 + $0xd7] sm:$0xff] %vm1265, %v1155
      %1310 = vst.msk [vmem:[#allocation2 + $0xdf] sm:$0xff] %vm1265, %v1156
      %1311 = vst.msk [vmem:[#allocation2 + $0xe7] sm:$0xff] %vm1265, %v1157
      %1312 = vst.msk [vmem:[#allocation2 + $0xef] sm:$0xff] %vm1265, %v1158
      %1313 = vst.msk [vmem:[#allocation2 + $0xf7] sm:$0xff] %vm1265, %v1159
      %1314 = vst.msk [vmem:[#allocation2 + $0xff] sm:$0xff] %vm1265, %v1160
      %1315 = vst.msk [vmem:[#allocation2 + $0x107] sm:$0x1] %vm1285, 0.0
      %1316 = vst.msk [vmem:[#allocation2 + $0x108] sm:$0x1] %vm1285, 0.0
      %1317 = vst.msk [vmem:[#allocation2 + $0x109] sm:$0xff] %vm1265, %v1161
      %1318 = vst.msk [vmem:[#allocation2 + $0x111] sm:$0xff] %vm1265, %v1162
      %1319 = vst.msk [vmem:[#allocation2 + $0x119] sm:$0xff] %vm1265, %v1163
      %1320 = vst.msk [vmem:[#allocation2 + $0x121] sm:$0xff] %vm1265, %v1164
      %1321 = vst.msk [vmem:[#allocation2 + $0x129] sm:$0xff] %vm1265, %v1165
      %1322 = vst.msk [vmem:[#allocation2 + $0x131] sm:$0xff] %vm1265, %v1166
      %1323 = vst.msk [vmem:[#allocation2 + $0x139] sm:$0xff] %vm1265, %v1167
      %1324 = vst.msk [vmem:[#allocation2 + $0x141] sm:$0xff] %vm1265, %v1168
      %1325 = vst.msk [vmem:[#allocation2 + $0x149] sm:$0x1] %vm1285, 0.0
      %1326 = vst.msk [vmem:[#allocation2 + $0x14a] sm:$0x1] %vm1285, 0.0
      %1327 = vst.msk [vmem:[#allocation2 + $0x14b] sm:$0xff] %vm1265, %v1169
      %1328 = vst.msk [vmem:[#allocation2 + $0x153] sm:$0xff] %vm1265, %v1170
      %1329 = vst.msk [vmem:[#allocation2 + $0x15b] sm:$0xff] %vm1265, %v1171
      %1330 = vst.msk [vmem:[#allocation2 + $0x163] sm:$0xff] %vm1265, %v1172
      %1331 = vst.msk [vmem:[#allocation2 + $0x16b] sm:$0xff] %vm1265, %v1173
      %1332 = vst.msk [vmem:[#allocation2 + $0x173] sm:$0xff] %vm1265, %v1174
      %1333 = vst.msk [vmem:[#allocation2 + $0x17b] sm:$0xff] %vm1265, %v1175
      %1334 = vst.msk [vmem:[#allocation2 + $0x183] sm:$0xff] %vm1265, %v1176
      %1335 = vst.msk [vmem:[#allocation2 + $0x18b] sm:$0x1] %vm1285, 0.0
      %1336 = vst.msk [vmem:[#allocation2 + $0x18c] sm:$0x1] %vm1285, 0.0
      %1337 = vst.msk [vmem:[#allocation2 + $0x18d] sm:$0xff] %vm1265, %v1177
      %1338 = vst.msk [vmem:[#allocation2 + $0x195] sm:$0xff] %vm1265, %v1178
      %1339 = vst.msk [vmem:[#allocation2 + $0x19d] sm:$0xff] %vm1265, %v1179
      %1340 = vst.msk [vmem:[#allocation2 + $0x1a5] sm:$0xff] %vm1265, %v1180
      %1341 = vst.msk [vmem:[#allocation2 + $0x1ad] sm:$0xff] %vm1265, %v1181
      %1342 = vst.msk [vmem:[#allocation2 + $0x1b5] sm:$0xff] %vm1265, %v1182
      %1343 = vst.msk [vmem:[#allocation2 + $0x1bd] sm:$0xff] %vm1265, %v1183
      %1344 = vst.msk [vmem:[#allocation2 + $0x1c5] sm:$0xff] %vm1265, %v1184
      %1345 = vst.msk [vmem:[#allocation2 + $0x1cd] sm:$0x1] %vm1285, 0.0
      %1346 = vst.msk [vmem:[#allocation2 + $0x1ce] sm:$0x1] %vm1285, 0.0
      %1347 = vst.msk [vmem:[#allocation2 + $0x1cf] sm:$0xff] %vm1265, %v1185
      %1348 = vst.msk [vmem:[#allocation2 + $0x1d7] sm:$0xff] %vm1265, %v1186
      %1349 = vst.msk [vmem:[#allocation2 + $0x1df] sm:$0xff] %vm1265, %v1187
      %1350 = vst.msk [vmem:[#allocation2 + $0x1e7] sm:$0xff] %vm1265, %v1188
      %1351 = vst.msk [vmem:[#allocation2 + $0x1ef] sm:$0xff] %vm1265, %v1189
      %1352 = vst.msk [vmem:[#allocation2 + $0x1f7] sm:$0xff] %vm1265, %v1190
      %1353 = vst.msk [vmem:[#allocation2 + $0x1ff] sm:$0xff] %vm1265, %v1191
      %1354 = vst.msk [vmem:[#allocation2 + $0x207] sm:$0xff] %vm1265, %v1192
      %1355 = vst.msk [vmem:[#allocation2 + $0x20f] sm:$0x1] %vm1285, 0.0
      %1356 = vst.msk [vmem:[#allocation2 + $0x210] sm:$0x1] %vm1285, 0.0
      %1357 = vst.msk [vmem:[#allocation2 + $0x211] sm:$0xff] %vm1265, %v1193
      %1358 = vst.msk [vmem:[#allocation2 + $0x219] sm:$0xff] %vm1265, %v1194
      %1359 = vst.msk [vmem:[#allocation2 + $0x221] sm:$0xff] %vm1265, %v1195
      %1360 = vst.msk [vmem:[#allocation2 + $0x229] sm:$0xff] %vm1265, %v1196
      %1361 = vst.msk [vmem:[#allocation2 + $0x231] sm:$0xff] %vm1265, %v1197
      %1362 = vst.msk [vmem:[#allocation2 + $0x239] sm:$0xff] %vm1265, %v1198
      %1363 = vst.msk [vmem:[#allocation2 + $0x241] sm:$0xff] %vm1265, %v1199
      %1364 = vst.msk [vmem:[#allocation2 + $0x249] sm:$0xff] %vm1265, %v1200
      %1365 = vst.msk [vmem:[#allocation2 + $0x251] sm:$0x1] %vm1285, 0.0
      %1366 = vst.msk [vmem:[#allocation2 + $0x252] sm:$0x1] %vm1285, 0.0
      %1367 = vst.msk [vmem:[#allocation2 + $0x253] sm:$0xff] %vm1265, %v1201
      %1368 = vst.msk [vmem:[#allocation2 + $0x25b] sm:$0xff] %vm1265, %v1202
      %1369 = vst.msk [vmem:[#allocation2 + $0x263] sm:$0xff] %vm1265, %v1203
      %1370 = vst.msk [vmem:[#allocation2 + $0x26b] sm:$0xff] %vm1265, %v1204
      %1371 = vst.msk [vmem:[#allocation2 + $0x273] sm:$0xff] %vm1265, %v1205
      %1372 = vst.msk [vmem:[#allocation2 + $0x27b] sm:$0xff] %vm1265, %v1206
      %1373 = vst.msk [vmem:[#allocation2 + $0x283] sm:$0xff] %vm1265, %v1207
      %1374 = vst.msk [vmem:[#allocation2 + $0x28b] sm:$0xff] %vm1265, %v1208
      %1375 = vst.msk [vmem:[#allocation2 + $0x293] sm:$0x1] %vm1285, 0.0
      %1376 = vst.msk [vmem:[#allocation2 + $0x294] sm:$0x1] %vm1285, 0.0
      %1377 = vst.msk [vmem:[#allocation2 + $0x295] sm:$0xff] %vm1265, %v1209
      %1378 = vst.msk [vmem:[#allocation2 + $0x29d] sm:$0xff] %vm1265, %v1210
      %1379 = vst.msk [vmem:[#allocation2 + $0x2a5] sm:$0xff] %vm1265, %v1211
      %1380 = vst.msk [vmem:[#allocation2 + $0x2ad] sm:$0xff] %vm1265, %v1212
      %1381 = vst.msk [vmem:[#allocation2 + $0x2b5] sm:$0xff] %vm1265, %v1213
      %1382 = vst.msk [vmem:[#allocation2 + $0x2bd] sm:$0xff] %vm1265, %v1214
      %1383 = vst.msk [vmem:[#allocation2 + $0x2c5] sm:$0xff] %vm1265, %v1215
      %1384 = vst.msk [vmem:[#allocation2 + $0x2cd] sm:$0xff] %vm1265, %v1216
      %1385 = vst.msk [vmem:[#allocation2 + $0x2d5] sm:$0x1] %vm1285, 0.0
      %1386 = vst.msk [vmem:[#allocation2 + $0x2d6] sm:$0x1] %vm1285, 0.0
      %1387 = vst.msk [vmem:[#allocation2 + $0x2d7] sm:$0xff] %vm1265, %v1217
      %1388 = vst.msk [vmem:[#allocation2 + $0x2df] sm:$0xff] %vm1265, %v1218
      %1389 = vst.msk [vmem:[#allocation2 + $0x2e7] sm:$0xff] %vm1265, %v1219
      %1390 = vst.msk [vmem:[#allocation2 + $0x2ef] sm:$0xff] %vm1265, %v1220
      %1391 = vst.msk [vmem:[#allocation2 + $0x2f7] sm:$0xff] %vm1265, %v1221
      %1392 = vst.msk [vmem:[#allocation2 + $0x2ff] sm:$0xff] %vm1265, %v1222
      %1393 = vst.msk [vmem:[#allocation2 + $0x307] sm:$0xff] %vm1265, %v1223
      %1394 = vst.msk [vmem:[#allocation2 + $0x30f] sm:$0xff] %vm1265, %v1224
      %1395 = vst.msk [vmem:[#allocation2 + $0x317] sm:$0x1] %vm1285, 0.0
      %1396 = vst.msk [vmem:[#allocation2 + $0x318] sm:$0x1] %vm1285, 0.0
      %1397 = vst.msk [vmem:[#allocation2 + $0x319] sm:$0xff] %vm1265, %v1225
      %1398 = vst.msk [vmem:[#allocation2 + $0x321] sm:$0xff] %vm1265, %v1226
      %1399 = vst.msk [vmem:[#allocation2 + $0x329] sm:$0xff] %vm1265, %v1227
      %1400 = vst.msk [vmem:[#allocation2 + $0x331] sm:$0xff] %vm1265, %v1228
      %1401 = vst.msk [vmem:[#allocation2 + $0x339] sm:$0xff] %vm1265, %v1229
      %1402 = vst.msk [vmem:[#allocation2 + $0x341] sm:$0xff] %vm1265, %v1230
      %1403 = vst.msk [vmem:[#allocation2 + $0x349] sm:$0xff] %vm1265, %v1231
      %1404 = vst.msk [vmem:[#allocation2 + $0x351] sm:$0xff] %vm1265, %v1232
      %1405 = vst.msk [vmem:[#allocation2 + $0x359] sm:$0x1] %vm1285, 0.0
      %1406 = vst.msk [vmem:[#allocation2 + $0x35a] sm:$0x1] %vm1285, 0.0
      %1407 = vst.msk [vmem:[#allocation2 + $0x35b] sm:$0xff] %vm1265, %v1233
      %1408 = vst.msk [vmem:[#allocation2 + $0x363] sm:$0xff] %vm1265, %v1234
      %1409 = vst.msk [vmem:[#allocation2 + $0x36b] sm:$0xff] %vm1265, %v1235
      %1410 = vst.msk [vmem:[#allocation2 + $0x373] sm:$0xff] %vm1265, %v1236
      %1411 = vst.msk [vmem:[#allocation2 + $0x37b] sm:$0xff] %vm1265, %v1237
      %1412 = vst.msk [vmem:[#allocation2 + $0x383] sm:$0xff] %vm1265, %v1238
      %1413 = vst.msk [vmem:[#allocation2 + $0x38b] sm:$0xff] %vm1265, %v1239
      %1414 = vst.msk [vmem:[#allocation2 + $0x393] sm:$0xff] %vm1265, %v1240
      %1415 = vst.msk [vmem:[#allocation2 + $0x39b] sm:$0x1] %vm1285, 0.0
      %1416 = vst.msk [vmem:[#allocation2 + $0x39c] sm:$0x1] %vm1285, 0.0
      %1417 = vst.msk [vmem:[#allocation2 + $0x39d] sm:$0xff] %vm1265, %v1241
      %1418 = vst.msk [vmem:[#allocation2 + $0x3a5] sm:$0xff] %vm1265, %v1242
      %1419 = vst.msk [vmem:[#allocation2 + $0x3ad] sm:$0xff] %vm1265, %v1243
      %1420 = vst.msk [vmem:[#allocation2 + $0x3b5] sm:$0xff] %vm1265, %v1244
      %1421 = vst.msk [vmem:[#allocation2 + $0x3bd] sm:$0xff] %vm1265, %v1245
      %1422 = vst.msk [vmem:[#allocation2 + $0x3c5] sm:$0xff] %vm1265, %v1246
      %1423 = vst.msk [vmem:[#allocation2 + $0x3cd] sm:$0xff] %vm1265, %v1247
      %1424 = vst.msk [vmem:[#allocation2 + $0x3d5] sm:$0xff] %vm1265, %v1248
      %1425 = vst.msk [vmem:[#allocation2 + $0x3dd] sm:$0x1] %vm1285, 0.0
      %1426 = vst.msk [vmem:[#allocation2 + $0x3de] sm:$0x1] %vm1285, 0.0
      %1427 = vst.msk [vmem:[#allocation2 + $0x3df] sm:$0xff] %vm1265, %v1249
      %1428 = vst.msk [vmem:[#allocation2 + $0x3e7] sm:$0xff] %vm1265, %v1250
      %1429 = vst.msk [vmem:[#allocation2 + $0x3ef] sm:$0xff] %vm1265, %v1251
      %1430 = vst.msk [vmem:[#allocation2 + $0x3f7] sm:$0xff] %vm1265, %v1252
      %1431 = vst.msk [vmem:[#allocation2 + $0x3ff] sm:$0xff] %vm1265, %v1253
      %1432 = vst.msk [vmem:[#allocation2 + $0x407] sm:$0xff] %vm1265, %v1254
      %1433 = vst.msk [vmem:[#allocation2 + $0x40f] sm:$0xff] %vm1265, %v1255
      %1434 = vst.msk [vmem:[#allocation2 + $0x417] sm:$0xff] %vm1265, %v1256
      %1435 = vst.msk [vmem:[#allocation2 + $0x41f] sm:$0x1] %vm1285, 0.0
      %1436 = vst.msk [vmem:[#allocation2 + $0x420] sm:$0x1] %vm1285, 0.0
      %1437 = vst.msk [vmem:[#allocation2 + $0x421] sm:$0xff] %vm1265, %v1257
      %1438 = vst.msk [vmem:[#allocation2 + $0x429] sm:$0xff] %vm1265, %v1258
      %1439 = vst.msk [vmem:[#allocation2 + $0x431] sm:$0xff] %vm1265, %v1259
      %1440 = vst.msk [vmem:[#allocation2 + $0x439] sm:$0xff] %vm1265, %v1260
      %1441 = vst.msk [vmem:[#allocation2 + $0x441] sm:$0xff] %vm1265, %v1261
      %1442 = vst.msk [vmem:[#allocation2 + $0x449] sm:$0xff] %vm1265, %v1262
      %1443 = vst.msk [vmem:[#allocation2 + $0x451] sm:$0xff] %vm1265, %v1263
      %1444 = vst.msk [vmem:[#allocation2 + $0x459] sm:$0xff] %vm1265, %v1264
      %1445 = vst.msk [vmem:[#allocation2 + $0x461] sm:$0x1] %vm1285, 0.0
      %v1446 = vld [vmem:[%s4] sm:$0x1]
      %v1447 = vld [vmem:[#allocation2] ss:$2 sm:$0xff]
      %s1448 = scalar_lea.vmem [#allocation2], 16
      %v1449 = vld [vmem:[%s1448] ss:$2 sm:$0xff]
      %s1450 = scalar_lea.vmem [#allocation2], 32
      %v1451 = vld [vmem:[%s1450] ss:$2 sm:$0xff]
      %s1452 = scalar_lea.vmem [#allocation2], 48
      %v1453 = vld [vmem:[%s1452] ss:$2 sm:$0xff]
      %s1454 = scalar_lea.vmem [#allocation2], 132
      %v1455 = vld [vmem:[%s1454] ss:$2 sm:$0xff]
      %s1456 = scalar_lea.vmem [#allocation2], 148
      %v1457 = vld [vmem:[%s1456] ss:$2 sm:$0xff]
      %s1458 = scalar_lea.vmem [#allocation2], 164
      %v1459 = vld [vmem:[%s1458] ss:$2 sm:$0xff]
      %s1460 = scalar_lea.vmem [#allocation2], 180
      %v1461 = vld [vmem:[%s1460] ss:$2 sm:$0xff]
      %s1462 = scalar_lea.vmem [#allocation2], 264
      %v1463 = vld [vmem:[%s1462] ss:$2 sm:$0xff]
      %s1464 = scalar_lea.vmem [#allocation2], 280
      %v1465 = vld [vmem:[%s1464] ss:$2 sm:$0xff]
      %s1466 = scalar_lea.vmem [#allocation2], 296
      %v1467 = vld [vmem:[%s1466] ss:$2 sm:$0xff]
      %s1468 = scalar_lea.vmem [#allocation2], 312
      %v1469 = vld [vmem:[%s1468] ss:$2 sm:$0xff]
      %s1470 = scalar_lea.vmem [#allocation2], 396
      %v1471 = vld [vmem:[%s1470] ss:$2 sm:$0xff]
      %s1472 = scalar_lea.vmem [#allocation2], 412
      %v1473 = vld [vmem:[%s1472] ss:$2 sm:$0xff]
      %s1474 = scalar_lea.vmem [#allocation2], 428
      %v1475 = vld [vmem:[%s1474] ss:$2 sm:$0xff]
      %s1476 = scalar_lea.vmem [#allocation2], 444
      %v1477 = vld [vmem:[%s1476] ss:$2 sm:$0xff]
      %s1478 = scalar_lea.vmem [#allocation2], 528
      %v1479 = vld [vmem:[%s1478] ss:$2 sm:$0xff]
      %s1480 = scalar_lea.vmem [#allocation2], 544
      %v1481 = vld [vmem:[%s1480] ss:$2 sm:$0xff]
      %s1482 = scalar_lea.vmem [#allocation2], 560
      %v1483 = vld [vmem:[%s1482] ss:$2 sm:$0xff]
      %s1484 = scalar_lea.vmem [#allocation2], 576
      %v1485 = vld [vmem:[%s1484] ss:$2 sm:$0xff]
      %s1486 = scalar_lea.vmem [#allocation2], 660
      %v1487 = vld [vmem:[%s1486] ss:$2 sm:$0xff]
      %s1488 = scalar_lea.vmem [#allocation2], 676
      %v1489 = vld [vmem:[%s1488] ss:$2 sm:$0xff]
      %s1490 = scalar_lea.vmem [#allocation2], 692
      %v1491 = vld [vmem:[%s1490] ss:$2 sm:$0xff]
      %s1492 = scalar_lea.vmem [#allocation2], 708
      %v1493 = vld [vmem:[%s1492] ss:$2 sm:$0xff]
      %s1494 = scalar_lea.vmem [#allocation2], 792
      %v1495 = vld [vmem:[%s1494] ss:$2 sm:$0xff]
      %s1496 = scalar_lea.vmem [#allocation2], 808
      %v1497 = vld [vmem:[%s1496] ss:$2 sm:$0xff]
      %s1498 = scalar_lea.vmem [#allocation2], 824
      %v1499 = vld [vmem:[%s1498] ss:$2 sm:$0xff]
      %s1500 = scalar_lea.vmem [#allocation2], 840
      %v1501 = vld [vmem:[%s1500] ss:$2 sm:$0xff]
      %s1502 = scalar_lea.vmem [#allocation2], 924
      %v1503 = vld [vmem:[%s1502] ss:$2 sm:$0xff]
      %s1504 = scalar_lea.vmem [#allocation2], 940
      %v1505 = vld [vmem:[%s1504] ss:$2 sm:$0xff]
      %s1506 = scalar_lea.vmem [#allocation2], 956
      %v1507 = vld [vmem:[%s1506] ss:$2 sm:$0xff]
      %s1508 = scalar_lea.vmem [#allocation2], 972
      %v1509 = vld [vmem:[%s1508] ss:$2 sm:$0xff]
      %v1510 = vpack.c.bf16 %v1449, %v1447
      %v1511 = vpack.c.bf16 %v1453, %v1451
      %v1512 = vpack.c.bf16 %v1457, %v1455
      %v1513 = vpack.c.bf16 %v1461, %v1459
      %v1514 = vpack.c.bf16 %v1465, %v1463
      %v1515 = vpack.c.bf16 %v1469, %v1467
      %v1516 = vpack.c.bf16 %v1473, %v1471
      %v1517 = vpack.c.bf16 %v1477, %v1475
      %v1518 = vpack.c.bf16 %v1481, %v1479
      %v1519 = vpack.c.bf16 %v1485, %v1483
      %v1520 = vpack.c.bf16 %v1489, %v1487
      %v1521 = vpack.c.bf16 %v1493, %v1491
      %v1522 = vpack.c.bf16 %v1497, %v1495
      %v1523 = vpack.c.bf16 %v1501, %v1499
      %v1524 = vpack.c.bf16 %v1505, %v1503
      %v1525 = vpack.c.bf16 %v1509, %v1507
      %v1526 = vld [vmem:[%s3] sm:$0xf]
      %v1527 = vld [vmem:[%s3 + $0x4] sm:$0xf]
      %v1528 = vld [vmem:[%s3 + $0x8] sm:$0xf]
      %v1529 = vld [vmem:[%s3 + $0xc] sm:$0xf]
      %s1530 = scalar_lea.vmem [#allocation2], 1
      %v1531 = vld [vmem:[%s1530] ss:$2 sm:$0xff]
      %s1532 = scalar_lea.vmem [#allocation2], 17
      %v1533 = vld [vmem:[%s1532] ss:$2 sm:$0xff]
      %s1534 = scalar_lea.vmem [#allocation2], 33
      %v1535 = vld [vmem:[%s1534] ss:$2 sm:$0xff]
      %s1536 = scalar_lea.vmem [#allocation2], 49
      %v1537 = vld [vmem:[%s1536] ss:$2 sm:$0xff]
      %s1538 = scalar_lea.vmem [#allocation2], 133
      %v1539 = vld [vmem:[%s1538] ss:$2 sm:$0xff]
      %s1540 = scalar_lea.vmem [#allocation2], 149
      %v1541 = vld [vmem:[%s1540] ss:$2 sm:$0xff]
      %s1542 = scalar_lea.vmem [#allocation2], 165
      %v1543 = vld [vmem:[%s1542] ss:$2 sm:$0xff]
      %s1544 = scalar_lea.vmem [#allocation2], 181
      %v1545 = vld [vmem:[%s1544] ss:$2 sm:$0xff]
      %s1546 = scalar_lea.vmem [#allocation2], 265
      %v1547 = vld [vmem:[%s1546] ss:$2 sm:$0xff]
      %s1548 = scalar_lea.vmem [#allocation2], 281
      %v1549 = vld [vmem:[%s1548] ss:$2 sm:$0xff]
      %s1550 = scalar_lea.vmem [#allocation2], 297
      %v1551 = vld [vmem:[%s1550] ss:$2 sm:$0xff]
      %s1552 = scalar_lea.vmem [#allocation2], 313
      %v1553 = vld [vmem:[%s1552] ss:$2 sm:$0xff]
      %s1554 = scalar_lea.vmem [#allocation2], 397
      %v1555 = vld [vmem:[%s1554] ss:$2 sm:$0xff]
      %s1556 = scalar_lea.vmem [#allocation2], 413
      %v1557 = vld [vmem:[%s1556] ss:$2 sm:$0xff]
      %s1558 = scalar_lea.vmem [#allocation2], 429
      %v1559 = vld [vmem:[%s1558] ss:$2 sm:$0xff]
      %s1560 = scalar_lea.vmem [#allocation2], 445
      %v1561 = vld [vmem:[%s1560] ss:$2 sm:$0xff]
      %s1562 = scalar_lea.vmem [#allocation2], 529
      %v1563 = vld [vmem:[%s1562] ss:$2 sm:$0xff]
      %s1564 = scalar_lea.vmem [#allocation2], 545
      %v1565 = vld [vmem:[%s1564] ss:$2 sm:$0xff]
      %s1566 = scalar_lea.vmem [#allocation2], 561
      %v1567 = vld [vmem:[%s1566] ss:$2 sm:$0xff]
      %s1568 = scalar_lea.vmem [#allocation2], 577
      %v1569 = vld [vmem:[%s1568] ss:$2 sm:$0xff]
      %s1570 = scalar_lea.vmem [#allocation2], 661
      %v1571 = vld [vmem:[%s1570] ss:$2 sm:$0xff]
      %s1572 = scalar_lea.vmem [#allocation2], 677
      %v1573 = vld [vmem:[%s1572] ss:$2 sm:$0xff]
      %s1574 = scalar_lea.vmem [#allocation2], 693
      %v1575 = vld [vmem:[%s1574] ss:$2 sm:$0xff]
      %s1576 = scalar_lea.vmem [#allocation2], 709
      %v1577 = vld [vmem:[%s1576] ss:$2 sm:$0xff]
      %s1578 = scalar_lea.vmem [#allocation2], 793
      %v1579 = vld [vmem:[%s1578] ss:$2 sm:$0xff]
      %s1580 = scalar_lea.vmem [#allocation2], 809
      %v1581 = vld [vmem:[%s1580] ss:$2 sm:$0xff]
      %s1582 = scalar_lea.vmem [#allocation2], 825
      %v1583 = vld [vmem:[%s1582] ss:$2 sm:$0xff]
      %s1584 = scalar_lea.vmem [#allocation2], 841
      %v1585 = vld [vmem:[%s1584] ss:$2 sm:$0xff]
      %s1586 = scalar_lea.vmem [#allocation2], 925
      %v1587 = vld [vmem:[%s1586] ss:$2 sm:$0xff]
      %s1588 = scalar_lea.vmem [#allocation2], 941
      %v1589 = vld [vmem:[%s1588] ss:$2 sm:$0xff]
      %s1590 = scalar_lea.vmem [#allocation2], 957
      %v1591 = vld [vmem:[%s1590] ss:$2 sm:$0xff]
      %s1592 = scalar_lea.vmem [#allocation2], 973
      %v1593 = vld [vmem:[%s1592] ss:$2 sm:$0xff]
      %v1594 = vpack.c.bf16 %v1533, %v1531
      %v1595 = vpack.c.bf16 %v1537, %v1535
      %v1596 = vpack.c.bf16 %v1541, %v1539
      %v1597 = vpack.c.bf16 %v1545, %v1543
      %v1598 = vpack.c.bf16 %v1549, %v1547
      %v1599 = vpack.c.bf16 %v1553, %v1551
      %v1600 = vpack.c.bf16 %v1557, %v1555
      %v1601 = vpack.c.bf16 %v1561, %v1559
      %v1602 = vpack.c.bf16 %v1565, %v1563
      %v1603 = vpack.c.bf16 %v1569, %v1567
      %v1604 = vpack.c.bf16 %v1573, %v1571
      %v1605 = vpack.c.bf16 %v1577, %v1575
      %v1606 = vpack.c.bf16 %v1581, %v1579
      %v1607 = vpack.c.bf16 %v1585, %v1583
      %v1608 = vpack.c.bf16 %v1589, %v1587
      %v1609 = vpack.c.bf16 %v1593, %v1591
      %s1610 = scalar_lea.vmem %s3, 16
      %v1611 = vld [vmem:[%s1610] sm:$0xf]
      %v1612 = vld [vmem:[%s1610 + $0x4] sm:$0xf]
      %v1613 = vld [vmem:[%s1610 + $0x8] sm:$0xf]
      %v1614 = vld [vmem:[%s1610 + $0xc] sm:$0xf]
      %v1619 = vunpack.c.l.b16 %v1611
      %v1620 = vunpack.c.l.b16 %v1612
      %v1621 = vunpack.c.l.b16 %v1613
      %v1622 = vunpack.c.l.b16 %v1614
      %v1623 = vpack.c.b16 %v1620, %v1619
      %v1624 = vpack.c.b16 %v1622, %v1621
      %v1628 = vsel %vm1265, %v1594, 0
      %v1631 = vsel %vm1265, %v1595, 0
      %v1634 = vsel %vm1265, %v1596, 0
      %v1637 = vsel %vm1265, %v1597, 0
      %v1640 = vsel %vm1265, %v1598, 0
      %v1643 = vsel %vm1265, %v1599, 0
      %v1646 = vsel %vm1265, %v1600, 0
      %v1649 = vsel %vm1265, %v1601, 0
      %v1652 = vsel %vm1265, %v1602, 0
      %v1655 = vsel %vm1265, %v1603, 0
      %v1658 = vsel %vm1265, %v1604, 0
      %v1661 = vsel %vm1265, %v1605, 0
      %v1664 = vsel %vm1265, %v1606, 0
      %v1667 = vsel %vm1265, %v1607, 0
      %v1670 = vsel %vm1265, %v1608, 0
      %v1673 = vsel %vm1265, %v1609, 0
      %1675 = vmatpush.bf16.msra.mxu0 0
      %1676 = vmatpush.bf16.msra.mxu0 0
      %1677 = vmatpush.bf16.msra.mxu0 0
      %1678 = vmatpush.bf16.msra.mxu0 0
      %1679 = vmatpush.bf16.msra.mxu0 0
      %1680 = vmatpush.bf16.msra.mxu0 0
      %1681 = vmatpush.bf16.msra.mxu0 %v1624
      %1682 = vmatpush.bf16.msra.mxu0 %v1623
      %1683 = vmatmul.bf16.gmra.mxu0 %v1628
      %v1684 = vpop.f32.mrf.mxu0
      %v1685 = vadd.f32 0.0, %v1684
      %v1686 = vpop.f32.mrf.mxu0
      %v1687 = vadd.f32 0.0, %v1686
      %1688 = vmatmul.bf16.gmra.mxu0 %v1631
      %v1689 = vpop.f32.mrf.mxu0
      %v1690 = vadd.f32 0.0, %v1689
      %v1691 = vpop.f32.mrf.mxu0
      %v1692 = vadd.f32 0.0, %v1691
      %1693 = vmatmul.bf16.gmra.mxu0 %v1634
      %v1694 = vpop.f32.mrf.mxu0
      %v1695 = vadd.f32 0.0, %v1694
      %v1696 = vpop.f32.mrf.mxu0
      %v1697 = vadd.f32 0.0, %v1696
      %1698 = vmatmul.bf16.gmra.mxu0 %v1637
      %v1699 = vpop.f32.mrf.mxu0
      %v1700 = vadd.f32 0.0, %v1699
      %v1701 = vpop.f32.mrf.mxu0
      %v1702 = vadd.f32 0.0, %v1701
      %1703 = vmatmul.bf16.gmra.mxu0 %v1640
      %v1704 = vpop.f32.mrf.mxu0
      %v1705 = vadd.f32 0.0, %v1704
      %v1706 = vpop.f32.mrf.mxu0
      %v1707 = vadd.f32 0.0, %v1706
      %1708 = vmatmul.bf16.gmra.mxu0 %v1643
      %v1709 = vpop.f32.mrf.mxu0
      %v1710 = vadd.f32 0.0, %v1709
      %v1711 = vpop.f32.mrf.mxu0
      %v1712 = vadd.f32 0.0, %v1711
      %1713 = vmatmul.bf16.gmra.mxu0 %v1646
      %v1714 = vpop.f32.mrf.mxu0
      %v1715 = vadd.f32 0.0, %v1714
      %v1716 = vpop.f32.mrf.mxu0
      %v1717 = vadd.f32 0.0, %v1716
      %1718 = vmatmul.bf16.gmra.mxu0 %v1649
      %v1719 = vpop.f32.mrf.mxu0
      %v1720 = vadd.f32 0.0, %v1719
      %v1721 = vpop.f32.mrf.mxu0
      %v1722 = vadd.f32 0.0, %v1721
      %1723 = vmatmul.bf16.gmra.mxu0 %v1652
      %v1724 = vpop.f32.mrf.mxu0
      %v1725 = vadd.f32 0.0, %v1724
      %v1726 = vpop.f32.mrf.mxu0
      %v1727 = vadd.f32 0.0, %v1726
      %1728 = vmatmul.bf16.gmra.mxu0 %v1655
      %v1729 = vpop.f32.mrf.mxu0
      %v1730 = vadd.f32 0.0, %v1729
      %v1731 = vpop.f32.mrf.mxu0
      %v1732 = vadd.f32 0.0, %v1731
      %1733 = vmatmul.bf16.gmra.mxu0 %v1658
      %v1734 = vpop.f32.mrf.mxu0
      %v1735 = vadd.f32 0.0, %v1734
      %v1736 = vpop.f32.mrf.mxu0
      %v1737 = vadd.f32 0.0, %v1736
      %1738 = vmatmul.bf16.gmra.mxu0 %v1661
      %v1739 = vpop.f32.mrf.mxu0
      %v1740 = vadd.f32 0.0, %v1739
      %v1741 = vpop.f32.mrf.mxu0
      %v1742 = vadd.f32 0.0, %v1741
      %1743 = vmatmul.bf16.gmra.mxu0 %v1664
      %v1744 = vpop.f32.mrf.mxu0
      %v1745 = vadd.f32 0.0, %v1744
      %v1746 = vpop.f32.mrf.mxu0
      %v1747 = vadd.f32 0.0, %v1746
      %1748 = vmatmul.bf16.gmra.mxu0 %v1667
      %v1749 = vpop.f32.mrf.mxu0
      %v1750 = vadd.f32 0.0, %v1749
      %v1751 = vpop.f32.mrf.mxu0
      %v1752 = vadd.f32 0.0, %v1751
      %1753 = vmatmul.bf16.gmra.mxu0 %v1670
      %v1754 = vpop.f32.mrf.mxu0
      %v1755 = vadd.f32 0.0, %v1754
      %v1756 = vpop.f32.mrf.mxu0
      %v1757 = vadd.f32 0.0, %v1756
      %1758 = vmatmul.bf16.gmra.mxu0 %v1673
      %v1759 = vpop.f32.mrf.mxu0
      %v1760 = vadd.f32 0.0, %v1759
      %v1761 = vpop.f32.mrf.mxu0
      %v1762 = vadd.f32 0.0, %v1761
      %1763 = vdwg.mxu0
      %v1768 = vunpack.c.l.b16 %v1526
      %v1769 = vunpack.c.l.b16 %v1527
      %v1770 = vunpack.c.l.b16 %v1528
      %v1771 = vunpack.c.l.b16 %v1529
      %v1772 = vpack.c.b16 %v1769, %v1768
      %v1773 = vpack.c.b16 %v1771, %v1770
      %v1777 = vsel %vm1265, %v1510, 0
      %v1780 = vsel %vm1265, %v1511, 0
      %v1783 = vsel %vm1265, %v1512, 0
      %v1786 = vsel %vm1265, %v1513, 0
      %v1789 = vsel %vm1265, %v1514, 0
      %v1792 = vsel %vm1265, %v1515, 0
      %v1795 = vsel %vm1265, %v1516, 0
      %v1798 = vsel %vm1265, %v1517, 0
      %v1801 = vsel %vm1265, %v1518, 0
      %v1804 = vsel %vm1265, %v1519, 0
      %v1807 = vsel %vm1265, %v1520, 0
      %v1810 = vsel %vm1265, %v1521, 0
      %v1813 = vsel %vm1265, %v1522, 0
      %v1816 = vsel %vm1265, %v1523, 0
      %v1819 = vsel %vm1265, %v1524, 0
      %v1822 = vsel %vm1265, %v1525, 0
      %1824 = vmatpush.bf16.msra.mxu0 0
      %1825 = vmatpush.bf16.msra.mxu0 0
      %1826 = vmatpush.bf16.msra.mxu0 0
      %1827 = vmatpush.bf16.msra.mxu0 0
      %1828 = vmatpush.bf16.msra.mxu0 0
      %1829 = vmatpush.bf16.msra.mxu0 0
      %1830 = vmatpush.bf16.msra.mxu0 %v1773
      %1831 = vmatpush.bf16.msra.mxu0 %v1772
      %1832 = vmatmul.bf16.gmra.mxu0 %v1777
      %v1833 = vpop.f32.mrf.mxu0
      %v1834 = vadd.f32 %v1685, %v1833
      %v1835 = vpop.f32.mrf.mxu0
      %v1836 = vadd.f32 %v1687, %v1835
      %1837 = vmatmul.bf16.gmra.mxu0 %v1780
      %v1838 = vpop.f32.mrf.mxu0
      %v1839 = vadd.f32 %v1690, %v1838
      %v1840 = vpop.f32.mrf.mxu0
      %v1841 = vadd.f32 %v1692, %v1840
      %1842 = vmatmul.bf16.gmra.mxu0 %v1783
      %v1843 = vpop.f32.mrf.mxu0
      %v1844 = vadd.f32 %v1695, %v1843
      %v1845 = vpop.f32.mrf.mxu0
      %v1846 = vadd.f32 %v1697, %v1845
      %1847 = vmatmul.bf16.gmra.mxu0 %v1786
      %v1848 = vpop.f32.mrf.mxu0
      %v1849 = vadd.f32 %v1700, %v1848
      %v1850 = vpop.f32.mrf.mxu0
      %v1851 = vadd.f32 %v1702, %v1850
      %1852 = vmatmul.bf16.gmra.mxu0 %v1789
      %v1853 = vpop.f32.mrf.mxu0
      %v1854 = vadd.f32 %v1705, %v1853
      %v1855 = vpop.f32.mrf.mxu0
      %v1856 = vadd.f32 %v1707, %v1855
      %1857 = vmatmul.bf16.gmra.mxu0 %v1792
      %v1858 = vpop.f32.mrf.mxu0
      %v1859 = vadd.f32 %v1710, %v1858
      %v1860 = vpop.f32.mrf.mxu0
      %v1861 = vadd.f32 %v1712, %v1860
      %1862 = vmatmul.bf16.gmra.mxu0 %v1795
      %v1863 = vpop.f32.mrf.mxu0
      %v1864 = vadd.f32 %v1715, %v1863
      %v1865 = vpop.f32.mrf.mxu0
      %v1866 = vadd.f32 %v1717, %v1865
      %1867 = vmatmul.bf16.gmra.mxu0 %v1798
      %v1868 = vpop.f32.mrf.mxu0
      %v1869 = vadd.f32 %v1720, %v1868
      %v1870 = vpop.f32.mrf.mxu0
      %v1871 = vadd.f32 %v1722, %v1870
      %1872 = vmatmul.bf16.gmra.mxu0 %v1801
      %v1873 = vpop.f32.mrf.mxu0
      %v1874 = vadd.f32 %v1725, %v1873
      %v1875 = vpop.f32.mrf.mxu0
      %v1876 = vadd.f32 %v1727, %v1875
      %1877 = vmatmul.bf16.gmra.mxu0 %v1804
      %v1878 = vpop.f32.mrf.mxu0
      %v1879 = vadd.f32 %v1730, %v1878
      %v1880 = vpop.f32.mrf.mxu0
      %v1881 = vadd.f32 %v1732, %v1880
      %1882 = vmatmul.bf16.gmra.mxu0 %v1807
      %v1883 = vpop.f32.mrf.mxu0
      %v1884 = vadd.f32 %v1735, %v1883
      %v1885 = vpop.f32.mrf.mxu0
      %v1886 = vadd.f32 %v1737, %v1885
      %1887 = vmatmul.bf16.gmra.mxu0 %v1810
      %v1888 = vpop.f32.mrf.mxu0
      %v1889 = vadd.f32 %v1740, %v1888
      %v1890 = vpop.f32.mrf.mxu0
      %v1891 = vadd.f32 %v1742, %v1890
      %1892 = vmatmul.bf16.gmra.mxu0 %v1813
      %v1893 = vpop.f32.mrf.mxu0
      %v1894 = vadd.f32 %v1745, %v1893
      %v1895 = vpop.f32.mrf.mxu0
      %v1896 = vadd.f32 %v1747, %v1895
      %1897 = vmatmul.bf16.gmra.mxu0 %v1816
      %v1898 = vpop.f32.mrf.mxu0
      %v1899 = vadd.f32 %v1750, %v1898
      %v1900 = vpop.f32.mrf.mxu0
      %v1901 = vadd.f32 %v1752, %v1900
      %1902 = vmatmul.bf16.gmra.mxu0 %v1819
      %v1903 = vpop.f32.mrf.mxu0
      %v1904 = vadd.f32 %v1755, %v1903
      %v1905 = vpop.f32.mrf.mxu0
      %v1906 = vadd.f32 %v1757, %v1905
      %1907 = vmatmul.bf16.gmra.mxu0 %v1822
      %v1908 = vpop.f32.mrf.mxu0
      %v1909 = vadd.f32 %v1760, %v1908
      %v1910 = vpop.f32.mrf.mxu0
      %v1911 = vadd.f32 %v1762, %v1910
      %1912 = vdwg.mxu0
      %s1913 = scalar_lea.vmem [#allocation2], 2
      %v1914 = vld [vmem:[%s1913] ss:$2 sm:$0xff]
      %s1915 = scalar_lea.vmem [#allocation2], 18
      %v1916 = vld [vmem:[%s1915] ss:$2 sm:$0xff]
      %s1917 = scalar_lea.vmem [#allocation2], 34
      %v1918 = vld [vmem:[%s1917] ss:$2 sm:$0xff]
      %s1919 = scalar_lea.vmem [#allocation2], 50
      %v1920 = vld [vmem:[%s1919] ss:$2 sm:$0xff]
      %s1921 = scalar_lea.vmem [#allocation2], 134
      %v1922 = vld [vmem:[%s1921] ss:$2 sm:$0xff]
      %s1923 = scalar_lea.vmem [#allocation2], 150
      %v1924 = vld [vmem:[%s1923] ss:$2 sm:$0xff]
      %s1925 = scalar_lea.vmem [#allocation2], 166
      %v1926 = vld [vmem:[%s1925] ss:$2 sm:$0xff]
      %s1927 = scalar_lea.vmem [#allocation2], 182
      %v1928 = vld [vmem:[%s1927] ss:$2 sm:$0xff]
      %s1929 = scalar_lea.vmem [#allocation2], 266
      %v1930 = vld [vmem:[%s1929] ss:$2 sm:$0xff]
      %s1931 = scalar_lea.vmem [#allocation2], 282
      %v1932 = vld [vmem:[%s1931] ss:$2 sm:$0xff]
      %s1933 = scalar_lea.vmem [#allocation2], 298
      %v1934 = vld [vmem:[%s1933] ss:$2 sm:$0xff]
      %s1935 = scalar_lea.vmem [#allocation2], 314
      %v1936 = vld [vmem:[%s1935] ss:$2 sm:$0xff]
      %s1937 = scalar_lea.vmem [#allocation2], 398
      %v1938 = vld [vmem:[%s1937] ss:$2 sm:$0xff]
      %s1939 = scalar_lea.vmem [#allocation2], 414
      %v1940 = vld [vmem:[%s1939] ss:$2 sm:$0xff]
      %s1941 = scalar_lea.vmem [#allocation2], 430
      %v1942 = vld [vmem:[%s1941] ss:$2 sm:$0xff]
      %s1943 = scalar_lea.vmem [#allocation2], 446
      %v1944 = vld [vmem:[%s1943] ss:$2 sm:$0xff]
      %s1945 = scalar_lea.vmem [#allocation2], 530
      %v1946 = vld [vmem:[%s1945] ss:$2 sm:$0xff]
      %s1947 = scalar_lea.vmem [#allocation2], 546
      %v1948 = vld [vmem:[%s1947] ss:$2 sm:$0xff]
      %s1949 = scalar_lea.vmem [#allocation2], 562
      %v1950 = vld [vmem:[%s1949] ss:$2 sm:$0xff]
      %s1951 = scalar_lea.vmem [#allocation2], 578
      %v1952 = vld [vmem:[%s1951] ss:$2 sm:$0xff]
      %s1953 = scalar_lea.vmem [#allocation2], 662
      %v1954 = vld [vmem:[%s1953] ss:$2 sm:$0xff]
      %s1955 = scalar_lea.vmem [#allocation2], 678
      %v1956 = vld [vmem:[%s1955] ss:$2 sm:$0xff]
      %s1957 = scalar_lea.vmem [#allocation2], 694
      %v1958 = vld [vmem:[%s1957] ss:$2 sm:$0xff]
      %s1959 = scalar_lea.vmem [#allocation2], 710
      %v1960 = vld [vmem:[%s1959] ss:$2 sm:$0xff]
      %s1961 = scalar_lea.vmem [#allocation2], 794
      %v1962 = vld [vmem:[%s1961] ss:$2 sm:$0xff]
      %s1963 = scalar_lea.vmem [#allocation2], 810
      %v1964 = vld [vmem:[%s1963] ss:$2 sm:$0xff]
      %s1965 = scalar_lea.vmem [#allocation2], 826
      %v1966 = vld [vmem:[%s1965] ss:$2 sm:$0xff]
      %s1967 = scalar_lea.vmem [#allocation2], 842
      %v1968 = vld [vmem:[%s1967] ss:$2 sm:$0xff]
      %s1969 = scalar_lea.vmem [#allocation2], 926
      %v1970 = vld [vmem:[%s1969] ss:$2 sm:$0xff]
      %s1971 = scalar_lea.vmem [#allocation2], 942
      %v1972 = vld [vmem:[%s1971] ss:$2 sm:$0xff]
      %s1973 = scalar_lea.vmem [#allocation2], 958
      %v1974 = vld [vmem:[%s1973] ss:$2 sm:$0xff]
      %s1975 = scalar_lea.vmem [#allocation2], 974
      %v1976 = vld [vmem:[%s1975] ss:$2 sm:$0xff]
      %v1977 = vpack.c.bf16 %v1916, %v1914
      %v1978 = vpack.c.bf16 %v1920, %v1918
      %v1979 = vpack.c.bf16 %v1924, %v1922
      %v1980 = vpack.c.bf16 %v1928, %v1926
      %v1981 = vpack.c.bf16 %v1932, %v1930
      %v1982 = vpack.c.bf16 %v1936, %v1934
      %v1983 = vpack.c.bf16 %v1940, %v1938
      %v1984 = vpack.c.bf16 %v1944, %v1942
      %v1985 = vpack.c.bf16 %v1948, %v1946
      %v1986 = vpack.c.bf16 %v1952, %v1950
      %v1987 = vpack.c.bf16 %v1956, %v1954
      %v1988 = vpack.c.bf16 %v1960, %v1958
      %v1989 = vpack.c.bf16 %v1964, %v1962
      %v1990 = vpack.c.bf16 %v1968, %v1966
      %v1991 = vpack.c.bf16 %v1972, %v1970
      %v1992 = vpack.c.bf16 %v1976, %v1974
      %s1993 = scalar_lea.vmem %s3, 32
      %v1994 = vld [vmem:[%s1993] sm:$0xf]
      %v1995 = vld [vmem:[%s1993 + $0x4] sm:$0xf]
      %v1996 = vld [vmem:[%s1993 + $0x8] sm:$0xf]
      %v1997 = vld [vmem:[%s1993 + $0xc] sm:$0xf]
      %v2002 = vunpack.c.l.b16 %v1994
      %v2003 = vunpack.c.l.b16 %v1995
      %v2004 = vunpack.c.l.b16 %v1996
      %v2005 = vunpack.c.l.b16 %v1997
      %v2006 = vpack.c.b16 %v2003, %v2002
      %v2007 = vpack.c.b16 %v2005, %v2004
      %v2011 = vsel %vm1265, %v1977, 0
      %v2014 = vsel %vm1265, %v1978, 0
      %v2017 = vsel %vm1265, %v1979, 0
      %v2020 = vsel %vm1265, %v1980, 0
      %v2023 = vsel %vm1265, %v1981, 0
      %v2026 = vsel %vm1265, %v1982, 0
      %v2029 = vsel %vm1265, %v1983, 0
      %v2032 = vsel %vm1265, %v1984, 0
      %v2035 = vsel %vm1265, %v1985, 0
      %v2038 = vsel %vm1265, %v1986, 0
      %v2041 = vsel %vm1265, %v1987, 0
      %v2044 = vsel %vm1265, %v1988, 0
      %v2047 = vsel %vm1265, %v1989, 0
      %v2050 = vsel %vm1265, %v1990, 0
      %v2053 = vsel %vm1265, %v1991, 0
      %v2056 = vsel %vm1265, %v1992, 0
      %2058 = vmatpush.bf16.msra.mxu0 0
      %2059 = vmatpush.bf16.msra.mxu0 0
      %2060 = vmatpush.bf16.msra.mxu0 0
      %2061 = vmatpush.bf16.msra.mxu0 0
      %2062 = vmatpush.bf16.msra.mxu0 0
      %2063 = vmatpush.bf16.msra.mxu0 0
      %2064 = vmatpush.bf16.msra.mxu0 %v2007
      %2065 = vmatpush.bf16.msra.mxu0 %v2006
      %2066 = vmatmul.bf16.gmra.mxu0 %v2011
      %v2067 = vpop.f32.mrf.mxu0
      %v2068 = vadd.f32 0.0, %v2067
      %v2069 = vpop.f32.mrf.mxu0
      %v2070 = vadd.f32 0.0, %v2069
      %2071 = vmatmul.bf16.gmra.mxu0 %v2014
      %v2072 = vpop.f32.mrf.mxu0
      %v2073 = vadd.f32 0.0, %v2072
      %v2074 = vpop.f32.mrf.mxu0
      %v2075 = vadd.f32 0.0, %v2074
      %2076 = vmatmul.bf16.gmra.mxu0 %v2017
      %v2077 = vpop.f32.mrf.mxu0
      %v2078 = vadd.f32 0.0, %v2077
      %v2079 = vpop.f32.mrf.mxu0
      %v2080 = vadd.f32 0.0, %v2079
      %2081 = vmatmul.bf16.gmra.mxu0 %v2020
      %v2082 = vpop.f32.mrf.mxu0
      %v2083 = vadd.f32 0.0, %v2082
      %v2084 = vpop.f32.mrf.mxu0
      %v2085 = vadd.f32 0.0, %v2084
      %2086 = vmatmul.bf16.gmra.mxu0 %v2023
      %v2087 = vpop.f32.mrf.mxu0
      %v2088 = vadd.f32 0.0, %v2087
      %v2089 = vpop.f32.mrf.mxu0
      %v2090 = vadd.f32 0.0, %v2089
      %2091 = vmatmul.bf16.gmra.mxu0 %v2026
      %v2092 = vpop.f32.mrf.mxu0
      %v2093 = vadd.f32 0.0, %v2092
      %v2094 = vpop.f32.mrf.mxu0
      %v2095 = vadd.f32 0.0, %v2094
      %2096 = vmatmul.bf16.gmra.mxu0 %v2029
      %v2097 = vpop.f32.mrf.mxu0
      %v2098 = vadd.f32 0.0, %v2097
      %v2099 = vpop.f32.mrf.mxu0
      %v2100 = vadd.f32 0.0, %v2099
      %2101 = vmatmul.bf16.gmra.mxu0 %v2032
      %v2102 = vpop.f32.mrf.mxu0
      %v2103 = vadd.f32 0.0, %v2102
      %v2104 = vpop.f32.mrf.mxu0
      %v2105 = vadd.f32 0.0, %v2104
      %2106 = vmatmul.bf16.gmra.mxu0 %v2035
      %v2107 = vpop.f32.mrf.mxu0
      %v2108 = vadd.f32 0.0, %v2107
      %v2109 = vpop.f32.mrf.mxu0
      %v2110 = vadd.f32 0.0, %v2109
      %2111 = vmatmul.bf16.gmra.mxu0 %v2038
      %v2112 = vpop.f32.mrf.mxu0
      %v2113 = vadd.f32 0.0, %v2112
      %v2114 = vpop.f32.mrf.mxu0
      %v2115 = vadd.f32 0.0, %v2114
      %2116 = vmatmul.bf16.gmra.mxu0 %v2041
      %v2117 = vpop.f32.mrf.mxu0
      %v2118 = vadd.f32 0.0, %v2117
      %v2119 = vpop.f32.mrf.mxu0
      %v2120 = vadd.f32 0.0, %v2119
      %2121 = vmatmul.bf16.gmra.mxu0 %v2044
      %v2122 = vpop.f32.mrf.mxu0
      %v2123 = vadd.f32 0.0, %v2122
      %v2124 = vpop.f32.mrf.mxu0
      %v2125 = vadd.f32 0.0, %v2124
      %2126 = vmatmul.bf16.gmra.mxu0 %v2047
      %v2127 = vpop.f32.mrf.mxu0
      %v2128 = vadd.f32 0.0, %v2127
      %v2129 = vpop.f32.mrf.mxu0
      %v2130 = vadd.f32 0.0, %v2129
      %2131 = vmatmul.bf16.gmra.mxu0 %v2050
      %v2132 = vpop.f32.mrf.mxu0
      %v2133 = vadd.f32 0.0, %v2132
      %v2134 = vpop.f32.mrf.mxu0
      %v2135 = vadd.f32 0.0, %v2134
      %2136 = vmatmul.bf16.gmra.mxu0 %v2053
      %v2137 = vpop.f32.mrf.mxu0
      %v2138 = vadd.f32 0.0, %v2137
      %v2139 = vpop.f32.mrf.mxu0
      %v2140 = vadd.f32 0.0, %v2139
      %2141 = vmatmul.bf16.gmra.mxu0 %v2056
      %v2142 = vpop.f32.mrf.mxu0
      %v2143 = vadd.f32 0.0, %v2142
      %v2144 = vpop.f32.mrf.mxu0
      %v2145 = vadd.f32 0.0, %v2144
      %2146 = vdwg.mxu0
      %v2147 = vadd.f32 %v1834, %v2068
      %v2148 = vadd.f32 %v1836, %v2070
      %v2149 = vadd.f32 %v1839, %v2073
      %v2150 = vadd.f32 %v1841, %v2075
      %v2151 = vadd.f32 %v1844, %v2078
      %v2152 = vadd.f32 %v1846, %v2080
      %v2153 = vadd.f32 %v1849, %v2083
      %v2154 = vadd.f32 %v1851, %v2085
      %v2155 = vadd.f32 %v1854, %v2088
      %v2156 = vadd.f32 %v1856, %v2090
      %v2157 = vadd.f32 %v1859, %v2093
      %v2158 = vadd.f32 %v1861, %v2095
      %v2159 = vadd.f32 %v1864, %v2098
      %v2160 = vadd.f32 %v1866, %v2100
      %v2161 = vadd.f32 %v1869, %v2103
      %v2162 = vadd.f32 %v1871, %v2105
      %v2163 = vadd.f32 %v1874, %v2108
      %v2164 = vadd.f32 %v1876, %v2110
      %v2165 = vadd.f32 %v1879, %v2113
      %v2166 = vadd.f32 %v1881, %v2115
      %v2167 = vadd.f32 %v1884, %v2118
      %v2168 = vadd.f32 %v1886, %v2120
      %v2169 = vadd.f32 %v1889, %v2123
      %v2170 = vadd.f32 %v1891, %v2125
      %v2171 = vadd.f32 %v1894, %v2128
      %v2172 = vadd.f32 %v1896, %v2130
      %v2173 = vadd.f32 %v1899, %v2133
      %v2174 = vadd.f32 %v1901, %v2135
      %v2175 = vadd.f32 %v1904, %v2138
      %v2176 = vadd.f32 %v1906, %v2140
      %v2177 = vadd.f32 %v1909, %v2143
      %v2178 = vadd.f32 %v1911, %v2145
      %s2179 = scalar_lea.vmem [#allocation2], 3
      %v2180 = vld [vmem:[%s2179] ss:$2 sm:$0xff]
      %s2181 = scalar_lea.vmem [#allocation2], 19
      %v2182 = vld [vmem:[%s2181] ss:$2 sm:$0xff]
      %s2183 = scalar_lea.vmem [#allocation2], 35
      %v2184 = vld [vmem:[%s2183] ss:$2 sm:$0xff]
      %s2185 = scalar_lea.vmem [#allocation2], 51
      %v2186 = vld [vmem:[%s2185] ss:$2 sm:$0xff]
      %s2187 = scalar_lea.vmem [#allocation2], 135
      %v2188 = vld [vmem:[%s2187] ss:$2 sm:$0xff]
      %s2189 = scalar_lea.vmem [#allocation2], 151
      %v2190 = vld [vmem:[%s2189] ss:$2 sm:$0xff]
      %s2191 = scalar_lea.vmem [#allocation2], 167
      %v2192 = vld [vmem:[%s2191] ss:$2 sm:$0xff]
      %s2193 = scalar_lea.vmem [#allocation2], 183
      %v2194 = vld [vmem:[%s2193] ss:$2 sm:$0xff]
      %s2195 = scalar_lea.vmem [#allocation2], 267
      %v2196 = vld [vmem:[%s2195] ss:$2 sm:$0xff]
      %s2197 = scalar_lea.vmem [#allocation2], 283
      %v2198 = vld [vmem:[%s2197] ss:$2 sm:$0xff]
      %s2199 = scalar_lea.vmem [#allocation2], 299
      %v2200 = vld [vmem:[%s2199] ss:$2 sm:$0xff]
      %s2201 = scalar_lea.vmem [#allocation2], 315
      %v2202 = vld [vmem:[%s2201] ss:$2 sm:$0xff]
      %s2203 = scalar_lea.vmem [#allocation2], 399
      %v2204 = vld [vmem:[%s2203] ss:$2 sm:$0xff]
      %s2205 = scalar_lea.vmem [#allocation2], 415
      %v2206 = vld [vmem:[%s2205] ss:$2 sm:$0xff]
      %s2207 = scalar_lea.vmem [#allocation2], 431
      %v2208 = vld [vmem:[%s2207] ss:$2 sm:$0xff]
      %s2209 = scalar_lea.vmem [#allocation2], 447
      %v2210 = vld [vmem:[%s2209] ss:$2 sm:$0xff]
      %s2211 = scalar_lea.vmem [#allocation2], 531
      %v2212 = vld [vmem:[%s2211] ss:$2 sm:$0xff]
      %s2213 = scalar_lea.vmem [#allocation2], 547
      %v2214 = vld [vmem:[%s2213] ss:$2 sm:$0xff]
      %s2215 = scalar_lea.vmem [#allocation2], 563
      %v2216 = vld [vmem:[%s2215] ss:$2 sm:$0xff]
      %s2217 = scalar_lea.vmem [#allocation2], 579
      %v2218 = vld [vmem:[%s2217] ss:$2 sm:$0xff]
      %s2219 = scalar_lea.vmem [#allocation2], 663
      %v2220 = vld [vmem:[%s2219] ss:$2 sm:$0xff]
      %s2221 = scalar_lea.vmem [#allocation2], 679
      %v2222 = vld [vmem:[%s2221] ss:$2 sm:$0xff]
      %s2223 = scalar_lea.vmem [#allocation2], 695
      %v2224 = vld [vmem:[%s2223] ss:$2 sm:$0xff]
      %s2225 = scalar_lea.vmem [#allocation2], 711
      %v2226 = vld [vmem:[%s2225] ss:$2 sm:$0xff]
      %s2227 = scalar_lea.vmem [#allocation2], 795
      %v2228 = vld [vmem:[%s2227] ss:$2 sm:$0xff]
      %s2229 = scalar_lea.vmem [#allocation2], 811
      %v2230 = vld [vmem:[%s2229] ss:$2 sm:$0xff]
      %s2231 = scalar_lea.vmem [#allocation2], 827
      %v2232 = vld [vmem:[%s2231] ss:$2 sm:$0xff]
      %s2233 = scalar_lea.vmem [#allocation2], 843
      %v2234 = vld [vmem:[%s2233] ss:$2 sm:$0xff]
      %s2235 = scalar_lea.vmem [#allocation2], 927
      %v2236 = vld [vmem:[%s2235] ss:$2 sm:$0xff]
      %s2237 = scalar_lea.vmem [#allocation2], 943
      %v2238 = vld [vmem:[%s2237] ss:$2 sm:$0xff]
      %s2239 = scalar_lea.vmem [#allocation2], 959
      %v2240 = vld [vmem:[%s2239] ss:$2 sm:$0xff]
      %s2241 = scalar_lea.vmem [#allocation2], 975
      %v2242 = vld [vmem:[%s2241] ss:$2 sm:$0xff]
      %v2243 = vpack.c.bf16 %v2182, %v2180
      %v2244 = vpack.c.bf16 %v2186, %v2184
      %v2245 = vpack.c.bf16 %v2190, %v2188
      %v2246 = vpack.c.bf16 %v2194, %v2192
      %v2247 = vpack.c.bf16 %v2198, %v2196
      %v2248 = vpack.c.bf16 %v2202, %v2200
      %v2249 = vpack.c.bf16 %v2206, %v2204
      %v2250 = vpack.c.bf16 %v2210, %v2208
      %v2251 = vpack.c.bf16 %v2214, %v2212
      %v2252 = vpack.c.bf16 %v2218, %v2216
      %v2253 = vpack.c.bf16 %v2222, %v2220
      %v2254 = vpack.c.bf16 %v2226, %v2224
      %v2255 = vpack.c.bf16 %v2230, %v2228
      %v2256 = vpack.c.bf16 %v2234, %v2232
      %v2257 = vpack.c.bf16 %v2238, %v2236
      %v2258 = vpack.c.bf16 %v2242, %v2240
      %s2259 = scalar_lea.vmem %s3, 48
      %v2260 = vld [vmem:[%s2259] sm:$0xf]
      %v2261 = vld [vmem:[%s2259 + $0x4] sm:$0xf]
      %v2262 = vld [vmem:[%s2259 + $0x8] sm:$0xf]
      %v2263 = vld [vmem:[%s2259 + $0xc] sm:$0xf]
      %v2268 = vunpack.c.l.b16 %v2260
      %v2269 = vunpack.c.l.b16 %v2261
      %v2270 = vunpack.c.l.b16 %v2262
      %v2271 = vunpack.c.l.b16 %v2263
      %v2272 = vpack.c.b16 %v2269, %v2268
      %v2273 = vpack.c.b16 %v2271, %v2270
      %v2277 = vsel %vm1265, %v2243, 0
      %v2280 = vsel %vm1265, %v2244, 0
      %v2283 = vsel %vm1265, %v2245, 0
      %v2286 = vsel %vm1265, %v2246, 0
      %v2289 = vsel %vm1265, %v2247, 0
      %v2292 = vsel %vm1265, %v2248, 0
      %v2295 = vsel %vm1265, %v2249, 0
      %v2298 = vsel %vm1265, %v2250, 0
      %v2301 = vsel %vm1265, %v2251, 0
      %v2304 = vsel %vm1265, %v2252, 0
      %v2307 = vsel %vm1265, %v2253, 0
      %v2310 = vsel %vm1265, %v2254, 0
      %v2313 = vsel %vm1265, %v2255, 0
      %v2316 = vsel %vm1265, %v2256, 0
      %v2319 = vsel %vm1265, %v2257, 0
      %v2322 = vsel %vm1265, %v2258, 0
      %2324 = vmatpush.bf16.msra.mxu0 0
      %2325 = vmatpush.bf16.msra.mxu0 0
      %2326 = vmatpush.bf16.msra.mxu0 0
      %2327 = vmatpush.bf16.msra.mxu0 0
      %2328 = vmatpush.bf16.msra.mxu0 0
      %2329 = vmatpush.bf16.msra.mxu0 0
      %2330 = vmatpush.bf16.msra.mxu0 %v2273
      %2331 = vmatpush.bf16.msra.mxu0 %v2272
      %2332 = vmatmul.bf16.gmra.mxu0 %v2277
      %v2333 = vpop.f32.mrf.mxu0
      %v2334 = vadd.f32 0.0, %v2333
      %v2335 = vpop.f32.mrf.mxu0
      %v2336 = vadd.f32 0.0, %v2335
      %2337 = vmatmul.bf16.gmra.mxu0 %v2280
      %v2338 = vpop.f32.mrf.mxu0
      %v2339 = vadd.f32 0.0, %v2338
      %v2340 = vpop.f32.mrf.mxu0
      %v2341 = vadd.f32 0.0, %v2340
      %2342 = vmatmul.bf16.gmra.mxu0 %v2283
      %v2343 = vpop.f32.mrf.mxu0
      %v2344 = vadd.f32 0.0, %v2343
      %v2345 = vpop.f32.mrf.mxu0
      %v2346 = vadd.f32 0.0, %v2345
      %2347 = vmatmul.bf16.gmra.mxu0 %v2286
      %v2348 = vpop.f32.mrf.mxu0
      %v2349 = vadd.f32 0.0, %v2348
      %v2350 = vpop.f32.mrf.mxu0
      %v2351 = vadd.f32 0.0, %v2350
      %2352 = vmatmul.bf16.gmra.mxu0 %v2289
      %v2353 = vpop.f32.mrf.mxu0
      %v2354 = vadd.f32 0.0, %v2353
      %v2355 = vpop.f32.mrf.mxu0
      %v2356 = vadd.f32 0.0, %v2355
      %2357 = vmatmul.bf16.gmra.mxu0 %v2292
      %v2358 = vpop.f32.mrf.mxu0
      %v2359 = vadd.f32 0.0, %v2358
      %v2360 = vpop.f32.mrf.mxu0
      %v2361 = vadd.f32 0.0, %v2360
      %2362 = vmatmul.bf16.gmra.mxu0 %v2295
      %v2363 = vpop.f32.mrf.mxu0
      %v2364 = vadd.f32 0.0, %v2363
      %v2365 = vpop.f32.mrf.mxu0
      %v2366 = vadd.f32 0.0, %v2365
      %2367 = vmatmul.bf16.gmra.mxu0 %v2298
      %v2368 = vpop.f32.mrf.mxu0
      %v2369 = vadd.f32 0.0, %v2368
      %v2370 = vpop.f32.mrf.mxu0
      %v2371 = vadd.f32 0.0, %v2370
      %2372 = vmatmul.bf16.gmra.mxu0 %v2301
      %v2373 = vpop.f32.mrf.mxu0
      %v2374 = vadd.f32 0.0, %v2373
      %v2375 = vpop.f32.mrf.mxu0
      %v2376 = vadd.f32 0.0, %v2375
      %2377 = vmatmul.bf16.gmra.mxu0 %v2304
      %v2378 = vpop.f32.mrf.mxu0
      %v2379 = vadd.f32 0.0, %v2378
      %v2380 = vpop.f32.mrf.mxu0
      %v2381 = vadd.f32 0.0, %v2380
      %2382 = vmatmul.bf16.gmra.mxu0 %v2307
      %v2383 = vpop.f32.mrf.mxu0
      %v2384 = vadd.f32 0.0, %v2383
      %v2385 = vpop.f32.mrf.mxu0
      %v2386 = vadd.f32 0.0, %v2385
      %2387 = vmatmul.bf16.gmra.mxu0 %v2310
      %v2388 = vpop.f32.mrf.mxu0
      %v2389 = vadd.f32 0.0, %v2388
      %v2390 = vpop.f32.mrf.mxu0
      %v2391 = vadd.f32 0.0, %v2390
      %2392 = vmatmul.bf16.gmra.mxu0 %v2313
      %v2393 = vpop.f32.mrf.mxu0
      %v2394 = vadd.f32 0.0, %v2393
      %v2395 = vpop.f32.mrf.mxu0
      %v2396 = vadd.f32 0.0, %v2395
      %2397 = vmatmul.bf16.gmra.mxu0 %v2316
      %v2398 = vpop.f32.mrf.mxu0
      %v2399 = vadd.f32 0.0, %v2398
      %v2400 = vpop.f32.mrf.mxu0
      %v2401 = vadd.f32 0.0, %v2400
      %2402 = vmatmul.bf16.gmra.mxu0 %v2319
      %v2403 = vpop.f32.mrf.mxu0
      %v2404 = vadd.f32 0.0, %v2403
      %v2405 = vpop.f32.mrf.mxu0
      %v2406 = vadd.f32 0.0, %v2405
      %2407 = vmatmul.bf16.gmra.mxu0 %v2322
      %v2408 = vpop.f32.mrf.mxu0
      %v2409 = vadd.f32 0.0, %v2408
      %v2410 = vpop.f32.mrf.mxu0
      %v2411 = vadd.f32 0.0, %v2410
      %2412 = vdwg.mxu0
      %v2413 = vadd.f32 %v2147, %v2334
      %v2414 = vadd.f32 %v2148, %v2336
      %v2415 = vadd.f32 %v2149, %v2339
      %v2416 = vadd.f32 %v2150, %v2341
      %v2417 = vadd.f32 %v2151, %v2344
      %v2418 = vadd.f32 %v2152, %v2346
      %v2419 = vadd.f32 %v2153, %v2349
      %v2420 = vadd.f32 %v2154, %v2351
      %v2421 = vadd.f32 %v2155, %v2354
      %v2422 = vadd.f32 %v2156, %v2356
      %v2423 = vadd.f32 %v2157, %v2359
      %v2424 = vadd.f32 %v2158, %v2361
      %v2425 = vadd.f32 %v2159, %v2364
      %v2426 = vadd.f32 %v2160, %v2366
      %v2427 = vadd.f32 %v2161, %v2369
      %v2428 = vadd.f32 %v2162, %v2371
      %v2429 = vadd.f32 %v2163, %v2374
      %v2430 = vadd.f32 %v2164, %v2376
      %v2431 = vadd.f32 %v2165, %v2379
      %v2432 = vadd.f32 %v2166, %v2381
      %v2433 = vadd.f32 %v2167, %v2384
      %v2434 = vadd.f32 %v2168, %v2386
      %v2435 = vadd.f32 %v2169, %v2389
      %v2436 = vadd.f32 %v2170, %v2391
      %v2437 = vadd.f32 %v2171, %v2394
      %v2438 = vadd.f32 %v2172, %v2396
      %v2439 = vadd.f32 %v2173, %v2399
      %v2440 = vadd.f32 %v2174, %v2401
      %v2441 = vadd.f32 %v2175, %v2404
      %v2442 = vadd.f32 %v2176, %v2406
      %v2443 = vadd.f32 %v2177, %v2409
      %v2444 = vadd.f32 %v2178, %v2411
      %s2445 = scalar_lea.vmem [#allocation2], 66
      %v2446 = vld [vmem:[%s2445] ss:$2 sm:$0xff]
      %s2447 = scalar_lea.vmem [#allocation2], 82
      %v2448 = vld [vmem:[%s2447] ss:$2 sm:$0xff]
      %s2449 = scalar_lea.vmem [#allocation2], 98
      %v2450 = vld [vmem:[%s2449] ss:$2 sm:$0xff]
      %s2451 = scalar_lea.vmem [#allocation2], 114
      %v2452 = vld [vmem:[%s2451] ss:$2 sm:$0xff]
      %s2453 = scalar_lea.vmem [#allocation2], 198
      %v2454 = vld [vmem:[%s2453] ss:$2 sm:$0xff]
      %s2455 = scalar_lea.vmem [#allocation2], 214
      %v2456 = vld [vmem:[%s2455] ss:$2 sm:$0xff]
      %s2457 = scalar_lea.vmem [#allocation2], 230
      %v2458 = vld [vmem:[%s2457] ss:$2 sm:$0xff]
      %s2459 = scalar_lea.vmem [#allocation2], 246
      %v2460 = vld [vmem:[%s2459] ss:$2 sm:$0xff]
      %s2461 = scalar_lea.vmem [#allocation2], 330
      %v2462 = vld [vmem:[%s2461] ss:$2 sm:$0xff]
      %s2463 = scalar_lea.vmem [#allocation2], 346
      %v2464 = vld [vmem:[%s2463] ss:$2 sm:$0xff]
      %s2465 = scalar_lea.vmem [#allocation2], 362
      %v2466 = vld [vmem:[%s2465] ss:$2 sm:$0xff]
      %s2467 = scalar_lea.vmem [#allocation2], 378
      %v2468 = vld [vmem:[%s2467] ss:$2 sm:$0xff]
      %s2469 = scalar_lea.vmem [#allocation2], 462
      %v2470 = vld [vmem:[%s2469] ss:$2 sm:$0xff]
      %s2471 = scalar_lea.vmem [#allocation2], 478
      %v2472 = vld [vmem:[%s2471] ss:$2 sm:$0xff]
      %s2473 = scalar_lea.vmem [#allocation2], 494
      %v2474 = vld [vmem:[%s2473] ss:$2 sm:$0xff]
      %s2475 = scalar_lea.vmem [#allocation2], 510
      %v2476 = vld [vmem:[%s2475] ss:$2 sm:$0xff]
      %s2477 = scalar_lea.vmem [#allocation2], 594
      %v2478 = vld [vmem:[%s2477] ss:$2 sm:$0xff]
      %s2479 = scalar_lea.vmem [#allocation2], 610
      %v2480 = vld [vmem:[%s2479] ss:$2 sm:$0xff]
      %s2481 = scalar_lea.vmem [#allocation2], 626
      %v2482 = vld [vmem:[%s2481] ss:$2 sm:$0xff]
      %s2483 = scalar_lea.vmem [#allocation2], 642
      %v2484 = vld [vmem:[%s2483] ss:$2 sm:$0xff]
      %s2485 = scalar_lea.vmem [#allocation2], 726
      %v2486 = vld [vmem:[%s2485] ss:$2 sm:$0xff]
      %s2487 = scalar_lea.vmem [#allocation2], 742
      %v2488 = vld [vmem:[%s2487] ss:$2 sm:$0xff]
      %s2489 = scalar_lea.vmem [#allocation2], 758
      %v2490 = vld [vmem:[%s2489] ss:$2 sm:$0xff]
      %s2491 = scalar_lea.vmem [#allocation2], 774
      %v2492 = vld [vmem:[%s2491] ss:$2 sm:$0xff]
      %s2493 = scalar_lea.vmem [#allocation2], 858
      %v2494 = vld [vmem:[%s2493] ss:$2 sm:$0xff]
      %s2495 = scalar_lea.vmem [#allocation2], 874
      %v2496 = vld [vmem:[%s2495] ss:$2 sm:$0xff]
      %s2497 = scalar_lea.vmem [#allocation2], 890
      %v2498 = vld [vmem:[%s2497] ss:$2 sm:$0xff]
      %s2499 = scalar_lea.vmem [#allocation2], 906
      %v2500 = vld [vmem:[%s2499] ss:$2 sm:$0xff]
      %s2501 = scalar_lea.vmem [#allocation2], 990
      %v2502 = vld [vmem:[%s2501] ss:$2 sm:$0xff]
      %s2503 = scalar_lea.vmem [#allocation2], 1006
      %v2504 = vld [vmem:[%s2503] ss:$2 sm:$0xff]
      %s2505 = scalar_lea.vmem [#allocation2], 1022
      %v2506 = vld [vmem:[%s2505] ss:$2 sm:$0xff]
      %s2507 = scalar_lea.vmem [#allocation2], 1038
      %v2508 = vld [vmem:[%s2507] ss:$2 sm:$0xff]
      %v2509 = vpack.c.bf16 %v2448, %v2446
      %v2510 = vpack.c.bf16 %v2452, %v2450
      %v2511 = vpack.c.bf16 %v2456, %v2454
      %v2512 = vpack.c.bf16 %v2460, %v2458
      %v2513 = vpack.c.bf16 %v2464, %v2462
      %v2514 = vpack.c.bf16 %v2468, %v2466
      %v2515 = vpack.c.bf16 %v2472, %v2470
      %v2516 = vpack.c.bf16 %v2476, %v2474
      %v2517 = vpack.c.bf16 %v2480, %v2478
      %v2518 = vpack.c.bf16 %v2484, %v2482
      %v2519 = vpack.c.bf16 %v2488, %v2486
      %v2520 = vpack.c.bf16 %v2492, %v2490
      %v2521 = vpack.c.bf16 %v2496, %v2494
      %v2522 = vpack.c.bf16 %v2500, %v2498
      %v2523 = vpack.c.bf16 %v2504, %v2502
      %v2524 = vpack.c.bf16 %v2508, %v2506
      %s2525 = scalar_lea.vmem %s3, 64
      %v2526 = vld [vmem:[%s2525] sm:$0xf]
      %v2527 = vld [vmem:[%s2525 + $0x4] sm:$0xf]
      %v2528 = vld [vmem:[%s2525 + $0x8] sm:$0xf]
      %v2529 = vld [vmem:[%s2525 + $0xc] sm:$0xf]
      %v2534 = vunpack.c.l.b16 %v2526
      %v2535 = vunpack.c.l.b16 %v2527
      %v2536 = vunpack.c.l.b16 %v2528
      %v2537 = vunpack.c.l.b16 %v2529
      %v2538 = vpack.c.b16 %v2535, %v2534
      %v2539 = vpack.c.b16 %v2537, %v2536
      %v2543 = vsel %vm1265, %v2509, 0
      %v2546 = vsel %vm1265, %v2510, 0
      %v2549 = vsel %vm1265, %v2511, 0
      %v2552 = vsel %vm1265, %v2512, 0
      %v2555 = vsel %vm1265, %v2513, 0
      %v2558 = vsel %vm1265, %v2514, 0
      %v2561 = vsel %vm1265, %v2515, 0
      %v2564 = vsel %vm1265, %v2516, 0
      %v2567 = vsel %vm1265, %v2517, 0
      %v2570 = vsel %vm1265, %v2518, 0
      %v2573 = vsel %vm1265, %v2519, 0
      %v2576 = vsel %vm1265, %v2520, 0
      %v2579 = vsel %vm1265, %v2521, 0
      %v2582 = vsel %vm1265, %v2522, 0
      %v2585 = vsel %vm1265, %v2523, 0
      %v2588 = vsel %vm1265, %v2524, 0
      %2590 = vmatpush.bf16.msra.mxu0 0
      %2591 = vmatpush.bf16.msra.mxu0 0
      %2592 = vmatpush.bf16.msra.mxu0 0
      %2593 = vmatpush.bf16.msra.mxu0 0
      %2594 = vmatpush.bf16.msra.mxu0 0
      %2595 = vmatpush.bf16.msra.mxu0 0
      %2596 = vmatpush.bf16.msra.mxu0 %v2539
      %2597 = vmatpush.bf16.msra.mxu0 %v2538
      %2598 = vmatmul.bf16.gmra.mxu0 %v2543
      %v2599 = vpop.f32.mrf.mxu0
      %v2600 = vadd.f32 0.0, %v2599
      %v2601 = vpop.f32.mrf.mxu0
      %v2602 = vadd.f32 0.0, %v2601
      %2603 = vmatmul.bf16.gmra.mxu0 %v2546
      %v2604 = vpop.f32.mrf.mxu0
      %v2605 = vadd.f32 0.0, %v2604
      %v2606 = vpop.f32.mrf.mxu0
      %v2607 = vadd.f32 0.0, %v2606
      %2608 = vmatmul.bf16.gmra.mxu0 %v2549
      %v2609 = vpop.f32.mrf.mxu0
      %v2610 = vadd.f32 0.0, %v2609
      %v2611 = vpop.f32.mrf.mxu0
      %v2612 = vadd.f32 0.0, %v2611
      %2613 = vmatmul.bf16.gmra.mxu0 %v2552
      %v2614 = vpop.f32.mrf.mxu0
      %v2615 = vadd.f32 0.0, %v2614
      %v2616 = vpop.f32.mrf.mxu0
      %v2617 = vadd.f32 0.0, %v2616
      %2618 = vmatmul.bf16.gmra.mxu0 %v2555
      %v2619 = vpop.f32.mrf.mxu0
      %v2620 = vadd.f32 0.0, %v2619
      %v2621 = vpop.f32.mrf.mxu0
      %v2622 = vadd.f32 0.0, %v2621
      %2623 = vmatmul.bf16.gmra.mxu0 %v2558
      %v2624 = vpop.f32.mrf.mxu0
      %v2625 = vadd.f32 0.0, %v2624
      %v2626 = vpop.f32.mrf.mxu0
      %v2627 = vadd.f32 0.0, %v2626
      %2628 = vmatmul.bf16.gmra.mxu0 %v2561
      %v2629 = vpop.f32.mrf.mxu0
      %v2630 = vadd.f32 0.0, %v2629
      %v2631 = vpop.f32.mrf.mxu0
      %v2632 = vadd.f32 0.0, %v2631
      %2633 = vmatmul.bf16.gmra.mxu0 %v2564
      %v2634 = vpop.f32.mrf.mxu0
      %v2635 = vadd.f32 0.0, %v2634
      %v2636 = vpop.f32.mrf.mxu0
      %v2637 = vadd.f32 0.0, %v2636
      %2638 = vmatmul.bf16.gmra.mxu0 %v2567
      %v2639 = vpop.f32.mrf.mxu0
      %v2640 = vadd.f32 0.0, %v2639
      %v2641 = vpop.f32.mrf.mxu0
      %v2642 = vadd.f32 0.0, %v2641
      %2643 = vmatmul.bf16.gmra.mxu0 %v2570
      %v2644 = vpop.f32.mrf.mxu0
      %v2645 = vadd.f32 0.0, %v2644
      %v2646 = vpop.f32.mrf.mxu0
      %v2647 = vadd.f32 0.0, %v2646
      %2648 = vmatmul.bf16.gmra.mxu0 %v2573
      %v2649 = vpop.f32.mrf.mxu0
      %v2650 = vadd.f32 0.0, %v2649
      %v2651 = vpop.f32.mrf.mxu0
      %v2652 = vadd.f32 0.0, %v2651
      %2653 = vmatmul.bf16.gmra.mxu0 %v2576
      %v2654 = vpop.f32.mrf.mxu0
      %v2655 = vadd.f32 0.0, %v2654
      %v2656 = vpop.f32.mrf.mxu0
      %v2657 = vadd.f32 0.0, %v2656
      %2658 = vmatmul.bf16.gmra.mxu0 %v2579
      %v2659 = vpop.f32.mrf.mxu0
      %v2660 = vadd.f32 0.0, %v2659
      %v2661 = vpop.f32.mrf.mxu0
      %v2662 = vadd.f32 0.0, %v2661
      %2663 = vmatmul.bf16.gmra.mxu0 %v2582
      %v2664 = vpop.f32.mrf.mxu0
      %v2665 = vadd.f32 0.0, %v2664
      %v2666 = vpop.f32.mrf.mxu0
      %v2667 = vadd.f32 0.0, %v2666
      %2668 = vmatmul.bf16.gmra.mxu0 %v2585
      %v2669 = vpop.f32.mrf.mxu0
      %v2670 = vadd.f32 0.0, %v2669
      %v2671 = vpop.f32.mrf.mxu0
      %v2672 = vadd.f32 0.0, %v2671
      %2673 = vmatmul.bf16.gmra.mxu0 %v2588
      %v2674 = vpop.f32.mrf.mxu0
      %v2675 = vadd.f32 0.0, %v2674
      %v2676 = vpop.f32.mrf.mxu0
      %v2677 = vadd.f32 0.0, %v2676
      %2678 = vdwg.mxu0
      %v2679 = vadd.f32 %v2413, %v2600
      %v2680 = vadd.f32 %v2414, %v2602
      %v2681 = vadd.f32 %v2415, %v2605
      %v2682 = vadd.f32 %v2416, %v2607
      %v2683 = vadd.f32 %v2417, %v2610
      %v2684 = vadd.f32 %v2418, %v2612
      %v2685 = vadd.f32 %v2419, %v2615
      %v2686 = vadd.f32 %v2420, %v2617
      %v2687 = vadd.f32 %v2421, %v2620
      %v2688 = vadd.f32 %v2422, %v2622
      %v2689 = vadd.f32 %v2423, %v2625
      %v2690 = vadd.f32 %v2424, %v2627
      %v2691 = vadd.f32 %v2425, %v2630
      %v2692 = vadd.f32 %v2426, %v2632
      %v2693 = vadd.f32 %v2427, %v2635
      %v2694 = vadd.f32 %v2428, %v2637
      %v2695 = vadd.f32 %v2429, %v2640
      %v2696 = vadd.f32 %v2430, %v2642
      %v2697 = vadd.f32 %v2431, %v2645
      %v2698 = vadd.f32 %v2432, %v2647
      %v2699 = vadd.f32 %v2433, %v2650
      %v2700 = vadd.f32 %v2434, %v2652
      %v2701 = vadd.f32 %v2435, %v2655
      %v2702 = vadd.f32 %v2436, %v2657
      %v2703 = vadd.f32 %v2437, %v2660
      %v2704 = vadd.f32 %v2438, %v2662
      %v2705 = vadd.f32 %v2439, %v2665
      %v2706 = vadd.f32 %v2440, %v2667
      %v2707 = vadd.f32 %v2441, %v2670
      %v2708 = vadd.f32 %v2442, %v2672
      %v2709 = vadd.f32 %v2443, %v2675
      %v2710 = vadd.f32 %v2444, %v2677
      %s2711 = scalar_lea.vmem [#allocation2], 67
      %v2712 = vld [vmem:[%s2711] ss:$2 sm:$0xff]
      %s2713 = scalar_lea.vmem [#allocation2], 83
      %v2714 = vld [vmem:[%s2713] ss:$2 sm:$0xff]
      %s2715 = scalar_lea.vmem [#allocation2], 99
      %v2716 = vld [vmem:[%s2715] ss:$2 sm:$0xff]
      %s2717 = scalar_lea.vmem [#allocation2], 115
      %v2718 = vld [vmem:[%s2717] ss:$2 sm:$0xff]
      %s2719 = scalar_lea.vmem [#allocation2], 199
      %v2720 = vld [vmem:[%s2719] ss:$2 sm:$0xff]
      %s2721 = scalar_lea.vmem [#allocation2], 215
      %v2722 = vld [vmem:[%s2721] ss:$2 sm:$0xff]
      %s2723 = scalar_lea.vmem [#allocation2], 231
      %v2724 = vld [vmem:[%s2723] ss:$2 sm:$0xff]
      %s2725 = scalar_lea.vmem [#allocation2], 247
      %v2726 = vld [vmem:[%s2725] ss:$2 sm:$0xff]
      %s2727 = scalar_lea.vmem [#allocation2], 331
      %v2728 = vld [vmem:[%s2727] ss:$2 sm:$0xff]
      %s2729 = scalar_lea.vmem [#allocation2], 347
      %v2730 = vld [vmem:[%s2729] ss:$2 sm:$0xff]
      %s2731 = scalar_lea.vmem [#allocation2], 363
      %v2732 = vld [vmem:[%s2731] ss:$2 sm:$0xff]
      %s2733 = scalar_lea.vmem [#allocation2], 379
      %v2734 = vld [vmem:[%s2733] ss:$2 sm:$0xff]
      %s2735 = scalar_lea.vmem [#allocation2], 463
      %v2736 = vld [vmem:[%s2735] ss:$2 sm:$0xff]
      %s2737 = scalar_lea.vmem [#allocation2], 479
      %v2738 = vld [vmem:[%s2737] ss:$2 sm:$0xff]
      %s2739 = scalar_lea.vmem [#allocation2], 495
      %v2740 = vld [vmem:[%s2739] ss:$2 sm:$0xff]
      %s2741 = scalar_lea.vmem [#allocation2], 511
      %v2742 = vld [vmem:[%s2741] ss:$2 sm:$0xff]
      %s2743 = scalar_lea.vmem [#allocation2], 595
      %v2744 = vld [vmem:[%s2743] ss:$2 sm:$0xff]
      %s2745 = scalar_lea.vmem [#allocation2], 611
      %v2746 = vld [vmem:[%s2745] ss:$2 sm:$0xff]
      %s2747 = scalar_lea.vmem [#allocation2], 627
      %v2748 = vld [vmem:[%s2747] ss:$2 sm:$0xff]
      %s2749 = scalar_lea.vmem [#allocation2], 643
      %v2750 = vld [vmem:[%s2749] ss:$2 sm:$0xff]
      %s2751 = scalar_lea.vmem [#allocation2], 727
      %v2752 = vld [vmem:[%s2751] ss:$2 sm:$0xff]
      %s2753 = scalar_lea.vmem [#allocation2], 743
      %v2754 = vld [vmem:[%s2753] ss:$2 sm:$0xff]
      %s2755 = scalar_lea.vmem [#allocation2], 759
      %v2756 = vld [vmem:[%s2755] ss:$2 sm:$0xff]
      %s2757 = scalar_lea.vmem [#allocation2], 775
      %v2758 = vld [vmem:[%s2757] ss:$2 sm:$0xff]
      %s2759 = scalar_lea.vmem [#allocation2], 859
      %v2760 = vld [vmem:[%s2759] ss:$2 sm:$0xff]
      %s2761 = scalar_lea.vmem [#allocation2], 875
      %v2762 = vld [vmem:[%s2761] ss:$2 sm:$0xff]
      %s2763 = scalar_lea.vmem [#allocation2], 891
      %v2764 = vld [vmem:[%s2763] ss:$2 sm:$0xff]
      %s2765 = scalar_lea.vmem [#allocation2], 907
      %v2766 = vld [vmem:[%s2765] ss:$2 sm:$0xff]
      %s2767 = scalar_lea.vmem [#allocation2], 991
      %v2768 = vld [vmem:[%s2767] ss:$2 sm:$0xff]
      %s2769 = scalar_lea.vmem [#allocation2], 1007
      %v2770 = vld [vmem:[%s2769] ss:$2 sm:$0xff]
      %s2771 = scalar_lea.vmem [#allocation2], 1023
      %v2772 = vld [vmem:[%s2771] ss:$2 sm:$0xff]
      %s2773 = scalar_lea.vmem [#allocation2], 1039
      %v2774 = vld [vmem:[%s2773] ss:$2 sm:$0xff]
      %v2775 = vpack.c.bf16 %v2714, %v2712
      %v2776 = vpack.c.bf16 %v2718, %v2716
      %v2777 = vpack.c.bf16 %v2722, %v2720
      %v2778 = vpack.c.bf16 %v2726, %v2724
      %v2779 = vpack.c.bf16 %v2730, %v2728
      %v2780 = vpack.c.bf16 %v2734, %v2732
      %v2781 = vpack.c.bf16 %v2738, %v2736
      %v2782 = vpack.c.bf16 %v2742, %v2740
      %v2783 = vpack.c.bf16 %v2746, %v2744
      %v2784 = vpack.c.bf16 %v2750, %v2748
      %v2785 = vpack.c.bf16 %v2754, %v2752
      %v2786 = vpack.c.bf16 %v2758, %v2756
      %v2787 = vpack.c.bf16 %v2762, %v2760
      %v2788 = vpack.c.bf16 %v2766, %v2764
      %v2789 = vpack.c.bf16 %v2770, %v2768
      %v2790 = vpack.c.bf16 %v2774, %v2772
      %s2791 = scalar_lea.vmem %s3, 80
      %v2792 = vld [vmem:[%s2791] sm:$0xf]
      %v2793 = vld [vmem:[%s2791 + $0x4] sm:$0xf]
      %v2794 = vld [vmem:[%s2791 + $0x8] sm:$0xf]
      %v2795 = vld [vmem:[%s2791 + $0xc] sm:$0xf]
      %v2800 = vunpack.c.l.b16 %v2792
      %v2801 = vunpack.c.l.b16 %v2793
      %v2802 = vunpack.c.l.b16 %v2794
      %v2803 = vunpack.c.l.b16 %v2795
      %v2804 = vpack.c.b16 %v2801, %v2800
      %v2805 = vpack.c.b16 %v2803, %v2802
      %v2809 = vsel %vm1265, %v2775, 0
      %v2812 = vsel %vm1265, %v2776, 0
      %v2815 = vsel %vm1265, %v2777, 0
      %v2818 = vsel %vm1265, %v2778, 0
      %v2821 = vsel %vm1265, %v2779, 0
      %v2824 = vsel %vm1265, %v2780, 0
      %v2827 = vsel %vm1265, %v2781, 0
      %v2830 = vsel %vm1265, %v2782, 0
      %v2833 = vsel %vm1265, %v2783, 0
      %v2836 = vsel %vm1265, %v2784, 0
      %v2839 = vsel %vm1265, %v2785, 0
      %v2842 = vsel %vm1265, %v2786, 0
      %v2845 = vsel %vm1265, %v2787, 0
      %v2848 = vsel %vm1265, %v2788, 0
      %v2851 = vsel %vm1265, %v2789, 0
      %v2854 = vsel %vm1265, %v2790, 0
      %2856 = vmatpush.bf16.msra.mxu0 0
      %2857 = vmatpush.bf16.msra.mxu0 0
      %2858 = vmatpush.bf16.msra.mxu0 0
      %2859 = vmatpush.bf16.msra.mxu0 0
      %2860 = vmatpush.bf16.msra.mxu0 0
      %2861 = vmatpush.bf16.msra.mxu0 0
      %2862 = vmatpush.bf16.msra.mxu0 %v2805
      %2863 = vmatpush.bf16.msra.mxu0 %v2804
      %2864 = vmatmul.bf16.gmra.mxu0 %v2809
      %v2865 = vpop.f32.mrf.mxu0
      %v2866 = vadd.f32 0.0, %v2865
      %v2867 = vpop.f32.mrf.mxu0
      %v2868 = vadd.f32 0.0, %v2867
      %2869 = vmatmul.bf16.gmra.mxu0 %v2812
      %v2870 = vpop.f32.mrf.mxu0
      %v2871 = vadd.f32 0.0, %v2870
      %v2872 = vpop.f32.mrf.mxu0
      %v2873 = vadd.f32 0.0, %v2872
      %2874 = vmatmul.bf16.gmra.mxu0 %v2815
      %v2875 = vpop.f32.mrf.mxu0
      %v2876 = vadd.f32 0.0, %v2875
      %v2877 = vpop.f32.mrf.mxu0
      %v2878 = vadd.f32 0.0, %v2877
      %2879 = vmatmul.bf16.gmra.mxu0 %v2818
      %v2880 = vpop.f32.mrf.mxu0
      %v2881 = vadd.f32 0.0, %v2880
      %v2882 = vpop.f32.mrf.mxu0
      %v2883 = vadd.f32 0.0, %v2882
      %2884 = vmatmul.bf16.gmra.mxu0 %v2821
      %v2885 = vpop.f32.mrf.mxu0
      %v2886 = vadd.f32 0.0, %v2885
      %v2887 = vpop.f32.mrf.mxu0
      %v2888 = vadd.f32 0.0, %v2887
      %2889 = vmatmul.bf16.gmra.mxu0 %v2824
      %v2890 = vpop.f32.mrf.mxu0
      %v2891 = vadd.f32 0.0, %v2890
      %v2892 = vpop.f32.mrf.mxu0
      %v2893 = vadd.f32 0.0, %v2892
      %2894 = vmatmul.bf16.gmra.mxu0 %v2827
      %v2895 = vpop.f32.mrf.mxu0
      %v2896 = vadd.f32 0.0, %v2895
      %v2897 = vpop.f32.mrf.mxu0
      %v2898 = vadd.f32 0.0, %v2897
      %2899 = vmatmul.bf16.gmra.mxu0 %v2830
      %v2900 = vpop.f32.mrf.mxu0
      %v2901 = vadd.f32 0.0, %v2900
      %v2902 = vpop.f32.mrf.mxu0
      %v2903 = vadd.f32 0.0, %v2902
      %2904 = vmatmul.bf16.gmra.mxu0 %v2833
      %v2905 = vpop.f32.mrf.mxu0
      %v2906 = vadd.f32 0.0, %v2905
      %v2907 = vpop.f32.mrf.mxu0
      %v2908 = vadd.f32 0.0, %v2907
      %2909 = vmatmul.bf16.gmra.mxu0 %v2836
      %v2910 = vpop.f32.mrf.mxu0
      %v2911 = vadd.f32 0.0, %v2910
      %v2912 = vpop.f32.mrf.mxu0
      %v2913 = vadd.f32 0.0, %v2912
      %2914 = vmatmul.bf16.gmra.mxu0 %v2839
      %v2915 = vpop.f32.mrf.mxu0
      %v2916 = vadd.f32 0.0, %v2915
      %v2917 = vpop.f32.mrf.mxu0
      %v2918 = vadd.f32 0.0, %v2917
      %2919 = vmatmul.bf16.gmra.mxu0 %v2842
      %v2920 = vpop.f32.mrf.mxu0
      %v2921 = vadd.f32 0.0, %v2920
      %v2922 = vpop.f32.mrf.mxu0
      %v2923 = vadd.f32 0.0, %v2922
      %2924 = vmatmul.bf16.gmra.mxu0 %v2845
      %v2925 = vpop.f32.mrf.mxu0
      %v2926 = vadd.f32 0.0, %v2925
      %v2927 = vpop.f32.mrf.mxu0
      %v2928 = vadd.f32 0.0, %v2927
      %2929 = vmatmul.bf16.gmra.mxu0 %v2848
      %v2930 = vpop.f32.mrf.mxu0
      %v2931 = vadd.f32 0.0, %v2930
      %v2932 = vpop.f32.mrf.mxu0
      %v2933 = vadd.f32 0.0, %v2932
      %2934 = vmatmul.bf16.gmra.mxu0 %v2851
      %v2935 = vpop.f32.mrf.mxu0
      %v2936 = vadd.f32 0.0, %v2935
      %v2937 = vpop.f32.mrf.mxu0
      %v2938 = vadd.f32 0.0, %v2937
      %2939 = vmatmul.bf16.gmra.mxu0 %v2854
      %v2940 = vpop.f32.mrf.mxu0
      %v2941 = vadd.f32 0.0, %v2940
      %v2942 = vpop.f32.mrf.mxu0
      %v2943 = vadd.f32 0.0, %v2942
      %2944 = vdwg.mxu0
      %v2945 = vadd.f32 %v2679, %v2866
      %v2946 = vadd.f32 %v2680, %v2868
      %v2947 = vadd.f32 %v2681, %v2871
      %v2948 = vadd.f32 %v2682, %v2873
      %v2949 = vadd.f32 %v2683, %v2876
      %v2950 = vadd.f32 %v2684, %v2878
      %v2951 = vadd.f32 %v2685, %v2881
      %v2952 = vadd.f32 %v2686, %v2883
      %v2953 = vadd.f32 %v2687, %v2886
      %v2954 = vadd.f32 %v2688, %v2888
      %v2955 = vadd.f32 %v2689, %v2891
      %v2956 = vadd.f32 %v2690, %v2893
      %v2957 = vadd.f32 %v2691, %v2896
      %v2958 = vadd.f32 %v2692, %v2898
      %v2959 = vadd.f32 %v2693, %v2901
      %v2960 = vadd.f32 %v2694, %v2903
      %v2961 = vadd.f32 %v2695, %v2906
      %v2962 = vadd.f32 %v2696, %v2908
      %v2963 = vadd.f32 %v2697, %v2911
      %v2964 = vadd.f32 %v2698, %v2913
      %v2965 = vadd.f32 %v2699, %v2916
      %v2966 = vadd.f32 %v2700, %v2918
      %v2967 = vadd.f32 %v2701, %v2921
      %v2968 = vadd.f32 %v2702, %v2923
      %v2969 = vadd.f32 %v2703, %v2926
      %v2970 = vadd.f32 %v2704, %v2928
      %v2971 = vadd.f32 %v2705, %v2931
      %v2972 = vadd.f32 %v2706, %v2933
      %v2973 = vadd.f32 %v2707, %v2936
      %v2974 = vadd.f32 %v2708, %v2938
      %v2975 = vadd.f32 %v2709, %v2941
      %v2976 = vadd.f32 %v2710, %v2943
      %s2977 = scalar_lea.vmem [#allocation2], 68
      %v2978 = vld [vmem:[%s2977] ss:$2 sm:$0xff]
      %s2979 = scalar_lea.vmem [#allocation2], 84
      %v2980 = vld [vmem:[%s2979] ss:$2 sm:$0xff]
      %s2981 = scalar_lea.vmem [#allocation2], 100
      %v2982 = vld [vmem:[%s2981] ss:$2 sm:$0xff]
      %s2983 = scalar_lea.vmem [#allocation2], 116
      %v2984 = vld [vmem:[%s2983] ss:$2 sm:$0xff]
      %s2985 = scalar_lea.vmem [#allocation2], 200
      %v2986 = vld [vmem:[%s2985] ss:$2 sm:$0xff]
      %s2987 = scalar_lea.vmem [#allocation2], 216
      %v2988 = vld [vmem:[%s2987] ss:$2 sm:$0xff]
      %s2989 = scalar_lea.vmem [#allocation2], 232
      %v2990 = vld [vmem:[%s2989] ss:$2 sm:$0xff]
      %s2991 = scalar_lea.vmem [#allocation2], 248
      %v2992 = vld [vmem:[%s2991] ss:$2 sm:$0xff]
      %s2993 = scalar_lea.vmem [#allocation2], 332
      %v2994 = vld [vmem:[%s2993] ss:$2 sm:$0xff]
      %s2995 = scalar_lea.vmem [#allocation2], 348
      %v2996 = vld [vmem:[%s2995] ss:$2 sm:$0xff]
      %s2997 = scalar_lea.vmem [#allocation2], 364
      %v2998 = vld [vmem:[%s2997] ss:$2 sm:$0xff]
      %s2999 = scalar_lea.vmem [#allocation2], 380
      %v3000 = vld [vmem:[%s2999] ss:$2 sm:$0xff]
      %s3001 = scalar_lea.vmem [#allocation2], 464
      %v3002 = vld [vmem:[%s3001] ss:$2 sm:$0xff]
      %s3003 = scalar_lea.vmem [#allocation2], 480
      %v3004 = vld [vmem:[%s3003] ss:$2 sm:$0xff]
      %s3005 = scalar_lea.vmem [#allocation2], 496
      %v3006 = vld [vmem:[%s3005] ss:$2 sm:$0xff]
      %s3007 = scalar_lea.vmem [#allocation2], 512
      %v3008 = vld [vmem:[%s3007] ss:$2 sm:$0xff]
      %s3009 = scalar_lea.vmem [#allocation2], 596
      %v3010 = vld [vmem:[%s3009] ss:$2 sm:$0xff]
      %s3011 = scalar_lea.vmem [#allocation2], 612
      %v3012 = vld [vmem:[%s3011] ss:$2 sm:$0xff]
      %s3013 = scalar_lea.vmem [#allocation2], 628
      %v3014 = vld [vmem:[%s3013] ss:$2 sm:$0xff]
      %s3015 = scalar_lea.vmem [#allocation2], 644
      %v3016 = vld [vmem:[%s3015] ss:$2 sm:$0xff]
      %s3017 = scalar_lea.vmem [#allocation2], 728
      %v3018 = vld [vmem:[%s3017] ss:$2 sm:$0xff]
      %s3019 = scalar_lea.vmem [#allocation2], 744
      %v3020 = vld [vmem:[%s3019] ss:$2 sm:$0xff]
      %s3021 = scalar_lea.vmem [#allocation2], 760
      %v3022 = vld [vmem:[%s3021] ss:$2 sm:$0xff]
      %s3023 = scalar_lea.vmem [#allocation2], 776
      %v3024 = vld [vmem:[%s3023] ss:$2 sm:$0xff]
      %s3025 = scalar_lea.vmem [#allocation2], 860
      %v3026 = vld [vmem:[%s3025] ss:$2 sm:$0xff]
      %s3027 = scalar_lea.vmem [#allocation2], 876
      %v3028 = vld [vmem:[%s3027] ss:$2 sm:$0xff]
      %s3029 = scalar_lea.vmem [#allocation2], 892
      %v3030 = vld [vmem:[%s3029] ss:$2 sm:$0xff]
      %s3031 = scalar_lea.vmem [#allocation2], 908
      %v3032 = vld [vmem:[%s3031] ss:$2 sm:$0xff]
      %s3033 = scalar_lea.vmem [#allocation2], 992
      %v3034 = vld [vmem:[%s3033] ss:$2 sm:$0xff]
      %s3035 = scalar_lea.vmem [#allocation2], 1008
      %v3036 = vld [vmem:[%s3035] ss:$2 sm:$0xff]
      %s3037 = scalar_lea.vmem [#allocation2], 1024
      %v3038 = vld [vmem:[%s3037] ss:$2 sm:$0xff]
      %s3039 = scalar_lea.vmem [#allocation2], 1040
      %v3040 = vld [vmem:[%s3039] ss:$2 sm:$0xff]
      %v3041 = vpack.c.bf16 %v2980, %v2978
      %v3042 = vpack.c.bf16 %v2984, %v2982
      %v3043 = vpack.c.bf16 %v2988, %v2986
      %v3044 = vpack.c.bf16 %v2992, %v2990
      %v3045 = vpack.c.bf16 %v2996, %v2994
      %v3046 = vpack.c.bf16 %v3000, %v2998
      %v3047 = vpack.c.bf16 %v3004, %v3002
      %v3048 = vpack.c.bf16 %v3008, %v3006
      %v3049 = vpack.c.bf16 %v3012, %v3010
      %v3050 = vpack.c.bf16 %v3016, %v3014
      %v3051 = vpack.c.bf16 %v3020, %v3018
      %v3052 = vpack.c.bf16 %v3024, %v3022
      %v3053 = vpack.c.bf16 %v3028, %v3026
      %v3054 = vpack.c.bf16 %v3032, %v3030
      %v3055 = vpack.c.bf16 %v3036, %v3034
      %v3056 = vpack.c.bf16 %v3040, %v3038
      %s3057 = scalar_lea.vmem %s3, 96
      %v3058 = vld [vmem:[%s3057] sm:$0xf]
      %v3059 = vld [vmem:[%s3057 + $0x4] sm:$0xf]
      %v3060 = vld [vmem:[%s3057 + $0x8] sm:$0xf]
      %v3061 = vld [vmem:[%s3057 + $0xc] sm:$0xf]
      %v3066 = vunpack.c.l.b16 %v3058
      %v3067 = vunpack.c.l.b16 %v3059
      %v3068 = vunpack.c.l.b16 %v3060
      %v3069 = vunpack.c.l.b16 %v3061
      %v3070 = vpack.c.b16 %v3067, %v3066
      %v3071 = vpack.c.b16 %v3069, %v3068
      %v3075 = vsel %vm1265, %v3041, 0
      %v3078 = vsel %vm1265, %v3042, 0
      %v3081 = vsel %vm1265, %v3043, 0
      %v3084 = vsel %vm1265, %v3044, 0
      %v3087 = vsel %vm1265, %v3045, 0
      %v3090 = vsel %vm1265, %v3046, 0
      %v3093 = vsel %vm1265, %v3047, 0
      %v3096 = vsel %vm1265, %v3048, 0
      %v3099 = vsel %vm1265, %v3049, 0
      %v3102 = vsel %vm1265, %v3050, 0
      %v3105 = vsel %vm1265, %v3051, 0
      %v3108 = vsel %vm1265, %v3052, 0
      %v3111 = vsel %vm1265, %v3053, 0
      %v3114 = vsel %vm1265, %v3054, 0
      %v3117 = vsel %vm1265, %v3055, 0
      %v3120 = vsel %vm1265, %v3056, 0
      %3122 = vmatpush.bf16.msra.mxu0 0
      %3123 = vmatpush.bf16.msra.mxu0 0
      %3124 = vmatpush.bf16.msra.mxu0 0
      %3125 = vmatpush.bf16.msra.mxu0 0
      %3126 = vmatpush.bf16.msra.mxu0 0
      %3127 = vmatpush.bf16.msra.mxu0 0
      %3128 = vmatpush.bf16.msra.mxu0 %v3071
      %3129 = vmatpush.bf16.msra.mxu0 %v3070
      %3130 = vmatmul.bf16.gmra.mxu0 %v3075
      %v3131 = vpop.f32.mrf.mxu0
      %v3132 = vadd.f32 0.0, %v3131
      %v3133 = vpop.f32.mrf.mxu0
      %v3134 = vadd.f32 0.0, %v3133
      %3135 = vmatmul.bf16.gmra.mxu0 %v3078
      %v3136 = vpop.f32.mrf.mxu0
      %v3137 = vadd.f32 0.0, %v3136
      %v3138 = vpop.f32.mrf.mxu0
      %v3139 = vadd.f32 0.0, %v3138
      %3140 = vmatmul.bf16.gmra.mxu0 %v3081
      %v3141 = vpop.f32.mrf.mxu0
      %v3142 = vadd.f32 0.0, %v3141
      %v3143 = vpop.f32.mrf.mxu0
      %v3144 = vadd.f32 0.0, %v3143
      %3145 = vmatmul.bf16.gmra.mxu0 %v3084
      %v3146 = vpop.f32.mrf.mxu0
      %v3147 = vadd.f32 0.0, %v3146
      %v3148 = vpop.f32.mrf.mxu0
      %v3149 = vadd.f32 0.0, %v3148
      %3150 = vmatmul.bf16.gmra.mxu0 %v3087
      %v3151 = vpop.f32.mrf.mxu0
      %v3152 = vadd.f32 0.0, %v3151
      %v3153 = vpop.f32.mrf.mxu0
      %v3154 = vadd.f32 0.0, %v3153
      %3155 = vmatmul.bf16.gmra.mxu0 %v3090
      %v3156 = vpop.f32.mrf.mxu0
      %v3157 = vadd.f32 0.0, %v3156
      %v3158 = vpop.f32.mrf.mxu0
      %v3159 = vadd.f32 0.0, %v3158
      %3160 = vmatmul.bf16.gmra.mxu0 %v3093
      %v3161 = vpop.f32.mrf.mxu0
      %v3162 = vadd.f32 0.0, %v3161
      %v3163 = vpop.f32.mrf.mxu0
      %v3164 = vadd.f32 0.0, %v3163
      %3165 = vmatmul.bf16.gmra.mxu0 %v3096
      %v3166 = vpop.f32.mrf.mxu0
      %v3167 = vadd.f32 0.0, %v3166
      %v3168 = vpop.f32.mrf.mxu0
      %v3169 = vadd.f32 0.0, %v3168
      %3170 = vmatmul.bf16.gmra.mxu0 %v3099
      %v3171 = vpop.f32.mrf.mxu0
      %v3172 = vadd.f32 0.0, %v3171
      %v3173 = vpop.f32.mrf.mxu0
      %v3174 = vadd.f32 0.0, %v3173
      %3175 = vmatmul.bf16.gmra.mxu0 %v3102
      %v3176 = vpop.f32.mrf.mxu0
      %v3177 = vadd.f32 0.0, %v3176
      %v3178 = vpop.f32.mrf.mxu0
      %v3179 = vadd.f32 0.0, %v3178
      %3180 = vmatmul.bf16.gmra.mxu0 %v3105
      %v3181 = vpop.f32.mrf.mxu0
      %v3182 = vadd.f32 0.0, %v3181
      %v3183 = vpop.f32.mrf.mxu0
      %v3184 = vadd.f32 0.0, %v3183
      %3185 = vmatmul.bf16.gmra.mxu0 %v3108
      %v3186 = vpop.f32.mrf.mxu0
      %v3187 = vadd.f32 0.0, %v3186
      %v3188 = vpop.f32.mrf.mxu0
      %v3189 = vadd.f32 0.0, %v3188
      %3190 = vmatmul.bf16.gmra.mxu0 %v3111
      %v3191 = vpop.f32.mrf.mxu0
      %v3192 = vadd.f32 0.0, %v3191
      %v3193 = vpop.f32.mrf.mxu0
      %v3194 = vadd.f32 0.0, %v3193
      %3195 = vmatmul.bf16.gmra.mxu0 %v3114
      %v3196 = vpop.f32.mrf.mxu0
      %v3197 = vadd.f32 0.0, %v3196
      %v3198 = vpop.f32.mrf.mxu0
      %v3199 = vadd.f32 0.0, %v3198
      %3200 = vmatmul.bf16.gmra.mxu0 %v3117
      %v3201 = vpop.f32.mrf.mxu0
      %v3202 = vadd.f32 0.0, %v3201
      %v3203 = vpop.f32.mrf.mxu0
      %v3204 = vadd.f32 0.0, %v3203
      %3205 = vmatmul.bf16.gmra.mxu0 %v3120
      %v3206 = vpop.f32.mrf.mxu0
      %v3207 = vadd.f32 0.0, %v3206
      %v3208 = vpop.f32.mrf.mxu0
      %v3209 = vadd.f32 0.0, %v3208
      %3210 = vdwg.mxu0
      %v3211 = vadd.f32 %v2945, %v3132
      %v3212 = vadd.f32 %v2946, %v3134
      %v3213 = vadd.f32 %v2947, %v3137
      %v3214 = vadd.f32 %v2948, %v3139
      %v3215 = vadd.f32 %v2949, %v3142
      %v3216 = vadd.f32 %v2950, %v3144
      %v3217 = vadd.f32 %v2951, %v3147
      %v3218 = vadd.f32 %v2952, %v3149
      %v3219 = vadd.f32 %v2953, %v3152
      %v3220 = vadd.f32 %v2954, %v3154
      %v3221 = vadd.f32 %v2955, %v3157
      %v3222 = vadd.f32 %v2956, %v3159
      %v3223 = vadd.f32 %v2957, %v3162
      %v3224 = vadd.f32 %v2958, %v3164
      %v3225 = vadd.f32 %v2959, %v3167
      %v3226 = vadd.f32 %v2960, %v3169
      %v3227 = vadd.f32 %v2961, %v3172
      %v3228 = vadd.f32 %v2962, %v3174
      %v3229 = vadd.f32 %v2963, %v3177
      %v3230 = vadd.f32 %v2964, %v3179
      %v3231 = vadd.f32 %v2965, %v3182
      %v3232 = vadd.f32 %v2966, %v3184
      %v3233 = vadd.f32 %v2967, %v3187
      %v3234 = vadd.f32 %v2968, %v3189
      %v3235 = vadd.f32 %v2969, %v3192
      %v3236 = vadd.f32 %v2970, %v3194
      %v3237 = vadd.f32 %v2971, %v3197
      %v3238 = vadd.f32 %v2972, %v3199
      %v3239 = vadd.f32 %v2973, %v3202
      %v3240 = vadd.f32 %v2974, %v3204
      %v3241 = vadd.f32 %v2975, %v3207
      %v3242 = vadd.f32 %v2976, %v3209
      %s3243 = scalar_lea.vmem [#allocation2], 69
      %v3244 = vld [vmem:[%s3243] ss:$2 sm:$0xff]
      %s3245 = scalar_lea.vmem [#allocation2], 85
      %v3246 = vld [vmem:[%s3245] ss:$2 sm:$0xff]
      %s3247 = scalar_lea.vmem [#allocation2], 101
      %v3248 = vld [vmem:[%s3247] ss:$2 sm:$0xff]
      %s3249 = scalar_lea.vmem [#allocation2], 117
      %v3250 = vld [vmem:[%s3249] ss:$2 sm:$0xff]
      %s3251 = scalar_lea.vmem [#allocation2], 201
      %v3252 = vld [vmem:[%s3251] ss:$2 sm:$0xff]
      %s3253 = scalar_lea.vmem [#allocation2], 217
      %v3254 = vld [vmem:[%s3253] ss:$2 sm:$0xff]
      %s3255 = scalar_lea.vmem [#allocation2], 233
      %v3256 = vld [vmem:[%s3255] ss:$2 sm:$0xff]
      %s3257 = scalar_lea.vmem [#allocation2], 249
      %v3258 = vld [vmem:[%s3257] ss:$2 sm:$0xff]
      %s3259 = scalar_lea.vmem [#allocation2], 333
      %v3260 = vld [vmem:[%s3259] ss:$2 sm:$0xff]
      %s3261 = scalar_lea.vmem [#allocation2], 349
      %v3262 = vld [vmem:[%s3261] ss:$2 sm:$0xff]
      %s3263 = scalar_lea.vmem [#allocation2], 365
      %v3264 = vld [vmem:[%s3263] ss:$2 sm:$0xff]
      %s3265 = scalar_lea.vmem [#allocation2], 381
      %v3266 = vld [vmem:[%s3265] ss:$2 sm:$0xff]
      %s3267 = scalar_lea.vmem [#allocation2], 465
      %v3268 = vld [vmem:[%s3267] ss:$2 sm:$0xff]
      %s3269 = scalar_lea.vmem [#allocation2], 481
      %v3270 = vld [vmem:[%s3269] ss:$2 sm:$0xff]
      %s3271 = scalar_lea.vmem [#allocation2], 497
      %v3272 = vld [vmem:[%s3271] ss:$2 sm:$0xff]
      %s3273 = scalar_lea.vmem [#allocation2], 513
      %v3274 = vld [vmem:[%s3273] ss:$2 sm:$0xff]
      %s3275 = scalar_lea.vmem [#allocation2], 597
      %v3276 = vld [vmem:[%s3275] ss:$2 sm:$0xff]
      %s3277 = scalar_lea.vmem [#allocation2], 613
      %v3278 = vld [vmem:[%s3277] ss:$2 sm:$0xff]
      %s3279 = scalar_lea.vmem [#allocation2], 629
      %v3280 = vld [vmem:[%s3279] ss:$2 sm:$0xff]
      %s3281 = scalar_lea.vmem [#allocation2], 645
      %v3282 = vld [vmem:[%s3281] ss:$2 sm:$0xff]
      %s3283 = scalar_lea.vmem [#allocation2], 729
      %v3284 = vld [vmem:[%s3283] ss:$2 sm:$0xff]
      %s3285 = scalar_lea.vmem [#allocation2], 745
      %v3286 = vld [vmem:[%s3285] ss:$2 sm:$0xff]
      %s3287 = scalar_lea.vmem [#allocation2], 761
      %v3288 = vld [vmem:[%s3287] ss:$2 sm:$0xff]
      %s3289 = scalar_lea.vmem [#allocation2], 777
      %v3290 = vld [vmem:[%s3289] ss:$2 sm:$0xff]
      %s3291 = scalar_lea.vmem [#allocation2], 861
      %v3292 = vld [vmem:[%s3291] ss:$2 sm:$0xff]
      %s3293 = scalar_lea.vmem [#allocation2], 877
      %v3294 = vld [vmem:[%s3293] ss:$2 sm:$0xff]
      %s3295 = scalar_lea.vmem [#allocation2], 893
      %v3296 = vld [vmem:[%s3295] ss:$2 sm:$0xff]
      %s3297 = scalar_lea.vmem [#allocation2], 909
      %v3298 = vld [vmem:[%s3297] ss:$2 sm:$0xff]
      %s3299 = scalar_lea.vmem [#allocation2], 993
      %v3300 = vld [vmem:[%s3299] ss:$2 sm:$0xff]
      %s3301 = scalar_lea.vmem [#allocation2], 1009
      %v3302 = vld [vmem:[%s3301] ss:$2 sm:$0xff]
      %s3303 = scalar_lea.vmem [#allocation2], 1025
      %v3304 = vld [vmem:[%s3303] ss:$2 sm:$0xff]
      %s3305 = scalar_lea.vmem [#allocation2], 1041
      %v3306 = vld [vmem:[%s3305] ss:$2 sm:$0xff]
      %v3307 = vpack.c.bf16 %v3246, %v3244
      %v3308 = vpack.c.bf16 %v3250, %v3248
      %v3309 = vpack.c.bf16 %v3254, %v3252
      %v3310 = vpack.c.bf16 %v3258, %v3256
      %v3311 = vpack.c.bf16 %v3262, %v3260
      %v3312 = vpack.c.bf16 %v3266, %v3264
      %v3313 = vpack.c.bf16 %v3270, %v3268
      %v3314 = vpack.c.bf16 %v3274, %v3272
      %v3315 = vpack.c.bf16 %v3278, %v3276
      %v3316 = vpack.c.bf16 %v3282, %v3280
      %v3317 = vpack.c.bf16 %v3286, %v3284
      %v3318 = vpack.c.bf16 %v3290, %v3288
      %v3319 = vpack.c.bf16 %v3294, %v3292
      %v3320 = vpack.c.bf16 %v3298, %v3296
      %v3321 = vpack.c.bf16 %v3302, %v3300
      %v3322 = vpack.c.bf16 %v3306, %v3304
      %s3323 = scalar_lea.vmem %s3, 112
      %v3324 = vld [vmem:[%s3323] sm:$0xf]
      %v3325 = vld [vmem:[%s3323 + $0x4] sm:$0xf]
      %v3326 = vld [vmem:[%s3323 + $0x8] sm:$0xf]
      %v3327 = vld [vmem:[%s3323 + $0xc] sm:$0xf]
      %v3332 = vunpack.c.l.b16 %v3324
      %v3333 = vunpack.c.l.b16 %v3325
      %v3334 = vunpack.c.l.b16 %v3326
      %v3335 = vunpack.c.l.b16 %v3327
      %v3336 = vpack.c.b16 %v3333, %v3332
      %v3337 = vpack.c.b16 %v3335, %v3334
      %v3341 = vsel %vm1265, %v3307, 0
      %v3344 = vsel %vm1265, %v3308, 0
      %v3347 = vsel %vm1265, %v3309, 0
      %v3350 = vsel %vm1265, %v3310, 0
      %v3353 = vsel %vm1265, %v3311, 0
      %v3356 = vsel %vm1265, %v3312, 0
      %v3359 = vsel %vm1265, %v3313, 0
      %v3362 = vsel %vm1265, %v3314, 0
      %v3365 = vsel %vm1265, %v3315, 0
      %v3368 = vsel %vm1265, %v3316, 0
      %v3371 = vsel %vm1265, %v3317, 0
      %v3374 = vsel %vm1265, %v3318, 0
      %v3377 = vsel %vm1265, %v3319, 0
      %v3380 = vsel %vm1265, %v3320, 0
      %v3383 = vsel %vm1265, %v3321, 0
      %v3386 = vsel %vm1265, %v3322, 0
      %3388 = vmatpush.bf16.msra.mxu0 0
      %3389 = vmatpush.bf16.msra.mxu0 0
      %3390 = vmatpush.bf16.msra.mxu0 0
      %3391 = vmatpush.bf16.msra.mxu0 0
      %3392 = vmatpush.bf16.msra.mxu0 0
      %3393 = vmatpush.bf16.msra.mxu0 0
      %3394 = vmatpush.bf16.msra.mxu0 %v3337
      %3395 = vmatpush.bf16.msra.mxu0 %v3336
      %3396 = vmatmul.bf16.gmra.mxu0 %v3341
      %v3397 = vpop.f32.mrf.mxu0
      %v3398 = vadd.f32 0.0, %v3397
      %v3399 = vpop.f32.mrf.mxu0
      %v3400 = vadd.f32 0.0, %v3399
      %3401 = vmatmul.bf16.gmra.mxu0 %v3344
      %v3402 = vpop.f32.mrf.mxu0
      %v3403 = vadd.f32 0.0, %v3402
      %v3404 = vpop.f32.mrf.mxu0
      %v3405 = vadd.f32 0.0, %v3404
      %3406 = vmatmul.bf16.gmra.mxu0 %v3347
      %v3407 = vpop.f32.mrf.mxu0
      %v3408 = vadd.f32 0.0, %v3407
      %v3409 = vpop.f32.mrf.mxu0
      %v3410 = vadd.f32 0.0, %v3409
      %3411 = vmatmul.bf16.gmra.mxu0 %v3350
      %v3412 = vpop.f32.mrf.mxu0
      %v3413 = vadd.f32 0.0, %v3412
      %v3414 = vpop.f32.mrf.mxu0
      %v3415 = vadd.f32 0.0, %v3414
      %3416 = vmatmul.bf16.gmra.mxu0 %v3353
      %v3417 = vpop.f32.mrf.mxu0
      %v3418 = vadd.f32 0.0, %v3417
      %v3419 = vpop.f32.mrf.mxu0
      %v3420 = vadd.f32 0.0, %v3419
      %3421 = vmatmul.bf16.gmra.mxu0 %v3356
      %v3422 = vpop.f32.mrf.mxu0
      %v3423 = vadd.f32 0.0, %v3422
      %v3424 = vpop.f32.mrf.mxu0
      %v3425 = vadd.f32 0.0, %v3424
      %3426 = vmatmul.bf16.gmra.mxu0 %v3359
      %v3427 = vpop.f32.mrf.mxu0
      %v3428 = vadd.f32 0.0, %v3427
      %v3429 = vpop.f32.mrf.mxu0
      %v3430 = vadd.f32 0.0, %v3429
      %3431 = vmatmul.bf16.gmra.mxu0 %v3362
      %v3432 = vpop.f32.mrf.mxu0
      %v3433 = vadd.f32 0.0, %v3432
      %v3434 = vpop.f32.mrf.mxu0
      %v3435 = vadd.f32 0.0, %v3434
      %3436 = vmatmul.bf16.gmra.mxu0 %v3365
      %v3437 = vpop.f32.mrf.mxu0
      %v3438 = vadd.f32 0.0, %v3437
      %v3439 = vpop.f32.mrf.mxu0
      %v3440 = vadd.f32 0.0, %v3439
      %3441 = vmatmul.bf16.gmra.mxu0 %v3368
      %v3442 = vpop.f32.mrf.mxu0
      %v3443 = vadd.f32 0.0, %v3442
      %v3444 = vpop.f32.mrf.mxu0
      %v3445 = vadd.f32 0.0, %v3444
      %3446 = vmatmul.bf16.gmra.mxu0 %v3371
      %v3447 = vpop.f32.mrf.mxu0
      %v3448 = vadd.f32 0.0, %v3447
      %v3449 = vpop.f32.mrf.mxu0
      %v3450 = vadd.f32 0.0, %v3449
      %3451 = vmatmul.bf16.gmra.mxu0 %v3374
      %v3452 = vpop.f32.mrf.mxu0
      %v3453 = vadd.f32 0.0, %v3452
      %v3454 = vpop.f32.mrf.mxu0
      %v3455 = vadd.f32 0.0, %v3454
      %3456 = vmatmul.bf16.gmra.mxu0 %v3377
      %v3457 = vpop.f32.mrf.mxu0
      %v3458 = vadd.f32 0.0, %v3457
      %v3459 = vpop.f32.mrf.mxu0
      %v3460 = vadd.f32 0.0, %v3459
      %3461 = vmatmul.bf16.gmra.mxu0 %v3380
      %v3462 = vpop.f32.mrf.mxu0
      %v3463 = vadd.f32 0.0, %v3462
      %v3464 = vpop.f32.mrf.mxu0
      %v3465 = vadd.f32 0.0, %v3464
      %3466 = vmatmul.bf16.gmra.mxu0 %v3383
      %v3467 = vpop.f32.mrf.mxu0
      %v3468 = vadd.f32 0.0, %v3467
      %v3469 = vpop.f32.mrf.mxu0
      %v3470 = vadd.f32 0.0, %v3469
      %3471 = vmatmul.bf16.gmra.mxu0 %v3386
      %v3472 = vpop.f32.mrf.mxu0
      %v3473 = vadd.f32 0.0, %v3472
      %v3474 = vpop.f32.mrf.mxu0
      %v3475 = vadd.f32 0.0, %v3474
      %3476 = vdwg.mxu0
      %v3477 = vadd.f32 %v3211, %v3398
      %v3478 = vadd.f32 %v3212, %v3400
      %v3479 = vadd.f32 %v3213, %v3403
      %v3480 = vadd.f32 %v3214, %v3405
      %v3481 = vadd.f32 %v3215, %v3408
      %v3482 = vadd.f32 %v3216, %v3410
      %v3483 = vadd.f32 %v3217, %v3413
      %v3484 = vadd.f32 %v3218, %v3415
      %v3485 = vadd.f32 %v3219, %v3418
      %v3486 = vadd.f32 %v3220, %v3420
      %v3487 = vadd.f32 %v3221, %v3423
      %v3488 = vadd.f32 %v3222, %v3425
      %v3489 = vadd.f32 %v3223, %v3428
      %v3490 = vadd.f32 %v3224, %v3430
      %v3491 = vadd.f32 %v3225, %v3433
      %v3492 = vadd.f32 %v3226, %v3435
      %v3493 = vadd.f32 %v3227, %v3438
      %v3494 = vadd.f32 %v3228, %v3440
      %v3495 = vadd.f32 %v3229, %v3443
      %v3496 = vadd.f32 %v3230, %v3445
      %v3497 = vadd.f32 %v3231, %v3448
      %v3498 = vadd.f32 %v3232, %v3450
      %v3499 = vadd.f32 %v3233, %v3453
      %v3500 = vadd.f32 %v3234, %v3455
      %v3501 = vadd.f32 %v3235, %v3458
      %v3502 = vadd.f32 %v3236, %v3460
      %v3503 = vadd.f32 %v3237, %v3463
      %v3504 = vadd.f32 %v3238, %v3465
      %v3505 = vadd.f32 %v3239, %v3468
      %v3506 = vadd.f32 %v3240, %v3470
      %v3507 = vadd.f32 %v3241, %v3473
      %v3508 = vadd.f32 %v3242, %v3475
      %s3509 = scalar_lea.vmem [#allocation2], 1056
      %v3510 = vld [vmem:[%s3509] ss:$2 sm:$0xff]
      %s3511 = scalar_lea.vmem [#allocation2], 1072
      %v3512 = vld [vmem:[%s3511] ss:$2 sm:$0xff]
      %s3513 = scalar_lea.vmem [#allocation2], 1088
      %v3514 = vld [vmem:[%s3513] ss:$2 sm:$0xff]
      %s3515 = scalar_lea.vmem [#allocation2], 1104
      %v3516 = vld [vmem:[%s3515] ss:$2 sm:$0xff]
      %v3517 = vpack.c.bf16 %v3512, %v3510
      %v3518 = vpack.c.bf16 %v3516, %v3514
      %s3519 = scalar_lea.vmem %s3, 128
      %v3520 = vld [vmem:[%s3519] sm:$0xf]
      %v3521 = vld [vmem:[%s3519 + $0x4] sm:$0xf]
      %v3522 = vld [vmem:[%s3519 + $0x8] sm:$0xf]
      %v3523 = vld [vmem:[%s3519 + $0xc] sm:$0xf]
      %v3528 = vunpack.c.l.b16 %v3520
      %v3529 = vunpack.c.l.b16 %v3521
      %v3530 = vunpack.c.l.b16 %v3522
      %v3531 = vunpack.c.l.b16 %v3523
      %v3532 = vpack.c.b16 %v3529, %v3528
      %v3533 = vpack.c.b16 %v3531, %v3530
      %v3537 = vsel %vm1265, %v3517, 0
      %v3540 = vsel %vm1265, %v3518, 0
      %3542 = vmatpush.bf16.msra.mxu0 0
      %3543 = vmatpush.bf16.msra.mxu0 0
      %3544 = vmatpush.bf16.msra.mxu0 0
      %3545 = vmatpush.bf16.msra.mxu0 0
      %3546 = vmatpush.bf16.msra.mxu0 0
      %3547 = vmatpush.bf16.msra.mxu0 0
      %3548 = vmatpush.bf16.msra.mxu0 %v3533
      %3549 = vmatpush.bf16.msra.mxu0 %v3532
      %3550 = vmatmul.bf16.gmra.mxu0 %v1783
      %v3551 = vpop.f32.mrf.mxu0
      %v3552 = vadd.f32 0.0, %v3551
      %v3553 = vpop.f32.mrf.mxu0
      %v3554 = vadd.f32 0.0, %v3553
      %3555 = vmatmul.bf16.gmra.mxu0 %v1786
      %v3556 = vpop.f32.mrf.mxu0
      %v3557 = vadd.f32 0.0, %v3556
      %v3558 = vpop.f32.mrf.mxu0
      %v3559 = vadd.f32 0.0, %v3558
      %3560 = vmatmul.bf16.gmra.mxu0 %v1789
      %v3561 = vpop.f32.mrf.mxu0
      %v3562 = vadd.f32 0.0, %v3561
      %v3563 = vpop.f32.mrf.mxu0
      %v3564 = vadd.f32 0.0, %v3563
      %3565 = vmatmul.bf16.gmra.mxu0 %v1792
      %v3566 = vpop.f32.mrf.mxu0
      %v3567 = vadd.f32 0.0, %v3566
      %v3568 = vpop.f32.mrf.mxu0
      %v3569 = vadd.f32 0.0, %v3568
      %3570 = vmatmul.bf16.gmra.mxu0 %v1795
      %v3571 = vpop.f32.mrf.mxu0
      %v3572 = vadd.f32 0.0, %v3571
      %v3573 = vpop.f32.mrf.mxu0
      %v3574 = vadd.f32 0.0, %v3573
      %3575 = vmatmul.bf16.gmra.mxu0 %v1798
      %v3576 = vpop.f32.mrf.mxu0
      %v3577 = vadd.f32 0.0, %v3576
      %v3578 = vpop.f32.mrf.mxu0
      %v3579 = vadd.f32 0.0, %v3578
      %3580 = vmatmul.bf16.gmra.mxu0 %v1801
      %v3581 = vpop.f32.mrf.mxu0
      %v3582 = vadd.f32 0.0, %v3581
      %v3583 = vpop.f32.mrf.mxu0
      %v3584 = vadd.f32 0.0, %v3583
      %3585 = vmatmul.bf16.gmra.mxu0 %v1804
      %v3586 = vpop.f32.mrf.mxu0
      %v3587 = vadd.f32 0.0, %v3586
      %v3588 = vpop.f32.mrf.mxu0
      %v3589 = vadd.f32 0.0, %v3588
      %3590 = vmatmul.bf16.gmra.mxu0 %v1807
      %v3591 = vpop.f32.mrf.mxu0
      %v3592 = vadd.f32 0.0, %v3591
      %v3593 = vpop.f32.mrf.mxu0
      %v3594 = vadd.f32 0.0, %v3593
      %3595 = vmatmul.bf16.gmra.mxu0 %v1810
      %v3596 = vpop.f32.mrf.mxu0
      %v3597 = vadd.f32 0.0, %v3596
      %v3598 = vpop.f32.mrf.mxu0
      %v3599 = vadd.f32 0.0, %v3598
      %3600 = vmatmul.bf16.gmra.mxu0 %v1813
      %v3601 = vpop.f32.mrf.mxu0
      %v3602 = vadd.f32 0.0, %v3601
      %v3603 = vpop.f32.mrf.mxu0
      %v3604 = vadd.f32 0.0, %v3603
      %3605 = vmatmul.bf16.gmra.mxu0 %v1816
      %v3606 = vpop.f32.mrf.mxu0
      %v3607 = vadd.f32 0.0, %v3606
      %v3608 = vpop.f32.mrf.mxu0
      %v3609 = vadd.f32 0.0, %v3608
      %3610 = vmatmul.bf16.gmra.mxu0 %v1819
      %v3611 = vpop.f32.mrf.mxu0
      %v3612 = vadd.f32 0.0, %v3611
      %v3613 = vpop.f32.mrf.mxu0
      %v3614 = vadd.f32 0.0, %v3613
      %3615 = vmatmul.bf16.gmra.mxu0 %v1822
      %v3616 = vpop.f32.mrf.mxu0
      %v3617 = vadd.f32 0.0, %v3616
      %v3618 = vpop.f32.mrf.mxu0
      %v3619 = vadd.f32 0.0, %v3618
      %3620 = vmatmul.bf16.gmra.mxu0 %v3537
      %v3621 = vpop.f32.mrf.mxu0
      %v3622 = vadd.f32 0.0, %v3621
      %v3623 = vpop.f32.mrf.mxu0
      %v3624 = vadd.f32 0.0, %v3623
      %3625 = vmatmul.bf16.gmra.mxu0 %v3540
      %v3626 = vpop.f32.mrf.mxu0
      %v3627 = vadd.f32 0.0, %v3626
      %v3628 = vpop.f32.mrf.mxu0
      %v3629 = vadd.f32 0.0, %v3628
      %3630 = vdwg.mxu0
      %v3631 = vadd.f32 %v3477, %v3552
      %v3632 = vadd.f32 %v3478, %v3554
      %v3633 = vadd.f32 %v3479, %v3557
      %v3634 = vadd.f32 %v3480, %v3559
      %v3635 = vadd.f32 %v3481, %v3562
      %v3636 = vadd.f32 %v3482, %v3564
      %v3637 = vadd.f32 %v3483, %v3567
      %v3638 = vadd.f32 %v3484, %v3569
      %v3639 = vadd.f32 %v3485, %v3572
      %v3640 = vadd.f32 %v3486, %v3574
      %v3641 = vadd.f32 %v3487, %v3577
      %v3642 = vadd.f32 %v3488, %v3579
      %v3643 = vadd.f32 %v3489, %v3582
      %v3644 = vadd.f32 %v3490, %v3584
      %v3645 = vadd.f32 %v3491, %v3587
      %v3646 = vadd.f32 %v3492, %v3589
      %v3647 = vadd.f32 %v3493, %v3592
      %v3648 = vadd.f32 %v3494, %v3594
      %v3649 = vadd.f32 %v3495, %v3597
      %v3650 = vadd.f32 %v3496, %v3599
      %v3651 = vadd.f32 %v3497, %v3602
      %v3652 = vadd.f32 %v3498, %v3604
      %v3653 = vadd.f32 %v3499, %v3607
      %v3654 = vadd.f32 %v3500, %v3609
      %v3655 = vadd.f32 %v3501, %v3612
      %v3656 = vadd.f32 %v3502, %v3614
      %v3657 = vadd.f32 %v3503, %v3617
      %v3658 = vadd.f32 %v3504, %v3619
      %v3659 = vadd.f32 %v3505, %v3622
      %v3660 = vadd.f32 %v3506, %v3624
      %v3661 = vadd.f32 %v3507, %v3627
      %v3662 = vadd.f32 %v3508, %v3629
      %s3663 = scalar_lea.vmem [#allocation2], 1057
      %v3664 = vld [vmem:[%s3663] ss:$2 sm:$0xff]
      %s3665 = scalar_lea.vmem [#allocation2], 1073
      %v3666 = vld [vmem:[%s3665] ss:$2 sm:$0xff]
      %s3667 = scalar_lea.vmem [#allocation2], 1089
      %v3668 = vld [vmem:[%s3667] ss:$2 sm:$0xff]
      %s3669 = scalar_lea.vmem [#allocation2], 1105
      %v3670 = vld [vmem:[%s3669] ss:$2 sm:$0xff]
      %v3671 = vpack.c.bf16 %v3666, %v3664
      %v3672 = vpack.c.bf16 %v3670, %v3668
      %s3673 = scalar_lea.vmem %s3, 144
      %v3674 = vld [vmem:[%s3673] sm:$0xf]
      %v3675 = vld [vmem:[%s3673 + $0x4] sm:$0xf]
      %v3676 = vld [vmem:[%s3673 + $0x8] sm:$0xf]
      %v3677 = vld [vmem:[%s3673 + $0xc] sm:$0xf]
      %v3682 = vunpack.c.l.b16 %v3674
      %v3683 = vunpack.c.l.b16 %v3675
      %v3684 = vunpack.c.l.b16 %v3676
      %v3685 = vunpack.c.l.b16 %v3677
      %v3686 = vpack.c.b16 %v3683, %v3682
      %v3687 = vpack.c.b16 %v3685, %v3684
      %v3691 = vsel %vm1265, %v3671, 0
      %v3694 = vsel %vm1265, %v3672, 0
      %3696 = vmatpush.bf16.msra.mxu0 0
      %3697 = vmatpush.bf16.msra.mxu0 0
      %3698 = vmatpush.bf16.msra.mxu0 0
      %3699 = vmatpush.bf16.msra.mxu0 0
      %3700 = vmatpush.bf16.msra.mxu0 0
      %3701 = vmatpush.bf16.msra.mxu0 0
      %3702 = vmatpush.bf16.msra.mxu0 %v3687
      %3703 = vmatpush.bf16.msra.mxu0 %v3686
      %3704 = vmatmul.bf16.gmra.mxu0 %v1634
      %v3705 = vpop.f32.mrf.mxu0
      %v3706 = vadd.f32 0.0, %v3705
      %v3707 = vpop.f32.mrf.mxu0
      %v3708 = vadd.f32 0.0, %v3707
      %3709 = vmatmul.bf16.gmra.mxu0 %v1637
      %v3710 = vpop.f32.mrf.mxu0
      %v3711 = vadd.f32 0.0, %v3710
      %v3712 = vpop.f32.mrf.mxu0
      %v3713 = vadd.f32 0.0, %v3712
      %3714 = vmatmul.bf16.gmra.mxu0 %v1640
      %v3715 = vpop.f32.mrf.mxu0
      %v3716 = vadd.f32 0.0, %v3715
      %v3717 = vpop.f32.mrf.mxu0
      %v3718 = vadd.f32 0.0, %v3717
      %3719 = vmatmul.bf16.gmra.mxu0 %v1643
      %v3720 = vpop.f32.mrf.mxu0
      %v3721 = vadd.f32 0.0, %v3720
      %v3722 = vpop.f32.mrf.mxu0
      %v3723 = vadd.f32 0.0, %v3722
      %3724 = vmatmul.bf16.gmra.mxu0 %v1646
      %v3725 = vpop.f32.mrf.mxu0
      %v3726 = vadd.f32 0.0, %v3725
      %v3727 = vpop.f32.mrf.mxu0
      %v3728 = vadd.f32 0.0, %v3727
      %3729 = vmatmul.bf16.gmra.mxu0 %v1649
      %v3730 = vpop.f32.mrf.mxu0
      %v3731 = vadd.f32 0.0, %v3730
      %v3732 = vpop.f32.mrf.mxu0
      %v3733 = vadd.f32 0.0, %v3732
      %3734 = vmatmul.bf16.gmra.mxu0 %v1652
      %v3735 = vpop.f32.mrf.mxu0
      %v3736 = vadd.f32 0.0, %v3735
      %v3737 = vpop.f32.mrf.mxu0
      %v3738 = vadd.f32 0.0, %v3737
      %3739 = vmatmul.bf16.gmra.mxu0 %v1655
      %v3740 = vpop.f32.mrf.mxu0
      %v3741 = vadd.f32 0.0, %v3740
      %v3742 = vpop.f32.mrf.mxu0
      %v3743 = vadd.f32 0.0, %v3742
      %3744 = vmatmul.bf16.gmra.mxu0 %v1658
      %v3745 = vpop.f32.mrf.mxu0
      %v3746 = vadd.f32 0.0, %v3745
      %v3747 = vpop.f32.mrf.mxu0
      %v3748 = vadd.f32 0.0, %v3747
      %3749 = vmatmul.bf16.gmra.mxu0 %v1661
      %v3750 = vpop.f32.mrf.mxu0
      %v3751 = vadd.f32 0.0, %v3750
      %v3752 = vpop.f32.mrf.mxu0
      %v3753 = vadd.f32 0.0, %v3752
      %3754 = vmatmul.bf16.gmra.mxu0 %v1664
      %v3755 = vpop.f32.mrf.mxu0
      %v3756 = vadd.f32 0.0, %v3755
      %v3757 = vpop.f32.mrf.mxu0
      %v3758 = vadd.f32 0.0, %v3757
      %3759 = vmatmul.bf16.gmra.mxu0 %v1667
      %v3760 = vpop.f32.mrf.mxu0
      %v3761 = vadd.f32 0.0, %v3760
      %v3762 = vpop.f32.mrf.mxu0
      %v3763 = vadd.f32 0.0, %v3762
      %3764 = vmatmul.bf16.gmra.mxu0 %v1670
      %v3765 = vpop.f32.mrf.mxu0
      %v3766 = vadd.f32 0.0, %v3765
      %v3767 = vpop.f32.mrf.mxu0
      %v3768 = vadd.f32 0.0, %v3767
      %3769 = vmatmul.bf16.gmra.mxu0 %v1673
      %v3770 = vpop.f32.mrf.mxu0
      %v3771 = vadd.f32 0.0, %v3770
      %v3772 = vpop.f32.mrf.mxu0
      %v3773 = vadd.f32 0.0, %v3772
      %3774 = vmatmul.bf16.gmra.mxu0 %v3691
      %v3775 = vpop.f32.mrf.mxu0
      %v3776 = vadd.f32 0.0, %v3775
      %v3777 = vpop.f32.mrf.mxu0
      %v3778 = vadd.f32 0.0, %v3777
      %3779 = vmatmul.bf16.gmra.mxu0 %v3694
      %v3780 = vpop.f32.mrf.mxu0
      %v3781 = vadd.f32 0.0, %v3780
      %v3782 = vpop.f32.mrf.mxu0
      %v3783 = vadd.f32 0.0, %v3782
      %3784 = vdwg.mxu0
      %v3785 = vadd.f32 %v3631, %v3706
      %v3786 = vadd.f32 %v3632, %v3708
      %v3787 = vadd.f32 %v3633, %v3711
      %v3788 = vadd.f32 %v3634, %v3713
      %v3789 = vadd.f32 %v3635, %v3716
      %v3790 = vadd.f32 %v3636, %v3718
      %v3791 = vadd.f32 %v3637, %v3721
      %v3792 = vadd.f32 %v3638, %v3723
      %v3793 = vadd.f32 %v3639, %v3726
      %v3794 = vadd.f32 %v3640, %v3728
      %v3795 = vadd.f32 %v3641, %v3731
      %v3796 = vadd.f32 %v3642, %v3733
      %v3797 = vadd.f32 %v3643, %v3736
      %v3798 = vadd.f32 %v3644, %v3738
      %v3799 = vadd.f32 %v3645, %v3741
      %v3800 = vadd.f32 %v3646, %v3743
      %v3801 = vadd.f32 %v3647, %v3746
      %v3802 = vadd.f32 %v3648, %v3748
      %v3803 = vadd.f32 %v3649, %v3751
      %v3804 = vadd.f32 %v3650, %v3753
      %v3805 = vadd.f32 %v3651, %v3756
      %v3806 = vadd.f32 %v3652, %v3758
      %v3807 = vadd.f32 %v3653, %v3761
      %v3808 = vadd.f32 %v3654, %v3763
      %v3809 = vadd.f32 %v3655, %v3766
      %v3810 = vadd.f32 %v3656, %v3768
      %v3811 = vadd.f32 %v3657, %v3771
      %v3812 = vadd.f32 %v3658, %v3773
      %v3813 = vadd.f32 %v3659, %v3776
      %v3814 = vadd.f32 %v3660, %v3778
      %v3815 = vadd.f32 %v3661, %v3781
      %v3816 = vadd.f32 %v3662, %v3783
      %s3817 = scalar_lea.vmem [#allocation2], 1058
      %v3818 = vld [vmem:[%s3817] ss:$2 sm:$0xff]
      %s3819 = scalar_lea.vmem [#allocation2], 1074
      %v3820 = vld [vmem:[%s3819] ss:$2 sm:$0xff]
      %s3821 = scalar_lea.vmem [#allocation2], 1090
      %v3822 = vld [vmem:[%s3821] ss:$2 sm:$0xff]
      %s3823 = scalar_lea.vmem [#allocation2], 1106
      %v3824 = vld [vmem:[%s3823] ss:$2 sm:$0xff]
      %v3825 = vpack.c.bf16 %v3820, %v3818
      %v3826 = vpack.c.bf16 %v3824, %v3822
      %s3827 = scalar_lea.vmem %s3, 160
      %v3828 = vld [vmem:[%s3827] sm:$0xf]
      %v3829 = vld [vmem:[%s3827 + $0x4] sm:$0xf]
      %v3830 = vld [vmem:[%s3827 + $0x8] sm:$0xf]
      %v3831 = vld [vmem:[%s3827 + $0xc] sm:$0xf]
      %v3836 = vunpack.c.l.b16 %v3828
      %v3837 = vunpack.c.l.b16 %v3829
      %v3838 = vunpack.c.l.b16 %v3830
      %v3839 = vunpack.c.l.b16 %v3831
      %v3840 = vpack.c.b16 %v3837, %v3836
      %v3841 = vpack.c.b16 %v3839, %v3838
      %v3845 = vsel %vm1265, %v3825, 0
      %v3848 = vsel %vm1265, %v3826, 0
      %3850 = vmatpush.bf16.msra.mxu0 0
      %3851 = vmatpush.bf16.msra.mxu0 0
      %3852 = vmatpush.bf16.msra.mxu0 0
      %3853 = vmatpush.bf16.msra.mxu0 0
      %3854 = vmatpush.bf16.msra.mxu0 0
      %3855 = vmatpush.bf16.msra.mxu0 0
      %3856 = vmatpush.bf16.msra.mxu0 %v3841
      %3857 = vmatpush.bf16.msra.mxu0 %v3840
      %3858 = vmatmul.bf16.gmra.mxu0 %v2017
      %v3859 = vpop.f32.mrf.mxu0
      %v3860 = vadd.f32 0.0, %v3859
      %v3861 = vpop.f32.mrf.mxu0
      %v3862 = vadd.f32 0.0, %v3861
      %3863 = vmatmul.bf16.gmra.mxu0 %v2020
      %v3864 = vpop.f32.mrf.mxu0
      %v3865 = vadd.f32 0.0, %v3864
      %v3866 = vpop.f32.mrf.mxu0
      %v3867 = vadd.f32 0.0, %v3866
      %3868 = vmatmul.bf16.gmra.mxu0 %v2023
      %v3869 = vpop.f32.mrf.mxu0
      %v3870 = vadd.f32 0.0, %v3869
      %v3871 = vpop.f32.mrf.mxu0
      %v3872 = vadd.f32 0.0, %v3871
      %3873 = vmatmul.bf16.gmra.mxu0 %v2026
      %v3874 = vpop.f32.mrf.mxu0
      %v3875 = vadd.f32 0.0, %v3874
      %v3876 = vpop.f32.mrf.mxu0
      %v3877 = vadd.f32 0.0, %v3876
      %3878 = vmatmul.bf16.gmra.mxu0 %v2029
      %v3879 = vpop.f32.mrf.mxu0
      %v3880 = vadd.f32 0.0, %v3879
      %v3881 = vpop.f32.mrf.mxu0
      %v3882 = vadd.f32 0.0, %v3881
      %3883 = vmatmul.bf16.gmra.mxu0 %v2032
      %v3884 = vpop.f32.mrf.mxu0
      %v3885 = vadd.f32 0.0, %v3884
      %v3886 = vpop.f32.mrf.mxu0
      %v3887 = vadd.f32 0.0, %v3886
      %3888 = vmatmul.bf16.gmra.mxu0 %v2035
      %v3889 = vpop.f32.mrf.mxu0
      %v3890 = vadd.f32 0.0, %v3889
      %v3891 = vpop.f32.mrf.mxu0
      %v3892 = vadd.f32 0.0, %v3891
      %3893 = vmatmul.bf16.gmra.mxu0 %v2038
      %v3894 = vpop.f32.mrf.mxu0
      %v3895 = vadd.f32 0.0, %v3894
      %v3896 = vpop.f32.mrf.mxu0
      %v3897 = vadd.f32 0.0, %v3896
      %3898 = vmatmul.bf16.gmra.mxu0 %v2041
      %v3899 = vpop.f32.mrf.mxu0
      %v3900 = vadd.f32 0.0, %v3899
      %v3901 = vpop.f32.mrf.mxu0
      %v3902 = vadd.f32 0.0, %v3901
      %3903 = vmatmul.bf16.gmra.mxu0 %v2044
      %v3904 = vpop.f32.mrf.mxu0
      %v3905 = vadd.f32 0.0, %v3904
      %v3906 = vpop.f32.mrf.mxu0
      %v3907 = vadd.f32 0.0, %v3906
      %3908 = vmatmul.bf16.gmra.mxu0 %v2047
      %v3909 = vpop.f32.mrf.mxu0
      %v3910 = vadd.f32 0.0, %v3909
      %v3911 = vpop.f32.mrf.mxu0
      %v3912 = vadd.f32 0.0, %v3911
      %3913 = vmatmul.bf16.gmra.mxu0 %v2050
      %v3914 = vpop.f32.mrf.mxu0
      %v3915 = vadd.f32 0.0, %v3914
      %v3916 = vpop.f32.mrf.mxu0
      %v3917 = vadd.f32 0.0, %v3916
      %3918 = vmatmul.bf16.gmra.mxu0 %v2053
      %v3919 = vpop.f32.mrf.mxu0
      %v3920 = vadd.f32 0.0, %v3919
      %v3921 = vpop.f32.mrf.mxu0
      %v3922 = vadd.f32 0.0, %v3921
      %3923 = vmatmul.bf16.gmra.mxu0 %v2056
      %v3924 = vpop.f32.mrf.mxu0
      %v3925 = vadd.f32 0.0, %v3924
      %v3926 = vpop.f32.mrf.mxu0
      %v3927 = vadd.f32 0.0, %v3926
      %3928 = vmatmul.bf16.gmra.mxu0 %v3845
      %v3929 = vpop.f32.mrf.mxu0
      %v3930 = vadd.f32 0.0, %v3929
      %v3931 = vpop.f32.mrf.mxu0
      %v3932 = vadd.f32 0.0, %v3931
      %3933 = vmatmul.bf16.gmra.mxu0 %v3848
      %v3934 = vpop.f32.mrf.mxu0
      %v3935 = vadd.f32 0.0, %v3934
      %v3936 = vpop.f32.mrf.mxu0
      %v3937 = vadd.f32 0.0, %v3936
      %3938 = vdwg.mxu0
      %v3939 = vadd.f32 %v3785, %v3860
      %v3940 = vadd.f32 %v3786, %v3862
      %v3941 = vadd.f32 %v3787, %v3865
      %v3942 = vadd.f32 %v3788, %v3867
      %v3943 = vadd.f32 %v3789, %v3870
      %v3944 = vadd.f32 %v3790, %v3872
      %v3945 = vadd.f32 %v3791, %v3875
      %v3946 = vadd.f32 %v3792, %v3877
      %v3947 = vadd.f32 %v3793, %v3880
      %v3948 = vadd.f32 %v3794, %v3882
      %v3949 = vadd.f32 %v3795, %v3885
      %v3950 = vadd.f32 %v3796, %v3887
      %v3951 = vadd.f32 %v3797, %v3890
      %v3952 = vadd.f32 %v3798, %v3892
      %v3953 = vadd.f32 %v3799, %v3895
      %v3954 = vadd.f32 %v3800, %v3897
      %v3955 = vadd.f32 %v3801, %v3900
      %v3956 = vadd.f32 %v3802, %v3902
      %v3957 = vadd.f32 %v3803, %v3905
      %v3958 = vadd.f32 %v3804, %v3907
      %v3959 = vadd.f32 %v3805, %v3910
      %v3960 = vadd.f32 %v3806, %v3912
      %v3961 = vadd.f32 %v3807, %v3915
      %v3962 = vadd.f32 %v3808, %v3917
      %v3963 = vadd.f32 %v3809, %v3920
      %v3964 = vadd.f32 %v3810, %v3922
      %v3965 = vadd.f32 %v3811, %v3925
      %v3966 = vadd.f32 %v3812, %v3927
      %v3967 = vadd.f32 %v3813, %v3930
      %v3968 = vadd.f32 %v3814, %v3932
      %v3969 = vadd.f32 %v3815, %v3935
      %v3970 = vadd.f32 %v3816, %v3937
      %s3971 = scalar_lea.vmem [#allocation2], 1059
      %v3972 = vld [vmem:[%s3971] ss:$2 sm:$0xff]
      %s3973 = scalar_lea.vmem [#allocation2], 1075
      %v3974 = vld [vmem:[%s3973] ss:$2 sm:$0xff]
      %s3975 = scalar_lea.vmem [#allocation2], 1091
      %v3976 = vld [vmem:[%s3975] ss:$2 sm:$0xff]
      %s3977 = scalar_lea.vmem [#allocation2], 1107
      %v3978 = vld [vmem:[%s3977] ss:$2 sm:$0xff]
      %v3979 = vpack.c.bf16 %v3974, %v3972
      %v3980 = vpack.c.bf16 %v3978, %v3976
      %s3981 = scalar_lea.vmem %s3, 176
      %v3982 = vld [vmem:[%s3981] sm:$0xf]
      %v3983 = vld [vmem:[%s3981 + $0x4] sm:$0xf]
      %v3984 = vld [vmem:[%s3981 + $0x8] sm:$0xf]
      %v3985 = vld [vmem:[%s3981 + $0xc] sm:$0xf]
      %v3990 = vunpack.c.l.b16 %v3982
      %v3991 = vunpack.c.l.b16 %v3983
      %v3992 = vunpack.c.l.b16 %v3984
      %v3993 = vunpack.c.l.b16 %v3985
      %v3994 = vpack.c.b16 %v3991, %v3990
      %v3995 = vpack.c.b16 %v3993, %v3992
      %v3999 = vsel %vm1265, %v3979, 0
      %v4002 = vsel %vm1265, %v3980, 0
      %4004 = vmatpush.bf16.msra.mxu0 0
      %4005 = vmatpush.bf16.msra.mxu0 0
      %4006 = vmatpush.bf16.msra.mxu0 0
      %4007 = vmatpush.bf16.msra.mxu0 0
      %4008 = vmatpush.bf16.msra.mxu0 0
      %4009 = vmatpush.bf16.msra.mxu0 0
      %4010 = vmatpush.bf16.msra.mxu0 %v3995
      %4011 = vmatpush.bf16.msra.mxu0 %v3994
      %4012 = vmatmul.bf16.gmra.mxu0 %v2283
      %v4013 = vpop.f32.mrf.mxu0
      %v4014 = vadd.f32 0.0, %v4013
      %v4015 = vpop.f32.mrf.mxu0
      %v4016 = vadd.f32 0.0, %v4015
      %4017 = vmatmul.bf16.gmra.mxu0 %v2286
      %v4018 = vpop.f32.mrf.mxu0
      %v4019 = vadd.f32 0.0, %v4018
      %v4020 = vpop.f32.mrf.mxu0
      %v4021 = vadd.f32 0.0, %v4020
      %4022 = vmatmul.bf16.gmra.mxu0 %v2289
      %v4023 = vpop.f32.mrf.mxu0
      %v4024 = vadd.f32 0.0, %v4023
      %v4025 = vpop.f32.mrf.mxu0
      %v4026 = vadd.f32 0.0, %v4025
      %4027 = vmatmul.bf16.gmra.mxu0 %v2292
      %v4028 = vpop.f32.mrf.mxu0
      %v4029 = vadd.f32 0.0, %v4028
      %v4030 = vpop.f32.mrf.mxu0
      %v4031 = vadd.f32 0.0, %v4030
      %4032 = vmatmul.bf16.gmra.mxu0 %v2295
      %v4033 = vpop.f32.mrf.mxu0
      %v4034 = vadd.f32 0.0, %v4033
      %v4035 = vpop.f32.mrf.mxu0
      %v4036 = vadd.f32 0.0, %v4035
      %4037 = vmatmul.bf16.gmra.mxu0 %v2298
      %v4038 = vpop.f32.mrf.mxu0
      %v4039 = vadd.f32 0.0, %v4038
      %v4040 = vpop.f32.mrf.mxu0
      %v4041 = vadd.f32 0.0, %v4040
      %4042 = vmatmul.bf16.gmra.mxu0 %v2301
      %v4043 = vpop.f32.mrf.mxu0
      %v4044 = vadd.f32 0.0, %v4043
      %v4045 = vpop.f32.mrf.mxu0
      %v4046 = vadd.f32 0.0, %v4045
      %4047 = vmatmul.bf16.gmra.mxu0 %v2304
      %v4048 = vpop.f32.mrf.mxu0
      %v4049 = vadd.f32 0.0, %v4048
      %v4050 = vpop.f32.mrf.mxu0
      %v4051 = vadd.f32 0.0, %v4050
      %4052 = vmatmul.bf16.gmra.mxu0 %v2307
      %v4053 = vpop.f32.mrf.mxu0
      %v4054 = vadd.f32 0.0, %v4053
      %v4055 = vpop.f32.mrf.mxu0
      %v4056 = vadd.f32 0.0, %v4055
      %4057 = vmatmul.bf16.gmra.mxu0 %v2310
      %v4058 = vpop.f32.mrf.mxu0
      %v4059 = vadd.f32 0.0, %v4058
      %v4060 = vpop.f32.mrf.mxu0
      %v4061 = vadd.f32 0.0, %v4060
      %4062 = vmatmul.bf16.gmra.mxu0 %v2313
      %v4063 = vpop.f32.mrf.mxu0
      %v4064 = vadd.f32 0.0, %v4063
      %v4065 = vpop.f32.mrf.mxu0
      %v4066 = vadd.f32 0.0, %v4065
      %4067 = vmatmul.bf16.gmra.mxu0 %v2316
      %v4068 = vpop.f32.mrf.mxu0
      %v4069 = vadd.f32 0.0, %v4068
      %v4070 = vpop.f32.mrf.mxu0
      %v4071 = vadd.f32 0.0, %v4070
      %4072 = vmatmul.bf16.gmra.mxu0 %v2319
      %v4073 = vpop.f32.mrf.mxu0
      %v4074 = vadd.f32 0.0, %v4073
      %v4075 = vpop.f32.mrf.mxu0
      %v4076 = vadd.f32 0.0, %v4075
      %4077 = vmatmul.bf16.gmra.mxu0 %v2322
      %v4078 = vpop.f32.mrf.mxu0
      %v4079 = vadd.f32 0.0, %v4078
      %v4080 = vpop.f32.mrf.mxu0
      %v4081 = vadd.f32 0.0, %v4080
      %4082 = vmatmul.bf16.gmra.mxu0 %v3999
      %v4083 = vpop.f32.mrf.mxu0
      %v4084 = vadd.f32 0.0, %v4083
      %v4085 = vpop.f32.mrf.mxu0
      %v4086 = vadd.f32 0.0, %v4085
      %4087 = vmatmul.bf16.gmra.mxu0 %v4002
      %v4088 = vpop.f32.mrf.mxu0
      %v4089 = vadd.f32 0.0, %v4088
      %v4090 = vpop.f32.mrf.mxu0
      %v4091 = vadd.f32 0.0, %v4090
      %4092 = vdwg.mxu0
      %v4093 = vadd.f32 %v3939, %v4014
      %v4094 = vadd.f32 %v3940, %v4016
      %v4095 = vadd.f32 %v3941, %v4019
      %v4096 = vadd.f32 %v3942, %v4021
      %v4097 = vadd.f32 %v3943, %v4024
      %v4098 = vadd.f32 %v3944, %v4026
      %v4099 = vadd.f32 %v3945, %v4029
      %v4100 = vadd.f32 %v3946, %v4031
      %v4101 = vadd.f32 %v3947, %v4034
      %v4102 = vadd.f32 %v3948, %v4036
      %v4103 = vadd.f32 %v3949, %v4039
      %v4104 = vadd.f32 %v3950, %v4041
      %v4105 = vadd.f32 %v3951, %v4044
      %v4106 = vadd.f32 %v3952, %v4046
      %v4107 = vadd.f32 %v3953, %v4049
      %v4108 = vadd.f32 %v3954, %v4051
      %v4109 = vadd.f32 %v3955, %v4054
      %v4110 = vadd.f32 %v3956, %v4056
      %v4111 = vadd.f32 %v3957, %v4059
      %v4112 = vadd.f32 %v3958, %v4061
      %v4113 = vadd.f32 %v3959, %v4064
      %v4114 = vadd.f32 %v3960, %v4066
      %v4115 = vadd.f32 %v3961, %v4069
      %v4116 = vadd.f32 %v3962, %v4071
      %v4117 = vadd.f32 %v3963, %v4074
      %v4118 = vadd.f32 %v3964, %v4076
      %v4119 = vadd.f32 %v3965, %v4079
      %v4120 = vadd.f32 %v3966, %v4081
      %v4121 = vadd.f32 %v3967, %v4084
      %v4122 = vadd.f32 %v3968, %v4086
      %v4123 = vadd.f32 %v3969, %v4089
      %v4124 = vadd.f32 %v3970, %v4091
      %s4125 = scalar_lea.vmem [#allocation2], 1122
      %v4126 = vld [vmem:[%s4125] ss:$2 sm:$0xff]
      %s4127 = scalar_lea.vmem [#allocation2], 1138
      %v4128 = vld [vmem:[%s4127] ss:$2 sm:$0xff]
      %s4129 = scalar_lea.vmem [#allocation2], 1154
      %v4130 = vld [vmem:[%s4129] ss:$2 sm:$0xff]
      %s4131 = scalar_lea.vmem [#allocation2], 1170
      %v4132 = vld [vmem:[%s4131] ss:$2 sm:$0xff]
      %v4133 = vpack.c.bf16 %v4128, %v4126
      %v4134 = vpack.c.bf16 %v4132, %v4130
      %s4135 = scalar_lea.vmem %s3, 192
      %v4136 = vld [vmem:[%s4135] sm:$0xf]
      %v4137 = vld [vmem:[%s4135 + $0x4] sm:$0xf]
      %v4138 = vld [vmem:[%s4135 + $0x8] sm:$0xf]
      %v4139 = vld [vmem:[%s4135 + $0xc] sm:$0xf]
      %v4144 = vunpack.c.l.b16 %v4136
      %v4145 = vunpack.c.l.b16 %v4137
      %v4146 = vunpack.c.l.b16 %v4138
      %v4147 = vunpack.c.l.b16 %v4139
      %v4148 = vpack.c.b16 %v4145, %v4144
      %v4149 = vpack.c.b16 %v4147, %v4146
      %v4153 = vsel %vm1265, %v4133, 0
      %v4156 = vsel %vm1265, %v4134, 0
      %4158 = vmatpush.bf16.msra.mxu0 0
      %4159 = vmatpush.bf16.msra.mxu0 0
      %4160 = vmatpush.bf16.msra.mxu0 0
      %4161 = vmatpush.bf16.msra.mxu0 0
      %4162 = vmatpush.bf16.msra.mxu0 0
      %4163 = vmatpush.bf16.msra.mxu0 0
      %4164 = vmatpush.bf16.msra.mxu0 %v4149
      %4165 = vmatpush.bf16.msra.mxu0 %v4148
      %4166 = vmatmul.bf16.gmra.mxu0 %v2549
      %v4167 = vpop.f32.mrf.mxu0
      %v4168 = vadd.f32 0.0, %v4167
      %v4169 = vpop.f32.mrf.mxu0
      %v4170 = vadd.f32 0.0, %v4169
      %4171 = vmatmul.bf16.gmra.mxu0 %v2552
      %v4172 = vpop.f32.mrf.mxu0
      %v4173 = vadd.f32 0.0, %v4172
      %v4174 = vpop.f32.mrf.mxu0
      %v4175 = vadd.f32 0.0, %v4174
      %4176 = vmatmul.bf16.gmra.mxu0 %v2555
      %v4177 = vpop.f32.mrf.mxu0
      %v4178 = vadd.f32 0.0, %v4177
      %v4179 = vpop.f32.mrf.mxu0
      %v4180 = vadd.f32 0.0, %v4179
      %4181 = vmatmul.bf16.gmra.mxu0 %v2558
      %v4182 = vpop.f32.mrf.mxu0
      %v4183 = vadd.f32 0.0, %v4182
      %v4184 = vpop.f32.mrf.mxu0
      %v4185 = vadd.f32 0.0, %v4184
      %4186 = vmatmul.bf16.gmra.mxu0 %v2561
      %v4187 = vpop.f32.mrf.mxu0
      %v4188 = vadd.f32 0.0, %v4187
      %v4189 = vpop.f32.mrf.mxu0
      %v4190 = vadd.f32 0.0, %v4189
      %4191 = vmatmul.bf16.gmra.mxu0 %v2564
      %v4192 = vpop.f32.mrf.mxu0
      %v4193 = vadd.f32 0.0, %v4192
      %v4194 = vpop.f32.mrf.mxu0
      %v4195 = vadd.f32 0.0, %v4194
      %4196 = vmatmul.bf16.gmra.mxu0 %v2567
      %v4197 = vpop.f32.mrf.mxu0
      %v4198 = vadd.f32 0.0, %v4197
      %v4199 = vpop.f32.mrf.mxu0
      %v4200 = vadd.f32 0.0, %v4199
      %4201 = vmatmul.bf16.gmra.mxu0 %v2570
      %v4202 = vpop.f32.mrf.mxu0
      %v4203 = vadd.f32 0.0, %v4202
      %v4204 = vpop.f32.mrf.mxu0
      %v4205 = vadd.f32 0.0, %v4204
      %4206 = vmatmul.bf16.gmra.mxu0 %v2573
      %v4207 = vpop.f32.mrf.mxu0
      %v4208 = vadd.f32 0.0, %v4207
      %v4209 = vpop.f32.mrf.mxu0
      %v4210 = vadd.f32 0.0, %v4209
      %4211 = vmatmul.bf16.gmra.mxu0 %v2576
      %v4212 = vpop.f32.mrf.mxu0
      %v4213 = vadd.f32 0.0, %v4212
      %v4214 = vpop.f32.mrf.mxu0
      %v4215 = vadd.f32 0.0, %v4214
      %4216 = vmatmul.bf16.gmra.mxu0 %v2579
      %v4217 = vpop.f32.mrf.mxu0
      %v4218 = vadd.f32 0.0, %v4217
      %v4219 = vpop.f32.mrf.mxu0
      %v4220 = vadd.f32 0.0, %v4219
      %4221 = vmatmul.bf16.gmra.mxu0 %v2582
      %v4222 = vpop.f32.mrf.mxu0
      %v4223 = vadd.f32 0.0, %v4222
      %v4224 = vpop.f32.mrf.mxu0
      %v4225 = vadd.f32 0.0, %v4224
      %4226 = vmatmul.bf16.gmra.mxu0 %v2585
      %v4227 = vpop.f32.mrf.mxu0
      %v4228 = vadd.f32 0.0, %v4227
      %v4229 = vpop.f32.mrf.mxu0
      %v4230 = vadd.f32 0.0, %v4229
      %4231 = vmatmul.bf16.gmra.mxu0 %v2588
      %v4232 = vpop.f32.mrf.mxu0
      %v4233 = vadd.f32 0.0, %v4232
      %v4234 = vpop.f32.mrf.mxu0
      %v4235 = vadd.f32 0.0, %v4234
      %4236 = vmatmul.bf16.gmra.mxu0 %v4153
      %v4237 = vpop.f32.mrf.mxu0
      %v4238 = vadd.f32 0.0, %v4237
      %v4239 = vpop.f32.mrf.mxu0
      %v4240 = vadd.f32 0.0, %v4239
      %4241 = vmatmul.bf16.gmra.mxu0 %v4156
      %v4242 = vpop.f32.mrf.mxu0
      %v4243 = vadd.f32 0.0, %v4242
      %v4244 = vpop.f32.mrf.mxu0
      %v4245 = vadd.f32 0.0, %v4244
      %4246 = vdwg.mxu0
      %v4247 = vadd.f32 %v4093, %v4168
      %v4248 = vadd.f32 %v4094, %v4170
      %v4249 = vadd.f32 %v4095, %v4173
      %v4250 = vadd.f32 %v4096, %v4175
      %v4251 = vadd.f32 %v4097, %v4178
      %v4252 = vadd.f32 %v4098, %v4180
      %v4253 = vadd.f32 %v4099, %v4183
      %v4254 = vadd.f32 %v4100, %v4185
      %v4255 = vadd.f32 %v4101, %v4188
      %v4256 = vadd.f32 %v4102, %v4190
      %v4257 = vadd.f32 %v4103, %v4193
      %v4258 = vadd.f32 %v4104, %v4195
      %v4259 = vadd.f32 %v4105, %v4198
      %v4260 = vadd.f32 %v4106, %v4200
      %v4261 = vadd.f32 %v4107, %v4203
      %v4262 = vadd.f32 %v4108, %v4205
      %v4263 = vadd.f32 %v4109, %v4208
      %v4264 = vadd.f32 %v4110, %v4210
      %v4265 = vadd.f32 %v4111, %v4213
      %v4266 = vadd.f32 %v4112, %v4215
      %v4267 = vadd.f32 %v4113, %v4218
      %v4268 = vadd.f32 %v4114, %v4220
      %v4269 = vadd.f32 %v4115, %v4223
      %v4270 = vadd.f32 %v4116, %v4225
      %v4271 = vadd.f32 %v4117, %v4228
      %v4272 = vadd.f32 %v4118, %v4230
      %v4273 = vadd.f32 %v4119, %v4233
      %v4274 = vadd.f32 %v4120, %v4235
      %v4275 = vadd.f32 %v4121, %v4238
      %v4276 = vadd.f32 %v4122, %v4240
      %v4277 = vadd.f32 %v4123, %v4243
      %v4278 = vadd.f32 %v4124, %v4245
      %s4279 = scalar_lea.vmem [#allocation2], 1123
      %v4280 = vld [vmem:[%s4279] ss:$2 sm:$0xff]
      %s4281 = scalar_lea.vmem [#allocation2], 1139
      %v4282 = vld [vmem:[%s4281] ss:$2 sm:$0xff]
      %s4283 = scalar_lea.vmem [#allocation2], 1155
      %v4284 = vld [vmem:[%s4283] ss:$2 sm:$0xff]
      %s4285 = scalar_lea.vmem [#allocation2], 1171
      %v4286 = vld [vmem:[%s4285] ss:$2 sm:$0xff]
      %v4287 = vpack.c.bf16 %v4282, %v4280
      %v4288 = vpack.c.bf16 %v4286, %v4284
      %s4289 = scalar_lea.vmem %s3, 208
      %v4290 = vld [vmem:[%s4289] sm:$0xf]
      %v4291 = vld [vmem:[%s4289 + $0x4] sm:$0xf]
      %v4292 = vld [vmem:[%s4289 + $0x8] sm:$0xf]
      %v4293 = vld [vmem:[%s4289 + $0xc] sm:$0xf]
      %v4298 = vunpack.c.l.b16 %v4290
      %v4299 = vunpack.c.l.b16 %v4291
      %v4300 = vunpack.c.l.b16 %v4292
      %v4301 = vunpack.c.l.b16 %v4293
      %v4302 = vpack.c.b16 %v4299, %v4298
      %v4303 = vpack.c.b16 %v4301, %v4300
      %v4307 = vsel %vm1265, %v4287, 0
      %v4310 = vsel %vm1265, %v4288, 0
      %4312 = vmatpush.bf16.msra.mxu0 0
      %4313 = vmatpush.bf16.msra.mxu0 0
      %4314 = vmatpush.bf16.msra.mxu0 0
      %4315 = vmatpush.bf16.msra.mxu0 0
      %4316 = vmatpush.bf16.msra.mxu0 0
      %4317 = vmatpush.bf16.msra.mxu0 0
      %4318 = vmatpush.bf16.msra.mxu0 %v4303
      %4319 = vmatpush.bf16.msra.mxu0 %v4302
      %4320 = vmatmul.bf16.gmra.mxu0 %v2815
      %v4321 = vpop.f32.mrf.mxu0
      %v4322 = vadd.f32 0.0, %v4321
      %v4323 = vpop.f32.mrf.mxu0
      %v4324 = vadd.f32 0.0, %v4323
      %4325 = vmatmul.bf16.gmra.mxu0 %v2818
      %v4326 = vpop.f32.mrf.mxu0
      %v4327 = vadd.f32 0.0, %v4326
      %v4328 = vpop.f32.mrf.mxu0
      %v4329 = vadd.f32 0.0, %v4328
      %4330 = vmatmul.bf16.gmra.mxu0 %v2821
      %v4331 = vpop.f32.mrf.mxu0
      %v4332 = vadd.f32 0.0, %v4331
      %v4333 = vpop.f32.mrf.mxu0
      %v4334 = vadd.f32 0.0, %v4333
      %4335 = vmatmul.bf16.gmra.mxu0 %v2824
      %v4336 = vpop.f32.mrf.mxu0
      %v4337 = vadd.f32 0.0, %v4336
      %v4338 = vpop.f32.mrf.mxu0
      %v4339 = vadd.f32 0.0, %v4338
      %4340 = vmatmul.bf16.gmra.mxu0 %v2827
      %v4341 = vpop.f32.mrf.mxu0
      %v4342 = vadd.f32 0.0, %v4341
      %v4343 = vpop.f32.mrf.mxu0
      %v4344 = vadd.f32 0.0, %v4343
      %4345 = vmatmul.bf16.gmra.mxu0 %v2830
      %v4346 = vpop.f32.mrf.mxu0
      %v4347 = vadd.f32 0.0, %v4346
      %v4348 = vpop.f32.mrf.mxu0
      %v4349 = vadd.f32 0.0, %v4348
      %4350 = vmatmul.bf16.gmra.mxu0 %v2833
      %v4351 = vpop.f32.mrf.mxu0
      %v4352 = vadd.f32 0.0, %v4351
      %v4353 = vpop.f32.mrf.mxu0
      %v4354 = vadd.f32 0.0, %v4353
      %4355 = vmatmul.bf16.gmra.mxu0 %v2836
      %v4356 = vpop.f32.mrf.mxu0
      %v4357 = vadd.f32 0.0, %v4356
      %v4358 = vpop.f32.mrf.mxu0
      %v4359 = vadd.f32 0.0, %v4358
      %4360 = vmatmul.bf16.gmra.mxu0 %v2839
      %v4361 = vpop.f32.mrf.mxu0
      %v4362 = vadd.f32 0.0, %v4361
      %v4363 = vpop.f32.mrf.mxu0
      %v4364 = vadd.f32 0.0, %v4363
      %4365 = vmatmul.bf16.gmra.mxu0 %v2842
      %v4366 = vpop.f32.mrf.mxu0
      %v4367 = vadd.f32 0.0, %v4366
      %v4368 = vpop.f32.mrf.mxu0
      %v4369 = vadd.f32 0.0, %v4368
      %4370 = vmatmul.bf16.gmra.mxu0 %v2845
      %v4371 = vpop.f32.mrf.mxu0
      %v4372 = vadd.f32 0.0, %v4371
      %v4373 = vpop.f32.mrf.mxu0
      %v4374 = vadd.f32 0.0, %v4373
      %4375 = vmatmul.bf16.gmra.mxu0 %v2848
      %v4376 = vpop.f32.mrf.mxu0
      %v4377 = vadd.f32 0.0, %v4376
      %v4378 = vpop.f32.mrf.mxu0
      %v4379 = vadd.f32 0.0, %v4378
      %4380 = vmatmul.bf16.gmra.mxu0 %v2851
      %v4381 = vpop.f32.mrf.mxu0
      %v4382 = vadd.f32 0.0, %v4381
      %v4383 = vpop.f32.mrf.mxu0
      %v4384 = vadd.f32 0.0, %v4383
      %4385 = vmatmul.bf16.gmra.mxu0 %v2854
      %v4386 = vpop.f32.mrf.mxu0
      %v4387 = vadd.f32 0.0, %v4386
      %v4388 = vpop.f32.mrf.mxu0
      %v4389 = vadd.f32 0.0, %v4388
      %4390 = vmatmul.bf16.gmra.mxu0 %v4307
      %v4391 = vpop.f32.mrf.mxu0
      %v4392 = vadd.f32 0.0, %v4391
      %v4393 = vpop.f32.mrf.mxu0
      %v4394 = vadd.f32 0.0, %v4393
      %4395 = vmatmul.bf16.gmra.mxu0 %v4310
      %v4396 = vpop.f32.mrf.mxu0
      %v4397 = vadd.f32 0.0, %v4396
      %v4398 = vpop.f32.mrf.mxu0
      %v4399 = vadd.f32 0.0, %v4398
      %4400 = vdwg.mxu0
      %v4401 = vadd.f32 %v4247, %v4322
      %v4402 = vadd.f32 %v4248, %v4324
      %v4403 = vadd.f32 %v4249, %v4327
      %v4404 = vadd.f32 %v4250, %v4329
      %v4405 = vadd.f32 %v4251, %v4332
      %v4406 = vadd.f32 %v4252, %v4334
      %v4407 = vadd.f32 %v4253, %v4337
      %v4408 = vadd.f32 %v4254, %v4339
      %v4409 = vadd.f32 %v4255, %v4342
      %v4410 = vadd.f32 %v4256, %v4344
      %v4411 = vadd.f32 %v4257, %v4347
      %v4412 = vadd.f32 %v4258, %v4349
      %v4413 = vadd.f32 %v4259, %v4352
      %v4414 = vadd.f32 %v4260, %v4354
      %v4415 = vadd.f32 %v4261, %v4357
      %v4416 = vadd.f32 %v4262, %v4359
      %v4417 = vadd.f32 %v4263, %v4362
      %v4418 = vadd.f32 %v4264, %v4364
      %v4419 = vadd.f32 %v4265, %v4367
      %v4420 = vadd.f32 %v4266, %v4369
      %v4421 = vadd.f32 %v4267, %v4372
      %v4422 = vadd.f32 %v4268, %v4374
      %v4423 = vadd.f32 %v4269, %v4377
      %v4424 = vadd.f32 %v4270, %v4379
      %v4425 = vadd.f32 %v4271, %v4382
      %v4426 = vadd.f32 %v4272, %v4384
      %v4427 = vadd.f32 %v4273, %v4387
      %v4428 = vadd.f32 %v4274, %v4389
      %v4429 = vadd.f32 %v4275, %v4392
      %v4430 = vadd.f32 %v4276, %v4394
      %v4431 = vadd.f32 %v4277, %v4397
      %v4432 = vadd.f32 %v4278, %v4399
      %s4433 = scalar_lea.vmem [#allocation2], 1124
      %v4434 = vld [vmem:[%s4433] ss:$2 sm:$0xff]
      %s4435 = scalar_lea.vmem [#allocation2], 1140
      %v4436 = vld [vmem:[%s4435] ss:$2 sm:$0xff]
      %s4437 = scalar_lea.vmem [#allocation2], 1156
      %v4438 = vld [vmem:[%s4437] ss:$2 sm:$0xff]
      %s4439 = scalar_lea.vmem [#allocation2], 1172
      %v4440 = vld [vmem:[%s4439] ss:$2 sm:$0xff]
      %v4441 = vpack.c.bf16 %v4436, %v4434
      %v4442 = vpack.c.bf16 %v4440, %v4438
      %s4443 = scalar_lea.vmem %s3, 224
      %v4444 = vld [vmem:[%s4443] sm:$0xf]
      %v4445 = vld [vmem:[%s4443 + $0x4] sm:$0xf]
      %v4446 = vld [vmem:[%s4443 + $0x8] sm:$0xf]
      %v4447 = vld [vmem:[%s4443 + $0xc] sm:$0xf]
      %v4452 = vunpack.c.l.b16 %v4444
      %v4453 = vunpack.c.l.b16 %v4445
      %v4454 = vunpack.c.l.b16 %v4446
      %v4455 = vunpack.c.l.b16 %v4447
      %v4456 = vpack.c.b16 %v4453, %v4452
      %v4457 = vpack.c.b16 %v4455, %v4454
      %v4461 = vsel %vm1265, %v4441, 0
      %v4464 = vsel %vm1265, %v4442, 0
      %4466 = vmatpush.bf16.msra.mxu0 0
      %4467 = vmatpush.bf16.msra.mxu0 0
      %4468 = vmatpush.bf16.msra.mxu0 0
      %4469 = vmatpush.bf16.msra.mxu0 0
      %4470 = vmatpush.bf16.msra.mxu0 0
      %4471 = vmatpush.bf16.msra.mxu0 0
      %4472 = vmatpush.bf16.msra.mxu0 %v4457
      %4473 = vmatpush.bf16.msra.mxu0 %v4456
      %4474 = vmatmul.bf16.gmra.mxu0 %v3081
      %v4475 = vpop.f32.mrf.mxu0
      %v4476 = vadd.f32 0.0, %v4475
      %v4477 = vpop.f32.mrf.mxu0
      %v4478 = vadd.f32 0.0, %v4477
      %4479 = vmatmul.bf16.gmra.mxu0 %v3084
      %v4480 = vpop.f32.mrf.mxu0
      %v4481 = vadd.f32 0.0, %v4480
      %v4482 = vpop.f32.mrf.mxu0
      %v4483 = vadd.f32 0.0, %v4482
      %4484 = vmatmul.bf16.gmra.mxu0 %v3087
      %v4485 = vpop.f32.mrf.mxu0
      %v4486 = vadd.f32 0.0, %v4485
      %v4487 = vpop.f32.mrf.mxu0
      %v4488 = vadd.f32 0.0, %v4487
      %4489 = vmatmul.bf16.gmra.mxu0 %v3090
      %v4490 = vpop.f32.mrf.mxu0
      %v4491 = vadd.f32 0.0, %v4490
      %v4492 = vpop.f32.mrf.mxu0
      %v4493 = vadd.f32 0.0, %v4492
      %4494 = vmatmul.bf16.gmra.mxu0 %v3093
      %v4495 = vpop.f32.mrf.mxu0
      %v4496 = vadd.f32 0.0, %v4495
      %v4497 = vpop.f32.mrf.mxu0
      %v4498 = vadd.f32 0.0, %v4497
      %4499 = vmatmul.bf16.gmra.mxu0 %v3096
      %v4500 = vpop.f32.mrf.mxu0
      %v4501 = vadd.f32 0.0, %v4500
      %v4502 = vpop.f32.mrf.mxu0
      %v4503 = vadd.f32 0.0, %v4502
      %4504 = vmatmul.bf16.gmra.mxu0 %v3099
      %v4505 = vpop.f32.mrf.mxu0
      %v4506 = vadd.f32 0.0, %v4505
      %v4507 = vpop.f32.mrf.mxu0
      %v4508 = vadd.f32 0.0, %v4507
      %4509 = vmatmul.bf16.gmra.mxu0 %v3102
      %v4510 = vpop.f32.mrf.mxu0
      %v4511 = vadd.f32 0.0, %v4510
      %v4512 = vpop.f32.mrf.mxu0
      %v4513 = vadd.f32 0.0, %v4512
      %4514 = vmatmul.bf16.gmra.mxu0 %v3105
      %v4515 = vpop.f32.mrf.mxu0
      %v4516 = vadd.f32 0.0, %v4515
      %v4517 = vpop.f32.mrf.mxu0
      %v4518 = vadd.f32 0.0, %v4517
      %4519 = vmatmul.bf16.gmra.mxu0 %v3108
      %v4520 = vpop.f32.mrf.mxu0
      %v4521 = vadd.f32 0.0, %v4520
      %v4522 = vpop.f32.mrf.mxu0
      %v4523 = vadd.f32 0.0, %v4522
      %4524 = vmatmul.bf16.gmra.mxu0 %v3111
      %v4525 = vpop.f32.mrf.mxu0
      %v4526 = vadd.f32 0.0, %v4525
      %v4527 = vpop.f32.mrf.mxu0
      %v4528 = vadd.f32 0.0, %v4527
      %4529 = vmatmul.bf16.gmra.mxu0 %v3114
      %v4530 = vpop.f32.mrf.mxu0
      %v4531 = vadd.f32 0.0, %v4530
      %v4532 = vpop.f32.mrf.mxu0
      %v4533 = vadd.f32 0.0, %v4532
      %4534 = vmatmul.bf16.gmra.mxu0 %v3117
      %v4535 = vpop.f32.mrf.mxu0
      %v4536 = vadd.f32 0.0, %v4535
      %v4537 = vpop.f32.mrf.mxu0
      %v4538 = vadd.f32 0.0, %v4537
      %4539 = vmatmul.bf16.gmra.mxu0 %v3120
      %v4540 = vpop.f32.mrf.mxu0
      %v4541 = vadd.f32 0.0, %v4540
      %v4542 = vpop.f32.mrf.mxu0
      %v4543 = vadd.f32 0.0, %v4542
      %4544 = vmatmul.bf16.gmra.mxu0 %v4461
      %v4545 = vpop.f32.mrf.mxu0
      %v4546 = vadd.f32 0.0, %v4545
      %v4547 = vpop.f32.mrf.mxu0
      %v4548 = vadd.f32 0.0, %v4547
      %4549 = vmatmul.bf16.gmra.mxu0 %v4464
      %v4550 = vpop.f32.mrf.mxu0
      %v4551 = vadd.f32 0.0, %v4550
      %v4552 = vpop.f32.mrf.mxu0
      %v4553 = vadd.f32 0.0, %v4552
      %4554 = vdwg.mxu0
      %v4555 = vadd.f32 %v4401, %v4476
      %v4556 = vadd.f32 %v4402, %v4478
      %v4557 = vadd.f32 %v4403, %v4481
      %v4558 = vadd.f32 %v4404, %v4483
      %v4559 = vadd.f32 %v4405, %v4486
      %v4560 = vadd.f32 %v4406, %v4488
      %v4561 = vadd.f32 %v4407, %v4491
      %v4562 = vadd.f32 %v4408, %v4493
      %v4563 = vadd.f32 %v4409, %v4496
      %v4564 = vadd.f32 %v4410, %v4498
      %v4565 = vadd.f32 %v4411, %v4501
      %v4566 = vadd.f32 %v4412, %v4503
      %v4567 = vadd.f32 %v4413, %v4506
      %v4568 = vadd.f32 %v4414, %v4508
      %v4569 = vadd.f32 %v4415, %v4511
      %v4570 = vadd.f32 %v4416, %v4513
      %v4571 = vadd.f32 %v4417, %v4516
      %v4572 = vadd.f32 %v4418, %v4518
      %v4573 = vadd.f32 %v4419, %v4521
      %v4574 = vadd.f32 %v4420, %v4523
      %v4575 = vadd.f32 %v4421, %v4526
      %v4576 = vadd.f32 %v4422, %v4528
      %v4577 = vadd.f32 %v4423, %v4531
      %v4578 = vadd.f32 %v4424, %v4533
      %v4579 = vadd.f32 %v4425, %v4536
      %v4580 = vadd.f32 %v4426, %v4538
      %v4581 = vadd.f32 %v4427, %v4541
      %v4582 = vadd.f32 %v4428, %v4543
      %v4583 = vadd.f32 %v4429, %v4546
      %v4584 = vadd.f32 %v4430, %v4548
      %v4585 = vadd.f32 %v4431, %v4551
      %v4586 = vadd.f32 %v4432, %v4553
      %s4587 = scalar_lea.vmem [#allocation2], 1125
      %v4588 = vld [vmem:[%s4587] ss:$2 sm:$0xff]
      %s4589 = scalar_lea.vmem [#allocation2], 1141
      %v4590 = vld [vmem:[%s4589] ss:$2 sm:$0xff]
      %s4591 = scalar_lea.vmem [#allocation2], 1157
      %v4592 = vld [vmem:[%s4591] ss:$2 sm:$0xff]
      %s4593 = scalar_lea.vmem [#allocation2], 1173
      %v4594 = vld [vmem:[%s4593] ss:$2 sm:$0xff]
      %v4595 = vpack.c.bf16 %v4590, %v4588
      %v4596 = vpack.c.bf16 %v4594, %v4592
      %s4597 = scalar_lea.vmem %s3, 240
      %v4598 = vld [vmem:[%s4597] sm:$0xf]
      %v4599 = vld [vmem:[%s4597 + $0x4] sm:$0xf]
      %v4600 = vld [vmem:[%s4597 + $0x8] sm:$0xf]
      %v4601 = vld [vmem:[%s4597 + $0xc] sm:$0xf]
      %v4606 = vunpack.c.l.b16 %v4598
      %v4607 = vunpack.c.l.b16 %v4599
      %v4608 = vunpack.c.l.b16 %v4600
      %v4609 = vunpack.c.l.b16 %v4601
      %v4610 = vpack.c.b16 %v4607, %v4606
      %v4611 = vpack.c.b16 %v4609, %v4608
      %v4615 = vsel %vm1265, %v4595, 0
      %v4618 = vsel %vm1265, %v4596, 0
      %4620 = vmatpush.bf16.msra.mxu0 0
      %4621 = vmatpush.bf16.msra.mxu0 0
      %4622 = vmatpush.bf16.msra.mxu0 0
      %4623 = vmatpush.bf16.msra.mxu0 0
      %4624 = vmatpush.bf16.msra.mxu0 0
      %4625 = vmatpush.bf16.msra.mxu0 0
      %4626 = vmatpush.bf16.msra.mxu0 %v4611
      %4627 = vmatpush.bf16.msra.mxu0 %v4610
      %4628 = vmatmul.bf16.gmra.mxu0 %v3347
      %v4629 = vpop.f32.mrf.mxu0
      %v4630 = vadd.f32 0.0, %v4629
      %v4631 = vpop.f32.mrf.mxu0
      %v4632 = vadd.f32 0.0, %v4631
      %4633 = vmatmul.bf16.gmra.mxu0 %v3350
      %v4634 = vpop.f32.mrf.mxu0
      %v4635 = vadd.f32 0.0, %v4634
      %v4636 = vpop.f32.mrf.mxu0
      %v4637 = vadd.f32 0.0, %v4636
      %4638 = vmatmul.bf16.gmra.mxu0 %v3353
      %v4639 = vpop.f32.mrf.mxu0
      %v4640 = vadd.f32 0.0, %v4639
      %v4641 = vpop.f32.mrf.mxu0
      %v4642 = vadd.f32 0.0, %v4641
      %4643 = vmatmul.bf16.gmra.mxu0 %v3356
      %v4644 = vpop.f32.mrf.mxu0
      %v4645 = vadd.f32 0.0, %v4644
      %v4646 = vpop.f32.mrf.mxu0
      %v4647 = vadd.f32 0.0, %v4646
      %4648 = vmatmul.bf16.gmra.mxu0 %v3359
      %v4649 = vpop.f32.mrf.mxu0
      %v4650 = vadd.f32 0.0, %v4649
      %v4651 = vpop.f32.mrf.mxu0
      %v4652 = vadd.f32 0.0, %v4651
      %4653 = vmatmul.bf16.gmra.mxu0 %v3362
      %v4654 = vpop.f32.mrf.mxu0
      %v4655 = vadd.f32 0.0, %v4654
      %v4656 = vpop.f32.mrf.mxu0
      %v4657 = vadd.f32 0.0, %v4656
      %4658 = vmatmul.bf16.gmra.mxu0 %v3365
      %v4659 = vpop.f32.mrf.mxu0
      %v4660 = vadd.f32 0.0, %v4659
      %v4661 = vpop.f32.mrf.mxu0
      %v4662 = vadd.f32 0.0, %v4661
      %4663 = vmatmul.bf16.gmra.mxu0 %v3368
      %v4664 = vpop.f32.mrf.mxu0
      %v4665 = vadd.f32 0.0, %v4664
      %v4666 = vpop.f32.mrf.mxu0
      %v4667 = vadd.f32 0.0, %v4666
      %4668 = vmatmul.bf16.gmra.mxu0 %v3371
      %v4669 = vpop.f32.mrf.mxu0
      %v4670 = vadd.f32 0.0, %v4669
      %v4671 = vpop.f32.mrf.mxu0
      %v4672 = vadd.f32 0.0, %v4671
      %4673 = vmatmul.bf16.gmra.mxu0 %v3374
      %v4674 = vpop.f32.mrf.mxu0
      %v4675 = vadd.f32 0.0, %v4674
      %v4676 = vpop.f32.mrf.mxu0
      %v4677 = vadd.f32 0.0, %v4676
      %4678 = vmatmul.bf16.gmra.mxu0 %v3377
      %v4679 = vpop.f32.mrf.mxu0
      %v4680 = vadd.f32 0.0, %v4679
      %v4681 = vpop.f32.mrf.mxu0
      %v4682 = vadd.f32 0.0, %v4681
      %4683 = vmatmul.bf16.gmra.mxu0 %v3380
      %v4684 = vpop.f32.mrf.mxu0
      %v4685 = vadd.f32 0.0, %v4684
      %v4686 = vpop.f32.mrf.mxu0
      %v4687 = vadd.f32 0.0, %v4686
      %4688 = vmatmul.bf16.gmra.mxu0 %v3383
      %v4689 = vpop.f32.mrf.mxu0
      %v4690 = vadd.f32 0.0, %v4689
      %v4691 = vpop.f32.mrf.mxu0
      %v4692 = vadd.f32 0.0, %v4691
      %4693 = vmatmul.bf16.gmra.mxu0 %v3386
      %v4694 = vpop.f32.mrf.mxu0
      %v4695 = vadd.f32 0.0, %v4694
      %v4696 = vpop.f32.mrf.mxu0
      %v4697 = vadd.f32 0.0, %v4696
      %4698 = vmatmul.bf16.gmra.mxu0 %v4615
      %v4699 = vpop.f32.mrf.mxu0
      %v4700 = vadd.f32 0.0, %v4699
      %v4701 = vpop.f32.mrf.mxu0
      %v4702 = vadd.f32 0.0, %v4701
      %4703 = vmatmul.bf16.gmra.mxu0 %v4618
      %v4704 = vpop.f32.mrf.mxu0
      %v4705 = vadd.f32 0.0, %v4704
      %v4706 = vpop.f32.mrf.mxu0
      %v4707 = vadd.f32 0.0, %v4706
      %4708 = vdwg.mxu0
      %v4709 = vadd.f32 %v4555, %v4630
      %v4710 = vadd.f32 %v4556, %v4632
      %v4711 = vadd.f32 %v4557, %v4635
      %v4712 = vadd.f32 %v4558, %v4637
      %v4713 = vadd.f32 %v4559, %v4640
      %v4714 = vadd.f32 %v4560, %v4642
      %v4715 = vadd.f32 %v4561, %v4645
      %v4716 = vadd.f32 %v4562, %v4647
      %v4717 = vadd.f32 %v4563, %v4650
      %v4718 = vadd.f32 %v4564, %v4652
      %v4719 = vadd.f32 %v4565, %v4655
      %v4720 = vadd.f32 %v4566, %v4657
      %v4721 = vadd.f32 %v4567, %v4660
      %v4722 = vadd.f32 %v4568, %v4662
      %v4723 = vadd.f32 %v4569, %v4665
      %v4724 = vadd.f32 %v4570, %v4667
      %v4725 = vadd.f32 %v4571, %v4670
      %v4726 = vadd.f32 %v4572, %v4672
      %v4727 = vadd.f32 %v4573, %v4675
      %v4728 = vadd.f32 %v4574, %v4677
      %v4729 = vadd.f32 %v4575, %v4680
      %v4730 = vadd.f32 %v4576, %v4682
      %v4731 = vadd.f32 %v4577, %v4685
      %v4732 = vadd.f32 %v4578, %v4687
      %v4733 = vadd.f32 %v4579, %v4690
      %v4734 = vadd.f32 %v4580, %v4692
      %v4735 = vadd.f32 %v4581, %v4695
      %v4736 = vadd.f32 %v4582, %v4697
      %v4737 = vadd.f32 %v4583, %v4700
      %v4738 = vadd.f32 %v4584, %v4702
      %v4739 = vadd.f32 %v4585, %v4705
      %v4740 = vadd.f32 %v4586, %v4707
      %v4742 = vperm.slane %v1446, 0
      %v4744 = vadd.f32 %v4709, %v4742
      %v4745 = vadd.f32 %v4710, %v4742
      %v4746 = vadd.f32 %v4711, %v4742
      %v4747 = vadd.f32 %v4712, %v4742
      %v4748 = vadd.f32 %v4713, %v4742
      %v4749 = vadd.f32 %v4714, %v4742
      %v4750 = vadd.f32 %v4715, %v4742
      %v4751 = vadd.f32 %v4716, %v4742
      %v4752 = vadd.f32 %v4717, %v4742
      %v4753 = vadd.f32 %v4718, %v4742
      %v4754 = vadd.f32 %v4719, %v4742
      %v4755 = vadd.f32 %v4720, %v4742
      %v4756 = vadd.f32 %v4721, %v4742
      %v4757 = vadd.f32 %v4722, %v4742
      %v4758 = vadd.f32 %v4723, %v4742
      %v4759 = vadd.f32 %v4724, %v4742
      %v4760 = vadd.f32 %v4725, %v4742
      %v4761 = vadd.f32 %v4726, %v4742
      %v4762 = vadd.f32 %v4727, %v4742
      %v4763 = vadd.f32 %v4728, %v4742
      %v4764 = vadd.f32 %v4729, %v4742
      %v4765 = vadd.f32 %v4730, %v4742
      %v4766 = vadd.f32 %v4731, %v4742
      %v4767 = vadd.f32 %v4732, %v4742
      %v4768 = vadd.f32 %v4733, %v4742
      %v4769 = vadd.f32 %v4734, %v4742
      %v4770 = vadd.f32 %v4735, %v4742
      %v4771 = vadd.f32 %v4736, %v4742
      %v4772 = vadd.f32 %v4737, %v4742
      %v4773 = vadd.f32 %v4738, %v4742
      %v4774 = vadd.f32 %v4739, %v4742
      %v4775 = vadd.f32 %v4740, %v4742
      %v4776 = vmax.f32 %v4744, 0.0
      %v4777 = vmax.f32 %v4745, 0.0
      %v4778 = vmax.f32 %v4746, 0.0
      %v4779 = vmax.f32 %v4747, 0.0
      %v4780 = vmax.f32 %v4748, 0.0
      %v4781 = vmax.f32 %v4749, 0.0
      %v4782 = vmax.f32 %v4750, 0.0
      %v4783 = vmax.f32 %v4751, 0.0
      %v4784 = vmax.f32 %v4752, 0.0
      %v4785 = vmax.f32 %v4753, 0.0
      %v4786 = vmax.f32 %v4754, 0.0
      %v4787 = vmax.f32 %v4755, 0.0
      %v4788 = vmax.f32 %v4756, 0.0
      %v4789 = vmax.f32 %v4757, 0.0
      %v4790 = vmax.f32 %v4758, 0.0
      %v4791 = vmax.f32 %v4759, 0.0
      %v4792 = vmax.f32 %v4760, 0.0
      %v4793 = vmax.f32 %v4761, 0.0
      %v4794 = vmax.f32 %v4762, 0.0
      %v4795 = vmax.f32 %v4763, 0.0
      %v4796 = vmax.f32 %v4764, 0.0
      %v4797 = vmax.f32 %v4765, 0.0
      %v4798 = vmax.f32 %v4766, 0.0
      %v4799 = vmax.f32 %v4767, 0.0
      %v4800 = vmax.f32 %v4768, 0.0
      %v4801 = vmax.f32 %v4769, 0.0
      %v4802 = vmax.f32 %v4770, 0.0
      %v4803 = vmax.f32 %v4771, 0.0
      %v4804 = vmax.f32 %v4772, 0.0
      %v4805 = vmax.f32 %v4773, 0.0
      %v4806 = vmax.f32 %v4774, 0.0
      %v4807 = vmax.f32 %v4775, 0.0
      %vm4808 = vcmask 523264
      %4809 = vst.msk [vmem:[#allocation3] sm:$0xff] %vm4808, 0.0
      %4810 = vst.msk [vmem:[#allocation3 + $0x8] sm:$0xff] %vm4808, 0.0
      %4811 = vst.msk [vmem:[#allocation3 + $0x10] sm:$0xff] %vm4808, 0.0
      %4812 = vst.msk [vmem:[#allocation3 + $0x18] sm:$0xff] %vm4808, 0.0
      %vm4813 = vcmask 517120
      %4814 = vst.msk [vmem:[#allocation3 + $0x20] sm:$0x3] %vm4813, 0.0
      %4815 = vst.msk [vmem:[#allocation3 + $0x132] sm:$0xff] %vm4808, 0.0
      %4816 = vst.msk [vmem:[#allocation3 + $0x13a] sm:$0xff] %vm4808, 0.0
      %4817 = vst.msk [vmem:[#allocation3 + $0x142] sm:$0xff] %vm4808, 0.0
      %4818 = vst.msk [vmem:[#allocation3 + $0x14a] sm:$0xff] %vm4808, 0.0
      %4819 = vst.msk [vmem:[#allocation3 + $0x152] sm:$0x3] %vm4813, 0.0
      %vm4820 = vcmask 516096
      %4821 = vst.msk [vmem:[#allocation3 + $0x22] sm:$0x1] %vm4820, 0.0
      %4822 = vst.msk [vmem:[#allocation3 + $0x23] sm:$0xff] %vm4808, %v4776
      %4823 = vst.msk [vmem:[#allocation3 + $0x2b] sm:$0xff] %vm4808, %v4777
      %4824 = vst.msk [vmem:[#allocation3 + $0x33] sm:$0xff] %vm4808, %v4778
      %4825 = vst.msk [vmem:[#allocation3 + $0x3b] sm:$0xff] %vm4808, %v4779
      %4826 = vst.msk [vmem:[#allocation3 + $0x43] sm:$0x1] %vm4820, 0.0
      %4827 = vst.msk [vmem:[#allocation3 + $0x44] sm:$0x1] %vm4820, 0.0
      %4828 = vst.msk [vmem:[#allocation3 + $0x45] sm:$0xff] %vm4808, %v4780
      %4829 = vst.msk [vmem:[#allocation3 + $0x4d] sm:$0xff] %vm4808, %v4781
      %4830 = vst.msk [vmem:[#allocation3 + $0x55] sm:$0xff] %vm4808, %v4782
      %4831 = vst.msk [vmem:[#allocation3 + $0x5d] sm:$0xff] %vm4808, %v4783
      %4832 = vst.msk [vmem:[#allocation3 + $0x65] sm:$0x1] %vm4820, 0.0
      %4833 = vst.msk [vmem:[#allocation3 + $0x66] sm:$0x1] %vm4820, 0.0
      %4834 = vst.msk [vmem:[#allocation3 + $0x67] sm:$0xff] %vm4808, %v4784
      %4835 = vst.msk [vmem:[#allocation3 + $0x6f] sm:$0xff] %vm4808, %v4785
      %4836 = vst.msk [vmem:[#allocation3 + $0x77] sm:$0xff] %vm4808, %v4786
      %4837 = vst.msk [vmem:[#allocation3 + $0x7f] sm:$0xff] %vm4808, %v4787
      %4838 = vst.msk [vmem:[#allocation3 + $0x87] sm:$0x1] %vm4820, 0.0
      %4839 = vst.msk [vmem:[#allocation3 + $0x88] sm:$0x1] %vm4820, 0.0
      %4840 = vst.msk [vmem:[#allocation3 + $0x89] sm:$0xff] %vm4808, %v4788
      %4841 = vst.msk [vmem:[#allocation3 + $0x91] sm:$0xff] %vm4808, %v4789
      %4842 = vst.msk [vmem:[#allocation3 + $0x99] sm:$0xff] %vm4808, %v4790
      %4843 = vst.msk [vmem:[#allocation3 + $0xa1] sm:$0xff] %vm4808, %v4791
      %4844 = vst.msk [vmem:[#allocation3 + $0xa9] sm:$0x1] %vm4820, 0.0
      %4845 = vst.msk [vmem:[#allocation3 + $0xaa] sm:$0x1] %vm4820, 0.0
      %4846 = vst.msk [vmem:[#allocation3 + $0xab] sm:$0xff] %vm4808, %v4792
      %4847 = vst.msk [vmem:[#allocation3 + $0xb3] sm:$0xff] %vm4808, %v4793
      %4848 = vst.msk [vmem:[#allocation3 + $0xbb] sm:$0xff] %vm4808, %v4794
      %4849 = vst.msk [vmem:[#allocation3 + $0xc3] sm:$0xff] %vm4808, %v4795
      %4850 = vst.msk [vmem:[#allocation3 + $0xcb] sm:$0x1] %vm4820, 0.0
      %4851 = vst.msk [vmem:[#allocation3 + $0xcc] sm:$0x1] %vm4820, 0.0
      %4852 = vst.msk [vmem:[#allocation3 + $0xcd] sm:$0xff] %vm4808, %v4796
      %4853 = vst.msk [vmem:[#allocation3 + $0xd5] sm:$0xff] %vm4808, %v4797
      %4854 = vst.msk [vmem:[#allocation3 + $0xdd] sm:$0xff] %vm4808, %v4798
      %4855 = vst.msk [vmem:[#allocation3 + $0xe5] sm:$0xff] %vm4808, %v4799
      %4856 = vst.msk [vmem:[#allocation3 + $0xed] sm:$0x1] %vm4820, 0.0
      %4857 = vst.msk [vmem:[#allocation3 + $0xee] sm:$0x1] %vm4820, 0.0
      %4858 = vst.msk [vmem:[#allocation3 + $0xef] sm:$0xff] %vm4808, %v4800
      %4859 = vst.msk [vmem:[#allocation3 + $0xf7] sm:$0xff] %vm4808, %v4801
      %4860 = vst.msk [vmem:[#allocation3 + $0xff] sm:$0xff] %vm4808, %v4802
      %4861 = vst.msk [vmem:[#allocation3 + $0x107] sm:$0xff] %vm4808, %v4803
      %4862 = vst.msk [vmem:[#allocation3 + $0x10f] sm:$0x1] %vm4820, 0.0
      %4863 = vst.msk [vmem:[#allocation3 + $0x110] sm:$0x1] %vm4820, 0.0
      %4864 = vst.msk [vmem:[#allocation3 + $0x111] sm:$0xff] %vm4808, %v4804
      %4865 = vst.msk [vmem:[#allocation3 + $0x119] sm:$0xff] %vm4808, %v4805
      %4866 = vst.msk [vmem:[#allocation3 + $0x121] sm:$0xff] %vm4808, %v4806
      %4867 = vst.msk [vmem:[#allocation3 + $0x129] sm:$0xff] %vm4808, %v4807
      %4868 = vst.msk [vmem:[#allocation3 + $0x131] sm:$0x1] %vm4820, 0.0
      %v4869 = vld [vmem:[%s6] sm:$0x1]
      %v4870 = vld [vmem:[#allocation3] ss:$2 sm:$0xff]
      %s4871 = scalar_lea.vmem [#allocation3], 16
      %v4872 = vld [vmem:[%s4871] ss:$2 sm:$0xff]
      %s4873 = scalar_lea.vmem [#allocation3], 68
      %v4874 = vld [vmem:[%s4873] ss:$2 sm:$0xff]
      %s4875 = scalar_lea.vmem [#allocation3], 84
      %v4876 = vld [vmem:[%s4875] ss:$2 sm:$0xff]
      %s4877 = scalar_lea.vmem [#allocation3], 136
      %v4878 = vld [vmem:[%s4877] ss:$2 sm:$0xff]
      %s4879 = scalar_lea.vmem [#allocation3], 152
      %v4880 = vld [vmem:[%s4879] ss:$2 sm:$0xff]
      %s4881 = scalar_lea.vmem [#allocation3], 204
      %v4882 = vld [vmem:[%s4881] ss:$2 sm:$0xff]
      %s4883 = scalar_lea.vmem [#allocation3], 220
      %v4884 = vld [vmem:[%s4883] ss:$2 sm:$0xff]
      %v4885 = vpack.c.bf16 %v4872, %v4870
      %v4886 = vpack.c.bf16 %v4876, %v4874
      %v4887 = vpack.c.bf16 %v4880, %v4878
      %v4888 = vpack.c.bf16 %v4884, %v4882
      %v4889 = vld [vmem:[%s5] sm:$0xf]
      %v4890 = vld [vmem:[%s5 + $0x4] sm:$0xf]
      %v4891 = vld [vmem:[%s5 + $0x8] sm:$0xf]
      %v4892 = vld [vmem:[%s5 + $0xc] sm:$0xf]
      %v4893 = vld [vmem:[%s5 + $0x10] sm:$0xf]
      %v4894 = vld [vmem:[%s5 + $0x14] sm:$0xf]
      %v4895 = vld [vmem:[%s5 + $0x18] sm:$0xf]
      %v4896 = vld [vmem:[%s5 + $0x1c] sm:$0xf]
      %s4897 = scalar_lea.vmem [#allocation3], 1
      %v4898 = vld [vmem:[%s4897] ss:$2 sm:$0xff]
      %s4899 = scalar_lea.vmem [#allocation3], 17
      %v4900 = vld [vmem:[%s4899] ss:$2 sm:$0xff]
      %s4901 = scalar_lea.vmem [#allocation3], 69
      %v4902 = vld [vmem:[%s4901] ss:$2 sm:$0xff]
      %s4903 = scalar_lea.vmem [#allocation3], 85
      %v4904 = vld [vmem:[%s4903] ss:$2 sm:$0xff]
      %s4905 = scalar_lea.vmem [#allocation3], 137
      %v4906 = vld [vmem:[%s4905] ss:$2 sm:$0xff]
      %s4907 = scalar_lea.vmem [#allocation3], 153
      %v4908 = vld [vmem:[%s4907] ss:$2 sm:$0xff]
      %s4909 = scalar_lea.vmem [#allocation3], 205
      %v4910 = vld [vmem:[%s4909] ss:$2 sm:$0xff]
      %s4911 = scalar_lea.vmem [#allocation3], 221
      %v4912 = vld [vmem:[%s4911] ss:$2 sm:$0xff]
      %v4913 = vpack.c.bf16 %v4900, %v4898
      %v4914 = vpack.c.bf16 %v4904, %v4902
      %v4915 = vpack.c.bf16 %v4908, %v4906
      %v4916 = vpack.c.bf16 %v4912, %v4910
      %s4917 = scalar_lea.vmem %s5, 32
      %v4918 = vld [vmem:[%s4917] sm:$0xf]
      %v4919 = vld [vmem:[%s4917 + $0x4] sm:$0xf]
      %v4920 = vld [vmem:[%s4917 + $0x8] sm:$0xf]
      %v4921 = vld [vmem:[%s4917 + $0xc] sm:$0xf]
      %v4922 = vld [vmem:[%s4917 + $0x10] sm:$0xf]
      %v4923 = vld [vmem:[%s4917 + $0x14] sm:$0xf]
      %v4924 = vld [vmem:[%s4917 + $0x18] sm:$0xf]
      %v4925 = vld [vmem:[%s4917 + $0x1c] sm:$0xf]
      %v4934 = vunpack.c.l.b16 %v4918
      %v4935 = vunpack.c.l.b16 %v4919
      %v4936 = vunpack.c.l.b16 %v4920
      %v4937 = vunpack.c.l.b16 %v4921
      %v4938 = vunpack.c.l.b16 %v4922
      %v4939 = vunpack.c.l.b16 %v4923
      %v4940 = vunpack.c.l.b16 %v4924
      %v4941 = vunpack.c.l.b16 %v4925
      %v4942 = vpack.c.b16 %v4935, %v4934
      %v4943 = vpack.c.b16 %v4937, %v4936
      %v4944 = vpack.c.b16 %v4939, %v4938
      %v4945 = vpack.c.b16 %v4941, %v4940
      %v4951 = vsel %vm4808, %v4913, 0
      %v4954 = vsel %vm4808, %v4914, 0
      %v4957 = vsel %vm4808, %v4915, 0
      %v4960 = vsel %vm4808, %v4916, 0
      %4962 = vmatpush.bf16.msra.mxu0 0
      %4963 = vmatpush.bf16.msra.mxu0 0
      %4964 = vmatpush.bf16.msra.mxu0 0
      %4965 = vmatpush.bf16.msra.mxu0 0
      %4966 = vmatpush.bf16.msra.mxu0 %v4945
      %4967 = vmatpush.bf16.msra.mxu0 %v4944
      %4968 = vmatpush.bf16.msra.mxu0 %v4943
      %4969 = vmatpush.bf16.msra.mxu0 %v4942
      %4970 = vmatmul.bf16.gmra.mxu0 %v4951
      %v4971 = vpop.f32.mrf.mxu0
      %v4972 = vadd.f32 0.0, %v4971
      %v4973 = vpop.f32.mrf.mxu0
      %v4974 = vadd.f32 0.0, %v4973
      %4975 = vmatmul.bf16.gmra.mxu0 %v4954
      %v4976 = vpop.f32.mrf.mxu0
      %v4977 = vadd.f32 0.0, %v4976
      %v4978 = vpop.f32.mrf.mxu0
      %v4979 = vadd.f32 0.0, %v4978
      %4980 = vmatmul.bf16.gmra.mxu0 %v4957
      %v4981 = vpop.f32.mrf.mxu0
      %v4982 = vadd.f32 0.0, %v4981
      %v4983 = vpop.f32.mrf.mxu0
      %v4984 = vadd.f32 0.0, %v4983
      %4985 = vmatmul.bf16.gmra.mxu0 %v4960
      %v4986 = vpop.f32.mrf.mxu0
      %v4987 = vadd.f32 0.0, %v4986
      %v4988 = vpop.f32.mrf.mxu0
      %v4989 = vadd.f32 0.0, %v4988
      %4990 = vdwg.mxu0
      %v4999 = vunpack.c.l.b16 %v4889
      %v5000 = vunpack.c.l.b16 %v4890
      %v5001 = vunpack.c.l.b16 %v4891
      %v5002 = vunpack.c.l.b16 %v4892
      %v5003 = vunpack.c.l.b16 %v4893
      %v5004 = vunpack.c.l.b16 %v4894
      %v5005 = vunpack.c.l.b16 %v4895
      %v5006 = vunpack.c.l.b16 %v4896
      %v5007 = vpack.c.b16 %v5000, %v4999
      %v5008 = vpack.c.b16 %v5002, %v5001
      %v5009 = vpack.c.b16 %v5004, %v5003
      %v5010 = vpack.c.b16 %v5006, %v5005
      %v5016 = vsel %vm4808, %v4885, 0
      %v5019 = vsel %vm4808, %v4886, 0
      %v5022 = vsel %vm4808, %v4887, 0
      %v5025 = vsel %vm4808, %v4888, 0
      %5027 = vmatpush.bf16.msra.mxu0 0
      %5028 = vmatpush.bf16.msra.mxu0 0
      %5029 = vmatpush.bf16.msra.mxu0 0
      %5030 = vmatpush.bf16.msra.mxu0 0
      %5031 = vmatpush.bf16.msra.mxu0 %v5010
      %5032 = vmatpush.bf16.msra.mxu0 %v5009
      %5033 = vmatpush.bf16.msra.mxu0 %v5008
      %5034 = vmatpush.bf16.msra.mxu0 %v5007
      %5035 = vmatmul.bf16.gmra.mxu0 %v5016
      %v5036 = vpop.f32.mrf.mxu0
      %v5037 = vadd.f32 %v4972, %v5036
      %v5038 = vpop.f32.mrf.mxu0
      %v5039 = vadd.f32 %v4974, %v5038
      %5040 = vmatmul.bf16.gmra.mxu0 %v5019
      %v5041 = vpop.f32.mrf.mxu0
      %v5042 = vadd.f32 %v4977, %v5041
      %v5043 = vpop.f32.mrf.mxu0
      %v5044 = vadd.f32 %v4979, %v5043
      %5045 = vmatmul.bf16.gmra.mxu0 %v5022
      %v5046 = vpop.f32.mrf.mxu0
      %v5047 = vadd.f32 %v4982, %v5046
      %v5048 = vpop.f32.mrf.mxu0
      %v5049 = vadd.f32 %v4984, %v5048
      %5050 = vmatmul.bf16.gmra.mxu0 %v5025
      %v5051 = vpop.f32.mrf.mxu0
      %v5052 = vadd.f32 %v4987, %v5051
      %v5053 = vpop.f32.mrf.mxu0
      %v5054 = vadd.f32 %v4989, %v5053
      %5055 = vdwg.mxu0
      %s5056 = scalar_lea.vmem [#allocation3], 2
      %v5057 = vld [vmem:[%s5056] ss:$2 sm:$0xff]
      %s5058 = scalar_lea.vmem [#allocation3], 18
      %v5059 = vld [vmem:[%s5058] ss:$2 sm:$0xff]
      %s5060 = scalar_lea.vmem [#allocation3], 70
      %v5061 = vld [vmem:[%s5060] ss:$2 sm:$0xff]
      %s5062 = scalar_lea.vmem [#allocation3], 86
      %v5063 = vld [vmem:[%s5062] ss:$2 sm:$0xff]
      %s5064 = scalar_lea.vmem [#allocation3], 138
      %v5065 = vld [vmem:[%s5064] ss:$2 sm:$0xff]
      %s5066 = scalar_lea.vmem [#allocation3], 154
      %v5067 = vld [vmem:[%s5066] ss:$2 sm:$0xff]
      %s5068 = scalar_lea.vmem [#allocation3], 206
      %v5069 = vld [vmem:[%s5068] ss:$2 sm:$0xff]
      %s5070 = scalar_lea.vmem [#allocation3], 222
      %v5071 = vld [vmem:[%s5070] ss:$2 sm:$0xff]
      %v5072 = vpack.c.bf16 %v5059, %v5057
      %v5073 = vpack.c.bf16 %v5063, %v5061
      %v5074 = vpack.c.bf16 %v5067, %v5065
      %v5075 = vpack.c.bf16 %v5071, %v5069
      %s5076 = scalar_lea.vmem %s5, 64
      %v5077 = vld [vmem:[%s5076] sm:$0xf]
      %v5078 = vld [vmem:[%s5076 + $0x4] sm:$0xf]
      %v5079 = vld [vmem:[%s5076 + $0x8] sm:$0xf]
      %v5080 = vld [vmem:[%s5076 + $0xc] sm:$0xf]
      %v5081 = vld [vmem:[%s5076 + $0x10] sm:$0xf]
      %v5082 = vld [vmem:[%s5076 + $0x14] sm:$0xf]
      %v5083 = vld [vmem:[%s5076 + $0x18] sm:$0xf]
      %v5084 = vld [vmem:[%s5076 + $0x1c] sm:$0xf]
      %v5093 = vunpack.c.l.b16 %v5077
      %v5094 = vunpack.c.l.b16 %v5078
      %v5095 = vunpack.c.l.b16 %v5079
      %v5096 = vunpack.c.l.b16 %v5080
      %v5097 = vunpack.c.l.b16 %v5081
      %v5098 = vunpack.c.l.b16 %v5082
      %v5099 = vunpack.c.l.b16 %v5083
      %v5100 = vunpack.c.l.b16 %v5084
      %v5101 = vpack.c.b16 %v5094, %v5093
      %v5102 = vpack.c.b16 %v5096, %v5095
      %v5103 = vpack.c.b16 %v5098, %v5097
      %v5104 = vpack.c.b16 %v5100, %v5099
      %v5110 = vsel %vm4808, %v5072, 0
      %v5113 = vsel %vm4808, %v5073, 0
      %v5116 = vsel %vm4808, %v5074, 0
      %v5119 = vsel %vm4808, %v5075, 0
      %5121 = vmatpush.bf16.msra.mxu0 0
      %5122 = vmatpush.bf16.msra.mxu0 0
      %5123 = vmatpush.bf16.msra.mxu0 0
      %5124 = vmatpush.bf16.msra.mxu0 0
      %5125 = vmatpush.bf16.msra.mxu0 %v5104
      %5126 = vmatpush.bf16.msra.mxu0 %v5103
      %5127 = vmatpush.bf16.msra.mxu0 %v5102
      %5128 = vmatpush.bf16.msra.mxu0 %v5101
      %5129 = vmatmul.bf16.gmra.mxu0 %v5110
      %v5130 = vpop.f32.mrf.mxu0
      %v5131 = vadd.f32 0.0, %v5130
      %v5132 = vpop.f32.mrf.mxu0
      %v5133 = vadd.f32 0.0, %v5132
      %5134 = vmatmul.bf16.gmra.mxu0 %v5113
      %v5135 = vpop.f32.mrf.mxu0
      %v5136 = vadd.f32 0.0, %v5135
      %v5137 = vpop.f32.mrf.mxu0
      %v5138 = vadd.f32 0.0, %v5137
      %5139 = vmatmul.bf16.gmra.mxu0 %v5116
      %v5140 = vpop.f32.mrf.mxu0
      %v5141 = vadd.f32 0.0, %v5140
      %v5142 = vpop.f32.mrf.mxu0
      %v5143 = vadd.f32 0.0, %v5142
      %5144 = vmatmul.bf16.gmra.mxu0 %v5119
      %v5145 = vpop.f32.mrf.mxu0
      %v5146 = vadd.f32 0.0, %v5145
      %v5147 = vpop.f32.mrf.mxu0
      %v5148 = vadd.f32 0.0, %v5147
      %5149 = vdwg.mxu0
      %v5150 = vadd.f32 %v5037, %v5131
      %v5151 = vadd.f32 %v5039, %v5133
      %v5152 = vadd.f32 %v5042, %v5136
      %v5153 = vadd.f32 %v5044, %v5138
      %v5154 = vadd.f32 %v5047, %v5141
      %v5155 = vadd.f32 %v5049, %v5143
      %v5156 = vadd.f32 %v5052, %v5146
      %v5157 = vadd.f32 %v5054, %v5148
      %s5158 = scalar_lea.vmem [#allocation3], 3
      %v5159 = vld [vmem:[%s5158] ss:$2 sm:$0xff]
      %s5160 = scalar_lea.vmem [#allocation3], 19
      %v5161 = vld [vmem:[%s5160] ss:$2 sm:$0xff]
      %s5162 = scalar_lea.vmem [#allocation3], 71
      %v5163 = vld [vmem:[%s5162] ss:$2 sm:$0xff]
      %s5164 = scalar_lea.vmem [#allocation3], 87
      %v5165 = vld [vmem:[%s5164] ss:$2 sm:$0xff]
      %s5166 = scalar_lea.vmem [#allocation3], 139
      %v5167 = vld [vmem:[%s5166] ss:$2 sm:$0xff]
      %s5168 = scalar_lea.vmem [#allocation3], 155
      %v5169 = vld [vmem:[%s5168] ss:$2 sm:$0xff]
      %s5170 = scalar_lea.vmem [#allocation3], 207
      %v5171 = vld [vmem:[%s5170] ss:$2 sm:$0xff]
      %s5172 = scalar_lea.vmem [#allocation3], 223
      %v5173 = vld [vmem:[%s5172] ss:$2 sm:$0xff]
      %v5174 = vpack.c.bf16 %v5161, %v5159
      %v5175 = vpack.c.bf16 %v5165, %v5163
      %v5176 = vpack.c.bf16 %v5169, %v5167
      %v5177 = vpack.c.bf16 %v5173, %v5171
      %s5178 = scalar_lea.vmem %s5, 96
      %v5179 = vld [vmem:[%s5178] sm:$0xf]
      %v5180 = vld [vmem:[%s5178 + $0x4] sm:$0xf]
      %v5181 = vld [vmem:[%s5178 + $0x8] sm:$0xf]
      %v5182 = vld [vmem:[%s5178 + $0xc] sm:$0xf]
      %v5183 = vld [vmem:[%s5178 + $0x10] sm:$0xf]
      %v5184 = vld [vmem:[%s5178 + $0x14] sm:$0xf]
      %v5185 = vld [vmem:[%s5178 + $0x18] sm:$0xf]
      %v5186 = vld [vmem:[%s5178 + $0x1c] sm:$0xf]
      %v5195 = vunpack.c.l.b16 %v5179
      %v5196 = vunpack.c.l.b16 %v5180
      %v5197 = vunpack.c.l.b16 %v5181
      %v5198 = vunpack.c.l.b16 %v5182
      %v5199 = vunpack.c.l.b16 %v5183
      %v5200 = vunpack.c.l.b16 %v5184
      %v5201 = vunpack.c.l.b16 %v5185
      %v5202 = vunpack.c.l.b16 %v5186
      %v5203 = vpack.c.b16 %v5196, %v5195
      %v5204 = vpack.c.b16 %v5198, %v5197
      %v5205 = vpack.c.b16 %v5200, %v5199
      %v5206 = vpack.c.b16 %v5202, %v5201
      %v5212 = vsel %vm4808, %v5174, 0
      %v5215 = vsel %vm4808, %v5175, 0
      %v5218 = vsel %vm4808, %v5176, 0
      %v5221 = vsel %vm4808, %v5177, 0
      %5223 = vmatpush.bf16.msra.mxu0 0
      %5224 = vmatpush.bf16.msra.mxu0 0
      %5225 = vmatpush.bf16.msra.mxu0 0
      %5226 = vmatpush.bf16.msra.mxu0 0
      %5227 = vmatpush.bf16.msra.mxu0 %v5206
      %5228 = vmatpush.bf16.msra.mxu0 %v5205
      %5229 = vmatpush.bf16.msra.mxu0 %v5204
      %5230 = vmatpush.bf16.msra.mxu0 %v5203
      %5231 = vmatmul.bf16.gmra.mxu0 %v5212
      %v5232 = vpop.f32.mrf.mxu0
      %v5233 = vadd.f32 0.0, %v5232
      %v5234 = vpop.f32.mrf.mxu0
      %v5235 = vadd.f32 0.0, %v5234
      %5236 = vmatmul.bf16.gmra.mxu0 %v5215
      %v5237 = vpop.f32.mrf.mxu0
      %v5238 = vadd.f32 0.0, %v5237
      %v5239 = vpop.f32.mrf.mxu0
      %v5240 = vadd.f32 0.0, %v5239
      %5241 = vmatmul.bf16.gmra.mxu0 %v5218
      %v5242 = vpop.f32.mrf.mxu0
      %v5243 = vadd.f32 0.0, %v5242
      %v5244 = vpop.f32.mrf.mxu0
      %v5245 = vadd.f32 0.0, %v5244
      %5246 = vmatmul.bf16.gmra.mxu0 %v5221
      %v5247 = vpop.f32.mrf.mxu0
      %v5248 = vadd.f32 0.0, %v5247
      %v5249 = vpop.f32.mrf.mxu0
      %v5250 = vadd.f32 0.0, %v5249
      %5251 = vdwg.mxu0
      %v5252 = vadd.f32 %v5150, %v5233
      %v5253 = vadd.f32 %v5151, %v5235
      %v5254 = vadd.f32 %v5152, %v5238
      %v5255 = vadd.f32 %v5153, %v5240
      %v5256 = vadd.f32 %v5154, %v5243
      %v5257 = vadd.f32 %v5155, %v5245
      %v5258 = vadd.f32 %v5156, %v5248
      %v5259 = vadd.f32 %v5157, %v5250
      %s5260 = scalar_lea.vmem [#allocation3], 34
      %v5261 = vld [vmem:[%s5260] ss:$2 sm:$0xff]
      %s5262 = scalar_lea.vmem [#allocation3], 50
      %v5263 = vld [vmem:[%s5262] ss:$2 sm:$0xff]
      %s5264 = scalar_lea.vmem [#allocation3], 102
      %v5265 = vld [vmem:[%s5264] ss:$2 sm:$0xff]
      %s5266 = scalar_lea.vmem [#allocation3], 118
      %v5267 = vld [vmem:[%s5266] ss:$2 sm:$0xff]
      %s5268 = scalar_lea.vmem [#allocation3], 170
      %v5269 = vld [vmem:[%s5268] ss:$2 sm:$0xff]
      %s5270 = scalar_lea.vmem [#allocation3], 186
      %v5271 = vld [vmem:[%s5270] ss:$2 sm:$0xff]
      %s5272 = scalar_lea.vmem [#allocation3], 238
      %v5273 = vld [vmem:[%s5272] ss:$2 sm:$0xff]
      %s5274 = scalar_lea.vmem [#allocation3], 254
      %v5275 = vld [vmem:[%s5274] ss:$2 sm:$0xff]
      %v5276 = vpack.c.bf16 %v5263, %v5261
      %v5277 = vpack.c.bf16 %v5267, %v5265
      %v5278 = vpack.c.bf16 %v5271, %v5269
      %v5279 = vpack.c.bf16 %v5275, %v5273
      %s5280 = scalar_lea.vmem %s5, 128
      %v5281 = vld [vmem:[%s5280] sm:$0xf]
      %v5282 = vld [vmem:[%s5280 + $0x4] sm:$0xf]
      %v5283 = vld [vmem:[%s5280 + $0x8] sm:$0xf]
      %v5284 = vld [vmem:[%s5280 + $0xc] sm:$0xf]
      %v5285 = vld [vmem:[%s5280 + $0x10] sm:$0xf]
      %v5286 = vld [vmem:[%s5280 + $0x14] sm:$0xf]
      %v5287 = vld [vmem:[%s5280 + $0x18] sm:$0xf]
      %v5288 = vld [vmem:[%s5280 + $0x1c] sm:$0xf]
      %v5297 = vunpack.c.l.b16 %v5281
      %v5298 = vunpack.c.l.b16 %v5282
      %v5299 = vunpack.c.l.b16 %v5283
      %v5300 = vunpack.c.l.b16 %v5284
      %v5301 = vunpack.c.l.b16 %v5285
      %v5302 = vunpack.c.l.b16 %v5286
      %v5303 = vunpack.c.l.b16 %v5287
      %v5304 = vunpack.c.l.b16 %v5288
      %v5305 = vpack.c.b16 %v5298, %v5297
      %v5306 = vpack.c.b16 %v5300, %v5299
      %v5307 = vpack.c.b16 %v5302, %v5301
      %v5308 = vpack.c.b16 %v5304, %v5303
      %v5314 = vsel %vm4808, %v5276, 0
      %v5317 = vsel %vm4808, %v5277, 0
      %v5320 = vsel %vm4808, %v5278, 0
      %v5323 = vsel %vm4808, %v5279, 0
      %5325 = vmatpush.bf16.msra.mxu0 0
      %5326 = vmatpush.bf16.msra.mxu0 0
      %5327 = vmatpush.bf16.msra.mxu0 0
      %5328 = vmatpush.bf16.msra.mxu0 0
      %5329 = vmatpush.bf16.msra.mxu0 %v5308
      %5330 = vmatpush.bf16.msra.mxu0 %v5307
      %5331 = vmatpush.bf16.msra.mxu0 %v5306
      %5332 = vmatpush.bf16.msra.mxu0 %v5305
      %5333 = vmatmul.bf16.gmra.mxu0 %v5314
      %v5334 = vpop.f32.mrf.mxu0
      %v5335 = vadd.f32 0.0, %v5334
      %v5336 = vpop.f32.mrf.mxu0
      %v5337 = vadd.f32 0.0, %v5336
      %5338 = vmatmul.bf16.gmra.mxu0 %v5317
      %v5339 = vpop.f32.mrf.mxu0
      %v5340 = vadd.f32 0.0, %v5339
      %v5341 = vpop.f32.mrf.mxu0
      %v5342 = vadd.f32 0.0, %v5341
      %5343 = vmatmul.bf16.gmra.mxu0 %v5320
      %v5344 = vpop.f32.mrf.mxu0
      %v5345 = vadd.f32 0.0, %v5344
      %v5346 = vpop.f32.mrf.mxu0
      %v5347 = vadd.f32 0.0, %v5346
      %5348 = vmatmul.bf16.gmra.mxu0 %v5323
      %v5349 = vpop.f32.mrf.mxu0
      %v5350 = vadd.f32 0.0, %v5349
      %v5351 = vpop.f32.mrf.mxu0
      %v5352 = vadd.f32 0.0, %v5351
      %5353 = vdwg.mxu0
      %v5354 = vadd.f32 %v5252, %v5335
      %v5355 = vadd.f32 %v5253, %v5337
      %v5356 = vadd.f32 %v5254, %v5340
      %v5357 = vadd.f32 %v5255, %v5342
      %v5358 = vadd.f32 %v5256, %v5345
      %v5359 = vadd.f32 %v5257, %v5347
      %v5360 = vadd.f32 %v5258, %v5350
      %v5361 = vadd.f32 %v5259, %v5352
      %s5362 = scalar_lea.vmem [#allocation3], 35
      %v5363 = vld [vmem:[%s5362] ss:$2 sm:$0xff]
      %s5364 = scalar_lea.vmem [#allocation3], 51
      %v5365 = vld [vmem:[%s5364] ss:$2 sm:$0xff]
      %s5366 = scalar_lea.vmem [#allocation3], 103
      %v5367 = vld [vmem:[%s5366] ss:$2 sm:$0xff]
      %s5368 = scalar_lea.vmem [#allocation3], 119
      %v5369 = vld [vmem:[%s5368] ss:$2 sm:$0xff]
      %s5370 = scalar_lea.vmem [#allocation3], 171
      %v5371 = vld [vmem:[%s5370] ss:$2 sm:$0xff]
      %s5372 = scalar_lea.vmem [#allocation3], 187
      %v5373 = vld [vmem:[%s5372] ss:$2 sm:$0xff]
      %s5374 = scalar_lea.vmem [#allocation3], 239
      %v5375 = vld [vmem:[%s5374] ss:$2 sm:$0xff]
      %s5376 = scalar_lea.vmem [#allocation3], 255
      %v5377 = vld [vmem:[%s5376] ss:$2 sm:$0xff]
      %v5378 = vpack.c.bf16 %v5365, %v5363
      %v5379 = vpack.c.bf16 %v5369, %v5367
      %v5380 = vpack.c.bf16 %v5373, %v5371
      %v5381 = vpack.c.bf16 %v5377, %v5375
      %s5382 = scalar_lea.vmem %s5, 160
      %v5383 = vld [vmem:[%s5382] sm:$0xf]
      %v5384 = vld [vmem:[%s5382 + $0x4] sm:$0xf]
      %v5385 = vld [vmem:[%s5382 + $0x8] sm:$0xf]
      %v5386 = vld [vmem:[%s5382 + $0xc] sm:$0xf]
      %v5387 = vld [vmem:[%s5382 + $0x10] sm:$0xf]
      %v5388 = vld [vmem:[%s5382 + $0x14] sm:$0xf]
      %v5389 = vld [vmem:[%s5382 + $0x18] sm:$0xf]
      %v5390 = vld [vmem:[%s5382 + $0x1c] sm:$0xf]
      %v5399 = vunpack.c.l.b16 %v5383
      %v5400 = vunpack.c.l.b16 %v5384
      %v5401 = vunpack.c.l.b16 %v5385
      %v5402 = vunpack.c.l.b16 %v5386
      %v5403 = vunpack.c.l.b16 %v5387
      %v5404 = vunpack.c.l.b16 %v5388
      %v5405 = vunpack.c.l.b16 %v5389
      %v5406 = vunpack.c.l.b16 %v5390
      %v5407 = vpack.c.b16 %v5400, %v5399
      %v5408 = vpack.c.b16 %v5402, %v5401
      %v5409 = vpack.c.b16 %v5404, %v5403
      %v5410 = vpack.c.b16 %v5406, %v5405
      %v5416 = vsel %vm4808, %v5378, 0
      %v5419 = vsel %vm4808, %v5379, 0
      %v5422 = vsel %vm4808, %v5380, 0
      %v5425 = vsel %vm4808, %v5381, 0
      %5427 = vmatpush.bf16.msra.mxu0 0
      %5428 = vmatpush.bf16.msra.mxu0 0
      %5429 = vmatpush.bf16.msra.mxu0 0
      %5430 = vmatpush.bf16.msra.mxu0 0
      %5431 = vmatpush.bf16.msra.mxu0 %v5410
      %5432 = vmatpush.bf16.msra.mxu0 %v5409
      %5433 = vmatpush.bf16.msra.mxu0 %v5408
      %5434 = vmatpush.bf16.msra.mxu0 %v5407
      %5435 = vmatmul.bf16.gmra.mxu0 %v5416
      %v5436 = vpop.f32.mrf.mxu0
      %v5437 = vadd.f32 0.0, %v5436
      %v5438 = vpop.f32.mrf.mxu0
      %v5439 = vadd.f32 0.0, %v5438
      %5440 = vmatmul.bf16.gmra.mxu0 %v5419
      %v5441 = vpop.f32.mrf.mxu0
      %v5442 = vadd.f32 0.0, %v5441
      %v5443 = vpop.f32.mrf.mxu0
      %v5444 = vadd.f32 0.0, %v5443
      %5445 = vmatmul.bf16.gmra.mxu0 %v5422
      %v5446 = vpop.f32.mrf.mxu0
      %v5447 = vadd.f32 0.0, %v5446
      %v5448 = vpop.f32.mrf.mxu0
      %v5449 = vadd.f32 0.0, %v5448
      %5450 = vmatmul.bf16.gmra.mxu0 %v5425
      %v5451 = vpop.f32.mrf.mxu0
      %v5452 = vadd.f32 0.0, %v5451
      %v5453 = vpop.f32.mrf.mxu0
      %v5454 = vadd.f32 0.0, %v5453
      %5455 = vdwg.mxu0
      %v5456 = vadd.f32 %v5354, %v5437
      %v5457 = vadd.f32 %v5355, %v5439
      %v5458 = vadd.f32 %v5356, %v5442
      %v5459 = vadd.f32 %v5357, %v5444
      %v5460 = vadd.f32 %v5358, %v5447
      %v5461 = vadd.f32 %v5359, %v5449
      %v5462 = vadd.f32 %v5360, %v5452
      %v5463 = vadd.f32 %v5361, %v5454
      %s5464 = scalar_lea.vmem [#allocation3], 36
      %v5465 = vld [vmem:[%s5464] ss:$2 sm:$0xff]
      %s5466 = scalar_lea.vmem [#allocation3], 52
      %v5467 = vld [vmem:[%s5466] ss:$2 sm:$0xff]
      %s5468 = scalar_lea.vmem [#allocation3], 104
      %v5469 = vld [vmem:[%s5468] ss:$2 sm:$0xff]
      %s5470 = scalar_lea.vmem [#allocation3], 120
      %v5471 = vld [vmem:[%s5470] ss:$2 sm:$0xff]
      %s5472 = scalar_lea.vmem [#allocation3], 172
      %v5473 = vld [vmem:[%s5472] ss:$2 sm:$0xff]
      %s5474 = scalar_lea.vmem [#allocation3], 188
      %v5475 = vld [vmem:[%s5474] ss:$2 sm:$0xff]
      %s5476 = scalar_lea.vmem [#allocation3], 240
      %v5477 = vld [vmem:[%s5476] ss:$2 sm:$0xff]
      %s5478 = scalar_lea.vmem [#allocation3], 256
      %v5479 = vld [vmem:[%s5478] ss:$2 sm:$0xff]
      %v5480 = vpack.c.bf16 %v5467, %v5465
      %v5481 = vpack.c.bf16 %v5471, %v5469
      %v5482 = vpack.c.bf16 %v5475, %v5473
      %v5483 = vpack.c.bf16 %v5479, %v5477
      %s5484 = scalar_lea.vmem %s5, 192
      %v5485 = vld [vmem:[%s5484] sm:$0xf]
      %v5486 = vld [vmem:[%s5484 + $0x4] sm:$0xf]
      %v5487 = vld [vmem:[%s5484 + $0x8] sm:$0xf]
      %v5488 = vld [vmem:[%s5484 + $0xc] sm:$0xf]
      %v5489 = vld [vmem:[%s5484 + $0x10] sm:$0xf]
      %v5490 = vld [vmem:[%s5484 + $0x14] sm:$0xf]
      %v5491 = vld [vmem:[%s5484 + $0x18] sm:$0xf]
      %v5492 = vld [vmem:[%s5484 + $0x1c] sm:$0xf]
      %v5501 = vunpack.c.l.b16 %v5485
      %v5502 = vunpack.c.l.b16 %v5486
      %v5503 = vunpack.c.l.b16 %v5487
      %v5504 = vunpack.c.l.b16 %v5488
      %v5505 = vunpack.c.l.b16 %v5489
      %v5506 = vunpack.c.l.b16 %v5490
      %v5507 = vunpack.c.l.b16 %v5491
      %v5508 = vunpack.c.l.b16 %v5492
      %v5509 = vpack.c.b16 %v5502, %v5501
      %v5510 = vpack.c.b16 %v5504, %v5503
      %v5511 = vpack.c.b16 %v5506, %v5505
      %v5512 = vpack.c.b16 %v5508, %v5507
      %v5518 = vsel %vm4808, %v5480, 0
      %v5521 = vsel %vm4808, %v5481, 0
      %v5524 = vsel %vm4808, %v5482, 0
      %v5527 = vsel %vm4808, %v5483, 0
      %5529 = vmatpush.bf16.msra.mxu0 0
      %5530 = vmatpush.bf16.msra.mxu0 0
      %5531 = vmatpush.bf16.msra.mxu0 0
      %5532 = vmatpush.bf16.msra.mxu0 0
      %5533 = vmatpush.bf16.msra.mxu0 %v5512
      %5534 = vmatpush.bf16.msra.mxu0 %v5511
      %5535 = vmatpush.bf16.msra.mxu0 %v5510
      %5536 = vmatpush.bf16.msra.mxu0 %v5509
      %5537 = vmatmul.bf16.gmra.mxu0 %v5518
      %v5538 = vpop.f32.mrf.mxu0
      %v5539 = vadd.f32 0.0, %v5538
      %v5540 = vpop.f32.mrf.mxu0
      %v5541 = vadd.f32 0.0, %v5540
      %5542 = vmatmul.bf16.gmra.mxu0 %v5521
      %v5543 = vpop.f32.mrf.mxu0
      %v5544 = vadd.f32 0.0, %v5543
      %v5545 = vpop.f32.mrf.mxu0
      %v5546 = vadd.f32 0.0, %v5545
      %5547 = vmatmul.bf16.gmra.mxu0 %v5524
      %v5548 = vpop.f32.mrf.mxu0
      %v5549 = vadd.f32 0.0, %v5548
      %v5550 = vpop.f32.mrf.mxu0
      %v5551 = vadd.f32 0.0, %v5550
      %5552 = vmatmul.bf16.gmra.mxu0 %v5527
      %v5553 = vpop.f32.mrf.mxu0
      %v5554 = vadd.f32 0.0, %v5553
      %v5555 = vpop.f32.mrf.mxu0
      %v5556 = vadd.f32 0.0, %v5555
      %5557 = vdwg.mxu0
      %v5558 = vadd.f32 %v5456, %v5539
      %v5559 = vadd.f32 %v5457, %v5541
      %v5560 = vadd.f32 %v5458, %v5544
      %v5561 = vadd.f32 %v5459, %v5546
      %v5562 = vadd.f32 %v5460, %v5549
      %v5563 = vadd.f32 %v5461, %v5551
      %v5564 = vadd.f32 %v5462, %v5554
      %v5565 = vadd.f32 %v5463, %v5556
      %s5566 = scalar_lea.vmem [#allocation3], 37
      %v5567 = vld [vmem:[%s5566] ss:$2 sm:$0xff]
      %s5568 = scalar_lea.vmem [#allocation3], 53
      %v5569 = vld [vmem:[%s5568] ss:$2 sm:$0xff]
      %s5570 = scalar_lea.vmem [#allocation3], 105
      %v5571 = vld [vmem:[%s5570] ss:$2 sm:$0xff]
      %s5572 = scalar_lea.vmem [#allocation3], 121
      %v5573 = vld [vmem:[%s5572] ss:$2 sm:$0xff]
      %s5574 = scalar_lea.vmem [#allocation3], 173
      %v5575 = vld [vmem:[%s5574] ss:$2 sm:$0xff]
      %s5576 = scalar_lea.vmem [#allocation3], 189
      %v5577 = vld [vmem:[%s5576] ss:$2 sm:$0xff]
      %s5578 = scalar_lea.vmem [#allocation3], 241
      %v5579 = vld [vmem:[%s5578] ss:$2 sm:$0xff]
      %s5580 = scalar_lea.vmem [#allocation3], 257
      %v5581 = vld [vmem:[%s5580] ss:$2 sm:$0xff]
      %v5582 = vpack.c.bf16 %v5569, %v5567
      %v5583 = vpack.c.bf16 %v5573, %v5571
      %v5584 = vpack.c.bf16 %v5577, %v5575
      %v5585 = vpack.c.bf16 %v5581, %v5579
      %s5586 = scalar_lea.vmem %s5, 224
      %v5587 = vld [vmem:[%s5586] sm:$0xf]
      %v5588 = vld [vmem:[%s5586 + $0x4] sm:$0xf]
      %v5589 = vld [vmem:[%s5586 + $0x8] sm:$0xf]
      %v5590 = vld [vmem:[%s5586 + $0xc] sm:$0xf]
      %v5591 = vld [vmem:[%s5586 + $0x10] sm:$0xf]
      %v5592 = vld [vmem:[%s5586 + $0x14] sm:$0xf]
      %v5593 = vld [vmem:[%s5586 + $0x18] sm:$0xf]
      %v5594 = vld [vmem:[%s5586 + $0x1c] sm:$0xf]
      %v5603 = vunpack.c.l.b16 %v5587
      %v5604 = vunpack.c.l.b16 %v5588
      %v5605 = vunpack.c.l.b16 %v5589
      %v5606 = vunpack.c.l.b16 %v5590
      %v5607 = vunpack.c.l.b16 %v5591
      %v5608 = vunpack.c.l.b16 %v5592
      %v5609 = vunpack.c.l.b16 %v5593
      %v5610 = vunpack.c.l.b16 %v5594
      %v5611 = vpack.c.b16 %v5604, %v5603
      %v5612 = vpack.c.b16 %v5606, %v5605
      %v5613 = vpack.c.b16 %v5608, %v5607
      %v5614 = vpack.c.b16 %v5610, %v5609
      %v5620 = vsel %vm4808, %v5582, 0
      %v5623 = vsel %vm4808, %v5583, 0
      %v5626 = vsel %vm4808, %v5584, 0
      %v5629 = vsel %vm4808, %v5585, 0
      %5631 = vmatpush.bf16.msra.mxu0 0
      %5632 = vmatpush.bf16.msra.mxu0 0
      %5633 = vmatpush.bf16.msra.mxu0 0
      %5634 = vmatpush.bf16.msra.mxu0 0
      %5635 = vmatpush.bf16.msra.mxu0 %v5614
      %5636 = vmatpush.bf16.msra.mxu0 %v5613
      %5637 = vmatpush.bf16.msra.mxu0 %v5612
      %5638 = vmatpush.bf16.msra.mxu0 %v5611
      %5639 = vmatmul.bf16.gmra.mxu0 %v5620
      %v5640 = vpop.f32.mrf.mxu0
      %v5641 = vadd.f32 0.0, %v5640
      %v5642 = vpop.f32.mrf.mxu0
      %v5643 = vadd.f32 0.0, %v5642
      %5644 = vmatmul.bf16.gmra.mxu0 %v5623
      %v5645 = vpop.f32.mrf.mxu0
      %v5646 = vadd.f32 0.0, %v5645
      %v5647 = vpop.f32.mrf.mxu0
      %v5648 = vadd.f32 0.0, %v5647
      %5649 = vmatmul.bf16.gmra.mxu0 %v5626
      %v5650 = vpop.f32.mrf.mxu0
      %v5651 = vadd.f32 0.0, %v5650
      %v5652 = vpop.f32.mrf.mxu0
      %v5653 = vadd.f32 0.0, %v5652
      %5654 = vmatmul.bf16.gmra.mxu0 %v5629
      %v5655 = vpop.f32.mrf.mxu0
      %v5656 = vadd.f32 0.0, %v5655
      %v5657 = vpop.f32.mrf.mxu0
      %v5658 = vadd.f32 0.0, %v5657
      %5659 = vdwg.mxu0
      %v5660 = vadd.f32 %v5558, %v5641
      %v5661 = vadd.f32 %v5559, %v5643
      %v5662 = vadd.f32 %v5560, %v5646
      %v5663 = vadd.f32 %v5561, %v5648
      %v5664 = vadd.f32 %v5562, %v5651
      %v5665 = vadd.f32 %v5563, %v5653
      %v5666 = vadd.f32 %v5564, %v5656
      %v5667 = vadd.f32 %v5565, %v5658
      %s5668 = scalar_lea.vmem [#allocation3], 272
      %v5669 = vld [vmem:[%s5668] ss:$2 sm:$0xff]
      %s5670 = scalar_lea.vmem [#allocation3], 288
      %v5671 = vld [vmem:[%s5670] ss:$2 sm:$0xff]
      %v5672 = vpack.c.bf16 %v5671, %v5669
      %s5673 = scalar_lea.vmem %s5, 256
      %v5674 = vld [vmem:[%s5673] sm:$0xf]
      %v5675 = vld [vmem:[%s5673 + $0x4] sm:$0xf]
      %v5676 = vld [vmem:[%s5673 + $0x8] sm:$0xf]
      %v5677 = vld [vmem:[%s5673 + $0xc] sm:$0xf]
      %v5678 = vld [vmem:[%s5673 + $0x10] sm:$0xf]
      %v5679 = vld [vmem:[%s5673 + $0x14] sm:$0xf]
      %v5680 = vld [vmem:[%s5673 + $0x18] sm:$0xf]
      %v5681 = vld [vmem:[%s5673 + $0x1c] sm:$0xf]
      %v5690 = vunpack.c.l.b16 %v5674
      %v5691 = vunpack.c.l.b16 %v5675
      %v5692 = vunpack.c.l.b16 %v5676
      %v5693 = vunpack.c.l.b16 %v5677
      %v5694 = vunpack.c.l.b16 %v5678
      %v5695 = vunpack.c.l.b16 %v5679
      %v5696 = vunpack.c.l.b16 %v5680
      %v5697 = vunpack.c.l.b16 %v5681
      %v5698 = vpack.c.b16 %v5691, %v5690
      %v5699 = vpack.c.b16 %v5693, %v5692
      %v5700 = vpack.c.b16 %v5695, %v5694
      %v5701 = vpack.c.b16 %v5697, %v5696
      %v5707 = vsel %vm4808, %v5672, 0
      %5709 = vmatpush.bf16.msra.mxu0 0
      %5710 = vmatpush.bf16.msra.mxu0 0
      %5711 = vmatpush.bf16.msra.mxu0 0
      %5712 = vmatpush.bf16.msra.mxu0 0
      %5713 = vmatpush.bf16.msra.mxu0 %v5701
      %5714 = vmatpush.bf16.msra.mxu0 %v5700
      %5715 = vmatpush.bf16.msra.mxu0 %v5699
      %5716 = vmatpush.bf16.msra.mxu0 %v5698
      %5717 = vmatmul.bf16.gmra.mxu0 %v5019
      %v5718 = vpop.f32.mrf.mxu0
      %v5719 = vadd.f32 0.0, %v5718
      %v5720 = vpop.f32.mrf.mxu0
      %v5721 = vadd.f32 0.0, %v5720
      %5722 = vmatmul.bf16.gmra.mxu0 %v5022
      %v5723 = vpop.f32.mrf.mxu0
      %v5724 = vadd.f32 0.0, %v5723
      %v5725 = vpop.f32.mrf.mxu0
      %v5726 = vadd.f32 0.0, %v5725
      %5727 = vmatmul.bf16.gmra.mxu0 %v5025
      %v5728 = vpop.f32.mrf.mxu0
      %v5729 = vadd.f32 0.0, %v5728
      %v5730 = vpop.f32.mrf.mxu0
      %v5731 = vadd.f32 0.0, %v5730
      %5732 = vmatmul.bf16.gmra.mxu0 %v5707
      %v5733 = vpop.f32.mrf.mxu0
      %v5734 = vadd.f32 0.0, %v5733
      %v5735 = vpop.f32.mrf.mxu0
      %v5736 = vadd.f32 0.0, %v5735
      %5737 = vdwg.mxu0
      %v5738 = vadd.f32 %v5660, %v5719
      %v5739 = vadd.f32 %v5661, %v5721
      %v5740 = vadd.f32 %v5662, %v5724
      %v5741 = vadd.f32 %v5663, %v5726
      %v5742 = vadd.f32 %v5664, %v5729
      %v5743 = vadd.f32 %v5665, %v5731
      %v5744 = vadd.f32 %v5666, %v5734
      %v5745 = vadd.f32 %v5667, %v5736
      %s5746 = scalar_lea.vmem [#allocation3], 273
      %v5747 = vld [vmem:[%s5746] ss:$2 sm:$0xff]
      %s5748 = scalar_lea.vmem [#allocation3], 289
      %v5749 = vld [vmem:[%s5748] ss:$2 sm:$0xff]
      %v5750 = vpack.c.bf16 %v5749, %v5747
      %s5751 = scalar_lea.vmem %s5, 288
      %v5752 = vld [vmem:[%s5751] sm:$0xf]
      %v5753 = vld [vmem:[%s5751 + $0x4] sm:$0xf]
      %v5754 = vld [vmem:[%s5751 + $0x8] sm:$0xf]
      %v5755 = vld [vmem:[%s5751 + $0xc] sm:$0xf]
      %v5756 = vld [vmem:[%s5751 + $0x10] sm:$0xf]
      %v5757 = vld [vmem:[%s5751 + $0x14] sm:$0xf]
      %v5758 = vld [vmem:[%s5751 + $0x18] sm:$0xf]
      %v5759 = vld [vmem:[%s5751 + $0x1c] sm:$0xf]
      %v5768 = vunpack.c.l.b16 %v5752
      %v5769 = vunpack.c.l.b16 %v5753
      %v5770 = vunpack.c.l.b16 %v5754
      %v5771 = vunpack.c.l.b16 %v5755
      %v5772 = vunpack.c.l.b16 %v5756
      %v5773 = vunpack.c.l.b16 %v5757
      %v5774 = vunpack.c.l.b16 %v5758
      %v5775 = vunpack.c.l.b16 %v5759
      %v5776 = vpack.c.b16 %v5769, %v5768
      %v5777 = vpack.c.b16 %v5771, %v5770
      %v5778 = vpack.c.b16 %v5773, %v5772
      %v5779 = vpack.c.b16 %v5775, %v5774
      %v5785 = vsel %vm4808, %v5750, 0
      %5787 = vmatpush.bf16.msra.mxu0 0
      %5788 = vmatpush.bf16.msra.mxu0 0
      %5789 = vmatpush.bf16.msra.mxu0 0
      %5790 = vmatpush.bf16.msra.mxu0 0
      %5791 = vmatpush.bf16.msra.mxu0 %v5779
      %5792 = vmatpush.bf16.msra.mxu0 %v5778
      %5793 = vmatpush.bf16.msra.mxu0 %v5777
      %5794 = vmatpush.bf16.msra.mxu0 %v5776
      %5795 = vmatmul.bf16.gmra.mxu0 %v4954
      %v5796 = vpop.f32.mrf.mxu0
      %v5797 = vadd.f32 0.0, %v5796
      %v5798 = vpop.f32.mrf.mxu0
      %v5799 = vadd.f32 0.0, %v5798
      %5800 = vmatmul.bf16.gmra.mxu0 %v4957
      %v5801 = vpop.f32.mrf.mxu0
      %v5802 = vadd.f32 0.0, %v5801
      %v5803 = vpop.f32.mrf.mxu0
      %v5804 = vadd.f32 0.0, %v5803
      %5805 = vmatmul.bf16.gmra.mxu0 %v4960
      %v5806 = vpop.f32.mrf.mxu0
      %v5807 = vadd.f32 0.0, %v5806
      %v5808 = vpop.f32.mrf.mxu0
      %v5809 = vadd.f32 0.0, %v5808
      %5810 = vmatmul.bf16.gmra.mxu0 %v5785
      %v5811 = vpop.f32.mrf.mxu0
      %v5812 = vadd.f32 0.0, %v5811
      %v5813 = vpop.f32.mrf.mxu0
      %v5814 = vadd.f32 0.0, %v5813
      %5815 = vdwg.mxu0
      %v5816 = vadd.f32 %v5738, %v5797
      %v5817 = vadd.f32 %v5739, %v5799
      %v5818 = vadd.f32 %v5740, %v5802
      %v5819 = vadd.f32 %v5741, %v5804
      %v5820 = vadd.f32 %v5742, %v5807
      %v5821 = vadd.f32 %v5743, %v5809
      %v5822 = vadd.f32 %v5744, %v5812
      %v5823 = vadd.f32 %v5745, %v5814
      %s5824 = scalar_lea.vmem [#allocation3], 274
      %v5825 = vld [vmem:[%s5824] ss:$2 sm:$0xff]
      %s5826 = scalar_lea.vmem [#allocation3], 290
      %v5827 = vld [vmem:[%s5826] ss:$2 sm:$0xff]
      %v5828 = vpack.c.bf16 %v5827, %v5825
      %s5829 = scalar_lea.vmem %s5, 320
      %v5830 = vld [vmem:[%s5829] sm:$0xf]
      %v5831 = vld [vmem:[%s5829 + $0x4] sm:$0xf]
      %v5832 = vld [vmem:[%s5829 + $0x8] sm:$0xf]
      %v5833 = vld [vmem:[%s5829 + $0xc] sm:$0xf]
      %v5834 = vld [vmem:[%s5829 + $0x10] sm:$0xf]
      %v5835 = vld [vmem:[%s5829 + $0x14] sm:$0xf]
      %v5836 = vld [vmem:[%s5829 + $0x18] sm:$0xf]
      %v5837 = vld [vmem:[%s5829 + $0x1c] sm:$0xf]
      %v5846 = vunpack.c.l.b16 %v5830
      %v5847 = vunpack.c.l.b16 %v5831
      %v5848 = vunpack.c.l.b16 %v5832
      %v5849 = vunpack.c.l.b16 %v5833
      %v5850 = vunpack.c.l.b16 %v5834
      %v5851 = vunpack.c.l.b16 %v5835
      %v5852 = vunpack.c.l.b16 %v5836
      %v5853 = vunpack.c.l.b16 %v5837
      %v5854 = vpack.c.b16 %v5847, %v5846
      %v5855 = vpack.c.b16 %v5849, %v5848
      %v5856 = vpack.c.b16 %v5851, %v5850
      %v5857 = vpack.c.b16 %v5853, %v5852
      %v5863 = vsel %vm4808, %v5828, 0
      %5865 = vmatpush.bf16.msra.mxu0 0
      %5866 = vmatpush.bf16.msra.mxu0 0
      %5867 = vmatpush.bf16.msra.mxu0 0
      %5868 = vmatpush.bf16.msra.mxu0 0
      %5869 = vmatpush.bf16.msra.mxu0 %v5857
      %5870 = vmatpush.bf16.msra.mxu0 %v5856
      %5871 = vmatpush.bf16.msra.mxu0 %v5855
      %5872 = vmatpush.bf16.msra.mxu0 %v5854
      %5873 = vmatmul.bf16.gmra.mxu0 %v5113
      %v5874 = vpop.f32.mrf.mxu0
      %v5875 = vadd.f32 0.0, %v5874
      %v5876 = vpop.f32.mrf.mxu0
      %v5877 = vadd.f32 0.0, %v5876
      %5878 = vmatmul.bf16.gmra.mxu0 %v5116
      %v5879 = vpop.f32.mrf.mxu0
      %v5880 = vadd.f32 0.0, %v5879
      %v5881 = vpop.f32.mrf.mxu0
      %v5882 = vadd.f32 0.0, %v5881
      %5883 = vmatmul.bf16.gmra.mxu0 %v5119
      %v5884 = vpop.f32.mrf.mxu0
      %v5885 = vadd.f32 0.0, %v5884
      %v5886 = vpop.f32.mrf.mxu0
      %v5887 = vadd.f32 0.0, %v5886
      %5888 = vmatmul.bf16.gmra.mxu0 %v5863
      %v5889 = vpop.f32.mrf.mxu0
      %v5890 = vadd.f32 0.0, %v5889
      %v5891 = vpop.f32.mrf.mxu0
      %v5892 = vadd.f32 0.0, %v5891
      %5893 = vdwg.mxu0
      %v5894 = vadd.f32 %v5816, %v5875
      %v5895 = vadd.f32 %v5817, %v5877
      %v5896 = vadd.f32 %v5818, %v5880
      %v5897 = vadd.f32 %v5819, %v5882
      %v5898 = vadd.f32 %v5820, %v5885
      %v5899 = vadd.f32 %v5821, %v5887
      %v5900 = vadd.f32 %v5822, %v5890
      %v5901 = vadd.f32 %v5823, %v5892
      %s5902 = scalar_lea.vmem [#allocation3], 275
      %v5903 = vld [vmem:[%s5902] ss:$2 sm:$0xff]
      %s5904 = scalar_lea.vmem [#allocation3], 291
      %v5905 = vld [vmem:[%s5904] ss:$2 sm:$0xff]
      %v5906 = vpack.c.bf16 %v5905, %v5903
      %s5907 = scalar_lea.vmem %s5, 352
      %v5908 = vld [vmem:[%s5907] sm:$0xf]
      %v5909 = vld [vmem:[%s5907 + $0x4] sm:$0xf]
      %v5910 = vld [vmem:[%s5907 + $0x8] sm:$0xf]
      %v5911 = vld [vmem:[%s5907 + $0xc] sm:$0xf]
      %v5912 = vld [vmem:[%s5907 + $0x10] sm:$0xf]
      %v5913 = vld [vmem:[%s5907 + $0x14] sm:$0xf]
      %v5914 = vld [vmem:[%s5907 + $0x18] sm:$0xf]
      %v5915 = vld [vmem:[%s5907 + $0x1c] sm:$0xf]
      %v5924 = vunpack.c.l.b16 %v5908
      %v5925 = vunpack.c.l.b16 %v5909
      %v5926 = vunpack.c.l.b16 %v5910
      %v5927 = vunpack.c.l.b16 %v5911
      %v5928 = vunpack.c.l.b16 %v5912
      %v5929 = vunpack.c.l.b16 %v5913
      %v5930 = vunpack.c.l.b16 %v5914
      %v5931 = vunpack.c.l.b16 %v5915
      %v5932 = vpack.c.b16 %v5925, %v5924
      %v5933 = vpack.c.b16 %v5927, %v5926
      %v5934 = vpack.c.b16 %v5929, %v5928
      %v5935 = vpack.c.b16 %v5931, %v5930
      %v5941 = vsel %vm4808, %v5906, 0
      %5943 = vmatpush.bf16.msra.mxu0 0
      %5944 = vmatpush.bf16.msra.mxu0 0
      %5945 = vmatpush.bf16.msra.mxu0 0
      %5946 = vmatpush.bf16.msra.mxu0 0
      %5947 = vmatpush.bf16.msra.mxu0 %v5935
      %5948 = vmatpush.bf16.msra.mxu0 %v5934
      %5949 = vmatpush.bf16.msra.mxu0 %v5933
      %5950 = vmatpush.bf16.msra.mxu0 %v5932
      %5951 = vmatmul.bf16.gmra.mxu0 %v5215
      %v5952 = vpop.f32.mrf.mxu0
      %v5953 = vadd.f32 0.0, %v5952
      %v5954 = vpop.f32.mrf.mxu0
      %v5955 = vadd.f32 0.0, %v5954
      %5956 = vmatmul.bf16.gmra.mxu0 %v5218
      %v5957 = vpop.f32.mrf.mxu0
      %v5958 = vadd.f32 0.0, %v5957
      %v5959 = vpop.f32.mrf.mxu0
      %v5960 = vadd.f32 0.0, %v5959
      %5961 = vmatmul.bf16.gmra.mxu0 %v5221
      %v5962 = vpop.f32.mrf.mxu0
      %v5963 = vadd.f32 0.0, %v5962
      %v5964 = vpop.f32.mrf.mxu0
      %v5965 = vadd.f32 0.0, %v5964
      %5966 = vmatmul.bf16.gmra.mxu0 %v5941
      %v5967 = vpop.f32.mrf.mxu0
      %v5968 = vadd.f32 0.0, %v5967
      %v5969 = vpop.f32.mrf.mxu0
      %v5970 = vadd.f32 0.0, %v5969
      %5971 = vdwg.mxu0
      %v5972 = vadd.f32 %v5894, %v5953
      %v5973 = vadd.f32 %v5895, %v5955
      %v5974 = vadd.f32 %v5896, %v5958
      %v5975 = vadd.f32 %v5897, %v5960
      %v5976 = vadd.f32 %v5898, %v5963
      %v5977 = vadd.f32 %v5899, %v5965
      %v5978 = vadd.f32 %v5900, %v5968
      %v5979 = vadd.f32 %v5901, %v5970
      %s5980 = scalar_lea.vmem [#allocation3], 306
      %v5981 = vld [vmem:[%s5980] ss:$2 sm:$0xff]
      %s5982 = scalar_lea.vmem [#allocation3], 322
      %v5983 = vld [vmem:[%s5982] ss:$2 sm:$0xff]
      %v5984 = vpack.c.bf16 %v5983, %v5981
      %s5985 = scalar_lea.vmem %s5, 384
      %v5986 = vld [vmem:[%s5985] sm:$0xf]
      %v5987 = vld [vmem:[%s5985 + $0x4] sm:$0xf]
      %v5988 = vld [vmem:[%s5985 + $0x8] sm:$0xf]
      %v5989 = vld [vmem:[%s5985 + $0xc] sm:$0xf]
      %v5990 = vld [vmem:[%s5985 + $0x10] sm:$0xf]
      %v5991 = vld [vmem:[%s5985 + $0x14] sm:$0xf]
      %v5992 = vld [vmem:[%s5985 + $0x18] sm:$0xf]
      %v5993 = vld [vmem:[%s5985 + $0x1c] sm:$0xf]
      %v6002 = vunpack.c.l.b16 %v5986
      %v6003 = vunpack.c.l.b16 %v5987
      %v6004 = vunpack.c.l.b16 %v5988
      %v6005 = vunpack.c.l.b16 %v5989
      %v6006 = vunpack.c.l.b16 %v5990
      %v6007 = vunpack.c.l.b16 %v5991
      %v6008 = vunpack.c.l.b16 %v5992
      %v6009 = vunpack.c.l.b16 %v5993
      %v6010 = vpack.c.b16 %v6003, %v6002
      %v6011 = vpack.c.b16 %v6005, %v6004
      %v6012 = vpack.c.b16 %v6007, %v6006
      %v6013 = vpack.c.b16 %v6009, %v6008
      %v6019 = vsel %vm4808, %v5984, 0
      %6021 = vmatpush.bf16.msra.mxu0 0
      %6022 = vmatpush.bf16.msra.mxu0 0
      %6023 = vmatpush.bf16.msra.mxu0 0
      %6024 = vmatpush.bf16.msra.mxu0 0
      %6025 = vmatpush.bf16.msra.mxu0 %v6013
      %6026 = vmatpush.bf16.msra.mxu0 %v6012
      %6027 = vmatpush.bf16.msra.mxu0 %v6011
      %6028 = vmatpush.bf16.msra.mxu0 %v6010
      %6029 = vmatmul.bf16.gmra.mxu0 %v5317
      %v6030 = vpop.f32.mrf.mxu0
      %v6031 = vadd.f32 0.0, %v6030
      %v6032 = vpop.f32.mrf.mxu0
      %v6033 = vadd.f32 0.0, %v6032
      %6034 = vmatmul.bf16.gmra.mxu0 %v5320
      %v6035 = vpop.f32.mrf.mxu0
      %v6036 = vadd.f32 0.0, %v6035
      %v6037 = vpop.f32.mrf.mxu0
      %v6038 = vadd.f32 0.0, %v6037
      %6039 = vmatmul.bf16.gmra.mxu0 %v5323
      %v6040 = vpop.f32.mrf.mxu0
      %v6041 = vadd.f32 0.0, %v6040
      %v6042 = vpop.f32.mrf.mxu0
      %v6043 = vadd.f32 0.0, %v6042
      %6044 = vmatmul.bf16.gmra.mxu0 %v6019
      %v6045 = vpop.f32.mrf.mxu0
      %v6046 = vadd.f32 0.0, %v6045
      %v6047 = vpop.f32.mrf.mxu0
      %v6048 = vadd.f32 0.0, %v6047
      %6049 = vdwg.mxu0
      %v6050 = vadd.f32 %v5972, %v6031
      %v6051 = vadd.f32 %v5973, %v6033
      %v6052 = vadd.f32 %v5974, %v6036
      %v6053 = vadd.f32 %v5975, %v6038
      %v6054 = vadd.f32 %v5976, %v6041
      %v6055 = vadd.f32 %v5977, %v6043
      %v6056 = vadd.f32 %v5978, %v6046
      %v6057 = vadd.f32 %v5979, %v6048
      %s6058 = scalar_lea.vmem [#allocation3], 307
      %v6059 = vld [vmem:[%s6058] ss:$2 sm:$0xff]
      %s6060 = scalar_lea.vmem [#allocation3], 323
      %v6061 = vld [vmem:[%s6060] ss:$2 sm:$0xff]
      %v6062 = vpack.c.bf16 %v6061, %v6059
      %s6063 = scalar_lea.vmem %s5, 416
      %v6064 = vld [vmem:[%s6063] sm:$0xf]
      %v6065 = vld [vmem:[%s6063 + $0x4] sm:$0xf]
      %v6066 = vld [vmem:[%s6063 + $0x8] sm:$0xf]
      %v6067 = vld [vmem:[%s6063 + $0xc] sm:$0xf]
      %v6068 = vld [vmem:[%s6063 + $0x10] sm:$0xf]
      %v6069 = vld [vmem:[%s6063 + $0x14] sm:$0xf]
      %v6070 = vld [vmem:[%s6063 + $0x18] sm:$0xf]
      %v6071 = vld [vmem:[%s6063 + $0x1c] sm:$0xf]
      %v6080 = vunpack.c.l.b16 %v6064
      %v6081 = vunpack.c.l.b16 %v6065
      %v6082 = vunpack.c.l.b16 %v6066
      %v6083 = vunpack.c.l.b16 %v6067
      %v6084 = vunpack.c.l.b16 %v6068
      %v6085 = vunpack.c.l.b16 %v6069
      %v6086 = vunpack.c.l.b16 %v6070
      %v6087 = vunpack.c.l.b16 %v6071
      %v6088 = vpack.c.b16 %v6081, %v6080
      %v6089 = vpack.c.b16 %v6083, %v6082
      %v6090 = vpack.c.b16 %v6085, %v6084
      %v6091 = vpack.c.b16 %v6087, %v6086
      %v6097 = vsel %vm4808, %v6062, 0
      %6099 = vmatpush.bf16.msra.mxu0 0
      %6100 = vmatpush.bf16.msra.mxu0 0
      %6101 = vmatpush.bf16.msra.mxu0 0
      %6102 = vmatpush.bf16.msra.mxu0 0
      %6103 = vmatpush.bf16.msra.mxu0 %v6091
      %6104 = vmatpush.bf16.msra.mxu0 %v6090
      %6105 = vmatpush.bf16.msra.mxu0 %v6089
      %6106 = vmatpush.bf16.msra.mxu0 %v6088
      %6107 = vmatmul.bf16.gmra.mxu0 %v5419
      %v6108 = vpop.f32.mrf.mxu0
      %v6109 = vadd.f32 0.0, %v6108
      %v6110 = vpop.f32.mrf.mxu0
      %v6111 = vadd.f32 0.0, %v6110
      %6112 = vmatmul.bf16.gmra.mxu0 %v5422
      %v6113 = vpop.f32.mrf.mxu0
      %v6114 = vadd.f32 0.0, %v6113
      %v6115 = vpop.f32.mrf.mxu0
      %v6116 = vadd.f32 0.0, %v6115
      %6117 = vmatmul.bf16.gmra.mxu0 %v5425
      %v6118 = vpop.f32.mrf.mxu0
      %v6119 = vadd.f32 0.0, %v6118
      %v6120 = vpop.f32.mrf.mxu0
      %v6121 = vadd.f32 0.0, %v6120
      %6122 = vmatmul.bf16.gmra.mxu0 %v6097
      %v6123 = vpop.f32.mrf.mxu0
      %v6124 = vadd.f32 0.0, %v6123
      %v6125 = vpop.f32.mrf.mxu0
      %v6126 = vadd.f32 0.0, %v6125
      %6127 = vdwg.mxu0
      %v6128 = vadd.f32 %v6050, %v6109
      %v6129 = vadd.f32 %v6051, %v6111
      %v6130 = vadd.f32 %v6052, %v6114
      %v6131 = vadd.f32 %v6053, %v6116
      %v6132 = vadd.f32 %v6054, %v6119
      %v6133 = vadd.f32 %v6055, %v6121
      %v6134 = vadd.f32 %v6056, %v6124
      %v6135 = vadd.f32 %v6057, %v6126
      %s6136 = scalar_lea.vmem [#allocation3], 308
      %v6137 = vld [vmem:[%s6136] ss:$2 sm:$0xff]
      %s6138 = scalar_lea.vmem [#allocation3], 324
      %v6139 = vld [vmem:[%s6138] ss:$2 sm:$0xff]
      %v6140 = vpack.c.bf16 %v6139, %v6137
      %s6141 = scalar_lea.vmem %s5, 448
      %v6142 = vld [vmem:[%s6141] sm:$0xf]
      %v6143 = vld [vmem:[%s6141 + $0x4] sm:$0xf]
      %v6144 = vld [vmem:[%s6141 + $0x8] sm:$0xf]
      %v6145 = vld [vmem:[%s6141 + $0xc] sm:$0xf]
      %v6146 = vld [vmem:[%s6141 + $0x10] sm:$0xf]
      %v6147 = vld [vmem:[%s6141 + $0x14] sm:$0xf]
      %v6148 = vld [vmem:[%s6141 + $0x18] sm:$0xf]
      %v6149 = vld [vmem:[%s6141 + $0x1c] sm:$0xf]
      %v6158 = vunpack.c.l.b16 %v6142
      %v6159 = vunpack.c.l.b16 %v6143
      %v6160 = vunpack.c.l.b16 %v6144
      %v6161 = vunpack.c.l.b16 %v6145
      %v6162 = vunpack.c.l.b16 %v6146
      %v6163 = vunpack.c.l.b16 %v6147
      %v6164 = vunpack.c.l.b16 %v6148
      %v6165 = vunpack.c.l.b16 %v6149
      %v6166 = vpack.c.b16 %v6159, %v6158
      %v6167 = vpack.c.b16 %v6161, %v6160
      %v6168 = vpack.c.b16 %v6163, %v6162
      %v6169 = vpack.c.b16 %v6165, %v6164
      %v6175 = vsel %vm4808, %v6140, 0
      %6177 = vmatpush.bf16.msra.mxu0 0
      %6178 = vmatpush.bf16.msra.mxu0 0
      %6179 = vmatpush.bf16.msra.mxu0 0
      %6180 = vmatpush.bf16.msra.mxu0 0
      %6181 = vmatpush.bf16.msra.mxu0 %v6169
      %6182 = vmatpush.bf16.msra.mxu0 %v6168
      %6183 = vmatpush.bf16.msra.mxu0 %v6167
      %6184 = vmatpush.bf16.msra.mxu0 %v6166
      %6185 = vmatmul.bf16.gmra.mxu0 %v5521
      %v6186 = vpop.f32.mrf.mxu0
      %v6187 = vadd.f32 0.0, %v6186
      %v6188 = vpop.f32.mrf.mxu0
      %v6189 = vadd.f32 0.0, %v6188
      %6190 = vmatmul.bf16.gmra.mxu0 %v5524
      %v6191 = vpop.f32.mrf.mxu0
      %v6192 = vadd.f32 0.0, %v6191
      %v6193 = vpop.f32.mrf.mxu0
      %v6194 = vadd.f32 0.0, %v6193
      %6195 = vmatmul.bf16.gmra.mxu0 %v5527
      %v6196 = vpop.f32.mrf.mxu0
      %v6197 = vadd.f32 0.0, %v6196
      %v6198 = vpop.f32.mrf.mxu0
      %v6199 = vadd.f32 0.0, %v6198
      %6200 = vmatmul.bf16.gmra.mxu0 %v6175
      %v6201 = vpop.f32.mrf.mxu0
      %v6202 = vadd.f32 0.0, %v6201
      %v6203 = vpop.f32.mrf.mxu0
      %v6204 = vadd.f32 0.0, %v6203
      %6205 = vdwg.mxu0
      %v6206 = vadd.f32 %v6128, %v6187
      %v6207 = vadd.f32 %v6129, %v6189
      %v6208 = vadd.f32 %v6130, %v6192
      %v6209 = vadd.f32 %v6131, %v6194
      %v6210 = vadd.f32 %v6132, %v6197
      %v6211 = vadd.f32 %v6133, %v6199
      %v6212 = vadd.f32 %v6134, %v6202
      %v6213 = vadd.f32 %v6135, %v6204
      %s6214 = scalar_lea.vmem [#allocation3], 309
      %v6215 = vld [vmem:[%s6214] ss:$2 sm:$0xff]
      %s6216 = scalar_lea.vmem [#allocation3], 325
      %v6217 = vld [vmem:[%s6216] ss:$2 sm:$0xff]
      %v6218 = vpack.c.bf16 %v6217, %v6215
      %s6219 = scalar_lea.vmem %s5, 480
      %v6220 = vld [vmem:[%s6219] sm:$0xf]
      %v6221 = vld [vmem:[%s6219 + $0x4] sm:$0xf]
      %v6222 = vld [vmem:[%s6219 + $0x8] sm:$0xf]
      %v6223 = vld [vmem:[%s6219 + $0xc] sm:$0xf]
      %v6224 = vld [vmem:[%s6219 + $0x10] sm:$0xf]
      %v6225 = vld [vmem:[%s6219 + $0x14] sm:$0xf]
      %v6226 = vld [vmem:[%s6219 + $0x18] sm:$0xf]
      %v6227 = vld [vmem:[%s6219 + $0x1c] sm:$0xf]
      %v6236 = vunpack.c.l.b16 %v6220
      %v6237 = vunpack.c.l.b16 %v6221
      %v6238 = vunpack.c.l.b16 %v6222
      %v6239 = vunpack.c.l.b16 %v6223
      %v6240 = vunpack.c.l.b16 %v6224
      %v6241 = vunpack.c.l.b16 %v6225
      %v6242 = vunpack.c.l.b16 %v6226
      %v6243 = vunpack.c.l.b16 %v6227
      %v6244 = vpack.c.b16 %v6237, %v6236
      %v6245 = vpack.c.b16 %v6239, %v6238
      %v6246 = vpack.c.b16 %v6241, %v6240
      %v6247 = vpack.c.b16 %v6243, %v6242
      %v6253 = vsel %vm4808, %v6218, 0
      %6255 = vmatpush.bf16.msra.mxu0 0
      %6256 = vmatpush.bf16.msra.mxu0 0
      %6257 = vmatpush.bf16.msra.mxu0 0
      %6258 = vmatpush.bf16.msra.mxu0 0
      %6259 = vmatpush.bf16.msra.mxu0 %v6247
      %6260 = vmatpush.bf16.msra.mxu0 %v6246
      %6261 = vmatpush.bf16.msra.mxu0 %v6245
      %6262 = vmatpush.bf16.msra.mxu0 %v6244
      %6263 = vmatmul.bf16.gmra.mxu0 %v5623
      %v6264 = vpop.f32.mrf.mxu0
      %v6265 = vadd.f32 0.0, %v6264
      %v6266 = vpop.f32.mrf.mxu0
      %v6267 = vadd.f32 0.0, %v6266
      %6268 = vmatmul.bf16.gmra.mxu0 %v5626
      %v6269 = vpop.f32.mrf.mxu0
      %v6270 = vadd.f32 0.0, %v6269
      %v6271 = vpop.f32.mrf.mxu0
      %v6272 = vadd.f32 0.0, %v6271
      %6273 = vmatmul.bf16.gmra.mxu0 %v5629
      %v6274 = vpop.f32.mrf.mxu0
      %v6275 = vadd.f32 0.0, %v6274
      %v6276 = vpop.f32.mrf.mxu0
      %v6277 = vadd.f32 0.0, %v6276
      %6278 = vmatmul.bf16.gmra.mxu0 %v6253
      %v6279 = vpop.f32.mrf.mxu0
      %v6280 = vadd.f32 0.0, %v6279
      %v6281 = vpop.f32.mrf.mxu0
      %v6282 = vadd.f32 0.0, %v6281
      %6283 = vdwg.mxu0
      %v6284 = vadd.f32 %v6206, %v6265
      %v6285 = vadd.f32 %v6207, %v6267
      %v6286 = vadd.f32 %v6208, %v6270
      %v6287 = vadd.f32 %v6209, %v6272
      %v6288 = vadd.f32 %v6210, %v6275
      %v6289 = vadd.f32 %v6211, %v6277
      %v6290 = vadd.f32 %v6212, %v6280
      %v6291 = vadd.f32 %v6213, %v6282
      %v6293 = vperm.slane %v4869, 0
      %v6295 = vadd.f32 %v6284, %v6293
      %v6296 = vadd.f32 %v6285, %v6293
      %v6297 = vadd.f32 %v6286, %v6293
      %v6298 = vadd.f32 %v6287, %v6293
      %v6299 = vadd.f32 %v6288, %v6293
      %v6300 = vadd.f32 %v6289, %v6293
      %v6301 = vadd.f32 %v6290, %v6293
      %v6302 = vadd.f32 %v6291, %v6293
      %v6303 = vmax.f32 %v6295, 0.0
      %v6304 = vmax.f32 %v6296, 0.0
      %v6305 = vmax.f32 %v6297, 0.0
      %v6306 = vmax.f32 %v6298, 0.0
      %v6307 = vmax.f32 %v6299, 0.0
      %v6308 = vmax.f32 %v6300, 0.0
      %v6309 = vmax.f32 %v6301, 0.0
      %v6310 = vmax.f32 %v6302, 0.0
      %6311 = vst [vmem:[#allocation4] sm:$0x1] 0.0
      %6312 = vst [vmem:[#allocation4 + $0x1] sm:$0xff] %v6303
      %6313 = vst [vmem:[#allocation4 + $0x9] sm:$0xff] %v6304
      %6314 = vst [vmem:[#allocation4 + $0x11] sm:$0x1] 0.0
      %6315 = vst [vmem:[#allocation4 + $0x12] sm:$0x1] 0.0
      %6316 = vst [vmem:[#allocation4 + $0x13] sm:$0xff] %v6305
      %6317 = vst [vmem:[#allocation4 + $0x1b] sm:$0xff] %v6306
      %6318 = vst [vmem:[#allocation4 + $0x23] sm:$0x1] 0.0
      %6319 = vst [vmem:[#allocation4 + $0x24] sm:$0x1] 0.0
      %6320 = vst [vmem:[#allocation4 + $0x25] sm:$0xff] %v6307
      %6321 = vst [vmem:[#allocation4 + $0x2d] sm:$0xff] %v6308
      %6322 = vst [vmem:[#allocation4 + $0x35] sm:$0x1] 0.0
      %6323 = vst [vmem:[#allocation4 + $0x36] sm:$0x1] 0.0
      %6324 = vst [vmem:[#allocation4 + $0x37] sm:$0xff] %v6309
      %6325 = vst [vmem:[#allocation4 + $0x3f] sm:$0xff] %v6310
      %6326 = vst [vmem:[#allocation4 + $0x47] sm:$0x1] 0.0
      %v6327 = vld [vmem:[%s8] sm:$0x1]
      %v6328 = vld [vmem:[#allocation4] ss:$2 sm:$0xff]
      %s6329 = scalar_lea.vmem [#allocation4], 18
      %v6330 = vld [vmem:[%s6329] ss:$2 sm:$0xff]
      %s6331 = scalar_lea.vmem [#allocation4], 36
      %v6332 = vld [vmem:[%s6331] ss:$2 sm:$0xff]
      %s6333 = scalar_lea.vmem [#allocation4], 54
      %v6334 = vld [vmem:[%s6333] ss:$2 sm:$0xff]
      %v6335 = vpack.c.bf16 %v6330, %v6328
      %v6336 = vpack.c.bf16 %v6334, %v6332
      %v6337 = vld [vmem:[%s7] sm:$0xf]
      %v6338 = vld [vmem:[%s7 + $0x4] sm:$0xf]
      %v6339 = vld [vmem:[%s7 + $0x8] sm:$0xf]
      %v6340 = vld [vmem:[%s7 + $0xc] sm:$0xf]
      %v6341 = vld [vmem:[%s7 + $0x10] sm:$0xf]
      %v6342 = vld [vmem:[%s7 + $0x14] sm:$0xf]
      %v6343 = vld [vmem:[%s7 + $0x18] sm:$0xf]
      %v6344 = vld [vmem:[%s7 + $0x1c] sm:$0xf]
      %v6345 = vld [vmem:[%s7 + $0x20] sm:$0xf]
      %v6346 = vld [vmem:[%s7 + $0x24] sm:$0xf]
      %v6347 = vld [vmem:[%s7 + $0x28] sm:$0xf]
      %v6348 = vld [vmem:[%s7 + $0x2c] sm:$0xf]
      %v6349 = vld [vmem:[%s7 + $0x30] sm:$0xf]
      %v6350 = vld [vmem:[%s7 + $0x34] sm:$0xf]
      %v6351 = vld [vmem:[%s7 + $0x38] sm:$0xf]
      %v6352 = vld [vmem:[%s7 + $0x3c] sm:$0xf]
      %s6353 = scalar_lea.vmem [#allocation4], 1
      %v6354 = vld [vmem:[%s6353] ss:$2 sm:$0xff]
      %s6355 = scalar_lea.vmem [#allocation4], 19
      %v6356 = vld [vmem:[%s6355] ss:$2 sm:$0xff]
      %s6357 = scalar_lea.vmem [#allocation4], 37
      %v6358 = vld [vmem:[%s6357] ss:$2 sm:$0xff]
      %s6359 = scalar_lea.vmem [#allocation4], 55
      %v6360 = vld [vmem:[%s6359] ss:$2 sm:$0xff]
      %v6361 = vpack.c.bf16 %v6356, %v6354
      %v6362 = vpack.c.bf16 %v6360, %v6358
      %s6363 = scalar_lea.vmem %s7, 64
      %v6364 = vld [vmem:[%s6363] sm:$0xf]
      %v6365 = vld [vmem:[%s6363 + $0x4] sm:$0xf]
      %v6366 = vld [vmem:[%s6363 + $0x8] sm:$0xf]
      %v6367 = vld [vmem:[%s6363 + $0xc] sm:$0xf]
      %v6368 = vld [vmem:[%s6363 + $0x10] sm:$0xf]
      %v6369 = vld [vmem:[%s6363 + $0x14] sm:$0xf]
      %v6370 = vld [vmem:[%s6363 + $0x18] sm:$0xf]
      %v6371 = vld [vmem:[%s6363 + $0x1c] sm:$0xf]
      %v6372 = vld [vmem:[%s6363 + $0x20] sm:$0xf]
      %v6373 = vld [vmem:[%s6363 + $0x24] sm:$0xf]
      %v6374 = vld [vmem:[%s6363 + $0x28] sm:$0xf]
      %v6375 = vld [vmem:[%s6363 + $0x2c] sm:$0xf]
      %v6376 = vld [vmem:[%s6363 + $0x30] sm:$0xf]
      %v6377 = vld [vmem:[%s6363 + $0x34] sm:$0xf]
      %v6378 = vld [vmem:[%s6363 + $0x38] sm:$0xf]
      %v6379 = vld [vmem:[%s6363 + $0x3c] sm:$0xf]
      %v6396 = vunpack.c.l.b16 %v6364
      %v6397 = vunpack.c.l.b16 %v6365
      %v6398 = vunpack.c.l.b16 %v6366
      %v6399 = vunpack.c.l.b16 %v6367
      %v6400 = vunpack.c.l.b16 %v6368
      %v6401 = vunpack.c.l.b16 %v6369
      %v6402 = vunpack.c.l.b16 %v6370
      %v6403 = vunpack.c.l.b16 %v6371
      %v6404 = vunpack.c.l.b16 %v6372
      %v6405 = vunpack.c.l.b16 %v6373
      %v6406 = vunpack.c.l.b16 %v6374
      %v6407 = vunpack.c.l.b16 %v6375
      %v6408 = vunpack.c.l.b16 %v6376
      %v6409 = vunpack.c.l.b16 %v6377
      %v6410 = vunpack.c.l.b16 %v6378
      %v6411 = vunpack.c.l.b16 %v6379
      %v6412 = vpack.c.b16 %v6397, %v6396
      %v6413 = vpack.c.b16 %v6399, %v6398
      %v6414 = vpack.c.b16 %v6401, %v6400
      %v6415 = vpack.c.b16 %v6403, %v6402
      %v6416 = vpack.c.b16 %v6405, %v6404
      %v6417 = vpack.c.b16 %v6407, %v6406
      %v6418 = vpack.c.b16 %v6409, %v6408
      %v6419 = vpack.c.b16 %v6411, %v6410
      %6428 = vmatpush.bf16.msra.mxu0 %v6419
      %6429 = vmatpush.bf16.msra.mxu0 %v6418
      %6430 = vmatpush.bf16.msra.mxu0 %v6417
      %6431 = vmatpush.bf16.msra.mxu0 %v6416
      %6432 = vmatpush.bf16.msra.mxu0 %v6415
      %6433 = vmatpush.bf16.msra.mxu0 %v6414
      %6434 = vmatpush.bf16.msra.mxu0 %v6413
      %6435 = vmatpush.bf16.msra.mxu0 %v6412
      %6436 = vmatmul.bf16.gmra.mxu0 %v6361
      %v6437 = vpop.f32.mrf.mxu0
      %v6438 = vadd.f32 0.0, %v6437
      %v6439 = vpop.f32.mrf.mxu0
      %v6440 = vadd.f32 0.0, %v6439
      %6441 = vmatmul.bf16.gmra.mxu0 %v6362
      %v6442 = vpop.f32.mrf.mxu0
      %v6443 = vadd.f32 0.0, %v6442
      %v6444 = vpop.f32.mrf.mxu0
      %v6445 = vadd.f32 0.0, %v6444
      %6446 = vdwg.mxu0
      %v6463 = vunpack.c.l.b16 %v6337
      %v6464 = vunpack.c.l.b16 %v6338
      %v6465 = vunpack.c.l.b16 %v6339
      %v6466 = vunpack.c.l.b16 %v6340
      %v6467 = vunpack.c.l.b16 %v6341
      %v6468 = vunpack.c.l.b16 %v6342
      %v6469 = vunpack.c.l.b16 %v6343
      %v6470 = vunpack.c.l.b16 %v6344
      %v6471 = vunpack.c.l.b16 %v6345
      %v6472 = vunpack.c.l.b16 %v6346
      %v6473 = vunpack.c.l.b16 %v6347
      %v6474 = vunpack.c.l.b16 %v6348
      %v6475 = vunpack.c.l.b16 %v6349
      %v6476 = vunpack.c.l.b16 %v6350
      %v6477 = vunpack.c.l.b16 %v6351
      %v6478 = vunpack.c.l.b16 %v6352
      %v6479 = vpack.c.b16 %v6464, %v6463
      %v6480 = vpack.c.b16 %v6466, %v6465
      %v6481 = vpack.c.b16 %v6468, %v6467
      %v6482 = vpack.c.b16 %v6470, %v6469
      %v6483 = vpack.c.b16 %v6472, %v6471
      %v6484 = vpack.c.b16 %v6474, %v6473
      %v6485 = vpack.c.b16 %v6476, %v6475
      %v6486 = vpack.c.b16 %v6478, %v6477
      %6495 = vmatpush.bf16.msra.mxu0 %v6486
      %6496 = vmatpush.bf16.msra.mxu0 %v6485
      %6497 = vmatpush.bf16.msra.mxu0 %v6484
      %6498 = vmatpush.bf16.msra.mxu0 %v6483
      %6499 = vmatpush.bf16.msra.mxu0 %v6482
      %6500 = vmatpush.bf16.msra.mxu0 %v6481
      %6501 = vmatpush.bf16.msra.mxu0 %v6480
      %6502 = vmatpush.bf16.msra.mxu0 %v6479
      %6503 = vmatmul.bf16.gmra.mxu0 %v6335
      %v6504 = vpop.f32.mrf.mxu0
      %v6505 = vadd.f32 %v6438, %v6504
      %v6506 = vpop.f32.mrf.mxu0
      %v6507 = vadd.f32 %v6440, %v6506
      %6508 = vmatmul.bf16.gmra.mxu0 %v6336
      %v6509 = vpop.f32.mrf.mxu0
      %v6510 = vadd.f32 %v6443, %v6509
      %v6511 = vpop.f32.mrf.mxu0
      %v6512 = vadd.f32 %v6445, %v6511
      %6513 = vdwg.mxu0
      %s6514 = scalar_lea.vmem [#allocation4], 2
      %v6515 = vld [vmem:[%s6514] ss:$2 sm:$0xff]
      %s6516 = scalar_lea.vmem [#allocation4], 20
      %v6517 = vld [vmem:[%s6516] ss:$2 sm:$0xff]
      %s6518 = scalar_lea.vmem [#allocation4], 38
      %v6519 = vld [vmem:[%s6518] ss:$2 sm:$0xff]
      %s6520 = scalar_lea.vmem [#allocation4], 56
      %v6521 = vld [vmem:[%s6520] ss:$2 sm:$0xff]
      %v6522 = vpack.c.bf16 %v6517, %v6515
      %v6523 = vpack.c.bf16 %v6521, %v6519
      %s6524 = scalar_lea.vmem %s7, 128
      %v6525 = vld [vmem:[%s6524] sm:$0xf]
      %v6526 = vld [vmem:[%s6524 + $0x4] sm:$0xf]
      %v6527 = vld [vmem:[%s6524 + $0x8] sm:$0xf]
      %v6528 = vld [vmem:[%s6524 + $0xc] sm:$0xf]
      %v6529 = vld [vmem:[%s6524 + $0x10] sm:$0xf]
      %v6530 = vld [vmem:[%s6524 + $0x14] sm:$0xf]
      %v6531 = vld [vmem:[%s6524 + $0x18] sm:$0xf]
      %v6532 = vld [vmem:[%s6524 + $0x1c] sm:$0xf]
      %v6533 = vld [vmem:[%s6524 + $0x20] sm:$0xf]
      %v6534 = vld [vmem:[%s6524 + $0x24] sm:$0xf]
      %v6535 = vld [vmem:[%s6524 + $0x28] sm:$0xf]
      %v6536 = vld [vmem:[%s6524 + $0x2c] sm:$0xf]
      %v6537 = vld [vmem:[%s6524 + $0x30] sm:$0xf]
      %v6538 = vld [vmem:[%s6524 + $0x34] sm:$0xf]
      %v6539 = vld [vmem:[%s6524 + $0x38] sm:$0xf]
      %v6540 = vld [vmem:[%s6524 + $0x3c] sm:$0xf]
      %v6557 = vunpack.c.l.b16 %v6525
      %v6558 = vunpack.c.l.b16 %v6526
      %v6559 = vunpack.c.l.b16 %v6527
      %v6560 = vunpack.c.l.b16 %v6528
      %v6561 = vunpack.c.l.b16 %v6529
      %v6562 = vunpack.c.l.b16 %v6530
      %v6563 = vunpack.c.l.b16 %v6531
      %v6564 = vunpack.c.l.b16 %v6532
      %v6565 = vunpack.c.l.b16 %v6533
      %v6566 = vunpack.c.l.b16 %v6534
      %v6567 = vunpack.c.l.b16 %v6535
      %v6568 = vunpack.c.l.b16 %v6536
      %v6569 = vunpack.c.l.b16 %v6537
      %v6570 = vunpack.c.l.b16 %v6538
      %v6571 = vunpack.c.l.b16 %v6539
      %v6572 = vunpack.c.l.b16 %v6540
      %v6573 = vpack.c.b16 %v6558, %v6557
      %v6574 = vpack.c.b16 %v6560, %v6559
      %v6575 = vpack.c.b16 %v6562, %v6561
      %v6576 = vpack.c.b16 %v6564, %v6563
      %v6577 = vpack.c.b16 %v6566, %v6565
      %v6578 = vpack.c.b16 %v6568, %v6567
      %v6579 = vpack.c.b16 %v6570, %v6569
      %v6580 = vpack.c.b16 %v6572, %v6571
      %6589 = vmatpush.bf16.msra.mxu0 %v6580
      %6590 = vmatpush.bf16.msra.mxu0 %v6579
      %6591 = vmatpush.bf16.msra.mxu0 %v6578
      %6592 = vmatpush.bf16.msra.mxu0 %v6577
      %6593 = vmatpush.bf16.msra.mxu0 %v6576
      %6594 = vmatpush.bf16.msra.mxu0 %v6575
      %6595 = vmatpush.bf16.msra.mxu0 %v6574
      %6596 = vmatpush.bf16.msra.mxu0 %v6573
      %6597 = vmatmul.bf16.gmra.mxu0 %v6522
      %v6598 = vpop.f32.mrf.mxu0
      %v6599 = vadd.f32 0.0, %v6598
      %v6600 = vpop.f32.mrf.mxu0
      %v6601 = vadd.f32 0.0, %v6600
      %6602 = vmatmul.bf16.gmra.mxu0 %v6523
      %v6603 = vpop.f32.mrf.mxu0
      %v6604 = vadd.f32 0.0, %v6603
      %v6605 = vpop.f32.mrf.mxu0
      %v6606 = vadd.f32 0.0, %v6605
      %6607 = vdwg.mxu0
      %v6608 = vadd.f32 %v6505, %v6599
      %v6609 = vadd.f32 %v6507, %v6601
      %v6610 = vadd.f32 %v6510, %v6604
      %v6611 = vadd.f32 %v6512, %v6606
      %s6612 = scalar_lea.vmem [#allocation4], 3
      %v6613 = vld [vmem:[%s6612] ss:$2 sm:$0xff]
      %s6614 = scalar_lea.vmem [#allocation4], 21
      %v6615 = vld [vmem:[%s6614] ss:$2 sm:$0xff]
      %s6616 = scalar_lea.vmem [#allocation4], 39
      %v6617 = vld [vmem:[%s6616] ss:$2 sm:$0xff]
      %s6618 = scalar_lea.vmem [#allocation4], 57
      %v6619 = vld [vmem:[%s6618] ss:$2 sm:$0xff]
      %v6620 = vpack.c.bf16 %v6615, %v6613
      %v6621 = vpack.c.bf16 %v6619, %v6617
      %s6622 = scalar_lea.vmem %s7, 192
      %v6623 = vld [vmem:[%s6622] sm:$0xf]
      %v6624 = vld [vmem:[%s6622 + $0x4] sm:$0xf]
      %v6625 = vld [vmem:[%s6622 + $0x8] sm:$0xf]
      %v6626 = vld [vmem:[%s6622 + $0xc] sm:$0xf]
      %v6627 = vld [vmem:[%s6622 + $0x10] sm:$0xf]
      %v6628 = vld [vmem:[%s6622 + $0x14] sm:$0xf]
      %v6629 = vld [vmem:[%s6622 + $0x18] sm:$0xf]
      %v6630 = vld [vmem:[%s6622 + $0x1c] sm:$0xf]
      %v6631 = vld [vmem:[%s6622 + $0x20] sm:$0xf]
      %v6632 = vld [vmem:[%s6622 + $0x24] sm:$0xf]
      %v6633 = vld [vmem:[%s6622 + $0x28] sm:$0xf]
      %v6634 = vld [vmem:[%s6622 + $0x2c] sm:$0xf]
      %v6635 = vld [vmem:[%s6622 + $0x30] sm:$0xf]
      %v6636 = vld [vmem:[%s6622 + $0x34] sm:$0xf]
      %v6637 = vld [vmem:[%s6622 + $0x38] sm:$0xf]
      %v6638 = vld [vmem:[%s6622 + $0x3c] sm:$0xf]
      %v6655 = vunpack.c.l.b16 %v6623
      %v6656 = vunpack.c.l.b16 %v6624
      %v6657 = vunpack.c.l.b16 %v6625
      %v6658 = vunpack.c.l.b16 %v6626
      %v6659 = vunpack.c.l.b16 %v6627
      %v6660 = vunpack.c.l.b16 %v6628
      %v6661 = vunpack.c.l.b16 %v6629
      %v6662 = vunpack.c.l.b16 %v6630
      %v6663 = vunpack.c.l.b16 %v6631
      %v6664 = vunpack.c.l.b16 %v6632
      %v6665 = vunpack.c.l.b16 %v6633
      %v6666 = vunpack.c.l.b16 %v6634
      %v6667 = vunpack.c.l.b16 %v6635
      %v6668 = vunpack.c.l.b16 %v6636
      %v6669 = vunpack.c.l.b16 %v6637
      %v6670 = vunpack.c.l.b16 %v6638
      %v6671 = vpack.c.b16 %v6656, %v6655
      %v6672 = vpack.c.b16 %v6658, %v6657
      %v6673 = vpack.c.b16 %v6660, %v6659
      %v6674 = vpack.c.b16 %v6662, %v6661
      %v6675 = vpack.c.b16 %v6664, %v6663
      %v6676 = vpack.c.b16 %v6666, %v6665
      %v6677 = vpack.c.b16 %v6668, %v6667
      %v6678 = vpack.c.b16 %v6670, %v6669
      %6687 = vmatpush.bf16.msra.mxu0 %v6678
      %6688 = vmatpush.bf16.msra.mxu0 %v6677
      %6689 = vmatpush.bf16.msra.mxu0 %v6676
      %6690 = vmatpush.bf16.msra.mxu0 %v6675
      %6691 = vmatpush.bf16.msra.mxu0 %v6674
      %6692 = vmatpush.bf16.msra.mxu0 %v6673
      %6693 = vmatpush.bf16.msra.mxu0 %v6672
      %6694 = vmatpush.bf16.msra.mxu0 %v6671
      %6695 = vmatmul.bf16.gmra.mxu0 %v6620
      %v6696 = vpop.f32.mrf.mxu0
      %v6697 = vadd.f32 0.0, %v6696
      %v6698 = vpop.f32.mrf.mxu0
      %v6699 = vadd.f32 0.0, %v6698
      %6700 = vmatmul.bf16.gmra.mxu0 %v6621
      %v6701 = vpop.f32.mrf.mxu0
      %v6702 = vadd.f32 0.0, %v6701
      %v6703 = vpop.f32.mrf.mxu0
      %v6704 = vadd.f32 0.0, %v6703
      %6705 = vdwg.mxu0
      %v6706 = vadd.f32 %v6608, %v6697
      %v6707 = vadd.f32 %v6609, %v6699
      %v6708 = vadd.f32 %v6610, %v6702
      %v6709 = vadd.f32 %v6611, %v6704
      %v6711 = vperm.slane %v6327, 0
      %v6713 = vadd.f32 %v6706, %v6711
      %v6714 = vadd.f32 %v6707, %v6711
      %v6715 = vadd.f32 %v6708, %v6711
      %v6716 = vadd.f32 %v6709, %v6711
      %v6717 = vmax.f32 %v6713, 0.0
      %v6718 = vmax.f32 %v6714, 0.0
      %v6719 = vmax.f32 %v6715, 0.0
      %v6720 = vmax.f32 %v6716, 0.0
      %6721 = vst [vmem:[#allocation5] sm:$0x1] 0.0
      %6722 = vst [vmem:[#allocation5 + $0x1] sm:$0xff] %v6717
      %6723 = vst [vmem:[#allocation5 + $0x9] sm:$0x1] 0.0
      %6724 = vst [vmem:[#allocation5 + $0xa] sm:$0x1] 0.0
      %6725 = vst [vmem:[#allocation5 + $0xb] sm:$0xff] %v6718
      %6726 = vst [vmem:[#allocation5 + $0x13] sm:$0x1] 0.0
      %6727 = vst [vmem:[#allocation5 + $0x14] sm:$0x1] 0.0
      %6728 = vst [vmem:[#allocation5 + $0x15] sm:$0xff] %v6719
      %6729 = vst [vmem:[#allocation5 + $0x1d] sm:$0x1] 0.0
      %6730 = vst [vmem:[#allocation5 + $0x1e] sm:$0x1] 0.0
      %6731 = vst [vmem:[#allocation5 + $0x1f] sm:$0xff] %v6720
      %6732 = vst [vmem:[#allocation5 + $0x27] sm:$0x1] 0.0
      %v6733 = vld [vmem:[%s10] sm:$0x1]
      %v6734 = vld [vmem:[#allocation5] ss:$2 sm:$0xf]
      %s6735 = scalar_lea.vmem [#allocation5], 10
      %v6736 = vld [vmem:[%s6735] ss:$2 sm:$0xf]
      %s6737 = scalar_lea.vmem [#allocation5], 20
      %v6738 = vld [vmem:[%s6737] ss:$2 sm:$0xf]
      %s6739 = scalar_lea.vmem [#allocation5], 30
      %v6740 = vld [vmem:[%s6739] ss:$2 sm:$0xf]
      %v6742 = vrot.slane %v6736, 4
      %v6745 = vrot.slane %v6740, 4
      %vm6747 = vcmask 1043456
      %v6748 = vsel %vm6747, %v6734, %v6742
      %v6749 = vsel %vm6747, %v6738, %v6745
      %v6750 = vpack.c.bf16 %v6749, %v6748
      %v6751 = vld [vmem:[%s9] sm:$0xf]
      %v6752 = vld [vmem:[%s9 + $0x4] sm:$0xf]
      %v6753 = vld [vmem:[%s9 + $0x8] sm:$0xf]
      %v6754 = vld [vmem:[%s9 + $0xc] sm:$0xf]
      %v6755 = vld [vmem:[%s9 + $0x10] sm:$0xf]
      %v6756 = vld [vmem:[%s9 + $0x14] sm:$0xf]
      %v6757 = vld [vmem:[%s9 + $0x18] sm:$0xf]
      %v6758 = vld [vmem:[%s9 + $0x1c] sm:$0xf]
      %v6759 = vld [vmem:[%s9 + $0x20] sm:$0xf]
      %v6760 = vld [vmem:[%s9 + $0x24] sm:$0xf]
      %v6761 = vld [vmem:[%s9 + $0x28] sm:$0xf]
      %v6762 = vld [vmem:[%s9 + $0x2c] sm:$0xf]
      %v6763 = vld [vmem:[%s9 + $0x30] sm:$0xf]
      %v6764 = vld [vmem:[%s9 + $0x34] sm:$0xf]
      %v6765 = vld [vmem:[%s9 + $0x38] sm:$0xf]
      %v6766 = vld [vmem:[%s9 + $0x3c] sm:$0xf]
      %s6767 = scalar_lea.vmem [#allocation5], 1
      %v6768 = vld [vmem:[%s6767] ss:$2 sm:$0xf]
      %s6769 = scalar_lea.vmem [#allocation5], 11
      %v6770 = vld [vmem:[%s6769] ss:$2 sm:$0xf]
      %s6771 = scalar_lea.vmem [#allocation5], 21
      %v6772 = vld [vmem:[%s6771] ss:$2 sm:$0xf]
      %s6773 = scalar_lea.vmem [#allocation5], 31
      %v6774 = vld [vmem:[%s6773] ss:$2 sm:$0xf]
      %v6776 = vrot.slane %v6770, 4
      %v6779 = vrot.slane %v6774, 4
      %v6781 = vsel %vm6747, %v6768, %v6776
      %v6782 = vsel %vm6747, %v6772, %v6779
      %v6783 = vpack.c.bf16 %v6782, %v6781
      %s6784 = scalar_lea.vmem %s9, 64
      %v6785 = vld [vmem:[%s6784] sm:$0xf]
      %v6786 = vld [vmem:[%s6784 + $0x4] sm:$0xf]
      %v6787 = vld [vmem:[%s6784 + $0x8] sm:$0xf]
      %v6788 = vld [vmem:[%s6784 + $0xc] sm:$0xf]
      %v6789 = vld [vmem:[%s6784 + $0x10] sm:$0xf]
      %v6790 = vld [vmem:[%s6784 + $0x14] sm:$0xf]
      %v6791 = vld [vmem:[%s6784 + $0x18] sm:$0xf]
      %v6792 = vld [vmem:[%s6784 + $0x1c] sm:$0xf]
      %v6793 = vld [vmem:[%s6784 + $0x20] sm:$0xf]
      %v6794 = vld [vmem:[%s6784 + $0x24] sm:$0xf]
      %v6795 = vld [vmem:[%s6784 + $0x28] sm:$0xf]
      %v6796 = vld [vmem:[%s6784 + $0x2c] sm:$0xf]
      %v6797 = vld [vmem:[%s6784 + $0x30] sm:$0xf]
      %v6798 = vld [vmem:[%s6784 + $0x34] sm:$0xf]
      %v6799 = vld [vmem:[%s6784 + $0x38] sm:$0xf]
      %v6800 = vld [vmem:[%s6784 + $0x3c] sm:$0xf]
      %v6817 = vunpack.c.l.b16 %v6785
      %v6818 = vunpack.c.l.b16 %v6786
      %v6819 = vunpack.c.l.b16 %v6787
      %v6820 = vunpack.c.l.b16 %v6788
      %v6821 = vunpack.c.l.b16 %v6789
      %v6822 = vunpack.c.l.b16 %v6790
      %v6823 = vunpack.c.l.b16 %v6791
      %v6824 = vunpack.c.l.b16 %v6792
      %v6825 = vunpack.c.l.b16 %v6793
      %v6826 = vunpack.c.l.b16 %v6794
      %v6827 = vunpack.c.l.b16 %v6795
      %v6828 = vunpack.c.l.b16 %v6796
      %v6829 = vunpack.c.l.b16 %v6797
      %v6830 = vunpack.c.l.b16 %v6798
      %v6831 = vunpack.c.l.b16 %v6799
      %v6832 = vunpack.c.l.b16 %v6800
      %v6833 = vpack.c.b16 %v6818, %v6817
      %v6834 = vpack.c.b16 %v6820, %v6819
      %v6835 = vpack.c.b16 %v6822, %v6821
      %v6836 = vpack.c.b16 %v6824, %v6823
      %v6837 = vpack.c.b16 %v6826, %v6825
      %v6838 = vpack.c.b16 %v6828, %v6827
      %v6839 = vpack.c.b16 %v6830, %v6829
      %v6840 = vpack.c.b16 %v6832, %v6831
      %6849 = vmatpush.bf16.msra.mxu0 %v6840
      %6850 = vmatpush.bf16.msra.mxu0 %v6839
      %6851 = vmatpush.bf16.msra.mxu0 %v6838
      %6852 = vmatpush.bf16.msra.mxu0 %v6837
      %6853 = vmatpush.bf16.msra.mxu0 %v6836
      %6854 = vmatpush.bf16.msra.mxu0 %v6835
      %6855 = vmatpush.bf16.msra.mxu0 %v6834
      %6856 = vmatpush.bf16.msra.mxu0 %v6833
      %6857 = vmatmul.bf16.gmra.mxu0 %v6783
      %v6858 = vpop.f32.mrf.mxu0
      %v6859 = vadd.f32 0.0, %v6858
      %v6860 = vpop.f32.mrf.mxu0
      %v6861 = vadd.f32 0.0, %v6860
      %6862 = vdwg.mxu0
      %v6879 = vunpack.c.l.b16 %v6751
      %v6880 = vunpack.c.l.b16 %v6752
      %v6881 = vunpack.c.l.b16 %v6753
      %v6882 = vunpack.c.l.b16 %v6754
      %v6883 = vunpack.c.l.b16 %v6755
      %v6884 = vunpack.c.l.b16 %v6756
      %v6885 = vunpack.c.l.b16 %v6757
      %v6886 = vunpack.c.l.b16 %v6758
      %v6887 = vunpack.c.l.b16 %v6759
      %v6888 = vunpack.c.l.b16 %v6760
      %v6889 = vunpack.c.l.b16 %v6761
      %v6890 = vunpack.c.l.b16 %v6762
      %v6891 = vunpack.c.l.b16 %v6763
      %v6892 = vunpack.c.l.b16 %v6764
      %v6893 = vunpack.c.l.b16 %v6765
      %v6894 = vunpack.c.l.b16 %v6766
      %v6895 = vpack.c.b16 %v6880, %v6879
      %v6896 = vpack.c.b16 %v6882, %v6881
      %v6897 = vpack.c.b16 %v6884, %v6883
      %v6898 = vpack.c.b16 %v6886, %v6885
      %v6899 = vpack.c.b16 %v6888, %v6887
      %v6900 = vpack.c.b16 %v6890, %v6889
      %v6901 = vpack.c.b16 %v6892, %v6891
      %v6902 = vpack.c.b16 %v6894, %v6893
      %6911 = vmatpush.bf16.msra.mxu0 %v6902
      %6912 = vmatpush.bf16.msra.mxu0 %v6901
      %6913 = vmatpush.bf16.msra.mxu0 %v6900
      %6914 = vmatpush.bf16.msra.mxu0 %v6899
      %6915 = vmatpush.bf16.msra.mxu0 %v6898
      %6916 = vmatpush.bf16.msra.mxu0 %v6897
      %6917 = vmatpush.bf16.msra.mxu0 %v6896
      %6918 = vmatpush.bf16.msra.mxu0 %v6895
      %6919 = vmatmul.bf16.gmra.mxu0 %v6750
      %v6920 = vpop.f32.mrf.mxu0
      %v6921 = vadd.f32 %v6859, %v6920
      %v6922 = vpop.f32.mrf.mxu0
      %v6923 = vadd.f32 %v6861, %v6922
      %6924 = vdwg.mxu0
      %s6925 = scalar_lea.vmem [#allocation5], 2
      %v6926 = vld [vmem:[%s6925] ss:$2 sm:$0xf]
      %s6927 = scalar_lea.vmem [#allocation5], 12
      %v6928 = vld [vmem:[%s6927] ss:$2 sm:$0xf]
      %s6929 = scalar_lea.vmem [#allocation5], 22
      %v6930 = vld [vmem:[%s6929] ss:$2 sm:$0xf]
      %s6931 = scalar_lea.vmem [#allocation5], 32
      %v6932 = vld [vmem:[%s6931] ss:$2 sm:$0xf]
      %v6934 = vrot.slane %v6928, 4
      %v6937 = vrot.slane %v6932, 4
      %v6939 = vsel %vm6747, %v6926, %v6934
      %v6940 = vsel %vm6747, %v6930, %v6937
      %v6941 = vpack.c.bf16 %v6940, %v6939
      %s6942 = scalar_lea.vmem %s9, 128
      %v6943 = vld [vmem:[%s6942] sm:$0xf]
      %v6944 = vld [vmem:[%s6942 + $0x4] sm:$0xf]
      %v6945 = vld [vmem:[%s6942 + $0x8] sm:$0xf]
      %v6946 = vld [vmem:[%s6942 + $0xc] sm:$0xf]
      %v6947 = vld [vmem:[%s6942 + $0x10] sm:$0xf]
      %v6948 = vld [vmem:[%s6942 + $0x14] sm:$0xf]
      %v6949 = vld [vmem:[%s6942 + $0x18] sm:$0xf]
      %v6950 = vld [vmem:[%s6942 + $0x1c] sm:$0xf]
      %v6951 = vld [vmem:[%s6942 + $0x20] sm:$0xf]
      %v6952 = vld [vmem:[%s6942 + $0x24] sm:$0xf]
      %v6953 = vld [vmem:[%s6942 + $0x28] sm:$0xf]
      %v6954 = vld [vmem:[%s6942 + $0x2c] sm:$0xf]
      %v6955 = vld [vmem:[%s6942 + $0x30] sm:$0xf]
      %v6956 = vld [vmem:[%s6942 + $0x34] sm:$0xf]
      %v6957 = vld [vmem:[%s6942 + $0x38] sm:$0xf]
      %v6958 = vld [vmem:[%s6942 + $0x3c] sm:$0xf]
      %v6975 = vunpack.c.l.b16 %v6943
      %v6976 = vunpack.c.l.b16 %v6944
      %v6977 = vunpack.c.l.b16 %v6945
      %v6978 = vunpack.c.l.b16 %v6946
      %v6979 = vunpack.c.l.b16 %v6947
      %v6980 = vunpack.c.l.b16 %v6948
      %v6981 = vunpack.c.l.b16 %v6949
      %v6982 = vunpack.c.l.b16 %v6950
      %v6983 = vunpack.c.l.b16 %v6951
      %v6984 = vunpack.c.l.b16 %v6952
      %v6985 = vunpack.c.l.b16 %v6953
      %v6986 = vunpack.c.l.b16 %v6954
      %v6987 = vunpack.c.l.b16 %v6955
      %v6988 = vunpack.c.l.b16 %v6956
      %v6989 = vunpack.c.l.b16 %v6957
      %v6990 = vunpack.c.l.b16 %v6958
      %v6991 = vpack.c.b16 %v6976, %v6975
      %v6992 = vpack.c.b16 %v6978, %v6977
      %v6993 = vpack.c.b16 %v6980, %v6979
      %v6994 = vpack.c.b16 %v6982, %v6981
      %v6995 = vpack.c.b16 %v6984, %v6983
      %v6996 = vpack.c.b16 %v6986, %v6985
      %v6997 = vpack.c.b16 %v6988, %v6987
      %v6998 = vpack.c.b16 %v6990, %v6989
      %7007 = vmatpush.bf16.msra.mxu0 %v6998
      %7008 = vmatpush.bf16.msra.mxu0 %v6997
      %7009 = vmatpush.bf16.msra.mxu0 %v6996
      %7010 = vmatpush.bf16.msra.mxu0 %v6995
      %7011 = vmatpush.bf16.msra.mxu0 %v6994
      %7012 = vmatpush.bf16.msra.mxu0 %v6993
      %7013 = vmatpush.bf16.msra.mxu0 %v6992
      %7014 = vmatpush.bf16.msra.mxu0 %v6991
      %7015 = vmatmul.bf16.gmra.mxu0 %v6941
      %v7016 = vpop.f32.mrf.mxu0
      %v7017 = vadd.f32 0.0, %v7016
      %v7018 = vpop.f32.mrf.mxu0
      %v7019 = vadd.f32 0.0, %v7018
      %7020 = vdwg.mxu0
      %v7021 = vadd.f32 %v6921, %v7017
      %v7022 = vadd.f32 %v6923, %v7019
      %s7023 = scalar_lea.vmem [#allocation5], 3
      %v7024 = vld [vmem:[%s7023] ss:$2 sm:$0xf]
      %s7025 = scalar_lea.vmem [#allocation5], 13
      %v7026 = vld [vmem:[%s7025] ss:$2 sm:$0xf]
      %s7027 = scalar_lea.vmem [#allocation5], 23
      %v7028 = vld [vmem:[%s7027] ss:$2 sm:$0xf]
      %s7029 = scalar_lea.vmem [#allocation5], 33
      %v7030 = vld [vmem:[%s7029] ss:$2 sm:$0xf]
      %v7032 = vrot.slane %v7026, 4
      %v7035 = vrot.slane %v7030, 4
      %v7037 = vsel %vm6747, %v7024, %v7032
      %v7038 = vsel %vm6747, %v7028, %v7035
      %v7039 = vpack.c.bf16 %v7038, %v7037
      %s7040 = scalar_lea.vmem %s9, 192
      %v7041 = vld [vmem:[%s7040] sm:$0xf]
      %v7042 = vld [vmem:[%s7040 + $0x4] sm:$0xf]
      %v7043 = vld [vmem:[%s7040 + $0x8] sm:$0xf]
      %v7044 = vld [vmem:[%s7040 + $0xc] sm:$0xf]
      %v7045 = vld [vmem:[%s7040 + $0x10] sm:$0xf]
      %v7046 = vld [vmem:[%s7040 + $0x14] sm:$0xf]
      %v7047 = vld [vmem:[%s7040 + $0x18] sm:$0xf]
      %v7048 = vld [vmem:[%s7040 + $0x1c] sm:$0xf]
      %v7049 = vld [vmem:[%s7040 + $0x20] sm:$0xf]
      %v7050 = vld [vmem:[%s7040 + $0x24] sm:$0xf]
      %v7051 = vld [vmem:[%s7040 + $0x28] sm:$0xf]
      %v7052 = vld [vmem:[%s7040 + $0x2c] sm:$0xf]
      %v7053 = vld [vmem:[%s7040 + $0x30] sm:$0xf]
      %v7054 = vld [vmem:[%s7040 + $0x34] sm:$0xf]
      %v7055 = vld [vmem:[%s7040 + $0x38] sm:$0xf]
      %v7056 = vld [vmem:[%s7040 + $0x3c] sm:$0xf]
      %v7073 = vunpack.c.l.b16 %v7041
      %v7074 = vunpack.c.l.b16 %v7042
      %v7075 = vunpack.c.l.b16 %v7043
      %v7076 = vunpack.c.l.b16 %v7044
      %v7077 = vunpack.c.l.b16 %v7045
      %v7078 = vunpack.c.l.b16 %v7046
      %v7079 = vunpack.c.l.b16 %v7047
      %v7080 = vunpack.c.l.b16 %v7048
      %v7081 = vunpack.c.l.b16 %v7049
      %v7082 = vunpack.c.l.b16 %v7050
      %v7083 = vunpack.c.l.b16 %v7051
      %v7084 = vunpack.c.l.b16 %v7052
      %v7085 = vunpack.c.l.b16 %v7053
      %v7086 = vunpack.c.l.b16 %v7054
      %v7087 = vunpack.c.l.b16 %v7055
      %v7088 = vunpack.c.l.b16 %v7056
      %v7089 = vpack.c.b16 %v7074, %v7073
      %v7090 = vpack.c.b16 %v7076, %v7075
      %v7091 = vpack.c.b16 %v7078, %v7077
      %v7092 = vpack.c.b16 %v7080, %v7079
      %v7093 = vpack.c.b16 %v7082, %v7081
      %v7094 = vpack.c.b16 %v7084, %v7083
      %v7095 = vpack.c.b16 %v7086, %v7085
      %v7096 = vpack.c.b16 %v7088, %v7087
      %7105 = vmatpush.bf16.msra.mxu0 %v7096
      %7106 = vmatpush.bf16.msra.mxu0 %v7095
      %7107 = vmatpush.bf16.msra.mxu0 %v7094
      %7108 = vmatpush.bf16.msra.mxu0 %v7093
      %7109 = vmatpush.bf16.msra.mxu0 %v7092
      %7110 = vmatpush.bf16.msra.mxu0 %v7091
      %7111 = vmatpush.bf16.msra.mxu0 %v7090
      %7112 = vmatpush.bf16.msra.mxu0 %v7089
      %7113 = vmatmul.bf16.gmra.mxu0 %v7039
      %v7114 = vpop.f32.mrf.mxu0
      %v7115 = vadd.f32 0.0, %v7114
      %v7116 = vpop.f32.mrf.mxu0
      %v7117 = vadd.f32 0.0, %v7116
      %7118 = vdwg.mxu0
      %v7119 = vadd.f32 %v7021, %v7115
      %v7120 = vadd.f32 %v7022, %v7117
      %v7122 = vperm.slane %v6733, 0
      %v7124 = vadd.f32 %v7119, %v7122
      %v7125 = vadd.f32 %v7120, %v7122
      %v7126 = vmax.f32 %v7124, 0.0
      %v7127 = vmax.f32 %v7125, 0.0
      %v7129 = vrot.slane %v7126, 1
      %v7131 = vrot.slane %v7126, 2
      %v7133 = vrot.slane %v7126, 3
      %v7135 = vrot.slane %v7126, 4
      %v7137 = vrot.slane %v7126, 5
      %v7139 = vrot.slane %v7126, 6
      %v7141 = vrot.slane %v7126, 7
      %v7144 = vrot.slane %v7127, 1
      %v7146 = vrot.slane %v7127, 2
      %v7148 = vrot.slane %v7127, 3
      %v7150 = vrot.slane %v7127, 4
      %v7152 = vrot.slane %v7127, 5
      %v7154 = vrot.slane %v7127, 6
      %v7156 = vrot.slane %v7127, 7
      %v7158 = vpack.c.bf16 %v7126, %v7126
      %v7159 = vpack.c.bf16 %v7129, %v7129
      %v7160 = vpack.c.bf16 %v7131, %v7131
      %v7161 = vpack.c.bf16 %v7133, %v7133
      %v7162 = vpack.c.bf16 %v7135, %v7135
      %v7163 = vpack.c.bf16 %v7137, %v7137
      %v7164 = vpack.c.bf16 %v7139, %v7139
      %v7165 = vpack.c.bf16 %v7141, %v7141
      %v7166 = vpack.c.bf16 %v7127, %v7127
      %v7167 = vpack.c.bf16 %v7144, %v7144
      %v7168 = vpack.c.bf16 %v7146, %v7146
      %v7169 = vpack.c.bf16 %v7148, %v7148
      %v7170 = vpack.c.bf16 %v7150, %v7150
      %v7171 = vpack.c.bf16 %v7152, %v7152
      %v7172 = vpack.c.bf16 %v7154, %v7154
      %v7173 = vpack.c.bf16 %v7156, %v7156
      %v7174 = vld [vmem:[%s11] sm:$0xf]
      %v7175 = vld [vmem:[%s11 + $0x4] sm:$0xf]
      %v7176 = vld [vmem:[%s11 + $0x8] sm:$0xf]
      %v7177 = vld [vmem:[%s11 + $0xc] sm:$0xf]
      %v7178 = vld [vmem:[%s11 + $0x10] sm:$0xf]
      %v7179 = vld [vmem:[%s11 + $0x14] sm:$0xf]
      %v7180 = vld [vmem:[%s11 + $0x18] sm:$0xf]
      %v7181 = vld [vmem:[%s11 + $0x1c] sm:$0xf]
      %v7182 = vld [vmem:[%s11 + $0x20] sm:$0xf]
      %v7183 = vld [vmem:[%s11 + $0x24] sm:$0xf]
      %v7184 = vld [vmem:[%s11 + $0x28] sm:$0xf]
      %v7185 = vld [vmem:[%s11 + $0x2c] sm:$0xf]
      %v7186 = vld [vmem:[%s11 + $0x30] sm:$0xf]
      %v7187 = vld [vmem:[%s11 + $0x34] sm:$0xf]
      %v7188 = vld [vmem:[%s11 + $0x38] sm:$0xf]
      %v7189 = vld [vmem:[%s11 + $0x3c] sm:$0xf]
      %v7190 = vld [vmem:[%s11 + $0x40] sm:$0xf]
      %v7191 = vld [vmem:[%s11 + $0x44] sm:$0xf]
      %v7192 = vld [vmem:[%s11 + $0x48] sm:$0xf]
      %v7193 = vld [vmem:[%s11 + $0x4c] sm:$0xf]
      %v7194 = vld [vmem:[%s11 + $0x50] sm:$0xf]
      %v7195 = vld [vmem:[%s11 + $0x54] sm:$0xf]
      %v7196 = vld [vmem:[%s11 + $0x58] sm:$0xf]
      %v7197 = vld [vmem:[%s11 + $0x5c] sm:$0xf]
      %v7198 = vld [vmem:[%s11 + $0x60] sm:$0xf]
      %v7199 = vld [vmem:[%s11 + $0x64] sm:$0xf]
      %v7200 = vld [vmem:[%s11 + $0x68] sm:$0xf]
      %v7201 = vld [vmem:[%s11 + $0x6c] sm:$0xf]
      %v7202 = vld [vmem:[%s11 + $0x70] sm:$0xf]
      %v7203 = vld [vmem:[%s11 + $0x74] sm:$0xf]
      %v7204 = vld [vmem:[%s11 + $0x78] sm:$0xf]
      %v7205 = vld [vmem:[%s11 + $0x7c] sm:$0xf]
      %v7206 = vld [vmem:[%s11 + $0x80] sm:$0xf]
      %v7207 = vld [vmem:[%s11 + $0x84] sm:$0xf]
      %v7208 = vld [vmem:[%s11 + $0x88] sm:$0xf]
      %v7209 = vld [vmem:[%s11 + $0x8c] sm:$0xf]
      %v7210 = vld [vmem:[%s11 + $0x90] sm:$0xf]
      %v7211 = vld [vmem:[%s11 + $0x94] sm:$0xf]
      %v7212 = vld [vmem:[%s11 + $0x98] sm:$0xf]
      %v7213 = vld [vmem:[%s11 + $0x9c] sm:$0xf]
      %v7214 = vld [vmem:[%s11 + $0xa0] sm:$0xf]
      %v7215 = vld [vmem:[%s11 + $0xa4] sm:$0xf]
      %v7216 = vld [vmem:[%s11 + $0xa8] sm:$0xf]
      %v7217 = vld [vmem:[%s11 + $0xac] sm:$0xf]
      %v7218 = vld [vmem:[%s11 + $0xb0] sm:$0xf]
      %v7219 = vld [vmem:[%s11 + $0xb4] sm:$0xf]
      %v7220 = vld [vmem:[%s11 + $0xb8] sm:$0xf]
      %v7221 = vld [vmem:[%s11 + $0xbc] sm:$0xf]
      %v7222 = vld [vmem:[%s11 + $0xc0] sm:$0xf]
      %v7223 = vld [vmem:[%s11 + $0xc4] sm:$0xf]
      %v7224 = vld [vmem:[%s11 + $0xc8] sm:$0xf]
      %v7225 = vld [vmem:[%s11 + $0xcc] sm:$0xf]
      %v7226 = vld [vmem:[%s11 + $0xd0] sm:$0xf]
      %v7227 = vld [vmem:[%s11 + $0xd4] sm:$0xf]
      %v7228 = vld [vmem:[%s11 + $0xd8] sm:$0xf]
      %v7229 = vld [vmem:[%s11 + $0xdc] sm:$0xf]
      %v7230 = vld [vmem:[%s11 + $0xe0] sm:$0xf]
      %v7231 = vld [vmem:[%s11 + $0xe4] sm:$0xf]
      %v7232 = vld [vmem:[%s11 + $0xe8] sm:$0xf]
      %v7233 = vld [vmem:[%s11 + $0xec] sm:$0xf]
      %v7234 = vld [vmem:[%s11 + $0xf0] sm:$0xf]
      %v7235 = vld [vmem:[%s11 + $0xf4] sm:$0xf]
      %v7236 = vld [vmem:[%s11 + $0xf8] sm:$0xf]
      %v7237 = vld [vmem:[%s11 + $0xfc] sm:$0xf]
      %v7238 = vld [vmem:[%s11 + $0x100] sm:$0xf]
      %v7239 = vld [vmem:[%s11 + $0x104] sm:$0xf]
      %v7240 = vld [vmem:[%s11 + $0x108] sm:$0xf]
      %v7241 = vld [vmem:[%s11 + $0x10c] sm:$0xf]
      %v7242 = vld [vmem:[%s11 + $0x110] sm:$0xf]
      %v7243 = vld [vmem:[%s11 + $0x114] sm:$0xf]
      %v7244 = vld [vmem:[%s11 + $0x118] sm:$0xf]
      %v7245 = vld [vmem:[%s11 + $0x11c] sm:$0xf]
      %v7246 = vld [vmem:[%s11 + $0x120] sm:$0xf]
      %v7247 = vld [vmem:[%s11 + $0x124] sm:$0xf]
      %v7248 = vld [vmem:[%s11 + $0x128] sm:$0xf]
      %v7249 = vld [vmem:[%s11 + $0x12c] sm:$0xf]
      %v7250 = vld [vmem:[%s11 + $0x130] sm:$0xf]
      %v7251 = vld [vmem:[%s11 + $0x134] sm:$0xf]
      %v7252 = vld [vmem:[%s11 + $0x138] sm:$0xf]
      %v7253 = vld [vmem:[%s11 + $0x13c] sm:$0xf]
      %v7254 = vld [vmem:[%s11 + $0x140] sm:$0xf]
      %v7255 = vld [vmem:[%s11 + $0x144] sm:$0xf]
      %v7256 = vld [vmem:[%s11 + $0x148] sm:$0xf]
      %v7257 = vld [vmem:[%s11 + $0x14c] sm:$0xf]
      %v7258 = vld [vmem:[%s11 + $0x150] sm:$0xf]
      %v7259 = vld [vmem:[%s11 + $0x154] sm:$0xf]
      %v7260 = vld [vmem:[%s11 + $0x158] sm:$0xf]
      %v7261 = vld [vmem:[%s11 + $0x15c] sm:$0xf]
      %v7262 = vld [vmem:[%s11 + $0x160] sm:$0xf]
      %v7263 = vld [vmem:[%s11 + $0x164] sm:$0xf]
      %v7264 = vld [vmem:[%s11 + $0x168] sm:$0xf]
      %v7265 = vld [vmem:[%s11 + $0x16c] sm:$0xf]
      %v7266 = vld [vmem:[%s11 + $0x170] sm:$0xf]
      %v7267 = vld [vmem:[%s11 + $0x174] sm:$0xf]
      %v7268 = vld [vmem:[%s11 + $0x178] sm:$0xf]
      %v7269 = vld [vmem:[%s11 + $0x17c] sm:$0xf]
      %v7270 = vld [vmem:[%s11 + $0x180] sm:$0xf]
      %v7271 = vld [vmem:[%s11 + $0x184] sm:$0xf]
      %v7272 = vld [vmem:[%s11 + $0x188] sm:$0xf]
      %v7273 = vld [vmem:[%s11 + $0x18c] sm:$0xf]
      %v7274 = vld [vmem:[%s11 + $0x190] sm:$0xf]
      %v7275 = vld [vmem:[%s11 + $0x194] sm:$0xf]
      %v7276 = vld [vmem:[%s11 + $0x198] sm:$0xf]
      %v7277 = vld [vmem:[%s11 + $0x19c] sm:$0xf]
      %v7278 = vld [vmem:[%s11 + $0x1a0] sm:$0xf]
      %v7279 = vld [vmem:[%s11 + $0x1a4] sm:$0xf]
      %v7280 = vld [vmem:[%s11 + $0x1a8] sm:$0xf]
      %v7281 = vld [vmem:[%s11 + $0x1ac] sm:$0xf]
      %v7282 = vld [vmem:[%s11 + $0x1b0] sm:$0xf]
      %v7283 = vld [vmem:[%s11 + $0x1b4] sm:$0xf]
      %v7284 = vld [vmem:[%s11 + $0x1b8] sm:$0xf]
      %v7285 = vld [vmem:[%s11 + $0x1bc] sm:$0xf]
      %v7286 = vld [vmem:[%s11 + $0x1c0] sm:$0xf]
      %v7287 = vld [vmem:[%s11 + $0x1c4] sm:$0xf]
      %v7288 = vld [vmem:[%s11 + $0x1c8] sm:$0xf]
      %v7289 = vld [vmem:[%s11 + $0x1cc] sm:$0xf]
      %v7290 = vld [vmem:[%s11 + $0x1d0] sm:$0xf]
      %v7291 = vld [vmem:[%s11 + $0x1d4] sm:$0xf]
      %v7292 = vld [vmem:[%s11 + $0x1d8] sm:$0xf]
      %v7293 = vld [vmem:[%s11 + $0x1dc] sm:$0xf]
      %v7294 = vld [vmem:[%s11 + $0x1e0] sm:$0xf]
      %v7295 = vld [vmem:[%s11 + $0x1e4] sm:$0xf]
      %v7296 = vld [vmem:[%s11 + $0x1e8] sm:$0xf]
      %v7297 = vld [vmem:[%s11 + $0x1ec] sm:$0xf]
      %v7298 = vld [vmem:[%s11 + $0x1f0] sm:$0xf]
      %v7299 = vld [vmem:[%s11 + $0x1f4] sm:$0xf]
      %v7300 = vld [vmem:[%s11 + $0x1f8] sm:$0xf]
      %v7301 = vld [vmem:[%s11 + $0x1fc] sm:$0xf]
      %v7302 = vld [vmem:[%s11 + $0x200] sm:$0xf]
      %v7303 = vld [vmem:[%s11 + $0x204] sm:$0xf]
      %v7304 = vld [vmem:[%s11 + $0x208] sm:$0xf]
      %v7305 = vld [vmem:[%s11 + $0x20c] sm:$0xf]
      %v7306 = vld [vmem:[%s11 + $0x210] sm:$0xf]
      %v7307 = vld [vmem:[%s11 + $0x214] sm:$0xf]
      %v7308 = vld [vmem:[%s11 + $0x218] sm:$0xf]
      %v7309 = vld [vmem:[%s11 + $0x21c] sm:$0xf]
      %v7310 = vld [vmem:[%s11 + $0x220] sm:$0xf]
      %v7311 = vld [vmem:[%s11 + $0x224] sm:$0xf]
      %v7312 = vld [vmem:[%s11 + $0x228] sm:$0xf]
      %v7313 = vld [vmem:[%s11 + $0x22c] sm:$0xf]
      %v7314 = vld [vmem:[%s11 + $0x230] sm:$0xf]
      %v7315 = vld [vmem:[%s11 + $0x234] sm:$0xf]
      %v7316 = vld [vmem:[%s11 + $0x238] sm:$0xf]
      %v7317 = vld [vmem:[%s11 + $0x23c] sm:$0xf]
      %v7318 = vld [vmem:[%s11 + $0x240] sm:$0xf]
      %v7319 = vld [vmem:[%s11 + $0x244] sm:$0xf]
      %v7320 = vld [vmem:[%s11 + $0x248] sm:$0xf]
      %v7321 = vld [vmem:[%s11 + $0x24c] sm:$0xf]
      %v7322 = vld [vmem:[%s11 + $0x250] sm:$0xf]
      %v7323 = vld [vmem:[%s11 + $0x254] sm:$0xf]
      %v7324 = vld [vmem:[%s11 + $0x258] sm:$0xf]
      %v7325 = vld [vmem:[%s11 + $0x25c] sm:$0xf]
      %v7326 = vld [vmem:[%s11 + $0x260] sm:$0xf]
      %v7327 = vld [vmem:[%s11 + $0x264] sm:$0xf]
      %v7328 = vld [vmem:[%s11 + $0x268] sm:$0xf]
      %v7329 = vld [vmem:[%s11 + $0x26c] sm:$0xf]
      %v7330 = vld [vmem:[%s11 + $0x270] sm:$0xf]
      %v7331 = vld [vmem:[%s11 + $0x274] sm:$0xf]
      %v7332 = vld [vmem:[%s11 + $0x278] sm:$0xf]
      %v7333 = vld [vmem:[%s11 + $0x27c] sm:$0xf]
      %v7334 = vld [vmem:[%s11 + $0x280] sm:$0xf]
      %v7335 = vld [vmem:[%s11 + $0x284] sm:$0xf]
      %v7336 = vld [vmem:[%s11 + $0x288] sm:$0xf]
      %v7337 = vld [vmem:[%s11 + $0x28c] sm:$0xf]
      %v7338 = vld [vmem:[%s11 + $0x290] sm:$0xf]
      %v7339 = vld [vmem:[%s11 + $0x294] sm:$0xf]
      %v7340 = vld [vmem:[%s11 + $0x298] sm:$0xf]
      %v7341 = vld [vmem:[%s11 + $0x29c] sm:$0xf]
      %v7342 = vld [vmem:[%s11 + $0x2a0] sm:$0xf]
      %v7343 = vld [vmem:[%s11 + $0x2a4] sm:$0xf]
      %v7344 = vld [vmem:[%s11 + $0x2a8] sm:$0xf]
      %v7345 = vld [vmem:[%s11 + $0x2ac] sm:$0xf]
      %v7346 = vld [vmem:[%s11 + $0x2b0] sm:$0xf]
      %v7347 = vld [vmem:[%s11 + $0x2b4] sm:$0xf]
      %v7348 = vld [vmem:[%s11 + $0x2b8] sm:$0xf]
      %v7349 = vld [vmem:[%s11 + $0x2bc] sm:$0xf]
      %v7350 = vld [vmem:[%s11 + $0x2c0] sm:$0xf]
      %v7351 = vld [vmem:[%s11 + $0x2c4] sm:$0xf]
      %v7352 = vld [vmem:[%s11 + $0x2c8] sm:$0xf]
      %v7353 = vld [vmem:[%s11 + $0x2cc] sm:$0xf]
      %v7354 = vld [vmem:[%s11 + $0x2d0] sm:$0xf]
      %v7355 = vld [vmem:[%s11 + $0x2d4] sm:$0xf]
      %v7356 = vld [vmem:[%s11 + $0x2d8] sm:$0xf]
      %v7357 = vld [vmem:[%s11 + $0x2dc] sm:$0xf]
      %v7358 = vld [vmem:[%s11 + $0x2e0] sm:$0xf]
      %v7359 = vld [vmem:[%s11 + $0x2e4] sm:$0xf]
      %v7360 = vld [vmem:[%s11 + $0x2e8] sm:$0xf]
      %v7361 = vld [vmem:[%s11 + $0x2ec] sm:$0xf]
      %v7362 = vld [vmem:[%s11 + $0x2f0] sm:$0xf]
      %v7363 = vld [vmem:[%s11 + $0x2f4] sm:$0xf]
      %v7364 = vld [vmem:[%s11 + $0x2f8] sm:$0xf]
      %v7365 = vld [vmem:[%s11 + $0x2fc] sm:$0xf]
      %v7366 = vld [vmem:[%s11 + $0x300] sm:$0xf]
      %v7367 = vld [vmem:[%s11 + $0x304] sm:$0xf]
      %v7368 = vld [vmem:[%s11 + $0x308] sm:$0xf]
      %v7369 = vld [vmem:[%s11 + $0x30c] sm:$0xf]
      %v7370 = vld [vmem:[%s11 + $0x310] sm:$0xf]
      %v7371 = vld [vmem:[%s11 + $0x314] sm:$0xf]
      %v7372 = vld [vmem:[%s11 + $0x318] sm:$0xf]
      %v7373 = vld [vmem:[%s11 + $0x31c] sm:$0xf]
      %v7374 = vld [vmem:[%s11 + $0x320] sm:$0xf]
      %v7375 = vld [vmem:[%s11 + $0x324] sm:$0xf]
      %v7376 = vld [vmem:[%s11 + $0x328] sm:$0xf]
      %v7377 = vld [vmem:[%s11 + $0x32c] sm:$0xf]
      %v7378 = vld [vmem:[%s11 + $0x330] sm:$0xf]
      %v7379 = vld [vmem:[%s11 + $0x334] sm:$0xf]
      %v7380 = vld [vmem:[%s11 + $0x338] sm:$0xf]
      %v7381 = vld [vmem:[%s11 + $0x33c] sm:$0xf]
      %v7382 = vld [vmem:[%s11 + $0x340] sm:$0xf]
      %v7383 = vld [vmem:[%s11 + $0x344] sm:$0xf]
      %v7384 = vld [vmem:[%s11 + $0x348] sm:$0xf]
      %v7385 = vld [vmem:[%s11 + $0x34c] sm:$0xf]
      %v7386 = vld [vmem:[%s11 + $0x350] sm:$0xf]
      %v7387 = vld [vmem:[%s11 + $0x354] sm:$0xf]
      %v7388 = vld [vmem:[%s11 + $0x358] sm:$0xf]
      %v7389 = vld [vmem:[%s11 + $0x35c] sm:$0xf]
      %v7390 = vld [vmem:[%s11 + $0x360] sm:$0xf]
      %v7391 = vld [vmem:[%s11 + $0x364] sm:$0xf]
      %v7392 = vld [vmem:[%s11 + $0x368] sm:$0xf]
      %v7393 = vld [vmem:[%s11 + $0x36c] sm:$0xf]
      %v7394 = vld [vmem:[%s11 + $0x370] sm:$0xf]
      %v7395 = vld [vmem:[%s11 + $0x374] sm:$0xf]
      %v7396 = vld [vmem:[%s11 + $0x378] sm:$0xf]
      %v7397 = vld [vmem:[%s11 + $0x37c] sm:$0xf]
      %v7398 = vld [vmem:[%s11 + $0x380] sm:$0xf]
      %v7399 = vld [vmem:[%s11 + $0x384] sm:$0xf]
      %v7400 = vld [vmem:[%s11 + $0x388] sm:$0xf]
      %v7401 = vld [vmem:[%s11 + $0x38c] sm:$0xf]
      %v7402 = vld [vmem:[%s11 + $0x390] sm:$0xf]
      %v7403 = vld [vmem:[%s11 + $0x394] sm:$0xf]
      %v7404 = vld [vmem:[%s11 + $0x398] sm:$0xf]
      %v7405 = vld [vmem:[%s11 + $0x39c] sm:$0xf]
      %v7406 = vld [vmem:[%s11 + $0x3a0] sm:$0xf]
      %v7407 = vld [vmem:[%s11 + $0x3a4] sm:$0xf]
      %v7408 = vld [vmem:[%s11 + $0x3a8] sm:$0xf]
      %v7409 = vld [vmem:[%s11 + $0x3ac] sm:$0xf]
      %v7410 = vld [vmem:[%s11 + $0x3b0] sm:$0xf]
      %v7411 = vld [vmem:[%s11 + $0x3b4] sm:$0xf]
      %v7412 = vld [vmem:[%s11 + $0x3b8] sm:$0xf]
      %v7413 = vld [vmem:[%s11 + $0x3bc] sm:$0xf]
      %v7414 = vld [vmem:[%s11 + $0x3c0] sm:$0xf]
      %v7415 = vld [vmem:[%s11 + $0x3c4] sm:$0xf]
      %v7416 = vld [vmem:[%s11 + $0x3c8] sm:$0xf]
      %v7417 = vld [vmem:[%s11 + $0x3cc] sm:$0xf]
      %v7418 = vld [vmem:[%s11 + $0x3d0] sm:$0xf]
      %v7419 = vld [vmem:[%s11 + $0x3d4] sm:$0xf]
      %v7420 = vld [vmem:[%s11 + $0x3d8] sm:$0xf]
      %v7421 = vld [vmem:[%s11 + $0x3dc] sm:$0xf]
      %v7422 = vld [vmem:[%s11 + $0x3e0] sm:$0xf]
      %v7423 = vld [vmem:[%s11 + $0x3e4] sm:$0xf]
      %v7424 = vld [vmem:[%s11 + $0x3e8] sm:$0xf]
      %v7425 = vld [vmem:[%s11 + $0x3ec] sm:$0xf]
      %v7426 = vld [vmem:[%s11 + $0x3f0] sm:$0xf]
      %v7427 = vld [vmem:[%s11 + $0x3f4] sm:$0xf]
      %v7428 = vld [vmem:[%s11 + $0x3f8] sm:$0xf]
      %v7429 = vld [vmem:[%s11 + $0x3fc] sm:$0xf]
      %v7686 = vunpack.c.l.b16 %v7174
      %v7687 = vunpack.c.l.b16 %v7175
      %v7688 = vunpack.c.l.b16 %v7176
      %v7689 = vunpack.c.l.b16 %v7177
      %v7690 = vunpack.c.l.b16 %v7178
      %v7691 = vunpack.c.l.b16 %v7179
      %v7692 = vunpack.c.l.b16 %v7180
      %v7693 = vunpack.c.l.b16 %v7181
      %v7694 = vunpack.c.l.b16 %v7182
      %v7695 = vunpack.c.l.b16 %v7183
      %v7696 = vunpack.c.l.b16 %v7184
      %v7697 = vunpack.c.l.b16 %v7185
      %v7698 = vunpack.c.l.b16 %v7186
      %v7699 = vunpack.c.l.b16 %v7187
      %v7700 = vunpack.c.l.b16 %v7188
      %v7701 = vunpack.c.l.b16 %v7189
      %v7702 = vunpack.c.l.b16 %v7190
      %v7703 = vunpack.c.l.b16 %v7191
      %v7704 = vunpack.c.l.b16 %v7192
      %v7705 = vunpack.c.l.b16 %v7193
      %v7706 = vunpack.c.l.b16 %v7194
      %v7707 = vunpack.c.l.b16 %v7195
      %v7708 = vunpack.c.l.b16 %v7196
      %v7709 = vunpack.c.l.b16 %v7197
      %v7710 = vunpack.c.l.b16 %v7198
      %v7711 = vunpack.c.l.b16 %v7199
      %v7712 = vunpack.c.l.b16 %v7200
      %v7713 = vunpack.c.l.b16 %v7201
      %v7714 = vunpack.c.l.b16 %v7202
      %v7715 = vunpack.c.l.b16 %v7203
      %v7716 = vunpack.c.l.b16 %v7204
      %v7717 = vunpack.c.l.b16 %v7205
      %v7718 = vunpack.c.l.b16 %v7206
      %v7719 = vunpack.c.l.b16 %v7207
      %v7720 = vunpack.c.l.b16 %v7208
      %v7721 = vunpack.c.l.b16 %v7209
      %v7722 = vunpack.c.l.b16 %v7210
      %v7723 = vunpack.c.l.b16 %v7211
      %v7724 = vunpack.c.l.b16 %v7212
      %v7725 = vunpack.c.l.b16 %v7213
      %v7726 = vunpack.c.l.b16 %v7214
      %v7727 = vunpack.c.l.b16 %v7215
      %v7728 = vunpack.c.l.b16 %v7216
      %v7729 = vunpack.c.l.b16 %v7217
      %v7730 = vunpack.c.l.b16 %v7218
      %v7731 = vunpack.c.l.b16 %v7219
      %v7732 = vunpack.c.l.b16 %v7220
      %v7733 = vunpack.c.l.b16 %v7221
      %v7734 = vunpack.c.l.b16 %v7222
      %v7735 = vunpack.c.l.b16 %v7223
      %v7736 = vunpack.c.l.b16 %v7224
      %v7737 = vunpack.c.l.b16 %v7225
      %v7738 = vunpack.c.l.b16 %v7226
      %v7739 = vunpack.c.l.b16 %v7227
      %v7740 = vunpack.c.l.b16 %v7228
      %v7741 = vunpack.c.l.b16 %v7229
      %v7742 = vunpack.c.l.b16 %v7230
      %v7743 = vunpack.c.l.b16 %v7231
      %v7744 = vunpack.c.l.b16 %v7232
      %v7745 = vunpack.c.l.b16 %v7233
      %v7746 = vunpack.c.l.b16 %v7234
      %v7747 = vunpack.c.l.b16 %v7235
      %v7748 = vunpack.c.l.b16 %v7236
      %v7749 = vunpack.c.l.b16 %v7237
      %v7750 = vunpack.c.l.b16 %v7238
      %v7751 = vunpack.c.l.b16 %v7239
      %v7752 = vunpack.c.l.b16 %v7240
      %v7753 = vunpack.c.l.b16 %v7241
      %v7754 = vunpack.c.l.b16 %v7242
      %v7755 = vunpack.c.l.b16 %v7243
      %v7756 = vunpack.c.l.b16 %v7244
      %v7757 = vunpack.c.l.b16 %v7245
      %v7758 = vunpack.c.l.b16 %v7246
      %v7759 = vunpack.c.l.b16 %v7247
      %v7760 = vunpack.c.l.b16 %v7248
      %v7761 = vunpack.c.l.b16 %v7249
      %v7762 = vunpack.c.l.b16 %v7250
      %v7763 = vunpack.c.l.b16 %v7251
      %v7764 = vunpack.c.l.b16 %v7252
      %v7765 = vunpack.c.l.b16 %v7253
      %v7766 = vunpack.c.l.b16 %v7254
      %v7767 = vunpack.c.l.b16 %v7255
      %v7768 = vunpack.c.l.b16 %v7256
      %v7769 = vunpack.c.l.b16 %v7257
      %v7770 = vunpack.c.l.b16 %v7258
      %v7771 = vunpack.c.l.b16 %v7259
      %v7772 = vunpack.c.l.b16 %v7260
      %v7773 = vunpack.c.l.b16 %v7261
      %v7774 = vunpack.c.l.b16 %v7262
      %v7775 = vunpack.c.l.b16 %v7263
      %v7776 = vunpack.c.l.b16 %v7264
      %v7777 = vunpack.c.l.b16 %v7265
      %v7778 = vunpack.c.l.b16 %v7266
      %v7779 = vunpack.c.l.b16 %v7267
      %v7780 = vunpack.c.l.b16 %v7268
      %v7781 = vunpack.c.l.b16 %v7269
      %v7782 = vunpack.c.l.b16 %v7270
      %v7783 = vunpack.c.l.b16 %v7271
      %v7784 = vunpack.c.l.b16 %v7272
      %v7785 = vunpack.c.l.b16 %v7273
      %v7786 = vunpack.c.l.b16 %v7274
      %v7787 = vunpack.c.l.b16 %v7275
      %v7788 = vunpack.c.l.b16 %v7276
      %v7789 = vunpack.c.l.b16 %v7277
      %v7790 = vunpack.c.l.b16 %v7278
      %v7791 = vunpack.c.l.b16 %v7279
      %v7792 = vunpack.c.l.b16 %v7280
      %v7793 = vunpack.c.l.b16 %v7281
      %v7794 = vunpack.c.l.b16 %v7282
      %v7795 = vunpack.c.l.b16 %v7283
      %v7796 = vunpack.c.l.b16 %v7284
      %v7797 = vunpack.c.l.b16 %v7285
      %v7798 = vunpack.c.l.b16 %v7286
      %v7799 = vunpack.c.l.b16 %v7287
      %v7800 = vunpack.c.l.b16 %v7288
      %v7801 = vunpack.c.l.b16 %v7289
      %v7802 = vunpack.c.l.b16 %v7290
      %v7803 = vunpack.c.l.b16 %v7291
      %v7804 = vunpack.c.l.b16 %v7292
      %v7805 = vunpack.c.l.b16 %v7293
      %v7806 = vunpack.c.l.b16 %v7294
      %v7807 = vunpack.c.l.b16 %v7295
      %v7808 = vunpack.c.l.b16 %v7296
      %v7809 = vunpack.c.l.b16 %v7297
      %v7810 = vunpack.c.l.b16 %v7298
      %v7811 = vunpack.c.l.b16 %v7299
      %v7812 = vunpack.c.l.b16 %v7300
      %v7813 = vunpack.c.l.b16 %v7301
      %v7814 = vunpack.c.l.b16 %v7302
      %v7815 = vunpack.c.l.b16 %v7303
      %v7816 = vunpack.c.l.b16 %v7304
      %v7817 = vunpack.c.l.b16 %v7305
      %v7818 = vunpack.c.l.b16 %v7306
      %v7819 = vunpack.c.l.b16 %v7307
      %v7820 = vunpack.c.l.b16 %v7308
      %v7821 = vunpack.c.l.b16 %v7309
      %v7822 = vunpack.c.l.b16 %v7310
      %v7823 = vunpack.c.l.b16 %v7311
      %v7824 = vunpack.c.l.b16 %v7312
      %v7825 = vunpack.c.l.b16 %v7313
      %v7826 = vunpack.c.l.b16 %v7314
      %v7827 = vunpack.c.l.b16 %v7315
      %v7828 = vunpack.c.l.b16 %v7316
      %v7829 = vunpack.c.l.b16 %v7317
      %v7830 = vunpack.c.l.b16 %v7318
      %v7831 = vunpack.c.l.b16 %v7319
      %v7832 = vunpack.c.l.b16 %v7320
      %v7833 = vunpack.c.l.b16 %v7321
      %v7834 = vunpack.c.l.b16 %v7322
      %v7835 = vunpack.c.l.b16 %v7323
      %v7836 = vunpack.c.l.b16 %v7324
      %v7837 = vunpack.c.l.b16 %v7325
      %v7838 = vunpack.c.l.b16 %v7326
      %v7839 = vunpack.c.l.b16 %v7327
      %v7840 = vunpack.c.l.b16 %v7328
      %v7841 = vunpack.c.l.b16 %v7329
      %v7842 = vunpack.c.l.b16 %v7330
      %v7843 = vunpack.c.l.b16 %v7331
      %v7844 = vunpack.c.l.b16 %v7332
      %v7845 = vunpack.c.l.b16 %v7333
      %v7846 = vunpack.c.l.b16 %v7334
      %v7847 = vunpack.c.l.b16 %v7335
      %v7848 = vunpack.c.l.b16 %v7336
      %v7849 = vunpack.c.l.b16 %v7337
      %v7850 = vunpack.c.l.b16 %v7338
      %v7851 = vunpack.c.l.b16 %v7339
      %v7852 = vunpack.c.l.b16 %v7340
      %v7853 = vunpack.c.l.b16 %v7341
      %v7854 = vunpack.c.l.b16 %v7342
      %v7855 = vunpack.c.l.b16 %v7343
      %v7856 = vunpack.c.l.b16 %v7344
      %v7857 = vunpack.c.l.b16 %v7345
      %v7858 = vunpack.c.l.b16 %v7346
      %v7859 = vunpack.c.l.b16 %v7347
      %v7860 = vunpack.c.l.b16 %v7348
      %v7861 = vunpack.c.l.b16 %v7349
      %v7862 = vunpack.c.l.b16 %v7350
      %v7863 = vunpack.c.l.b16 %v7351
      %v7864 = vunpack.c.l.b16 %v7352
      %v7865 = vunpack.c.l.b16 %v7353
      %v7866 = vunpack.c.l.b16 %v7354
      %v7867 = vunpack.c.l.b16 %v7355
      %v7868 = vunpack.c.l.b16 %v7356
      %v7869 = vunpack.c.l.b16 %v7357
      %v7870 = vunpack.c.l.b16 %v7358
      %v7871 = vunpack.c.l.b16 %v7359
      %v7872 = vunpack.c.l.b16 %v7360
      %v7873 = vunpack.c.l.b16 %v7361
      %v7874 = vunpack.c.l.b16 %v7362
      %v7875 = vunpack.c.l.b16 %v7363
      %v7876 = vunpack.c.l.b16 %v7364
      %v7877 = vunpack.c.l.b16 %v7365
      %v7878 = vunpack.c.l.b16 %v7366
      %v7879 = vunpack.c.l.b16 %v7367
      %v7880 = vunpack.c.l.b16 %v7368
      %v7881 = vunpack.c.l.b16 %v7369
      %v7882 = vunpack.c.l.b16 %v7370
      %v7883 = vunpack.c.l.b16 %v7371
      %v7884 = vunpack.c.l.b16 %v7372
      %v7885 = vunpack.c.l.b16 %v7373
      %v7886 = vunpack.c.l.b16 %v7374
      %v7887 = vunpack.c.l.b16 %v7375
      %v7888 = vunpack.c.l.b16 %v7376
      %v7889 = vunpack.c.l.b16 %v7377
      %v7890 = vunpack.c.l.b16 %v7378
      %v7891 = vunpack.c.l.b16 %v7379
      %v7892 = vunpack.c.l.b16 %v7380
      %v7893 = vunpack.c.l.b16 %v7381
      %v7894 = vunpack.c.l.b16 %v7382
      %v7895 = vunpack.c.l.b16 %v7383
      %v7896 = vunpack.c.l.b16 %v7384
      %v7897 = vunpack.c.l.b16 %v7385
      %v7898 = vunpack.c.l.b16 %v7386
      %v7899 = vunpack.c.l.b16 %v7387
      %v7900 = vunpack.c.l.b16 %v7388
      %v7901 = vunpack.c.l.b16 %v7389
      %v7902 = vunpack.c.l.b16 %v7390
      %v7903 = vunpack.c.l.b16 %v7391
      %v7904 = vunpack.c.l.b16 %v7392
      %v7905 = vunpack.c.l.b16 %v7393
      %v7906 = vunpack.c.l.b16 %v7394
      %v7907 = vunpack.c.l.b16 %v7395
      %v7908 = vunpack.c.l.b16 %v7396
      %v7909 = vunpack.c.l.b16 %v7397
      %v7910 = vunpack.c.l.b16 %v7398
      %v7911 = vunpack.c.l.b16 %v7399
      %v7912 = vunpack.c.l.b16 %v7400
      %v7913 = vunpack.c.l.b16 %v7401
      %v7914 = vunpack.c.l.b16 %v7402
      %v7915 = vunpack.c.l.b16 %v7403
      %v7916 = vunpack.c.l.b16 %v7404
      %v7917 = vunpack.c.l.b16 %v7405
      %v7918 = vunpack.c.l.b16 %v7406
      %v7919 = vunpack.c.l.b16 %v7407
      %v7920 = vunpack.c.l.b16 %v7408
      %v7921 = vunpack.c.l.b16 %v7409
      %v7922 = vunpack.c.l.b16 %v7410
      %v7923 = vunpack.c.l.b16 %v7411
      %v7924 = vunpack.c.l.b16 %v7412
      %v7925 = vunpack.c.l.b16 %v7413
      %v7926 = vunpack.c.l.b16 %v7414
      %v7927 = vunpack.c.l.b16 %v7415
      %v7928 = vunpack.c.l.b16 %v7416
      %v7929 = vunpack.c.l.b16 %v7417
      %v7930 = vunpack.c.l.b16 %v7418
      %v7931 = vunpack.c.l.b16 %v7419
      %v7932 = vunpack.c.l.b16 %v7420
      %v7933 = vunpack.c.l.b16 %v7421
      %v7934 = vunpack.c.l.b16 %v7422
      %v7935 = vunpack.c.l.b16 %v7423
      %v7936 = vunpack.c.l.b16 %v7424
      %v7937 = vunpack.c.l.b16 %v7425
      %v7938 = vunpack.c.l.b16 %v7426
      %v7939 = vunpack.c.l.b16 %v7427
      %v7940 = vunpack.c.l.b16 %v7428
      %v7941 = vunpack.c.l.b16 %v7429
      %v7942 = vpack.c.b16 %v7687, %v7686
      %v7943 = vpack.c.b16 %v7689, %v7688
      %v7944 = vpack.c.b16 %v7691, %v7690
      %v7945 = vpack.c.b16 %v7693, %v7692
      %v7946 = vpack.c.b16 %v7695, %v7694
      %v7947 = vpack.c.b16 %v7697, %v7696
      %v7948 = vpack.c.b16 %v7699, %v7698
      %v7949 = vpack.c.b16 %v7701, %v7700
      %v7950 = vpack.c.b16 %v7703, %v7702
      %v7951 = vpack.c.b16 %v7705, %v7704
      %v7952 = vpack.c.b16 %v7707, %v7706
      %v7953 = vpack.c.b16 %v7709, %v7708
      %v7954 = vpack.c.b16 %v7711, %v7710
      %v7955 = vpack.c.b16 %v7713, %v7712
      %v7956 = vpack.c.b16 %v7715, %v7714
      %v7957 = vpack.c.b16 %v7717, %v7716
      %v7958 = vpack.c.b16 %v7719, %v7718
      %v7959 = vpack.c.b16 %v7721, %v7720
      %v7960 = vpack.c.b16 %v7723, %v7722
      %v7961 = vpack.c.b16 %v7725, %v7724
      %v7962 = vpack.c.b16 %v7727, %v7726
      %v7963 = vpack.c.b16 %v7729, %v7728
      %v7964 = vpack.c.b16 %v7731, %v7730
      %v7965 = vpack.c.b16 %v7733, %v7732
      %v7966 = vpack.c.b16 %v7735, %v7734
      %v7967 = vpack.c.b16 %v7737, %v7736
      %v7968 = vpack.c.b16 %v7739, %v7738
      %v7969 = vpack.c.b16 %v7741, %v7740
      %v7970 = vpack.c.b16 %v7743, %v7742
      %v7971 = vpack.c.b16 %v7745, %v7744
      %v7972 = vpack.c.b16 %v7747, %v7746
      %v7973 = vpack.c.b16 %v7749, %v7748
      %v7974 = vpack.c.b16 %v7751, %v7750
      %v7975 = vpack.c.b16 %v7753, %v7752
      %v7976 = vpack.c.b16 %v7755, %v7754
      %v7977 = vpack.c.b16 %v7757, %v7756
      %v7978 = vpack.c.b16 %v7759, %v7758
      %v7979 = vpack.c.b16 %v7761, %v7760
      %v7980 = vpack.c.b16 %v7763, %v7762
      %v7981 = vpack.c.b16 %v7765, %v7764
      %v7982 = vpack.c.b16 %v7767, %v7766
      %v7983 = vpack.c.b16 %v7769, %v7768
      %v7984 = vpack.c.b16 %v7771, %v7770
      %v7985 = vpack.c.b16 %v7773, %v7772
      %v7986 = vpack.c.b16 %v7775, %v7774
      %v7987 = vpack.c.b16 %v7777, %v7776
      %v7988 = vpack.c.b16 %v7779, %v7778
      %v7989 = vpack.c.b16 %v7781, %v7780
      %v7990 = vpack.c.b16 %v7783, %v7782
      %v7991 = vpack.c.b16 %v7785, %v7784
      %v7992 = vpack.c.b16 %v7787, %v7786
      %v7993 = vpack.c.b16 %v7789, %v7788
      %v7994 = vpack.c.b16 %v7791, %v7790
      %v7995 = vpack.c.b16 %v7793, %v7792
      %v7996 = vpack.c.b16 %v7795, %v7794
      %v7997 = vpack.c.b16 %v7797, %v7796
      %v7998 = vpack.c.b16 %v7799, %v7798
      %v7999 = vpack.c.b16 %v7801, %v7800
      %v8000 = vpack.c.b16 %v7803, %v7802
      %v8001 = vpack.c.b16 %v7805, %v7804
      %v8002 = vpack.c.b16 %v7807, %v7806
      %v8003 = vpack.c.b16 %v7809, %v7808
      %v8004 = vpack.c.b16 %v7811, %v7810
      %v8005 = vpack.c.b16 %v7813, %v7812
      %v8006 = vpack.c.b16 %v7815, %v7814
      %v8007 = vpack.c.b16 %v7817, %v7816
      %v8008 = vpack.c.b16 %v7819, %v7818
      %v8009 = vpack.c.b16 %v7821, %v7820
      %v8010 = vpack.c.b16 %v7823, %v7822
      %v8011 = vpack.c.b16 %v7825, %v7824
      %v8012 = vpack.c.b16 %v7827, %v7826
      %v8013 = vpack.c.b16 %v7829, %v7828
      %v8014 = vpack.c.b16 %v7831, %v7830
      %v8015 = vpack.c.b16 %v7833, %v7832
      %v8016 = vpack.c.b16 %v7835, %v7834
      %v8017 = vpack.c.b16 %v7837, %v7836
      %v8018 = vpack.c.b16 %v7839, %v7838
      %v8019 = vpack.c.b16 %v7841, %v7840
      %v8020 = vpack.c.b16 %v7843, %v7842
      %v8021 = vpack.c.b16 %v7845, %v7844
      %v8022 = vpack.c.b16 %v7847, %v7846
      %v8023 = vpack.c.b16 %v7849, %v7848
      %v8024 = vpack.c.b16 %v7851, %v7850
      %v8025 = vpack.c.b16 %v7853, %v7852
      %v8026 = vpack.c.b16 %v7855, %v7854
      %v8027 = vpack.c.b16 %v7857, %v7856
      %v8028 = vpack.c.b16 %v7859, %v7858
      %v8029 = vpack.c.b16 %v7861, %v7860
      %v8030 = vpack.c.b16 %v7863, %v7862
      %v8031 = vpack.c.b16 %v7865, %v7864
      %v8032 = vpack.c.b16 %v7867, %v7866
      %v8033 = vpack.c.b16 %v7869, %v7868
      %v8034 = vpack.c.b16 %v7871, %v7870
      %v8035 = vpack.c.b16 %v7873, %v7872
      %v8036 = vpack.c.b16 %v7875, %v7874
      %v8037 = vpack.c.b16 %v7877, %v7876
      %v8038 = vpack.c.b16 %v7879, %v7878
      %v8039 = vpack.c.b16 %v7881, %v7880
      %v8040 = vpack.c.b16 %v7883, %v7882
      %v8041 = vpack.c.b16 %v7885, %v7884
      %v8042 = vpack.c.b16 %v7887, %v7886
      %v8043 = vpack.c.b16 %v7889, %v7888
      %v8044 = vpack.c.b16 %v7891, %v7890
      %v8045 = vpack.c.b16 %v7893, %v7892
      %v8046 = vpack.c.b16 %v7895, %v7894
      %v8047 = vpack.c.b16 %v7897, %v7896
      %v8048 = vpack.c.b16 %v7899, %v7898
      %v8049 = vpack.c.b16 %v7901, %v7900
      %v8050 = vpack.c.b16 %v7903, %v7902
      %v8051 = vpack.c.b16 %v7905, %v7904
      %v8052 = vpack.c.b16 %v7907, %v7906
      %v8053 = vpack.c.b16 %v7909, %v7908
      %v8054 = vpack.c.b16 %v7911, %v7910
      %v8055 = vpack.c.b16 %v7913, %v7912
      %v8056 = vpack.c.b16 %v7915, %v7914
      %v8057 = vpack.c.b16 %v7917, %v7916
      %v8058 = vpack.c.b16 %v7919, %v7918
      %v8059 = vpack.c.b16 %v7921, %v7920
      %v8060 = vpack.c.b16 %v7923, %v7922
      %v8061 = vpack.c.b16 %v7925, %v7924
      %v8062 = vpack.c.b16 %v7927, %v7926
      %v8063 = vpack.c.b16 %v7929, %v7928
      %v8064 = vpack.c.b16 %v7931, %v7930
      %v8065 = vpack.c.b16 %v7933, %v7932
      %v8066 = vpack.c.b16 %v7935, %v7934
      %v8067 = vpack.c.b16 %v7937, %v7936
      %v8068 = vpack.c.b16 %v7939, %v7938
      %v8069 = vpack.c.b16 %v7941, %v7940
      %8198 = vmatpush.bf16.msra.mxu0 %v7949
      %8199 = vmatpush.bf16.msra.mxu0 %v7948
      %8200 = vmatpush.bf16.msra.mxu0 %v7947
      %8201 = vmatpush.bf16.msra.mxu0 %v7946
      %8202 = vmatpush.bf16.msra.mxu0 %v7945
      %8203 = vmatpush.bf16.msra.mxu0 %v7944
      %8204 = vmatpush.bf16.msra.mxu0 %v7943
      %8205 = vmatpush.bf16.msra.mxu0 %v7942
      %8206 = vmatmul.bf16.gmra.mxu0 %v7158
      %v8207 = vpop.f32.mrf.mxu0
      %v8208 = vadd.f32 0.0, %v8207
      %v8209 = vpop.f32.mrf.mxu0
      %8210 = vdwg.mxu0
      %8211 = vmatpush.bf16.msra.mxu0 %v7957
      %8212 = vmatpush.bf16.msra.mxu0 %v7956
      %8213 = vmatpush.bf16.msra.mxu0 %v7955
      %8214 = vmatpush.bf16.msra.mxu0 %v7954
      %8215 = vmatpush.bf16.msra.mxu0 %v7953
      %8216 = vmatpush.bf16.msra.mxu0 %v7952
      %8217 = vmatpush.bf16.msra.mxu0 %v7951
      %8218 = vmatpush.bf16.msra.mxu0 %v7950
      %8219 = vmatmul.bf16.gmra.mxu0 %v7159
      %v8220 = vpop.f32.mrf.mxu0
      %v8221 = vadd.f32 %v8208, %v8220
      %v8222 = vpop.f32.mrf.mxu0
      %8223 = vdwg.mxu0
      %8224 = vmatpush.bf16.msra.mxu0 %v7965
      %8225 = vmatpush.bf16.msra.mxu0 %v7964
      %8226 = vmatpush.bf16.msra.mxu0 %v7963
      %8227 = vmatpush.bf16.msra.mxu0 %v7962
      %8228 = vmatpush.bf16.msra.mxu0 %v7961
      %8229 = vmatpush.bf16.msra.mxu0 %v7960
      %8230 = vmatpush.bf16.msra.mxu0 %v7959
      %8231 = vmatpush.bf16.msra.mxu0 %v7958
      %8232 = vmatmul.bf16.gmra.mxu0 %v7160
      %v8233 = vpop.f32.mrf.mxu0
      %v8234 = vadd.f32 %v8221, %v8233
      %v8235 = vpop.f32.mrf.mxu0
      %8236 = vdwg.mxu0
      %8237 = vmatpush.bf16.msra.mxu0 %v7973
      %8238 = vmatpush.bf16.msra.mxu0 %v7972
      %8239 = vmatpush.bf16.msra.mxu0 %v7971
      %8240 = vmatpush.bf16.msra.mxu0 %v7970
      %8241 = vmatpush.bf16.msra.mxu0 %v7969
      %8242 = vmatpush.bf16.msra.mxu0 %v7968
      %8243 = vmatpush.bf16.msra.mxu0 %v7967
      %8244 = vmatpush.bf16.msra.mxu0 %v7966
      %8245 = vmatmul.bf16.gmra.mxu0 %v7161
      %v8246 = vpop.f32.mrf.mxu0
      %v8247 = vadd.f32 %v8234, %v8246
      %v8248 = vpop.f32.mrf.mxu0
      %8249 = vdwg.mxu0
      %8250 = vmatpush.bf16.msra.mxu0 %v7981
      %8251 = vmatpush.bf16.msra.mxu0 %v7980
      %8252 = vmatpush.bf16.msra.mxu0 %v7979
      %8253 = vmatpush.bf16.msra.mxu0 %v7978
      %8254 = vmatpush.bf16.msra.mxu0 %v7977
      %8255 = vmatpush.bf16.msra.mxu0 %v7976
      %8256 = vmatpush.bf16.msra.mxu0 %v7975
      %8257 = vmatpush.bf16.msra.mxu0 %v7974
      %8258 = vmatmul.bf16.gmra.mxu0 %v7162
      %v8259 = vpop.f32.mrf.mxu0
      %v8260 = vadd.f32 %v8247, %v8259
      %v8261 = vpop.f32.mrf.mxu0
      %8262 = vdwg.mxu0
      %8263 = vmatpush.bf16.msra.mxu0 %v7989
      %8264 = vmatpush.bf16.msra.mxu0 %v7988
      %8265 = vmatpush.bf16.msra.mxu0 %v7987
      %8266 = vmatpush.bf16.msra.mxu0 %v7986
      %8267 = vmatpush.bf16.msra.mxu0 %v7985
      %8268 = vmatpush.bf16.msra.mxu0 %v7984
      %8269 = vmatpush.bf16.msra.mxu0 %v7983
      %8270 = vmatpush.bf16.msra.mxu0 %v7982
      %8271 = vmatmul.bf16.gmra.mxu0 %v7163
      %v8272 = vpop.f32.mrf.mxu0
      %v8273 = vadd.f32 %v8260, %v8272
      %v8274 = vpop.f32.mrf.mxu0
      %8275 = vdwg.mxu0
      %8276 = vmatpush.bf16.msra.mxu0 %v7997
      %8277 = vmatpush.bf16.msra.mxu0 %v7996
      %8278 = vmatpush.bf16.msra.mxu0 %v7995
      %8279 = vmatpush.bf16.msra.mxu0 %v7994
      %8280 = vmatpush.bf16.msra.mxu0 %v7993
      %8281 = vmatpush.bf16.msra.mxu0 %v7992
      %8282 = vmatpush.bf16.msra.mxu0 %v7991
      %8283 = vmatpush.bf16.msra.mxu0 %v7990
      %8284 = vmatmul.bf16.gmra.mxu0 %v7164
      %v8285 = vpop.f32.mrf.mxu0
      %v8286 = vadd.f32 %v8273, %v8285
      %v8287 = vpop.f32.mrf.mxu0
      %8288 = vdwg.mxu0
      %8289 = vmatpush.bf16.msra.mxu0 %v8005
      %8290 = vmatpush.bf16.msra.mxu0 %v8004
      %8291 = vmatpush.bf16.msra.mxu0 %v8003
      %8292 = vmatpush.bf16.msra.mxu0 %v8002
      %8293 = vmatpush.bf16.msra.mxu0 %v8001
      %8294 = vmatpush.bf16.msra.mxu0 %v8000
      %8295 = vmatpush.bf16.msra.mxu0 %v7999
      %8296 = vmatpush.bf16.msra.mxu0 %v7998
      %8297 = vmatmul.bf16.gmra.mxu0 %v7165
      %v8298 = vpop.f32.mrf.mxu0
      %v8299 = vadd.f32 %v8286, %v8298
      %v8300 = vpop.f32.mrf.mxu0
      %8301 = vdwg.mxu0
      %8302 = vmatpush.bf16.msra.mxu0 %v8013
      %8303 = vmatpush.bf16.msra.mxu0 %v8012
      %8304 = vmatpush.bf16.msra.mxu0 %v8011
      %8305 = vmatpush.bf16.msra.mxu0 %v8010
      %8306 = vmatpush.bf16.msra.mxu0 %v8009
      %8307 = vmatpush.bf16.msra.mxu0 %v8008
      %8308 = vmatpush.bf16.msra.mxu0 %v8007
      %8309 = vmatpush.bf16.msra.mxu0 %v8006
      %8310 = vmatmul.bf16.gmra.mxu0 %v7166
      %v8311 = vpop.f32.mrf.mxu0
      %v8312 = vadd.f32 %v8299, %v8311
      %v8313 = vpop.f32.mrf.mxu0
      %8314 = vdwg.mxu0
      %8315 = vmatpush.bf16.msra.mxu0 %v8021
      %8316 = vmatpush.bf16.msra.mxu0 %v8020
      %8317 = vmatpush.bf16.msra.mxu0 %v8019
      %8318 = vmatpush.bf16.msra.mxu0 %v8018
      %8319 = vmatpush.bf16.msra.mxu0 %v8017
      %8320 = vmatpush.bf16.msra.mxu0 %v8016
      %8321 = vmatpush.bf16.msra.mxu0 %v8015
      %8322 = vmatpush.bf16.msra.mxu0 %v8014
      %8323 = vmatmul.bf16.gmra.mxu0 %v7167
      %v8324 = vpop.f32.mrf.mxu0
      %v8325 = vadd.f32 %v8312, %v8324
      %v8326 = vpop.f32.mrf.mxu0
      %8327 = vdwg.mxu0
      %8328 = vmatpush.bf16.msra.mxu0 %v8029
      %8329 = vmatpush.bf16.msra.mxu0 %v8028
      %8330 = vmatpush.bf16.msra.mxu0 %v8027
      %8331 = vmatpush.bf16.msra.mxu0 %v8026
      %8332 = vmatpush.bf16.msra.mxu0 %v8025
      %8333 = vmatpush.bf16.msra.mxu0 %v8024
      %8334 = vmatpush.bf16.msra.mxu0 %v8023
      %8335 = vmatpush.bf16.msra.mxu0 %v8022
      %8336 = vmatmul.bf16.gmra.mxu0 %v7168
      %v8337 = vpop.f32.mrf.mxu0
      %v8338 = vadd.f32 %v8325, %v8337
      %v8339 = vpop.f32.mrf.mxu0
      %8340 = vdwg.mxu0
      %8341 = vmatpush.bf16.msra.mxu0 %v8037
      %8342 = vmatpush.bf16.msra.mxu0 %v8036
      %8343 = vmatpush.bf16.msra.mxu0 %v8035
      %8344 = vmatpush.bf16.msra.mxu0 %v8034
      %8345 = vmatpush.bf16.msra.mxu0 %v8033
      %8346 = vmatpush.bf16.msra.mxu0 %v8032
      %8347 = vmatpush.bf16.msra.mxu0 %v8031
      %8348 = vmatpush.bf16.msra.mxu0 %v8030
      %8349 = vmatmul.bf16.gmra.mxu0 %v7169
      %v8350 = vpop.f32.mrf.mxu0
      %v8351 = vadd.f32 %v8338, %v8350
      %v8352 = vpop.f32.mrf.mxu0
      %8353 = vdwg.mxu0
      %8354 = vmatpush.bf16.msra.mxu0 %v8045
      %8355 = vmatpush.bf16.msra.mxu0 %v8044
      %8356 = vmatpush.bf16.msra.mxu0 %v8043
      %8357 = vmatpush.bf16.msra.mxu0 %v8042
      %8358 = vmatpush.bf16.msra.mxu0 %v8041
      %8359 = vmatpush.bf16.msra.mxu0 %v8040
      %8360 = vmatpush.bf16.msra.mxu0 %v8039
      %8361 = vmatpush.bf16.msra.mxu0 %v8038
      %8362 = vmatmul.bf16.gmra.mxu0 %v7170
      %v8363 = vpop.f32.mrf.mxu0
      %v8364 = vadd.f32 %v8351, %v8363
      %v8365 = vpop.f32.mrf.mxu0
      %8366 = vdwg.mxu0
      %8367 = vmatpush.bf16.msra.mxu0 %v8053
      %8368 = vmatpush.bf16.msra.mxu0 %v8052
      %8369 = vmatpush.bf16.msra.mxu0 %v8051
      %8370 = vmatpush.bf16.msra.mxu0 %v8050
      %8371 = vmatpush.bf16.msra.mxu0 %v8049
      %8372 = vmatpush.bf16.msra.mxu0 %v8048
      %8373 = vmatpush.bf16.msra.mxu0 %v8047
      %8374 = vmatpush.bf16.msra.mxu0 %v8046
      %8375 = vmatmul.bf16.gmra.mxu0 %v7171
      %v8376 = vpop.f32.mrf.mxu0
      %v8377 = vadd.f32 %v8364, %v8376
      %v8378 = vpop.f32.mrf.mxu0
      %8379 = vdwg.mxu0
      %8380 = vmatpush.bf16.msra.mxu0 %v8061
      %8381 = vmatpush.bf16.msra.mxu0 %v8060
      %8382 = vmatpush.bf16.msra.mxu0 %v8059
      %8383 = vmatpush.bf16.msra.mxu0 %v8058
      %8384 = vmatpush.bf16.msra.mxu0 %v8057
      %8385 = vmatpush.bf16.msra.mxu0 %v8056
      %8386 = vmatpush.bf16.msra.mxu0 %v8055
      %8387 = vmatpush.bf16.msra.mxu0 %v8054
      %8388 = vmatmul.bf16.gmra.mxu0 %v7172
      %v8389 = vpop.f32.mrf.mxu0
      %v8390 = vadd.f32 %v8377, %v8389
      %v8391 = vpop.f32.mrf.mxu0
      %8392 = vdwg.mxu0
      %8393 = vmatpush.bf16.msra.mxu0 %v8069
      %8394 = vmatpush.bf16.msra.mxu0 %v8068
      %8395 = vmatpush.bf16.msra.mxu0 %v8067
      %8396 = vmatpush.bf16.msra.mxu0 %v8066
      %8397 = vmatpush.bf16.msra.mxu0 %v8065
      %8398 = vmatpush.bf16.msra.mxu0 %v8064
      %8399 = vmatpush.bf16.msra.mxu0 %v8063
      %8400 = vmatpush.bf16.msra.mxu0 %v8062
      %8401 = vmatmul.bf16.gmra.mxu0 %v7173
      %v8402 = vpop.f32.mrf.mxu0
      %v8403 = vadd.f32 %v8390, %v8402
      %v8404 = vpop.f32.mrf.mxu0
      %8405 = vdwg.mxu0
      %8406 = vst [vmem:[%s409] sm:$0x1] %v8403
      %p8407 = scmp.lt.s32.totalorder %s23, 1
      %s8408 = scalar_select %p8407, %s23, 1
      %s8409 = scalar_lea.vmem %s12, %s8408
      // Predicated region
      $region69: #{encoder_forward.1} parent=67 // pred_check
        %p8410 = pneg %p298
      $region70: #{encoder_forward.1} parent=67 // pred_check_branch
        %8412 = sbr.rel (%p8410) target = $region72
      $region71: #{encoder_forward.1} parent=67 // pred_region
        _
      $region72: #{encoder_forward.1} parent=67 // pred_fallthru
        _
    $region68: #{encoder_forward.1} parent=5 // pred_fallthru
      _
    %p8413 = scmp.le.s32.totalorder 2, %s18
    // Predicated region
    $region73: #{encoder_forward.1} parent=5 // pred_check
      %p8414 = pneg %p8413
    $region74: #{encoder_forward.1} parent=5 // pred_check_branch
      %8416 = sbr.rel (%p8414) target = $region76
    $region75: #{encoder_forward.1} parent=5 // pred_region
      %s8417 = ssub.s32 %s18, 2
      // Predicated region
      $region77: #{encoder_forward.1} parent=75 // pred_check
        %p8418 = pneg %p304
      $region78: #{encoder_forward.1} parent=75 // pred_check_branch
        %8420 = sbr.rel (%p8418) target = $region80
      $region79: #{encoder_forward.1} parent=75 // pred_region
        %p8421 = scmp.lt.s32.totalorder %s24, 1
        %s8422 = scalar_select %p8421, %s24, 1
        %s8423 = scalar_lea.vmem %s12, %s8422
      $region80: #{encoder_forward.1} parent=75 // pred_fallthru
        _
    $region76: #{encoder_forward.1} parent=5 // pred_fallthru
      _
  $region6: #{encoder_forward.1} parent=0 // loop_footer
    %s22 = sadd.s32 1, %s18
  $region7: #{encoder_forward.1} parent=0 // loop_footer_branch
    %17 = sbr.rel target = $region3
  $region8: #{encoder_forward.1} parent=0 // loop_exit
    _

</llo_original>
